<compile_context>
chip_gen: v7x
topology: tpu7x:2x2x1
jax: 0.10.0
libtpu: 0.0.40
codegen_flags: <defaults>
</compile_context>

<pallas_src>
import functools

import jax
import jax.numpy as jnp
from jax import lax
from jax.experimental import pallas as pl
from jax.experimental.pallas import tpu as pltpu


def _mdesc_aug_kernel(ranks_smem, q_ref, x_ref, xdba_ref, res_ref, *scratch,
                      M, M_pad, n_sel, beta, mxu_dtype, precision, gather):
    # ranks_smem: (nq*M,) int32 in SMEM (scalar prefetch, row-major per query)
    # q_ref     : (1, 1, D)   query descriptor
    # x_ref     : gather=True  -> full (N, D) db matrix left in HBM (pl.ANY)
    #             gather=False -> (1, M_pad, D) pre-gathered tile in VMEM
    if gather:
        x1_buf, dma_sem = scratch                      # (M_pad, D) VMEM, DMA sem
        qid = pl.program_id(0)
        sem = dma_sem.at[0]
        base = qid * M

        # ---- gather: one row DMA per top-M candidate, issue all then drain ----
        def _issue(i, carry):
            row = ranks_smem[base + i]
            pltpu.make_async_copy(x_ref.at[row], x1_buf.at[i], sem).start()
            return carry

        lax.fori_loop(0, M, _issue, 0)

        def _drain(i, carry):
            # same-shaped dummy descriptor; each wait consumes one row's signal
            pltpu.make_async_copy(x_ref.at[0], x1_buf.at[0], sem).wait()
            return carry

        lax.fori_loop(0, M, _drain, 0)

        x1 = x1_buf[...]                               # (M_pad, D)
        if M_pad > M:
            # Rows >= M were never DMA'd: uninitialized scratch (NaN / stale).
            # Zero them so 0*NaN can never leak into real rows via the matmuls.
            row_id = lax.broadcasted_iota(jnp.int32, x1.shape, 0)
            x1 = jnp.where(row_id < M, x1, jnp.zeros((), x1.dtype))
    else:
        x1 = x_ref[0]                                  # (M_pad, D), all real rows

    x1_m = x1.astype(mxu_dtype)                        # MXU operands (bf16 fast / f32 precise)

    # (1) pairwise similarities, contracting the last dim of both operands.
    s = lax.dot_general(x1_m, x1_m,
                        dimension_numbers=(((1,), (1,)), ((), ())),
                        precision=precision,
                        preferred_element_type=jnp.float32)         # (M_pad, M_pad)

    # Mask padded columns so they are never selected as neighbours.
    if M_pad > M:
        col = lax.broadcasted_iota(jnp.int32, (M_pad, M_pad), 1)
        s = jnp.where(col < M, s, -1e30)

    # (2) top-n_sel selection: one XLU reduction + a handful of VPU ops per pass.
    #     First pass peeled (weight 1.0), remaining passes weighted beta * sim.
    hit = s == jnp.max(s, axis=-1, keepdims=True)
    w = hit.astype(jnp.float32)                        # top-1 weight = 1.0
    work = jnp.where(hit, -1e30, s)

    def _pass(_, carry):
        work, w = carry
        mx = jnp.max(work, axis=-1, keepdims=True)
        hit = work == mx
        valid = mx > -1e29                             # never true once a row is exhausted
        w = w + jnp.where(hit & valid, beta * mx, 0.0)
        work = jnp.where(hit, -1e30, work)
        return work, w

    _, w = lax.fori_loop(1, n_sel, _pass, (work, w))

    # (3) weighted DBA average: (W @ X1) * 1/rowsum(W)  (reciprocal-multiply).
    denom = jnp.sum(w, axis=-1, keepdims=True)                      # (M_pad, 1)
    num = lax.dot_general(w.astype(mxu_dtype), x1_m,
                          dimension_numbers=(((1,), (0,)), ((), ())),
                          precision=precision,
                          preferred_element_type=jnp.float32)       # (M_pad, D)
    x_dba = num * (1.0 / denom)
    xdba_ref[0] = x_dba[:M].astype(xdba_ref.dtype)                  # only the real rows

    # (4) query re-scoring on the MXU, lane-dense (1, M_pad) result.
    q = q_ref[0].astype(mxu_dtype)                                  # (1, D)
    res = lax.dot_general(q, x_dba.astype(mxu_dtype),
                          dimension_numbers=(((1,), (1,)), ((), ())),
                          precision=precision,
                          preferred_element_type=jnp.float32)       # (1, M_pad)
    res_ref[0] = res.astype(res_ref.dtype)


def mdesc_aug(X, Q, ranks, *, M=400, K=9, beta=0.15,
              precise=False, gather_in_kernel=True):
    """JAX/Pallas equivalent of MDescAug.forward.

    Returns (rerank_dba_final, res_top1000_dba, ranks_trans_1000_pre, x_dba).
    rerank_dba_final is returned stacked as an [nq, M] array (the PyTorch
    module returns it as a python list of per-query tensors).
    precise=True -> f32 MXU, HIGHEST precision (validation mode);
    precise=False -> bf16 MXU operands, f32 accumulation (fast mode).
    """
    N, D = X.shape
    nq = Q.shape[0]
    M = min(M, ranks.shape[0])
    M_pad = ((M + 127) // 128) * 128                  # lane-dense working width
    n_sel = min(K + 1, M)
    mxu_dtype = jnp.float32 if precise else jnp.bfloat16
    precision = lax.Precision.HIGHEST if precise else None

    ranks_trans = jnp.transpose(ranks, (1, 0))[:, :M].astype(jnp.int32)   # (nq, M)
    ranks_flat = ranks_trans.reshape(-1)              # (nq*M,) 1-D -> cheap in SMEM
    q3 = Q.reshape(nq, 1, D)

    kernel = functools.partial(
        _mdesc_aug_kernel, M=M, M_pad=M_pad, n_sel=n_sel, beta=float(beta),
        mxu_dtype=mxu_dtype, precision=precision, gather=gather_in_kernel)

    if gather_in_kernel:
        x_in = X
        x_spec = pl.BlockSpec(memory_space=pl.ANY)            # raw HBM ref, no auto-DMA
        scratch = [pltpu.VMEM((M_pad, D), X.dtype),           # gathered descriptor rows
                   pltpu.SemaphoreType.DMA((1,))]
    else:
        # Fallback: XLA gather in the wrapper (extra HBM round-trip).
        if M_pad > M:
            ranks_pad = jnp.concatenate(
                [ranks_trans, jnp.zeros((nq, M_pad - M), jnp.int32)], axis=1)
        else:
            ranks_pad = ranks_trans
        x_in = jnp.take(X, ranks_pad, axis=0)                 # (nq, M_pad, D)
        x_spec = pl.BlockSpec((1, M_pad, D), lambda q, r: (q, 0, 0))
        scratch = []

    x_dba, res3 = pl.pallas_call(
        kernel,
        out_shape=(
            jax.ShapeDtypeStruct((nq, M, D), X.dtype),        # x_dba in the input dtype
            jax.ShapeDtypeStruct((nq, 1, M_pad), jnp.float32),
        ),
        grid_spec=pltpu.PrefetchScalarGridSpec(
            num_scalar_prefetch=1,
            grid=(nq,),
            in_specs=[pl.BlockSpec((1, 1, D), lambda q, r: (q, 0, 0)), x_spec],
            out_specs=[pl.BlockSpec((1, M, D), lambda q, r: (q, 0, 0)),
                       pl.BlockSpec((1, 1, M_pad), lambda q, r: (q, 0, 0))],
            scratch_shapes=scratch,
        ),
        compiler_params=pltpu.CompilerParams(
            dimension_semantics=("parallel",),                # query axis -> megacore
            vmem_limit_bytes=48 * 1024 * 1024,                # fits v5e/v6e/v7x budgets
        ),
    )(ranks_flat, q3, x_in)

    res_top = res3[:, 0, :M]
    # TODO(synk): full argsort for the final reranking has no clean Pallas
    # equivalent; done in plain JAX.
    ranks_pre = jnp.argsort(-res_top, axis=-1)
    rerank = jnp.take_along_axis(ranks_trans, ranks_pre, axis=1)
    return rerank, res_top, ranks_pre, x_dba


def mdesc_aug_ref(X, Q, ranks, *, M=400, K=9, beta=0.15):
    """Pure-JAX reference matching the PyTorch forward semantics."""
    M = min(M, ranks.shape[0])
    n_sel = min(K + 1, M)
    ranks_trans = jnp.transpose(ranks, (1, 0))[:, :M]
    x1 = X[ranks_trans]                                               # (nq, M, D)
    res_ie = jnp.einsum("abc,adc->abd", x1, x1,
                        precision=lax.Precision.HIGHEST)              # (nq, M, M)
    idx = jnp.argsort(-res_ie, axis=-1)[:, :, :n_sel]
    vals = -jnp.sort(-res_ie, axis=-1)[:, :, :n_sel]
    vals = vals.at[:, :, 1:].multiply(beta)
    vals = vals.at[:, :, 0:1].set(1.0)
    vals = vals[..., None]                                            # (nq, M, n_sel, 1)
    gathered = jax.vmap(lambda xq, iq: xq[iq])(x1, idx)               # (nq, M, n_sel, D)
    x_dba = jnp.sum(gathered * vals, axis=2) / jnp.sum(vals, axis=2)
    res_top = jnp.einsum("ac,adc->ad", Q, x_dba,
                         precision=lax.Precision.HIGHEST)
    ranks_pre = jnp.argsort(-res_top, axis=-1)
    rerank = jnp.take_along_axis(ranks_trans, ranks_pre, axis=1)
    return rerank, res_top, ranks_pre, x_dba


def _mostly_close(a, b, *, rtol, atol, max_bad_frac):
    """allclose that tolerates a small fraction of outlier elements.

    NaN/Inf always count as mismatches.  A near-tie at the K-th-neighbour
    boundary (under different matmul precisions) can swap one selected
    neighbour and shift an entire x_dba row; that is inherent to top-K
    selection, not a kernel bug, so a bounded fraction of such rows is allowed
    while the bulk must match tightly.
    """
    a = jnp.asarray(a, jnp.float32)
    b = jnp.asarray(b, jnp.float32)
    good = jnp.abs(a - b) <= (atol + rtol * jnp.abs(b))               # NaN -> False
    return float(jnp.mean(good.astype(jnp.float32))) >= 1.0 - max_bad_frac


if __name__ == "__main__":
    key = jax.random.PRNGKey(0)
    kx, kq, kr = jax.random.split(key, 3)

    N, D, nq = 64, 128, 2          # database size, descriptor dim, num queries
    M_top, K_nn, beta = 16, 4, 0.15

    X = jax.random.normal(kx, (N, D), dtype=jnp.float32)
    Q = jax.random.normal(kq, (nq, D), dtype=jnp.float32)
    # ranks[:, q] is a permutation of db indices for query q (as in PyTorch usage)
    ranks = jnp.stack(
        [jax.random.permutation(k, N) for k in jax.random.split(kr, nq)], axis=1
    ).astype(jnp.int32)                                               # (N, nq)

    r_rerank, r_res, r_pre, r_xdba = mdesc_aug_ref(X, Q, ranks, M=M_top, K=K_nn, beta=beta)

    # ---- precise (f32 MXU) run: validates the kernel semantics tightly ----
    use_gather = True
    try:
        out_p = mdesc_aug(X, Q, ranks, M=M_top, K=K_nn, beta=beta,
                          precise=True, gather_in_kernel=True)
        jax.block_until_ready(out_p)
    except Exception:
        # TODO(synk): fall back to the wrapper-side XLA gather if manual HBM
        # row-DMA gather is unsupported in this environment.
        use_gather = False
        out_p = mdesc_aug(X, Q, ranks, M=M_top, K=K_nn, beta=beta,
                          precise=True, gather_in_kernel=False)
        jax.block_until_ready(out_p)

    rerank_p, res_p, pre_p, xdba_p = out_p
    assert rerank_p.shape == r_rerank.shape and pre_p.shape == r_pre.shape
    assert bool(jnp.all(jnp.isfinite(res_p))) and bool(jnp.all(jnp.isfinite(xdba_p))), \
        "non-finite values in precise outputs"
    assert _mostly_close(xdba_p, r_xdba, rtol=5e-3, atol=5e-3, max_bad_frac=0.15), \
        "x_dba (precise) mismatch"
    assert _mostly_close(res_p, r_res, rtol=5e-3, atol=5e-3, max_bad_frac=0.15), \
        "res_top (precise) mismatch"
    # rerank must be a per-query permutation of the top-M candidate ids
    ranks_trans_ref = jnp.transpose(ranks, (1, 0))[:, :M_top]
    assert bool(jnp.all(jnp.sort(rerank_p, axis=1) == jnp.sort(ranks_trans_ref, axis=1))), \
        "rerank is not a permutation of the top-M candidates"

    # ---- fast (default) run: bf16 MXU operands, f32 accumulation/selection ----
    out_f = mdesc_aug(X, Q, ranks, M=M_top, K=K_nn, beta=beta,
                      precise=False, gather_in_kernel=use_gather)
    jax.block_until_ready(out_f)
    rerank_f, res_f, pre_f, xdba_f = out_f
    assert bool(jnp.all(jnp.isfinite(res_f))) and bool(jnp.all(jnp.isfinite(xdba_f))), \
        "non-finite values in fast outputs"
    assert _mostly_close(xdba_f, r_xdba, rtol=5e-2, atol=5e-2, max_bad_frac=0.25), \
        "x_dba (bf16) too far off"
    assert _mostly_close(res_f, r_res, rtol=5e-2, atol=5e-2, max_bad_frac=0.25), \
        "res_top (bf16) too far off"

    print("KERNEL_OK")
</pallas_src>

<mosaic_0001>
module attributes {stable_mosaic.version = 11 : i64} {
  func.func @_mdesc_aug_kernel(%arg0: i32, %arg1: memref<32xi32, #tpu.memory_space<smem>>, %arg2: memref<1x1x128xf32, #tpu.memory_space<vmem>>, %arg3: memref<64x128xf32, #tpu.memory_space<any>>, %arg4: memref<1x16x128xf32, #tpu.memory_space<vmem>>, %arg5: memref<1x1x128xf32, #tpu.memory_space<vmem>>, %arg6: memref<128x128xf32, #tpu.memory_space<vmem>>, %arg7: memref<1x!tpu.dma_semaphore, #tpu.memory_space<semaphore_mem>>) attributes {dimension_semantics = [#tpu.dimension_semantics<parallel>], iteration_bounds = array<i64: 2>, scalar_prefetch = 1 : i64, scratch_operands = 2 : i64, tpu.core_type = #tpu.core_type<tc>, window_params = [{transform_indices = @transform_0, window_bounds = array<i64: 1, 1, 128>}, {}, {transform_indices = @transform_2, window_bounds = array<i64: 1, 16, 128>}, {transform_indices = @transform_3, window_bounds = array<i64: 1, 1, 128>}]} {
    %c16_i32 = arith.constant 16 : i32
    %0 = arith.muli %arg0, %c16_i32 : i32
    %c0_i32 = arith.constant 0 : i32
    %c0_i32_0 = arith.constant 0 : i32
    %c16_i32_1 = arith.constant 16 : i32
    %1 = arith.addi %c0_i32_0, %c16_i32_1 : i32
    %c1_i32 = arith.constant 1 : i32
    scf.for %arg8 = %c0_i32_0 to %1 step %c1_i32  : i32 {
      %42 = arith.addi %0, %arg8 : i32
      %43 = arith.index_cast %42 : i32 to index
      %44 = memref.load %arg1[%43] : memref<32xi32, #tpu.memory_space<smem>>
      %c0_i32_29 = arith.constant 0 : i32
      %45 = tpu.memref_slice %arg3[%44, %c0_i32_29] : memref<64x128xf32, #tpu.memory_space<any>> -> memref<1x128xf32, #tpu.memory_space<any>>
      %46 = tpu.memref_squeeze %45 : memref<1x128xf32, #tpu.memory_space<any>> -> memref<128xf32, #tpu.memory_space<any>>
      %c0_i32_30 = arith.constant 0 : i32
      %47 = tpu.memref_slice %arg6[%arg8, %c0_i32_30] : memref<128x128xf32, #tpu.memory_space<vmem>> -> memref<1x128xf32, #tpu.memory_space<vmem>>
      %48 = tpu.memref_squeeze %47 : memref<1x128xf32, #tpu.memory_space<vmem>> -> memref<128xf32, #tpu.memory_space<vmem>>
      %49 = tpu.memref_slice %arg7[%c0_i32] : memref<1x!tpu.dma_semaphore, #tpu.memory_space<semaphore_mem>> -> memref<1x!tpu.dma_semaphore, #tpu.memory_space<semaphore_mem>>
      %50 = tpu.memref_squeeze %49 : memref<1x!tpu.dma_semaphore, #tpu.memory_space<semaphore_mem>> -> memref<!tpu.dma_semaphore, #tpu.memory_space<semaphore_mem>>
      tpu.enqueue_dma source(%46 : memref<128xf32, #tpu.memory_space<any>>) target(%48 : memref<128xf32, #tpu.memory_space<vmem>>) target_semaphore(%50 : memref<!tpu.dma_semaphore, #tpu.memory_space<semaphore_mem>>)
    }
    %c16_i32_2 = arith.constant 16 : i32
    %c0_i32_3 = arith.constant 0 : i32
    %c0_i32_4 = arith.constant 0 : i32
    %c16_i32_5 = arith.constant 16 : i32
    %2 = arith.addi %c0_i32_4, %c16_i32_5 : i32
    %c1_i32_6 = arith.constant 1 : i32
    scf.for %arg8 = %c0_i32_4 to %2 step %c1_i32_6  : i32 {
      %c0_i32_29 = arith.constant 0 : i32
      %c0_i32_30 = arith.constant 0 : i32
      %c0_i32_31 = arith.constant 0 : i32
      %42 = tpu.memref_slice %arg3[%c0_i32_29, %c0_i32_31] : memref<64x128xf32, #tpu.memory_space<any>> -> memref<1x128xf32, #tpu.memory_space<any>>
      %43 = tpu.memref_squeeze %42 : memref<1x128xf32, #tpu.memory_space<any>> -> memref<128xf32, #tpu.memory_space<any>>
      %c0_i32_32 = arith.constant 0 : i32
      %44 = tpu.memref_slice %arg6[%c0_i32_30, %c0_i32_32] : memref<128x128xf32, #tpu.memory_space<vmem>> -> memref<1x128xf32, #tpu.memory_space<vmem>>
      %45 = tpu.memref_squeeze %44 : memref<1x128xf32, #tpu.memory_space<vmem>> -> memref<128xf32, #tpu.memory_space<vmem>>
      %46 = tpu.memref_slice %arg7[%c0_i32_3] : memref<1x!tpu.dma_semaphore, #tpu.memory_space<semaphore_mem>> -> memref<1x!tpu.dma_semaphore, #tpu.memory_space<semaphore_mem>>
      %47 = tpu.memref_squeeze %46 : memref<1x!tpu.dma_semaphore, #tpu.memory_space<semaphore_mem>> -> memref<!tpu.dma_semaphore, #tpu.memory_space<semaphore_mem>>
      tpu.wait_dma2 semaphore(%47 : memref<!tpu.dma_semaphore, #tpu.memory_space<semaphore_mem>>) src(%43 : memref<128xf32, #tpu.memory_space<any>>) dst(%45 : memref<128xf32, #tpu.memory_space<vmem>>)
    }
    %c0 = arith.constant 0 : index
    %c0_7 = arith.constant 0 : index
    %3 = vector.load %arg6[%c0, %c0_7] : memref<128x128xf32, #tpu.memory_space<vmem>>, vector<128x128xf32>
    %4 = tpu.iota {dimensions = array<i32: 0>} : vector<128x128xi32>
    %c16_i32_8 = arith.constant 16 : i32
    %5 = vector.broadcast %c16_i32_8 : i32 to vector<128x128xi32>
    %6 = arith.cmpi slt, %4, %5 : vector<128x128xi32>
    %cst = arith.constant 0.000000e+00 : f32
    %7 = vector.broadcast %cst : f32 to vector<128x128xf32>
    %8 = arith.select %6, %3, %7 : vector<128x128xi1>, vector<128x128xf32>
    %cst_9 = arith.constant dense<0.000000e+00> : vector<128x128xf32>
    %9 = tpu.matmul %8, %8, %cst_9 {dimension_numbers = #tpu.dot_dimension_numbers<[1], [1], [0], [0], [0, 0, 1, 0], [], []>, precision = #tpu.contract_precision<fp32>} : vector<128x128xf32>, vector<128x128xf32>, vector<128x128xf32> -> vector<128x128xf32>
    %10 = tpu.iota {dimensions = array<i32: 1>} : vector<128x128xi32>
    %c16_i32_10 = arith.constant 16 : i32
    %11 = vector.broadcast %c16_i32_10 : i32 to vector<128x128xi32>
    %12 = arith.cmpi slt, %10, %11 : vector<128x128xi32>
    %cst_11 = arith.constant -1.000000e+30 : f32
    %13 = vector.broadcast %cst_11 : f32 to vector<128x128xf32>
    %14 = arith.select %12, %9, %13 : vector<128x128xi1>, vector<128x128xf32>
    %cst_12 = arith.constant dense<0xFF800000> : vector<128xf32>
    %15 = vector.multi_reduction <maximumf>, %14, %cst_12 [1] : vector<128x128xf32> to vector<128xf32>
    %16 = vector.shape_cast %15 : vector<128xf32> to vector<128x1xf32>
    %17 = vector.broadcast %16 : vector<128x1xf32> to vector<128x128xf32>
    %18 = arith.cmpf oeq, %14, %17 : vector<128x128xf32>
    %19 = arith.extui %18 : vector<128x128xi1> to vector<128x128xi32>
    %20 = arith.sitofp %19 : vector<128x128xi32> to vector<128x128xf32>
    %cst_13 = arith.constant -1.000000e+30 : f32
    %21 = vector.broadcast %cst_13 : f32 to vector<128x128xf32>
    %22 = arith.select %18, %21, %14 : vector<128x128xi1>, vector<128x128xf32>
    %c0_i32_14 = arith.constant 0 : i32
    %c4_i32 = arith.constant 4 : i32
    %23 = arith.addi %c0_i32_14, %c4_i32 : i32
    %c1_i32_15 = arith.constant 1 : i32
    %24:2 = scf.for %arg8 = %c0_i32_14 to %23 step %c1_i32_15 iter_args(%arg9 = %22, %arg10 = %20) -> (vector<128x128xf32>, vector<128x128xf32>)  : i32 {
      %cst_29 = arith.constant dense<0xFF800000> : vector<128xf32>
      %42 = vector.multi_reduction <maximumf>, %arg9, %cst_29 [1] : vector<128x128xf32> to vector<128xf32>
      %43 = vector.shape_cast %42 : vector<128xf32> to vector<128x1xf32>
      %44 = vector.broadcast %43 : vector<128x1xf32> to vector<128x128xf32>
      %45 = arith.cmpf oeq, %arg9, %44 : vector<128x128xf32>
      %cst_30 = arith.constant -1.000000e+29 : f32
      %46 = vector.broadcast %cst_30 : f32 to vector<128x1xf32>
      %47 = arith.cmpf ogt, %43, %46 : vector<128x1xf32>
      %48 = vector.broadcast %47 : vector<128x1xi1> to vector<128x128xi1>
      %49 = arith.andi %45, %48 : vector<128x128xi1>
      %cst_31 = arith.constant 1.500000e-01 : f32
      %50 = vector.broadcast %cst_31 : f32 to vector<128x1xf32>
      %51 = arith.mulf %50, %43 : vector<128x1xf32>
      %cst_32 = arith.constant 0.000000e+00 : f32
      %52 = vector.shape_cast %51 : vector<128x1xf32> to vector<128x1xf32>
      %53 = vector.broadcast %52 : vector<128x1xf32> to vector<128x128xf32>
      %54 = vector.broadcast %cst_32 : f32 to vector<128x128xf32>
      %55 = arith.select %49, %53, %54 : vector<128x128xi1>, vector<128x128xf32>
      %56 = arith.addf %arg10, %55 : vector<128x128xf32>
      %cst_33 = arith.constant -1.000000e+30 : f32
      %57 = vector.broadcast %cst_33 : f32 to vector<128x128xf32>
      %58 = arith.select %45, %57, %arg9 : vector<128x128xi1>, vector<128x128xf32>
      scf.yield %58, %56 : vector<128x128xf32>, vector<128x128xf32>
    }
    %cst_16 = arith.constant dense<0.000000e+00> : vector<128xf32>
    %25 = vector.multi_reduction <add>, %24#1, %cst_16 [1] : vector<128x128xf32> to vector<128xf32>
    %26 = vector.shape_cast %25 : vector<128xf32> to vector<128x1xf32>
    %cst_17 = arith.constant dense<0.000000e+00> : vector<128x128xf32>
    %27 = tpu.matmul %24#1, %8, %cst_17 {dimension_numbers = #tpu.dot_dimension_numbers<[1], [0], [0], [1], [0, 0, 1, 1], [], []>, precision = #tpu.contract_precision<fp32>} : vector<128x128xf32>, vector<128x128xf32>, vector<128x128xf32> -> vector<128x128xf32>
    %cst_18 = arith.constant 1.000000e+00 : f32
    %28 = vector.broadcast %cst_18 : f32 to vector<128x1xf32>
    %29 = arith.divf %28, %26 : vector<128x1xf32>
    %30 = vector.broadcast %29 : vector<128x1xf32> to vector<128x128xf32>
    %31 = arith.mulf %27, %30 : vector<128x128xf32>
    %32 = vector.extract_strided_slice %31 {offsets = [0, 0], sizes = [16, 128], strides = [1, 1]} : vector<128x128xf32> to vector<16x128xf32>
    %c0_19 = arith.constant 0 : index
    %c0_20 = arith.constant 0 : index
    %c0_21 = arith.constant 0 : index
    %33 = vector.load %arg4[%c0_19, %c0_20, %c0_21] : memref<1x16x128xf32, #tpu.memory_space<vmem>>, vector<1x16x128xf32>
    %34 = vector.shape_cast %33 : vector<1x16x128xf32> to vector<16x128xf32>
    %35 = vector.shape_cast %32 : vector<16x128xf32> to vector<1x16x128xf32>
    tpu.vector_store %arg4[%c0_19, %c0_20, %c0_21], %35 {strides = array<i32>} : memref<1x16x128xf32, #tpu.memory_space<vmem>>, vector<1x16x128xf32>,
    %c0_22 = arith.constant 0 : index
    %c0_23 = arith.constant 0 : index
    %c0_24 = arith.constant 0 : index
    %36 = vector.load %arg2[%c0_22, %c0_23, %c0_24] : memref<1x1x128xf32, #tpu.memory_space<vmem>>, vector<1x1x128xf32>
    %37 = vector.shape_cast %36 : vector<1x1x128xf32> to vector<1x128xf32>
    %cst_25 = arith.constant dense<0.000000e+00> : vector<1x128xf32>
    %38 = tpu.matmul %37, %31, %cst_25 {dimension_numbers = #tpu.dot_dimension_numbers<[1], [1], [0], [0], [0, 0, 1, 0], [], []>, precision = #tpu.contract_precision<fp32>} : vector<1x128xf32>, vector<128x128xf32>, vector<1x128xf32> -> vector<1x128xf32>
    %c0_26 = arith.constant 0 : index
    %c0_27 = arith.constant 0 : index
    %c0_28 = arith.constant 0 : index
    %39 = vector.load %arg5[%c0_26, %c0_27, %c0_28] : memref<1x1x128xf32, #tpu.memory_space<vmem>>, vector<1x1x128xf32>
    %40 = vector.shape_cast %39 : vector<1x1x128xf32> to vector<1x128xf32>
    %41 = vector.shape_cast %38 : vector<1x128xf32> to vector<1x1x128xf32>
    tpu.vector_store %arg5[%c0_26, %c0_27, %c0_28], %41 {strides = array<i32>} : memref<1x1x128xf32, #tpu.memory_space<vmem>>, vector<1x1x128xf32>,
    return
  }
  func.func @transform_0(%arg0: i32, %arg1: memref<32xi32, #tpu.memory_space<smem>>) -> (i32, i32, i32) {
    %c0_i32 = arith.constant 0 : i32
    %c0_i32_0 = arith.constant 0 : i32
    %c0_i32_1 = arith.constant 0 : i32
    return %arg0, %c0_i32, %c0_i32_0 : i32, i32, i32
  }
  func.func @transform_2(%arg0: i32, %arg1: memref<32xi32, #tpu.memory_space<smem>>) -> (i32, i32, i32) {
    %c0_i32 = arith.constant 0 : i32
    %c0_i32_0 = arith.constant 0 : i32
    %c0_i32_1 = arith.constant 0 : i32
    return %arg0, %c0_i32, %c0_i32_0 : i32, i32, i32
  }
  func.func @transform_3(%arg0: i32, %arg1: memref<32xi32, #tpu.memory_space<smem>>) -> (i32, i32, i32) {
    %c0_i32 = arith.constant 0 : i32
    %c0_i32_0 = arith.constant 0 : i32
    %c0_i32_1 = arith.constant 0 : i32
    return %arg0, %c0_i32, %c0_i32_0 : i32, i32, i32
  }
}

module attributes {stable_mosaic.version = 11 : i64} {
  func.func @_mdesc_aug_kernel(%arg0: i32, %arg1: memref<32xi32, #tpu.memory_space<smem>>, %arg2: memref<1x1x128xf32, #tpu.memory_space<vmem>>, %arg3: memref<1x128x128xf32, #tpu.memory_space<vmem>>, %arg4: memref<1x16x128xf32, #tpu.memory_space<vmem>>, %arg5: memref<1x1x128xf32, #tpu.memory_space<vmem>>) attributes {dimension_semantics = [#tpu.dimension_semantics<parallel>], iteration_bounds = array<i64: 2>, scalar_prefetch = 1 : i64, scratch_operands = 0 : i64, tpu.core_type = #tpu.core_type<tc>, window_params = [{transform_indices = @transform_0, window_bounds = array<i64: 1, 1, 128>}, {transform_indices = @transform_1, window_bounds = array<i64: 1, 128, 128>}, {transform_indices = @transform_2, window_bounds = array<i64: 1, 16, 128>}, {transform_indices = @transform_3, window_bounds = array<i64: 1, 1, 128>}]} {
    %c0 = arith.constant 0 : index
    %c0_0 = arith.constant 0 : index
    %c0_1 = arith.constant 0 : index
    %0 = vector.load %arg3[%c0, %c0_0, %c0_1] : memref<1x128x128xf32, #tpu.memory_space<vmem>>, vector<1x128x128xf32>
    %1 = vector.shape_cast %0 : vector<1x128x128xf32> to vector<128x128xf32>
    %cst = arith.constant dense<0.000000e+00> : vector<128x128xf32>
    %2 = tpu.matmul %1, %1, %cst {dimension_numbers = #tpu.dot_dimension_numbers<[1], [1], [0], [0], [0, 0, 1, 0], [], []>, precision = #tpu.contract_precision<fp32>} : vector<128x128xf32>, vector<128x128xf32>, vector<128x128xf32> -> vector<128x128xf32>
    %3 = tpu.iota {dimensions = array<i32: 1>} : vector<128x128xi32>
    %c16_i32 = arith.constant 16 : i32
    %4 = vector.broadcast %c16_i32 : i32 to vector<128x128xi32>
    %5 = arith.cmpi slt, %3, %4 : vector<128x128xi32>
    %cst_2 = arith.constant -1.000000e+30 : f32
    %6 = vector.broadcast %cst_2 : f32 to vector<128x128xf32>
    %7 = arith.select %5, %2, %6 : vector<128x128xi1>, vector<128x128xf32>
    %cst_3 = arith.constant dense<0xFF800000> : vector<128xf32>
    %8 = vector.multi_reduction <maximumf>, %7, %cst_3 [1] : vector<128x128xf32> to vector<128xf32>
    %9 = vector.shape_cast %8 : vector<128xf32> to vector<128x1xf32>
    %10 = vector.broadcast %9 : vector<128x1xf32> to vector<128x128xf32>
    %11 = arith.cmpf oeq, %7, %10 : vector<128x128xf32>
    %12 = arith.extui %11 : vector<128x128xi1> to vector<128x128xi32>
    %13 = arith.sitofp %12 : vector<128x128xi32> to vector<128x128xf32>
    %cst_4 = arith.constant -1.000000e+30 : f32
    %14 = vector.broadcast %cst_4 : f32 to vector<128x128xf32>
    %15 = arith.select %11, %14, %7 : vector<128x128xi1>, vector<128x128xf32>
    %c0_i32 = arith.constant 0 : i32
    %c4_i32 = arith.constant 4 : i32
    %16 = arith.addi %c0_i32, %c4_i32 : i32
    %c1_i32 = arith.constant 1 : i32
    %17:2 = scf.for %arg6 = %c0_i32 to %16 step %c1_i32 iter_args(%arg7 = %15, %arg8 = %13) -> (vector<128x128xf32>, vector<128x128xf32>)  : i32 {
      %cst_18 = arith.constant dense<0xFF800000> : vector<128xf32>
      %35 = vector.multi_reduction <maximumf>, %arg7, %cst_18 [1] : vector<128x128xf32> to vector<128xf32>
      %36 = vector.shape_cast %35 : vector<128xf32> to vector<128x1xf32>
      %37 = vector.broadcast %36 : vector<128x1xf32> to vector<128x128xf32>
      %38 = arith.cmpf oeq, %arg7, %37 : vector<128x128xf32>
      %cst_19 = arith.constant -1.000000e+29 : f32
      %39 = vector.broadcast %cst_19 : f32 to vector<128x1xf32>
      %40 = arith.cmpf ogt, %36, %39 : vector<128x1xf32>
      %41 = vector.broadcast %40 : vector<128x1xi1> to vector<128x128xi1>
      %42 = arith.andi %38, %41 : vector<128x128xi1>
      %cst_20 = arith.constant 1.500000e-01 : f32
      %43 = vector.broadcast %cst_20 : f32 to vector<128x1xf32>
      %44 = arith.mulf %43, %36 : vector<128x1xf32>
      %cst_21 = arith.constant 0.000000e+00 : f32
      %45 = vector.shape_cast %44 : vector<128x1xf32> to vector<128x1xf32>
      %46 = vector.broadcast %45 : vector<128x1xf32> to vector<128x128xf32>
      %47 = vector.broadcast %cst_21 : f32 to vector<128x128xf32>
      %48 = arith.select %42, %46, %47 : vector<128x128xi1>, vector<128x128xf32>
      %49 = arith.addf %arg8, %48 : vector<128x128xf32>
      %cst_22 = arith.constant -1.000000e+30 : f32
      %50 = vector.broadcast %cst_22 : f32 to vector<128x128xf32>
      %51 = arith.select %38, %50, %arg7 : vector<128x128xi1>, vector<128x128xf32>
      scf.yield %51, %49 : vector<128x128xf32>, vector<128x128xf32>
    }
    %cst_5 = arith.constant dense<0.000000e+00> : vector<128xf32>
    %18 = vector.multi_reduction <add>, %17#1, %cst_5 [1] : vector<128x128xf32> to vector<128xf32>
    %19 = vector.shape_cast %18 : vector<128xf32> to vector<128x1xf32>
    %cst_6 = arith.constant dense<0.000000e+00> : vector<128x128xf32>
    %20 = tpu.matmul %17#1, %1, %cst_6 {dimension_numbers = #tpu.dot_dimension_numbers<[1], [0], [0], [1], [0, 0, 1, 1], [], []>, precision = #tpu.contract_precision<fp32>} : vector<128x128xf32>, vector<128x128xf32>, vector<128x128xf32> -> vector<128x128xf32>
    %cst_7 = arith.constant 1.000000e+00 : f32
    %21 = vector.broadcast %cst_7 : f32 to vector<128x1xf32>
    %22 = arith.divf %21, %19 : vector<128x1xf32>
    %23 = vector.broadcast %22 : vector<128x1xf32> to vector<128x128xf32>
    %24 = arith.mulf %20, %23 : vector<128x128xf32>
    %25 = vector.extract_strided_slice %24 {offsets = [0, 0], sizes = [16, 128], strides = [1, 1]} : vector<128x128xf32> to vector<16x128xf32>
    %c0_8 = arith.constant 0 : index
    %c0_9 = arith.constant 0 : index
    %c0_10 = arith.constant 0 : index
    %26 = vector.load %arg4[%c0_8, %c0_9, %c0_10] : memref<1x16x128xf32, #tpu.memory_space<vmem>>, vector<1x16x128xf32>
    %27 = vector.shape_cast %26 : vector<1x16x128xf32> to vector<16x128xf32>
    %28 = vector.shape_cast %25 : vector<16x128xf32> to vector<1x16x128xf32>
    tpu.vector_store %arg4[%c0_8, %c0_9, %c0_10], %28 {strides = array<i32>} : memref<1x16x128xf32, #tpu.memory_space<vmem>>, vector<1x16x128xf32>,
    %c0_11 = arith.constant 0 : index
    %c0_12 = arith.constant 0 : index
    %c0_13 = arith.constant 0 : index
    %29 = vector.load %arg2[%c0_11, %c0_12, %c0_13] : memref<1x1x128xf32, #tpu.memory_space<vmem>>, vector<1x1x128xf32>
    %30 = vector.shape_cast %29 : vector<1x1x128xf32> to vector<1x128xf32>
    %cst_14 = arith.constant dense<0.000000e+00> : vector<1x128xf32>
    %31 = tpu.matmul %30, %24, %cst_14 {dimension_numbers = #tpu.dot_dimension_numbers<[1], [1], [0], [0], [0, 0, 1, 0], [], []>, precision = #tpu.contract_precision<fp32>} : vector<1x128xf32>, vector<128x128xf32>, vector<1x128xf32> -> vector<1x128xf32>
    %c0_15 = arith.constant 0 : index
    %c0_16 = arith.constant 0 : index
    %c0_17 = arith.constant 0 : index
    %32 = vector.load %arg5[%c0_15, %c0_16, %c0_17] : memref<1x1x128xf32, #tpu.memory_space<vmem>>, vector<1x1x128xf32>
    %33 = vector.shape_cast %32 : vector<1x1x128xf32> to vector<1x128xf32>
    %34 = vector.shape_cast %31 : vector<1x128xf32> to vector<1x1x128xf32>
    tpu.vector_store %arg5[%c0_15, %c0_16, %c0_17], %34 {strides = array<i32>} : memref<1x1x128xf32, #tpu.memory_space<vmem>>, vector<1x1x128xf32>,
    return
  }
  func.func @transform_0(%arg0: i32, %arg1: memref<32xi32, #tpu.memory_space<smem>>) -> (i32, i32, i32) {
    %c0_i32 = arith.constant 0 : i32
    %c0_i32_0 = arith.constant 0 : i32
    %c0_i32_1 = arith.constant 0 : i32
    return %arg0, %c0_i32, %c0_i32_0 : i32, i32, i32
  }
  func.func @transform_1(%arg0: i32, %arg1: memref<32xi32, #tpu.memory_space<smem>>) -> (i32, i32, i32) {
    %c0_i32 = arith.constant 0 : i32
    %c0_i32_0 = arith.constant 0 : i32
    %c0_i32_1 = arith.constant 0 : i32
    return %arg0, %c0_i32, %c0_i32_0 : i32, i32, i32
  }
  func.func @transform_2(%arg0: i32, %arg1: memref<32xi32, #tpu.memory_space<smem>>) -> (i32, i32, i32) {
    %c0_i32 = arith.constant 0 : i32
    %c0_i32_0 = arith.constant 0 : i32
    %c0_i32_1 = arith.constant 0 : i32
    return %arg0, %c0_i32, %c0_i32_0 : i32, i32, i32
  }
  func.func @transform_3(%arg0: i32, %arg1: memref<32xi32, #tpu.memory_space<smem>>) -> (i32, i32, i32) {
    %c0_i32 = arith.constant 0 : i32
    %c0_i32_0 = arith.constant 0 : i32
    %c0_i32_1 = arith.constant 0 : i32
    return %arg0, %c0_i32, %c0_i32_0 : i32, i32, i32
  }
}

</mosaic_0001>

<llo_original>
// kernel: tpu_custom_call.1
$region0: #{tpu_custom_call.1}
  #allocation0 [shape = 'u32[]', space=smem, size = 0x4, offset = 0x4, fixed_abs, tag = 'smem constant byte address 0x4 - core index']
  #allocation1 [shape = 'u32[144,128]{1,0:T(1,128)}', space=vmem, size = 0x12000, scoped, tag = 'internal scratch']
  #allocation2 [shape = 'f32[128,128]{1,0:T(8,128)}', space=vmem, size = 0x10000, scoped, tag = 'scratch operand']
  #allocation3 [shape = 's32[1]{0}', space=sflag, size = 0x4, scoped, tag = 'scratch operand']
  #allocation4 [shape = 's32[1]{0}', space=sflag, size = 0x4, scoped, tag = 'scoped memory for tpu_custom_call.1']
  #allocation5 [shape = 'u8[512]{0}', space=smem, size = 0x200, scoped, tag = 'prefetched SMEM operand 0']
  #allocation10 [shape = 's32[]', space=sflag, size = 0x4, offset = 0, fixed_abs, tag = 'sflag constant byte address 0x0 - dummy sync flag']
  #allocation11 [shape = 's32[]', space=sflag, size = 0x4, offset = 0, fixed_abs, tag = 'sflag constant byte address 0x0 - dummy sync flag']
  #allocation12 [shape = 'u32[]', space=smem, size = 0x4, offset = 0x44, fixed_abs, tag = 'smem constant byte address 0x44 - assertion arg 0']
  #allocation13 [shape = 'u32[]', space=smem, size = 0x4, offset = 0x48, fixed_abs, tag = 'smem constant byte address 0x48 - assertion arg 1']
  %s0 = inlined_call_operand.hbm [shape: s32[32], index: 0, kind: input, shape index: {}]
  %s1 = inlined_call_operand.vmem [shape: f32[2,1,128], index: 1, kind: input, shape index: {}]
  %s2 = inlined_call_operand.hbm [shape: f32[64,128], index: 2, kind: input, shape index: {}]
  %s3 = inlined_call_operand.hbm [shape: f32[2,16,128], index: 3, kind: output, shape index: {0}]
  %s4 = inlined_call_operand.hbm [shape: f32[2,1,128], index: 4, kind: output, shape index: {1}]
  %5 = xla_tuple %s3, %s4
  %s6 = sld [smem:[#allocation0]]
  $region70: #{tpu_custom_call.1} parent=0
    _
  %s8 = ssub.s32 1, %s6
  %s9 = scalar_select 0, %s8, %s6
  %11 = dma.hbm_to_smem %s0, 16, [#allocation5], [#allocation4]
  %12 = dma.done [#allocation4], 16
  %13 = sfence
  $region1: #{tpu_custom_call.1} parent=0
    #allocation6 [shape = 'u8[16384]{0}', space=vmem, size = 0x4000, scoped, tag = 'output window, operand 0']
    #allocation7 [shape = 's32[2]{0}', space=sflag, size = 0x8, scoped, tag = 'scoped memory for tpu_custom_call.1']
    #allocation8 [shape = 'u8[1024]{0}', space=vmem, size = 0x400, scoped, tag = 'output window, operand 1']
    #allocation9 [shape = 's32[2]{0}', space=sflag, size = 0x8, scoped, tag = 'scoped memory for tpu_custom_call.1']
    %14 = vsyncpa [#allocation7], 0
    %s15 = scalar_lea.sflag [#allocation7], 1
    %16 = vsyncpa %s15, 0
    %17 = vsyncpa [#allocation9], 0
    %s18 = scalar_lea.sflag [#allocation9], 1
    %19 = vsyncpa %s18, 0
    loop: start=0, step=1, limit=4
    $region2: #{tpu_custom_call.1} parent=1 // loop_pre_header
      _
    $region3: #{tpu_custom_call.1} parent=1 // loop_header
      %s21 = sphi 0, %s25
      %p22 = scmp.ge.s32.totalorder %s21, 4
      %s31 = sphi 0, %s33
      %s34 = sphi 0, %s31
      %s35 = sphi 0, %s34
      %s51 = sphi 0, %s35
      %s57 = sphi 0, %s59
      %s60 = sphi 0, %s57
      %s61 = sphi 0, %s60
      %s77 = sphi 0, %s61
      %s83 = sphi 0, %s85
      %s86 = sphi 0, %s83
      %s87 = sphi 0, %s86
      %s103 = sphi 0, %s87
    $region4: #{tpu_custom_call.1} parent=1 // loop_header_branch
      %24 = sbr.rel (%p22) target = $region8
    $region5: #{tpu_custom_call.1} parent=1 // loop_body
      %s26 = ssub.s32 %s21, 1
      %s27 = ssub.s32 %s21, 2
      %s28 = sadd.s32 %s21, 1
      %s29 = ssub.s32 %s21, %s28
      %p30 = scmp.eq.s32.totalorder %s29, 0
      %s32 = sadd.s32 %s31, 1
      %s33 = scalar_select %p30, %s31, %s32
      %p36 = pneg %p30
      %p37 = scmp.eq.s32.totalorder %s21, 1
      %p38 = por %p36, %p37
      %p39 = scmp.ne.s32.totalorder %s31, %s34
      %p40 = scmp.eq.s32.totalorder %s21, 0
      %p41 = por %p39, %p40
      %p42 = scmp.ne.s32.totalorder %s31, %s34
      %p43 = scmp.eq.s32.totalorder %s26, 1
      %p44 = por %p42, %p43
      %p45 = scmp.ne.s32.totalorder %s34, %s35
      %p46 = scmp.eq.s32.totalorder %s26, 0
      %p47 = por %p45, %p46
      %p48 = scmp.ne.s32.totalorder %s34, %s35
      %p49 = scmp.eq.s32.totalorder %s27, 1
      %p50 = por %p48, %p49
      %p52 = scmp.ne.s32.totalorder %s35, %s51
      %p53 = scmp.eq.s32.totalorder %s27, 0
      %p54 = por %p52, %p53
      %s55 = ssub.s32 %s21, %s28
      %p56 = scmp.eq.s32.totalorder %s55, 0
      %s58 = sadd.s32 %s57, 1
      %s59 = scalar_select %p56, %s57, %s58
      %p62 = pneg %p56
      %p63 = scmp.eq.s32.totalorder %s21, 1
      %p64 = por %p62, %p63
      %p65 = scmp.ne.s32.totalorder %s57, %s60
      %p66 = scmp.eq.s32.totalorder %s21, 0
      %p67 = por %p65, %p66
      %p68 = scmp.ne.s32.totalorder %s57, %s60
      %p69 = scmp.eq.s32.totalorder %s26, 1
      %p70 = por %p68, %p69
      %p71 = scmp.ne.s32.totalorder %s60, %s61
      %p72 = scmp.eq.s32.totalorder %s26, 0
      %p73 = por %p71, %p72
      %p74 = scmp.ne.s32.totalorder %s60, %s61
      %p75 = scmp.eq.s32.totalorder %s27, 1
      %p76 = por %p74, %p75
      %p78 = scmp.ne.s32.totalorder %s61, %s77
      %p79 = scmp.eq.s32.totalorder %s27, 0
      %p80 = por %p78, %p79
      %s81 = ssub.s32 %s21, %s28
      %p82 = scmp.eq.s32.totalorder %s81, 0
      %s84 = sadd.s32 %s83, 1
      %s85 = scalar_select %p82, %s83, %s84
      %p88 = pneg %p82
      %p89 = scmp.eq.s32.totalorder %s21, 1
      %p90 = por %p88, %p89
      %p91 = scmp.ne.s32.totalorder %s83, %s86
      %p92 = scmp.eq.s32.totalorder %s21, 0
      %p93 = por %p91, %p92
      %p94 = scmp.ne.s32.totalorder %s83, %s86
      %p95 = scmp.eq.s32.totalorder %s26, 1
      %p96 = por %p94, %p95
      %p97 = scmp.ne.s32.totalorder %s86, %s87
      %p98 = scmp.eq.s32.totalorder %s26, 0
      %p99 = por %p97, %p98
      %p100 = scmp.ne.s32.totalorder %s86, %s87
      %p101 = scmp.eq.s32.totalorder %s27, 1
      %p102 = por %p100, %p101
      %p104 = scmp.ne.s32.totalorder %s87, %s103
      %p105 = scmp.eq.s32.totalorder %s27, 0
      %p106 = por %p104, %p105
      %p107 = scmp.le.s32.totalorder 1, %s21
      %p108 = scmp.lt.s32.totalorder %s21, 3
      %p109 = pnand %p107, %p108
      %p110 = pneg %p109
      // Predicated region
      $region9: #{tpu_custom_call.1} parent=5 // pred_check
        _
      $region10: #{tpu_custom_call.1} parent=5 // pred_check_branch
        %112 = sbr.rel (%p109) target = $region12
      $region11: #{tpu_custom_call.1} parent=5 // pred_region
        %s113 = ssub.s32 %s21, 1
      $region12: #{tpu_custom_call.1} parent=5 // pred_fallthru
        _
      %p114 = scmp.lt.s32.totalorder %s21, 2
      // Predicated region
      $region13: #{tpu_custom_call.1} parent=5 // pred_check
        %p115 = pneg %p114
      $region14: #{tpu_custom_call.1} parent=5 // pred_check_branch
        %117 = sbr.rel (%p115) target = $region16
      $region15: #{tpu_custom_call.1} parent=5 // pred_region
        // Predicated region
        $region17: #{tpu_custom_call.1} parent=15 // pred_check
          %p118 = pneg %p41
        $region18: #{tpu_custom_call.1} parent=15 // pred_check_branch
          %120 = sbr.rel (%p118) target = $region20
        $region19: #{tpu_custom_call.1} parent=15 // pred_region
          %p121 = scmp.lt.s32.totalorder %s21, 1
          %s122 = scalar_select %p121, %s21, 1
          %s123 = scalar_lea.vmem %s1, %s122
        $region20: #{tpu_custom_call.1} parent=15 // pred_fallthru
          _
      $region16: #{tpu_custom_call.1} parent=5 // pred_fallthru
        _
      %p124 = scmp.le.s32.totalorder 1, %s21
      %p125 = scmp.lt.s32.totalorder %s21, 3
      %p126 = pnand %p124, %p125
      %p127 = pneg %p126
      // Predicated region
      $region21: #{tpu_custom_call.1} parent=5 // pred_check
        _
      $region22: #{tpu_custom_call.1} parent=5 // pred_check_branch
        %129 = sbr.rel (%p126) target = $region24
      $region23: #{tpu_custom_call.1} parent=5 // pred_region
        %s130 = ssub.s32 %s21, 1
        %p131 = scmp.lt.s32.totalorder %s26, 1
        %s132 = scalar_select %p131, %s26, 1
        %s133 = scalar_lea.vmem %s1, %s132
        %p134 = pneg %p47
        %p135 = pneg %p44
        %p136 = pneg %p73
        %p137 = pneg %p70
        %s138 = sand.u32 %s60, 1
        %s139 = scalar_lea.sflag [#allocation7], %s138
        %s140 = sand.u32 %s60, 1
        %s141 = smul.addr %s140, 16
        %s142 = scalar_lea.vmem [#allocation6], %s141
        %p143 = pneg %p99
        %p144 = pneg %p96
        %s145 = sand.u32 %s86, 1
        %s146 = scalar_lea.sflag [#allocation9], %s145
        %s147 = sand.u32 %s86, 1
        %s148 = scalar_lea.vmem [#allocation8], %s147
        %p149 = scmp.lt.s32.totalorder %s26, 1
        %s150 = scalar_select %p149, %s26, 1
        %s151 = scalar_lea.vmem %s1, %s150
        %s152 = smul.u32 %s26, 16
        loop: start=0, step=1, limit=16
        $region25: #{tpu_custom_call.1} parent=23 // loop_pre_header
          _
        $region26: #{tpu_custom_call.1} parent=23 // loop_header
          %s154 = sphi 0, %s158
          %p155 = scmp.ge.s32.totalorder %s154, 16
        $region27: #{tpu_custom_call.1} parent=23 // loop_header_branch
          %157 = sbr.rel (%p155) target = $region31
        $region28: #{tpu_custom_call.1} parent=23 // loop_body
          %s159 = sadd.s32 %s152, %s154
          %s160 = sld [smem:[#allocation5 + %s159]]
          %s161 = smul.addr %s160, 16
          %s162 = scalar_lea.hbm %s2, %s161
          %s163 = scalar_lea.vmem [#allocation2], %s154
          // Predicated region
          $region32: #{tpu_custom_call.1} parent=28 // pred_check
            _
          $region33: #{tpu_custom_call.1} parent=28 // pred_check_branch
            %165 = sbr.rel target = $region35
          $region34: #{tpu_custom_call.1} parent=28 // pred_region
            %166 = sst [smem:[#allocation12]] [#allocation11]
            %167 = sst [smem:[#allocation13]] [#allocation10]
          $region35: #{tpu_custom_call.1} parent=28 // pred_fallthru
            _
          %169 = shalt.err (0)
          %s171 = sshll.u32 %s163, 4
          %s172 = int_to_ptr.vmem [resolvable:$true] %s171
          %174 = dma.hbm_to_vmem [thread:$0]  %s162, 16, %s172, [#allocation3]
        $region29: #{tpu_custom_call.1} parent=23 // loop_footer
          %s158 = sadd.s32 1, %s154
        $region30: #{tpu_custom_call.1} parent=23 // loop_footer_branch
          %153 = sbr.rel target = $region26
        $region31: #{tpu_custom_call.1} parent=23 // loop_exit
          _
        loop: start=0, step=1, limit=16
        $region36: #{tpu_custom_call.1} parent=23 // loop_pre_header
          _
        $region37: #{tpu_custom_call.1} parent=23 // loop_header
          %s176 = sphi 0, %s180
          %p177 = scmp.ge.s32.totalorder %s176, 16
        $region38: #{tpu_custom_call.1} parent=23 // loop_header_branch
          %179 = sbr.rel (%p177) target = $region42
        $region39: #{tpu_custom_call.1} parent=23 // loop_body
          %182 = dma.done [#allocation3], 16
        $region40: #{tpu_custom_call.1} parent=23 // loop_footer
          %s180 = sadd.s32 1, %s176
        $region41: #{tpu_custom_call.1} parent=23 // loop_footer_branch
          %175 = sbr.rel target = $region37
        $region42: #{tpu_custom_call.1} parent=23 // loop_exit
          _
        %v183 = vld [vmem:[#allocation2] sm:$0xff]
        %v184 = vld [vmem:[#allocation2 + $0x8] sm:$0xff]
        %v185 = vld [vmem:[#allocation2 + $0x10] sm:$0xff]
        %v186 = vld [vmem:[#allocation2 + $0x18] sm:$0xff]
        %v187 = vld [vmem:[#allocation2 + $0x20] sm:$0xff]
        %v188 = vld [vmem:[#allocation2 + $0x28] sm:$0xff]
        %v189 = vld [vmem:[#allocation2 + $0x30] sm:$0xff]
        %v190 = vld [vmem:[#allocation2 + $0x38] sm:$0xff]
        %v191 = vld [vmem:[#allocation2 + $0x40] sm:$0xff]
        %v192 = vld [vmem:[#allocation2 + $0x48] sm:$0xff]
        %v193 = vld [vmem:[#allocation2 + $0x50] sm:$0xff]
        %v194 = vld [vmem:[#allocation2 + $0x58] sm:$0xff]
        %v195 = vld [vmem:[#allocation2 + $0x60] sm:$0xff]
        %v196 = vld [vmem:[#allocation2 + $0x68] sm:$0xff]
        %v197 = vld [vmem:[#allocation2 + $0x70] sm:$0xff]
        %v198 = vld [vmem:[#allocation2 + $0x78] sm:$0xff]
        %v199 = vlaneseq
        %v200 = vshrl.u32 %v199, 7
        %v201 = vadd.s32 %v200, 8
        %v202 = vadd.s32 %v200, 16
        %v203 = vadd.s32 %v200, 24
        %v204 = vadd.s32 %v200, 32
        %v205 = vadd.s32 %v200, 40
        %v206 = vadd.s32 %v200, 48
        %v207 = vadd.s32 %v200, 56
        %v208 = vadd.s32 %v200, 64
        %v209 = vadd.s32 %v200, 72
        %v210 = vadd.s32 %v200, 80
        %v211 = vadd.s32 %v200, 88
        %v212 = vadd.s32 %v200, 96
        %v213 = vadd.s32 %v200, 104
        %v214 = vadd.s32 %v200, 112
        %v215 = vadd.s32 %v200, 120
        %vm216 = vcmp.lt.s32.totalorder %v200, 16
        %vm217 = vcmp.lt.s32.totalorder %v201, 16
        %vm218 = vcmp.lt.s32.totalorder %v202, 16
        %vm219 = vcmp.lt.s32.totalorder %v203, 16
        %vm220 = vcmp.lt.s32.totalorder %v204, 16
        %vm221 = vcmp.lt.s32.totalorder %v205, 16
        %vm222 = vcmp.lt.s32.totalorder %v206, 16
        %vm223 = vcmp.lt.s32.totalorder %v207, 16
        %vm224 = vcmp.lt.s32.totalorder %v208, 16
        %vm225 = vcmp.lt.s32.totalorder %v209, 16
        %vm226 = vcmp.lt.s32.totalorder %v210, 16
        %vm227 = vcmp.lt.s32.totalorder %v211, 16
        %vm228 = vcmp.lt.s32.totalorder %v212, 16
        %vm229 = vcmp.lt.s32.totalorder %v213, 16
        %vm230 = vcmp.lt.s32.totalorder %v214, 16
        %vm231 = vcmp.lt.s32.totalorder %v215, 16
        %v232 = vsel %vm216, %v183, 0.0
        %v233 = vsel %vm217, %v184, 0.0
        %v234 = vsel %vm218, %v185, 0.0
        %v235 = vsel %vm219, %v186, 0.0
        %v236 = vsel %vm220, %v187, 0.0
        %v237 = vsel %vm221, %v188, 0.0
        %v238 = vsel %vm222, %v189, 0.0
        %v239 = vsel %vm223, %v190, 0.0
        %v240 = vsel %vm224, %v191, 0.0
        %v241 = vsel %vm225, %v192, 0.0
        %v242 = vsel %vm226, %v193, 0.0
        %v243 = vsel %vm227, %v194, 0.0
        %v244 = vsel %vm228, %v195, 0.0
        %v245 = vsel %vm229, %v196, 0.0
        %v246 = vsel %vm230, %v197, 0.0
        %v247 = vsel %vm231, %v198, 0.0
        %248 = vmatprep.subr.mxu0 0.0
        %v249 = vand.u32 %v232, 4294901760
        %250 = vmatpush1.xpose.msra.mxu0 %v249
        %251 = vmatprep.subr.mxu0 0.0
        %v252 = vand.u32 %v233, 4294901760
        %253 = vmatpush1.xpose.msra.mxu0 %v252
        %254 = vmatprep.subr.mxu0 0.0
        %v255 = vand.u32 %v234, 4294901760
        %256 = vmatpush1.xpose.msra.mxu0 %v255
        %257 = vmatprep.subr.mxu0 0.0
        %v258 = vand.u32 %v235, 4294901760
        %259 = vmatpush1.xpose.msra.mxu0 %v258
        %260 = vmatprep.subr.mxu0 0.0
        %v261 = vand.u32 %v236, 4294901760
        %262 = vmatpush1.xpose.msra.mxu0 %v261
        %263 = vmatprep.subr.mxu0 0.0
        %v264 = vand.u32 %v237, 4294901760
        %265 = vmatpush1.xpose.msra.mxu0 %v264
        %266 = vmatprep.subr.mxu0 0.0
        %v267 = vand.u32 %v238, 4294901760
        %268 = vmatpush1.xpose.msra.mxu0 %v267
        %269 = vmatprep.subr.mxu0 0.0
        %v270 = vand.u32 %v239, 4294901760
        %271 = vmatpush1.xpose.msra.mxu0 %v270
        %272 = vmatprep.subr.mxu0 0.0
        %v273 = vand.u32 %v240, 4294901760
        %274 = vmatpush1.xpose.msra.mxu0 %v273
        %275 = vmatprep.subr.mxu0 0.0
        %v276 = vand.u32 %v241, 4294901760
        %277 = vmatpush1.xpose.msra.mxu0 %v276
        %278 = vmatprep.subr.mxu0 0.0
        %v279 = vand.u32 %v242, 4294901760
        %280 = vmatpush1.xpose.msra.mxu0 %v279
        %281 = vmatprep.subr.mxu0 0.0
        %v282 = vand.u32 %v243, 4294901760
        %283 = vmatpush1.xpose.msra.mxu0 %v282
        %284 = vmatprep.subr.mxu0 0.0
        %v285 = vand.u32 %v244, 4294901760
        %286 = vmatpush1.xpose.msra.mxu0 %v285
        %287 = vmatprep.subr.mxu0 0.0
        %v288 = vand.u32 %v245, 4294901760
        %289 = vmatpush1.xpose.msra.mxu0 %v288
        %290 = vmatprep.subr.mxu0 0.0
        %v291 = vand.u32 %v246, 4294901760
        %292 = vmatpush1.xpose.msra.mxu0 %v291
        %293 = vmatprep.subr.mxu0 0.0
        %v294 = vand.u32 %v247, 4294901760
        %295 = vmatpush1.xpose.msra.mxu0 %v294
        %296 = vmatprep.subr.mxu0 0.0
        %297 = vmatpush1.xpose.msra.mxu0 0.0
        %298 = vmatprep.subr.mxu0 0.0
        %299 = vmatpush1.xpose.msra.mxu0 0.0
        %300 = vmatprep.subr.mxu0 0.0
        %301 = vmatpush1.xpose.msra.mxu0 0.0
        %302 = vmatprep.subr.mxu0 0.0
        %303 = vmatpush1.xpose.msra.mxu0 0.0
        %304 = vmatprep.subr.mxu0 0.0
        %305 = vmatpush1.xpose.msra.mxu0 0.0
        %306 = vmatprep.subr.mxu0 0.0
        %307 = vmatpush1.xpose.msra.mxu0 0.0
        %308 = vmatprep.subr.mxu0 0.0
        %309 = vmatpush1.xpose.msra.mxu0 0.0
        %310 = vmatprep.subr.mxu0 0.0
        %311 = vmatpush1.xpose.msra.mxu0 0.0
        %312 = vmatprep.subr.mxu0 0.0
        %313 = vmatpush1.xpose.msra.mxu0 0.0
        %314 = vmatprep.subr.mxu0 0.0
        %315 = vmatpush1.xpose.msra.mxu0 0.0
        %316 = vmatprep.subr.mxu0 0.0
        %317 = vmatpush1.xpose.msra.mxu0 0.0
        %318 = vmatprep.subr.mxu0 0.0
        %319 = vmatpush1.xpose.msra.mxu0 0.0
        %320 = vmatprep.subr.mxu0 0.0
        %321 = vmatpush1.xpose.msra.mxu0 0.0
        %322 = vmatprep.subr.mxu0 0.0
        %323 = vmatpush1.xpose.msra.mxu0 0.0
        %324 = vmatprep.subr.mxu0 0.0
        %325 = vmatpush1.xpose.msra.mxu0 0.0
        %326 = vmatprep.subr.mxu0 0.0
        %327 = vmatpush1.xpose.msra.mxu0 0.0
        %328 = vmatprep.mubr.f32.mxu0 0.0
        %v329 = vand.u32 %v232, 4294901760
        %v330 = vsub.f32 %v232, %v329
        %v331 = vand.u32 %v330, 4294901760
        %v332 = vsub.f32 %v330, %v331
        %v333 = vand.u32 %v332, 4294901760
        %334 = vmatmul.mubr.f32.gmra.mrb[0].mxu0 %v333
        %v335 = vpop.f32.mrb[0].mxu0
        %v336 = vadd.f32 0.0, %v335
        %v337 = vpop.f32.mrb[0].mxu0
        %338 = vmatprep.mubr.f32.mxu0 0.0
        %v339 = vand.u32 %v233, 4294901760
        %v340 = vsub.f32 %v233, %v339
        %v341 = vand.u32 %v340, 4294901760
        %v342 = vsub.f32 %v340, %v341
        %v343 = vand.u32 %v342, 4294901760
        %344 = vmatmul.mubr.f32.gmra.mrb[0].mxu0 %v343
        %v345 = vpop.f32.mrb[0].mxu0
        %v346 = vadd.f32 0.0, %v345
        %v347 = vpop.f32.mrb[0].mxu0
        %348 = vmatprep.mubr.f32.mxu0 0.0
        %v349 = vand.u32 %v234, 4294901760
        %v350 = vsub.f32 %v234, %v349
        %v351 = vand.u32 %v350, 4294901760
        %v352 = vsub.f32 %v350, %v351
        %v353 = vand.u32 %v352, 4294901760
        %354 = vmatmul.mubr.f32.gmra.mrb[0].mxu0 %v353
        %v355 = vpop.f32.mrb[0].mxu0
        %v356 = vadd.f32 0.0, %v355
        %v357 = vpop.f32.mrb[0].mxu0
        %358 = vmatprep.mubr.f32.mxu0 0.0
        %v359 = vand.u32 %v235, 4294901760
        %v360 = vsub.f32 %v235, %v359
        %v361 = vand.u32 %v360, 4294901760
        %v362 = vsub.f32 %v360, %v361
        %v363 = vand.u32 %v362, 4294901760
        %364 = vmatmul.mubr.f32.gmra.mrb[0].mxu0 %v363
        %v365 = vpop.f32.mrb[0].mxu0
        %v366 = vadd.f32 0.0, %v365
        %v367 = vpop.f32.mrb[0].mxu0
        %368 = vmatprep.mubr.f32.mxu0 0.0
        %v369 = vand.u32 %v236, 4294901760
        %v370 = vsub.f32 %v236, %v369
        %v371 = vand.u32 %v370, 4294901760
        %v372 = vsub.f32 %v370, %v371
        %v373 = vand.u32 %v372, 4294901760
        %374 = vmatmul.mubr.f32.gmra.mrb[0].mxu0 %v373
        %v375 = vpop.f32.mrb[0].mxu0
        %v376 = vadd.f32 0.0, %v375
        %v377 = vpop.f32.mrb[0].mxu0
        %378 = vmatprep.mubr.f32.mxu0 0.0
        %v379 = vand.u32 %v237, 4294901760
        %v380 = vsub.f32 %v237, %v379
        %v381 = vand.u32 %v380, 4294901760
        %v382 = vsub.f32 %v380, %v381
        %v383 = vand.u32 %v382, 4294901760
        %384 = vmatmul.mubr.f32.gmra.mrb[0].mxu0 %v383
        %v385 = vpop.f32.mrb[0].mxu0
        %v386 = vadd.f32 0.0, %v385
        %v387 = vpop.f32.mrb[0].mxu0
        %388 = vmatprep.mubr.f32.mxu0 0.0
        %v389 = vand.u32 %v238, 4294901760
        %v390 = vsub.f32 %v238, %v389
        %v391 = vand.u32 %v390, 4294901760
        %v392 = vsub.f32 %v390, %v391
        %v393 = vand.u32 %v392, 4294901760
        %394 = vmatmul.mubr.f32.gmra.mrb[0].mxu0 %v393
        %v395 = vpop.f32.mrb[0].mxu0
        %v396 = vadd.f32 0.0, %v395
        %v397 = vpop.f32.mrb[0].mxu0
        %398 = vmatprep.mubr.f32.mxu0 0.0
        %v399 = vand.u32 %v239, 4294901760
        %v400 = vsub.f32 %v239, %v399
        %v401 = vand.u32 %v400, 4294901760
        %v402 = vsub.f32 %v400, %v401
        %v403 = vand.u32 %v402, 4294901760
        %404 = vmatmul.mubr.f32.gmra.mrb[0].mxu0 %v403
        %v405 = vpop.f32.mrb[0].mxu0
        %v406 = vadd.f32 0.0, %v405
        %v407 = vpop.f32.mrb[0].mxu0
        %408 = vmatprep.mubr.f32.mxu0 0.0
        %v409 = vand.u32 %v240, 4294901760
        %v410 = vsub.f32 %v240, %v409
        %v411 = vand.u32 %v410, 4294901760
        %v412 = vsub.f32 %v410, %v411
        %v413 = vand.u32 %v412, 4294901760
        %414 = vmatmul.mubr.f32.gmra.mrb[0].mxu0 %v413
        %v415 = vpop.f32.mrb[0].mxu0
        %v416 = vadd.f32 0.0, %v415
        %v417 = vpop.f32.mrb[0].mxu0
        %418 = vmatprep.mubr.f32.mxu0 0.0
        %v419 = vand.u32 %v241, 4294901760
        %v420 = vsub.f32 %v241, %v419
        %v421 = vand.u32 %v420, 4294901760
        %v422 = vsub.f32 %v420, %v421
        %v423 = vand.u32 %v422, 4294901760
        %424 = vmatmul.mubr.f32.gmra.mrb[0].mxu0 %v423
        %v425 = vpop.f32.mrb[0].mxu0
        %v426 = vadd.f32 0.0, %v425
        %v427 = vpop.f32.mrb[0].mxu0
        %428 = vmatprep.mubr.f32.mxu0 0.0
        %v429 = vand.u32 %v242, 4294901760
        %v430 = vsub.f32 %v242, %v429
        %v431 = vand.u32 %v430, 4294901760
        %v432 = vsub.f32 %v430, %v431
        %v433 = vand.u32 %v432, 4294901760
        %434 = vmatmul.mubr.f32.gmra.mrb[0].mxu0 %v433
        %v435 = vpop.f32.mrb[0].mxu0
        %v436 = vadd.f32 0.0, %v435
        %v437 = vpop.f32.mrb[0].mxu0
        %438 = vmatprep.mubr.f32.mxu0 0.0
        %v439 = vand.u32 %v243, 4294901760
        %v440 = vsub.f32 %v243, %v439
        %v441 = vand.u32 %v440, 4294901760
        %v442 = vsub.f32 %v440, %v441
        %v443 = vand.u32 %v442, 4294901760
        %444 = vmatmul.mubr.f32.gmra.mrb[0].mxu0 %v443
        %v445 = vpop.f32.mrb[0].mxu0
        %v446 = vadd.f32 0.0, %v445
        %v447 = vpop.f32.mrb[0].mxu0
        %448 = vmatprep.mubr.f32.mxu0 0.0
        %v449 = vand.u32 %v244, 4294901760
        %v450 = vsub.f32 %v244, %v449
        %v451 = vand.u32 %v450, 4294901760
        %v452 = vsub.f32 %v450, %v451
        %v453 = vand.u32 %v452, 4294901760
        %454 = vmatmul.mubr.f32.gmra.mrb[0].mxu0 %v453
        %v455 = vpop.f32.mrb[0].mxu0
        %v456 = vadd.f32 0.0, %v455
        %v457 = vpop.f32.mrb[0].mxu0
        %458 = vmatprep.mubr.f32.mxu0 0.0
        %v459 = vand.u32 %v245, 4294901760
        %v460 = vsub.f32 %v245, %v459
        %v461 = vand.u32 %v460, 4294901760
        %v462 = vsub.f32 %v460, %v461
        %v463 = vand.u32 %v462, 4294901760
        %464 = vmatmul.mubr.f32.gmra.mrb[0].mxu0 %v463
        %v465 = vpop.f32.mrb[0].mxu0
        %v466 = vadd.f32 0.0, %v465
        %v467 = vpop.f32.mrb[0].mxu0
        %468 = vmatprep.mubr.f32.mxu0 0.0
        %v469 = vand.u32 %v246, 4294901760
        %v470 = vsub.f32 %v246, %v469
        %v471 = vand.u32 %v470, 4294901760
        %v472 = vsub.f32 %v470, %v471
        %v473 = vand.u32 %v472, 4294901760
        %474 = vmatmul.mubr.f32.gmra.mrb[0].mxu0 %v473
        %v475 = vpop.f32.mrb[0].mxu0
        %v476 = vadd.f32 0.0, %v475
        %v477 = vpop.f32.mrb[0].mxu0
        %478 = vmatprep.mubr.f32.mxu0 0.0
        %v479 = vand.u32 %v247, 4294901760
        %v480 = vsub.f32 %v247, %v479
        %v481 = vand.u32 %v480, 4294901760
        %v482 = vsub.f32 %v480, %v481
        %v483 = vand.u32 %v482, 4294901760
        %484 = vmatmul.mubr.f32.gmra.mrb[0].mxu0 %v483
        %v485 = vpop.f32.mrb[0].mxu0
        %v486 = vadd.f32 0.0, %v485
        %v487 = vpop.f32.mrb[0].mxu0
        %488 = vdwg.mxu0
        %489 = vmatprep.subr.mxu0 0.0
        %v490 = vand.u32 %v232, 4294901760
        %v491 = vsub.f32 %v232, %v490
        %v492 = vand.u32 %v491, 4294901760
        %v493 = vsub.f32 %v491, %v492
        %v494 = vand.u32 %v493, 4294901760
        %495 = vmatpush1.xpose.msra.mxu0 %v494
        %496 = vmatprep.subr.mxu0 0.0
        %v497 = vand.u32 %v233, 4294901760
        %v498 = vsub.f32 %v233, %v497
        %v499 = vand.u32 %v498, 4294901760
        %v500 = vsub.f32 %v498, %v499
        %v501 = vand.u32 %v500, 4294901760
        %502 = vmatpush1.xpose.msra.mxu0 %v501
        %503 = vmatprep.subr.mxu0 0.0
        %v504 = vand.u32 %v234, 4294901760
        %v505 = vsub.f32 %v234, %v504
        %v506 = vand.u32 %v505, 4294901760
        %v507 = vsub.f32 %v505, %v506
        %v508 = vand.u32 %v507, 4294901760
        %509 = vmatpush1.xpose.msra.mxu0 %v508
        %510 = vmatprep.subr.mxu0 0.0
        %v511 = vand.u32 %v235, 4294901760
        %v512 = vsub.f32 %v235, %v511
        %v513 = vand.u32 %v512, 4294901760
        %v514 = vsub.f32 %v512, %v513
        %v515 = vand.u32 %v514, 4294901760
        %516 = vmatpush1.xpose.msra.mxu0 %v515
        %517 = vmatprep.subr.mxu0 0.0
        %v518 = vand.u32 %v236, 4294901760
        %v519 = vsub.f32 %v236, %v518
        %v520 = vand.u32 %v519, 4294901760
        %v521 = vsub.f32 %v519, %v520
        %v522 = vand.u32 %v521, 4294901760
        %523 = vmatpush1.xpose.msra.mxu0 %v522
        %524 = vmatprep.subr.mxu0 0.0
        %v525 = vand.u32 %v237, 4294901760
        %v526 = vsub.f32 %v237, %v525
        %v527 = vand.u32 %v526, 4294901760
        %v528 = vsub.f32 %v526, %v527
        %v529 = vand.u32 %v528, 4294901760
        %530 = vmatpush1.xpose.msra.mxu0 %v529
        %531 = vmatprep.subr.mxu0 0.0
        %v532 = vand.u32 %v238, 4294901760
        %v533 = vsub.f32 %v238, %v532
        %v534 = vand.u32 %v533, 4294901760
        %v535 = vsub.f32 %v533, %v534
        %v536 = vand.u32 %v535, 4294901760
        %537 = vmatpush1.xpose.msra.mxu0 %v536
        %538 = vmatprep.subr.mxu0 0.0
        %v539 = vand.u32 %v239, 4294901760
        %v540 = vsub.f32 %v239, %v539
        %v541 = vand.u32 %v540, 4294901760
        %v542 = vsub.f32 %v540, %v541
        %v543 = vand.u32 %v542, 4294901760
        %544 = vmatpush1.xpose.msra.mxu0 %v543
        %545 = vmatprep.subr.mxu0 0.0
        %v546 = vand.u32 %v240, 4294901760
        %v547 = vsub.f32 %v240, %v546
        %v548 = vand.u32 %v547, 4294901760
        %v549 = vsub.f32 %v547, %v548
        %v550 = vand.u32 %v549, 4294901760
        %551 = vmatpush1.xpose.msra.mxu0 %v550
        %552 = vmatprep.subr.mxu0 0.0
        %v553 = vand.u32 %v241, 4294901760
        %v554 = vsub.f32 %v241, %v553
        %v555 = vand.u32 %v554, 4294901760
        %v556 = vsub.f32 %v554, %v555
        %v557 = vand.u32 %v556, 4294901760
        %558 = vmatpush1.xpose.msra.mxu0 %v557
        %559 = vmatprep.subr.mxu0 0.0
        %v560 = vand.u32 %v242, 4294901760
        %v561 = vsub.f32 %v242, %v560
        %v562 = vand.u32 %v561, 4294901760
        %v563 = vsub.f32 %v561, %v562
        %v564 = vand.u32 %v563, 4294901760
        %565 = vmatpush1.xpose.msra.mxu0 %v564
        %566 = vmatprep.subr.mxu0 0.0
        %v567 = vand.u32 %v243, 4294901760
        %v568 = vsub.f32 %v243, %v567
        %v569 = vand.u32 %v568, 4294901760
        %v570 = vsub.f32 %v568, %v569
        %v571 = vand.u32 %v570, 4294901760
        %572 = vmatpush1.xpose.msra.mxu0 %v571
        %573 = vmatprep.subr.mxu0 0.0
        %v574 = vand.u32 %v244, 4294901760
        %v575 = vsub.f32 %v244, %v574
        %v576 = vand.u32 %v575, 4294901760
        %v577 = vsub.f32 %v575, %v576
        %v578 = vand.u32 %v577, 4294901760
        %579 = vmatpush1.xpose.msra.mxu0 %v578
        %580 = vmatprep.subr.mxu0 0.0
        %v581 = vand.u32 %v245, 4294901760
        %v582 = vsub.f32 %v245, %v581
        %v583 = vand.u32 %v582, 4294901760
        %v584 = vsub.f32 %v582, %v583
        %v585 = vand.u32 %v584, 4294901760
        %586 = vmatpush1.xpose.msra.mxu0 %v585
        %587 = vmatprep.subr.mxu0 0.0
        %v588 = vand.u32 %v246, 4294901760
        %v589 = vsub.f32 %v246, %v588
        %v590 = vand.u32 %v589, 4294901760
        %v591 = vsub.f32 %v589, %v590
        %v592 = vand.u32 %v591, 4294901760
        %593 = vmatpush1.xpose.msra.mxu0 %v592
        %594 = vmatprep.subr.mxu0 0.0
        %v595 = vand.u32 %v247, 4294901760
        %v596 = vsub.f32 %v247, %v595
        %v597 = vand.u32 %v596, 4294901760
        %v598 = vsub.f32 %v596, %v597
        %v599 = vand.u32 %v598, 4294901760
        %600 = vmatpush1.xpose.msra.mxu0 %v599
        %601 = vmatprep.subr.mxu0 0.0
        %602 = vmatpush1.xpose.msra.mxu0 0.0
        %603 = vmatprep.subr.mxu0 0.0
        %604 = vmatpush1.xpose.msra.mxu0 0.0
        %605 = vmatprep.subr.mxu0 0.0
        %606 = vmatpush1.xpose.msra.mxu0 0.0
        %607 = vmatprep.subr.mxu0 0.0
        %608 = vmatpush1.xpose.msra.mxu0 0.0
        %609 = vmatprep.subr.mxu0 0.0
        %610 = vmatpush1.xpose.msra.mxu0 0.0
        %611 = vmatprep.subr.mxu0 0.0
        %612 = vmatpush1.xpose.msra.mxu0 0.0
        %613 = vmatprep.subr.mxu0 0.0
        %614 = vmatpush1.xpose.msra.mxu0 0.0
        %615 = vmatprep.subr.mxu0 0.0
        %616 = vmatpush1.xpose.msra.mxu0 0.0
        %617 = vmatprep.subr.mxu0 0.0
        %618 = vmatpush1.xpose.msra.mxu0 0.0
        %619 = vmatprep.subr.mxu0 0.0
        %620 = vmatpush1.xpose.msra.mxu0 0.0
        %621 = vmatprep.subr.mxu0 0.0
        %622 = vmatpush1.xpose.msra.mxu0 0.0
        %623 = vmatprep.subr.mxu0 0.0
        %624 = vmatpush1.xpose.msra.mxu0 0.0
        %625 = vmatprep.subr.mxu0 0.0
        %626 = vmatpush1.xpose.msra.mxu0 0.0
        %627 = vmatprep.subr.mxu0 0.0
        %628 = vmatpush1.xpose.msra.mxu0 0.0
        %629 = vmatprep.subr.mxu0 0.0
        %630 = vmatpush1.xpose.msra.mxu0 0.0
        %631 = vmatprep.subr.mxu0 0.0
        %632 = vmatpush1.xpose.msra.mxu0 0.0
        %633 = vmatprep.mubr.f32.mxu0 0.0
        %v634 = vand.u32 %v232, 4294901760
        %635 = vmatmul.mubr.f32.gmra.mrb[0].mxu0 %v634
        %v636 = vpop.f32.mrb[0].mxu0
        %v637 = vadd.f32 %v336, %v636
        %v638 = vpop.f32.mrb[0].mxu0
        %639 = vmatprep.mubr.f32.mxu0 0.0
        %v640 = vand.u32 %v233, 4294901760
        %641 = vmatmul.mubr.f32.gmra.mrb[0].mxu0 %v640
        %v642 = vpop.f32.mrb[0].mxu0
        %v643 = vadd.f32 %v346, %v642
        %v644 = vpop.f32.mrb[0].mxu0
        %645 = vmatprep.mubr.f32.mxu0 0.0
        %v646 = vand.u32 %v234, 4294901760
        %647 = vmatmul.mubr.f32.gmra.mrb[0].mxu0 %v646
        %v648 = vpop.f32.mrb[0].mxu0
        %v649 = vadd.f32 %v356, %v648
        %v650 = vpop.f32.mrb[0].mxu0
        %651 = vmatprep.mubr.f32.mxu0 0.0
        %v652 = vand.u32 %v235, 4294901760
        %653 = vmatmul.mubr.f32.gmra.mrb[0].mxu0 %v652
        %v654 = vpop.f32.mrb[0].mxu0
        %v655 = vadd.f32 %v366, %v654
        %v656 = vpop.f32.mrb[0].mxu0
        %657 = vmatprep.mubr.f32.mxu0 0.0
        %v658 = vand.u32 %v236, 4294901760
        %659 = vmatmul.mubr.f32.gmra.mrb[0].mxu0 %v658
        %v660 = vpop.f32.mrb[0].mxu0
        %v661 = vadd.f32 %v376, %v660
        %v662 = vpop.f32.mrb[0].mxu0
        %663 = vmatprep.mubr.f32.mxu0 0.0
        %v664 = vand.u32 %v237, 4294901760
        %665 = vmatmul.mubr.f32.gmra.mrb[0].mxu0 %v664
        %v666 = vpop.f32.mrb[0].mxu0
        %v667 = vadd.f32 %v386, %v666
        %v668 = vpop.f32.mrb[0].mxu0
        %669 = vmatprep.mubr.f32.mxu0 0.0
        %v670 = vand.u32 %v238, 4294901760
        %671 = vmatmul.mubr.f32.gmra.mrb[0].mxu0 %v670
        %v672 = vpop.f32.mrb[0].mxu0
        %v673 = vadd.f32 %v396, %v672
        %v674 = vpop.f32.mrb[0].mxu0
        %675 = vmatprep.mubr.f32.mxu0 0.0
        %v676 = vand.u32 %v239, 4294901760
        %677 = vmatmul.mubr.f32.gmra.mrb[0].mxu0 %v676
        %v678 = vpop.f32.mrb[0].mxu0
        %v679 = vadd.f32 %v406, %v678
        %v680 = vpop.f32.mrb[0].mxu0
        %681 = vmatprep.mubr.f32.mxu0 0.0
        %v682 = vand.u32 %v240, 4294901760
        %683 = vmatmul.mubr.f32.gmra.mrb[0].mxu0 %v682
        %v684 = vpop.f32.mrb[0].mxu0
        %v685 = vadd.f32 %v416, %v684
        %v686 = vpop.f32.mrb[0].mxu0
        %687 = vmatprep.mubr.f32.mxu0 0.0
        %v688 = vand.u32 %v241, 4294901760
        %689 = vmatmul.mubr.f32.gmra.mrb[0].mxu0 %v688
        %v690 = vpop.f32.mrb[0].mxu0
        %v691 = vadd.f32 %v426, %v690
        %v692 = vpop.f32.mrb[0].mxu0
        %693 = vmatprep.mubr.f32.mxu0 0.0
        %v694 = vand.u32 %v242, 4294901760
        %695 = vmatmul.mubr.f32.gmra.mrb[0].mxu0 %v694
        %v696 = vpop.f32.mrb[0].mxu0
        %v697 = vadd.f32 %v436, %v696
        %v698 = vpop.f32.mrb[0].mxu0
        %699 = vmatprep.mubr.f32.mxu0 0.0
        %v700 = vand.u32 %v243, 4294901760
        %701 = vmatmul.mubr.f32.gmra.mrb[0].mxu0 %v700
        %v702 = vpop.f32.mrb[0].mxu0
        %v703 = vadd.f32 %v446, %v702
        %v704 = vpop.f32.mrb[0].mxu0
        %705 = vmatprep.mubr.f32.mxu0 0.0
        %v706 = vand.u32 %v244, 4294901760
        %707 = vmatmul.mubr.f32.gmra.mrb[0].mxu0 %v706
        %v708 = vpop.f32.mrb[0].mxu0
        %v709 = vadd.f32 %v456, %v708
        %v710 = vpop.f32.mrb[0].mxu0
        %711 = vmatprep.mubr.f32.mxu0 0.0
        %v712 = vand.u32 %v245, 4294901760
        %713 = vmatmul.mubr.f32.gmra.mrb[0].mxu0 %v712
        %v714 = vpop.f32.mrb[0].mxu0
        %v715 = vadd.f32 %v466, %v714
        %v716 = vpop.f32.mrb[0].mxu0
        %717 = vmatprep.mubr.f32.mxu0 0.0
        %v718 = vand.u32 %v246, 4294901760
        %719 = vmatmul.mubr.f32.gmra.mrb[0].mxu0 %v718
        %v720 = vpop.f32.mrb[0].mxu0
        %v721 = vadd.f32 %v476, %v720
        %v722 = vpop.f32.mrb[0].mxu0
        %723 = vmatprep.mubr.f32.mxu0 0.0
        %v724 = vand.u32 %v247, 4294901760
        %725 = vmatmul.mubr.f32.gmra.mrb[0].mxu0 %v724
        %v726 = vpop.f32.mrb[0].mxu0
        %v727 = vadd.f32 %v486, %v726
        %v728 = vpop.f32.mrb[0].mxu0
        %729 = vdwg.mxu0
        %730 = vmatprep.subr.mxu0 0.0
        %v731 = vand.u32 %v232, 4294901760
        %v732 = vsub.f32 %v232, %v731
        %733 = vmatpush1.xpose.msra.mxu0 %v732
        %734 = vmatprep.subr.mxu0 0.0
        %v735 = vand.u32 %v233, 4294901760
        %v736 = vsub.f32 %v233, %v735
        %737 = vmatpush1.xpose.msra.mxu0 %v736
        %738 = vmatprep.subr.mxu0 0.0
        %v739 = vand.u32 %v234, 4294901760
        %v740 = vsub.f32 %v234, %v739
        %741 = vmatpush1.xpose.msra.mxu0 %v740
        %742 = vmatprep.subr.mxu0 0.0
        %v743 = vand.u32 %v235, 4294901760
        %v744 = vsub.f32 %v235, %v743
        %745 = vmatpush1.xpose.msra.mxu0 %v744
        %746 = vmatprep.subr.mxu0 0.0
        %v747 = vand.u32 %v236, 4294901760
        %v748 = vsub.f32 %v236, %v747
        %749 = vmatpush1.xpose.msra.mxu0 %v748
        %750 = vmatprep.subr.mxu0 0.0
        %v751 = vand.u32 %v237, 4294901760
        %v752 = vsub.f32 %v237, %v751
        %753 = vmatpush1.xpose.msra.mxu0 %v752
        %754 = vmatprep.subr.mxu0 0.0
        %v755 = vand.u32 %v238, 4294901760
        %v756 = vsub.f32 %v238, %v755
        %757 = vmatpush1.xpose.msra.mxu0 %v756
        %758 = vmatprep.subr.mxu0 0.0
        %v759 = vand.u32 %v239, 4294901760
        %v760 = vsub.f32 %v239, %v759
        %761 = vmatpush1.xpose.msra.mxu0 %v760
        %762 = vmatprep.subr.mxu0 0.0
        %v763 = vand.u32 %v240, 4294901760
        %v764 = vsub.f32 %v240, %v763
        %765 = vmatpush1.xpose.msra.mxu0 %v764
        %766 = vmatprep.subr.mxu0 0.0
        %v767 = vand.u32 %v241, 4294901760
        %v768 = vsub.f32 %v241, %v767
        %769 = vmatpush1.xpose.msra.mxu0 %v768
        %770 = vmatprep.subr.mxu0 0.0
        %v771 = vand.u32 %v242, 4294901760
        %v772 = vsub.f32 %v242, %v771
        %773 = vmatpush1.xpose.msra.mxu0 %v772
        %774 = vmatprep.subr.mxu0 0.0
        %v775 = vand.u32 %v243, 4294901760
        %v776 = vsub.f32 %v243, %v775
        %777 = vmatpush1.xpose.msra.mxu0 %v776
        %778 = vmatprep.subr.mxu0 0.0
        %v779 = vand.u32 %v244, 4294901760
        %v780 = vsub.f32 %v244, %v779
        %781 = vmatpush1.xpose.msra.mxu0 %v780
        %782 = vmatprep.subr.mxu0 0.0
        %v783 = vand.u32 %v245, 4294901760
        %v784 = vsub.f32 %v245, %v783
        %785 = vmatpush1.xpose.msra.mxu0 %v784
        %786 = vmatprep.subr.mxu0 0.0
        %v787 = vand.u32 %v246, 4294901760
        %v788 = vsub.f32 %v246, %v787
        %789 = vmatpush1.xpose.msra.mxu0 %v788
        %790 = vmatprep.subr.mxu0 0.0
        %v791 = vand.u32 %v247, 4294901760
        %v792 = vsub.f32 %v247, %v791
        %793 = vmatpush1.xpose.msra.mxu0 %v792
        %794 = vmatprep.subr.mxu0 0.0
        %795 = vmatpush1.xpose.msra.mxu0 0.0
        %796 = vmatprep.subr.mxu0 0.0
        %797 = vmatpush1.xpose.msra.mxu0 0.0
        %798 = vmatprep.subr.mxu0 0.0
        %799 = vmatpush1.xpose.msra.mxu0 0.0
        %800 = vmatprep.subr.mxu0 0.0
        %801 = vmatpush1.xpose.msra.mxu0 0.0
        %802 = vmatprep.subr.mxu0 0.0
        %803 = vmatpush1.xpose.msra.mxu0 0.0
        %804 = vmatprep.subr.mxu0 0.0
        %805 = vmatpush1.xpose.msra.mxu0 0.0
        %806 = vmatprep.subr.mxu0 0.0
        %807 = vmatpush1.xpose.msra.mxu0 0.0
        %808 = vmatprep.subr.mxu0 0.0
        %809 = vmatpush1.xpose.msra.mxu0 0.0
        %810 = vmatprep.subr.mxu0 0.0
        %811 = vmatpush1.xpose.msra.mxu0 0.0
        %812 = vmatprep.subr.mxu0 0.0
        %813 = vmatpush1.xpose.msra.mxu0 0.0
        %814 = vmatprep.subr.mxu0 0.0
        %815 = vmatpush1.xpose.msra.mxu0 0.0
        %816 = vmatprep.subr.mxu0 0.0
        %817 = vmatpush1.xpose.msra.mxu0 0.0
        %818 = vmatprep.subr.mxu0 0.0
        %819 = vmatpush1.xpose.msra.mxu0 0.0
        %820 = vmatprep.subr.mxu0 0.0
        %821 = vmatpush1.xpose.msra.mxu0 0.0
        %822 = vmatprep.subr.mxu0 0.0
        %823 = vmatpush1.xpose.msra.mxu0 0.0
        %824 = vmatprep.subr.mxu0 0.0
        %825 = vmatpush1.xpose.msra.mxu0 0.0
        %826 = vmatprep.mubr.f32.mxu0 0.0
        %v827 = vand.u32 %v232, 4294901760
        %v828 = vsub.f32 %v232, %v827
        %829 = vmatmul.mubr.f32.gmra.mrb[0].mxu0 %v828
        %v830 = vpop.f32.mrb[0].mxu0
        %v831 = vadd.f32 %v637, %v830
        %v832 = vpop.f32.mrb[0].mxu0
        %833 = vmatprep.mubr.f32.mxu0 0.0
        %v834 = vand.u32 %v233, 4294901760
        %v835 = vsub.f32 %v233, %v834
        %836 = vmatmul.mubr.f32.gmra.mrb[0].mxu0 %v835
        %v837 = vpop.f32.mrb[0].mxu0
        %v838 = vadd.f32 %v643, %v837
        %v839 = vpop.f32.mrb[0].mxu0
        %840 = vmatprep.mubr.f32.mxu0 0.0
        %v841 = vand.u32 %v234, 4294901760
        %v842 = vsub.f32 %v234, %v841
        %843 = vmatmul.mubr.f32.gmra.mrb[0].mxu0 %v842
        %v844 = vpop.f32.mrb[0].mxu0
        %v845 = vadd.f32 %v649, %v844
        %v846 = vpop.f32.mrb[0].mxu0
        %847 = vmatprep.mubr.f32.mxu0 0.0
        %v848 = vand.u32 %v235, 4294901760
        %v849 = vsub.f32 %v235, %v848
        %850 = vmatmul.mubr.f32.gmra.mrb[0].mxu0 %v849
        %v851 = vpop.f32.mrb[0].mxu0
        %v852 = vadd.f32 %v655, %v851
        %v853 = vpop.f32.mrb[0].mxu0
        %854 = vmatprep.mubr.f32.mxu0 0.0
        %v855 = vand.u32 %v236, 4294901760
        %v856 = vsub.f32 %v236, %v855
        %857 = vmatmul.mubr.f32.gmra.mrb[0].mxu0 %v856
        %v858 = vpop.f32.mrb[0].mxu0
        %v859 = vadd.f32 %v661, %v858
        %v860 = vpop.f32.mrb[0].mxu0
        %861 = vmatprep.mubr.f32.mxu0 0.0
        %v862 = vand.u32 %v237, 4294901760
        %v863 = vsub.f32 %v237, %v862
        %864 = vmatmul.mubr.f32.gmra.mrb[0].mxu0 %v863
        %v865 = vpop.f32.mrb[0].mxu0
        %v866 = vadd.f32 %v667, %v865
        %v867 = vpop.f32.mrb[0].mxu0
        %868 = vmatprep.mubr.f32.mxu0 0.0
        %v869 = vand.u32 %v238, 4294901760
        %v870 = vsub.f32 %v238, %v869
        %871 = vmatmul.mubr.f32.gmra.mrb[0].mxu0 %v870
        %v872 = vpop.f32.mrb[0].mxu0
        %v873 = vadd.f32 %v673, %v872
        %v874 = vpop.f32.mrb[0].mxu0
        %875 = vmatprep.mubr.f32.mxu0 0.0
        %v876 = vand.u32 %v239, 4294901760
        %v877 = vsub.f32 %v239, %v876
        %878 = vmatmul.mubr.f32.gmra.mrb[0].mxu0 %v877
        %v879 = vpop.f32.mrb[0].mxu0
        %v880 = vadd.f32 %v679, %v879
        %v881 = vpop.f32.mrb[0].mxu0
        %882 = vmatprep.mubr.f32.mxu0 0.0
        %v883 = vand.u32 %v240, 4294901760
        %v884 = vsub.f32 %v240, %v883
        %885 = vmatmul.mubr.f32.gmra.mrb[0].mxu0 %v884
        %v886 = vpop.f32.mrb[0].mxu0
        %v887 = vadd.f32 %v685, %v886
        %v888 = vpop.f32.mrb[0].mxu0
        %889 = vmatprep.mubr.f32.mxu0 0.0
        %v890 = vand.u32 %v241, 4294901760
        %v891 = vsub.f32 %v241, %v890
        %892 = vmatmul.mubr.f32.gmra.mrb[0].mxu0 %v891
        %v893 = vpop.f32.mrb[0].mxu0
        %v894 = vadd.f32 %v691, %v893
        %v895 = vpop.f32.mrb[0].mxu0
        %896 = vmatprep.mubr.f32.mxu0 0.0
        %v897 = vand.u32 %v242, 4294901760
        %v898 = vsub.f32 %v242, %v897
        %899 = vmatmul.mubr.f32.gmra.mrb[0].mxu0 %v898
        %v900 = vpop.f32.mrb[0].mxu0
        %v901 = vadd.f32 %v697, %v900
        %v902 = vpop.f32.mrb[0].mxu0
        %903 = vmatprep.mubr.f32.mxu0 0.0
        %v904 = vand.u32 %v243, 4294901760
        %v905 = vsub.f32 %v243, %v904
        %906 = vmatmul.mubr.f32.gmra.mrb[0].mxu0 %v905
        %v907 = vpop.f32.mrb[0].mxu0
        %v908 = vadd.f32 %v703, %v907
        %v909 = vpop.f32.mrb[0].mxu0
        %910 = vmatprep.mubr.f32.mxu0 0.0
        %v911 = vand.u32 %v244, 4294901760
        %v912 = vsub.f32 %v244, %v911
        %913 = vmatmul.mubr.f32.gmra.mrb[0].mxu0 %v912
        %v914 = vpop.f32.mrb[0].mxu0
        %v915 = vadd.f32 %v709, %v914
        %v916 = vpop.f32.mrb[0].mxu0
        %917 = vmatprep.mubr.f32.mxu0 0.0
        %v918 = vand.u32 %v245, 4294901760
        %v919 = vsub.f32 %v245, %v918
        %920 = vmatmul.mubr.f32.gmra.mrb[0].mxu0 %v919
        %v921 = vpop.f32.mrb[0].mxu0
        %v922 = vadd.f32 %v715, %v921
        %v923 = vpop.f32.mrb[0].mxu0
        %924 = vmatprep.mubr.f32.mxu0 0.0
        %v925 = vand.u32 %v246, 4294901760
        %v926 = vsub.f32 %v246, %v925
        %927 = vmatmul.mubr.f32.gmra.mrb[0].mxu0 %v926
        %v928 = vpop.f32.mrb[0].mxu0
        %v929 = vadd.f32 %v721, %v928
        %v930 = vpop.f32.mrb[0].mxu0
        %931 = vmatprep.mubr.f32.mxu0 0.0
        %v932 = vand.u32 %v247, 4294901760
        %v933 = vsub.f32 %v247, %v932
        %934 = vmatmul.mubr.f32.gmra.mrb[0].mxu0 %v933
        %v935 = vpop.f32.mrb[0].mxu0
        %v936 = vadd.f32 %v727, %v935
        %v937 = vpop.f32.mrb[0].mxu0
        %938 = vdwg.mxu0
        %939 = vmatprep.subr.mxu0 0.0
        %v940 = vand.u32 %v232, 4294901760
        %941 = vmatpush1.xpose.msra.mxu0 %v940
        %942 = vmatprep.subr.mxu0 0.0
        %v943 = vand.u32 %v233, 4294901760
        %944 = vmatpush1.xpose.msra.mxu0 %v943
        %945 = vmatprep.subr.mxu0 0.0
        %v946 = vand.u32 %v234, 4294901760
        %947 = vmatpush1.xpose.msra.mxu0 %v946
        %948 = vmatprep.subr.mxu0 0.0
        %v949 = vand.u32 %v235, 4294901760
        %950 = vmatpush1.xpose.msra.mxu0 %v949
        %951 = vmatprep.subr.mxu0 0.0
        %v952 = vand.u32 %v236, 4294901760
        %953 = vmatpush1.xpose.msra.mxu0 %v952
        %954 = vmatprep.subr.mxu0 0.0
        %v955 = vand.u32 %v237, 4294901760
        %956 = vmatpush1.xpose.msra.mxu0 %v955
        %957 = vmatprep.subr.mxu0 0.0
        %v958 = vand.u32 %v238, 4294901760
        %959 = vmatpush1.xpose.msra.mxu0 %v958
        %960 = vmatprep.subr.mxu0 0.0
        %v961 = vand.u32 %v239, 4294901760
        %962 = vmatpush1.xpose.msra.mxu0 %v961
        %963 = vmatprep.subr.mxu0 0.0
        %v964 = vand.u32 %v240, 4294901760
        %965 = vmatpush1.xpose.msra.mxu0 %v964
        %966 = vmatprep.subr.mxu0 0.0
        %v967 = vand.u32 %v241, 4294901760
        %968 = vmatpush1.xpose.msra.mxu0 %v967
        %969 = vmatprep.subr.mxu0 0.0
        %v970 = vand.u32 %v242, 4294901760
        %971 = vmatpush1.xpose.msra.mxu0 %v970
        %972 = vmatprep.subr.mxu0 0.0
        %v973 = vand.u32 %v243, 4294901760
        %974 = vmatpush1.xpose.msra.mxu0 %v973
        %975 = vmatprep.subr.mxu0 0.0
        %v976 = vand.u32 %v244, 4294901760
        %977 = vmatpush1.xpose.msra.mxu0 %v976
        %978 = vmatprep.subr.mxu0 0.0
        %v979 = vand.u32 %v245, 4294901760
        %980 = vmatpush1.xpose.msra.mxu0 %v979
        %981 = vmatprep.subr.mxu0 0.0
        %v982 = vand.u32 %v246, 4294901760
        %983 = vmatpush1.xpose.msra.mxu0 %v982
        %984 = vmatprep.subr.mxu0 0.0
        %v985 = vand.u32 %v247, 4294901760
        %986 = vmatpush1.xpose.msra.mxu0 %v985
        %987 = vmatprep.subr.mxu0 0.0
        %988 = vmatpush1.xpose.msra.mxu0 0.0
        %989 = vmatprep.subr.mxu0 0.0
        %990 = vmatpush1.xpose.msra.mxu0 0.0
        %991 = vmatprep.subr.mxu0 0.0
        %992 = vmatpush1.xpose.msra.mxu0 0.0
        %993 = vmatprep.subr.mxu0 0.0
        %994 = vmatpush1.xpose.msra.mxu0 0.0
        %995 = vmatprep.subr.mxu0 0.0
        %996 = vmatpush1.xpose.msra.mxu0 0.0
        %997 = vmatprep.subr.mxu0 0.0
        %998 = vmatpush1.xpose.msra.mxu0 0.0
        %999 = vmatprep.subr.mxu0 0.0
        %1000 = vmatpush1.xpose.msra.mxu0 0.0
        %1001 = vmatprep.subr.mxu0 0.0
        %1002 = vmatpush1.xpose.msra.mxu0 0.0
        %1003 = vmatprep.subr.mxu0 0.0
        %1004 = vmatpush1.xpose.msra.mxu0 0.0
        %1005 = vmatprep.subr.mxu0 0.0
        %1006 = vmatpush1.xpose.msra.mxu0 0.0
        %1007 = vmatprep.subr.mxu0 0.0
        %1008 = vmatpush1.xpose.msra.mxu0 0.0
        %1009 = vmatprep.subr.mxu0 0.0
        %1010 = vmatpush1.xpose.msra.mxu0 0.0
        %1011 = vmatprep.subr.mxu0 0.0
        %1012 = vmatpush1.xpose.msra.mxu0 0.0
        %1013 = vmatprep.subr.mxu0 0.0
        %1014 = vmatpush1.xpose.msra.mxu0 0.0
        %1015 = vmatprep.subr.mxu0 0.0
        %1016 = vmatpush1.xpose.msra.mxu0 0.0
        %1017 = vmatprep.subr.mxu0 0.0
        %1018 = vmatpush1.xpose.msra.mxu0 0.0
        %1019 = vmatprep.mubr.f32.mxu0 0.0
        %v1020 = vand.u32 %v232, 4294901760
        %v1021 = vsub.f32 %v232, %v1020
        %v1022 = vand.u32 %v1021, 4294901760
        %1023 = vmatmul.mubr.f32.gmra.mrb[0].mxu0 %v1022
        %v1024 = vpop.f32.mrb[0].mxu0
        %v1025 = vadd.f32 %v831, %v1024
        %v1026 = vpop.f32.mrb[0].mxu0
        %1027 = vmatprep.mubr.f32.mxu0 0.0
        %v1028 = vand.u32 %v233, 4294901760
        %v1029 = vsub.f32 %v233, %v1028
        %v1030 = vand.u32 %v1029, 4294901760
        %1031 = vmatmul.mubr.f32.gmra.mrb[0].mxu0 %v1030
        %v1032 = vpop.f32.mrb[0].mxu0
        %v1033 = vadd.f32 %v838, %v1032
        %v1034 = vpop.f32.mrb[0].mxu0
        %1035 = vmatprep.mubr.f32.mxu0 0.0
        %v1036 = vand.u32 %v234, 4294901760
        %v1037 = vsub.f32 %v234, %v1036
        %v1038 = vand.u32 %v1037, 4294901760
        %1039 = vmatmul.mubr.f32.gmra.mrb[0].mxu0 %v1038
        %v1040 = vpop.f32.mrb[0].mxu0
        %v1041 = vadd.f32 %v845, %v1040
        %v1042 = vpop.f32.mrb[0].mxu0
        %1043 = vmatprep.mubr.f32.mxu0 0.0
        %v1044 = vand.u32 %v235, 4294901760
        %v1045 = vsub.f32 %v235, %v1044
        %v1046 = vand.u32 %v1045, 4294901760
        %1047 = vmatmul.mubr.f32.gmra.mrb[0].mxu0 %v1046
        %v1048 = vpop.f32.mrb[0].mxu0
        %v1049 = vadd.f32 %v852, %v1048
        %v1050 = vpop.f32.mrb[0].mxu0
        %1051 = vmatprep.mubr.f32.mxu0 0.0
        %v1052 = vand.u32 %v236, 4294901760
        %v1053 = vsub.f32 %v236, %v1052
        %v1054 = vand.u32 %v1053, 4294901760
        %1055 = vmatmul.mubr.f32.gmra.mrb[0].mxu0 %v1054
        %v1056 = vpop.f32.mrb[0].mxu0
        %v1057 = vadd.f32 %v859, %v1056
        %v1058 = vpop.f32.mrb[0].mxu0
        %1059 = vmatprep.mubr.f32.mxu0 0.0
        %v1060 = vand.u32 %v237, 4294901760
        %v1061 = vsub.f32 %v237, %v1060
        %v1062 = vand.u32 %v1061, 4294901760
        %1063 = vmatmul.mubr.f32.gmra.mrb[0].mxu0 %v1062
        %v1064 = vpop.f32.mrb[0].mxu0
        %v1065 = vadd.f32 %v866, %v1064
        %v1066 = vpop.f32.mrb[0].mxu0
        %1067 = vmatprep.mubr.f32.mxu0 0.0
        %v1068 = vand.u32 %v238, 4294901760
        %v1069 = vsub.f32 %v238, %v1068
        %v1070 = vand.u32 %v1069, 4294901760
        %1071 = vmatmul.mubr.f32.gmra.mrb[0].mxu0 %v1070
        %v1072 = vpop.f32.mrb[0].mxu0
        %v1073 = vadd.f32 %v873, %v1072
        %v1074 = vpop.f32.mrb[0].mxu0
        %1075 = vmatprep.mubr.f32.mxu0 0.0
        %v1076 = vand.u32 %v239, 4294901760
        %v1077 = vsub.f32 %v239, %v1076
        %v1078 = vand.u32 %v1077, 4294901760
        %1079 = vmatmul.mubr.f32.gmra.mrb[0].mxu0 %v1078
        %v1080 = vpop.f32.mrb[0].mxu0
        %v1081 = vadd.f32 %v880, %v1080
        %v1082 = vpop.f32.mrb[0].mxu0
        %1083 = vmatprep.mubr.f32.mxu0 0.0
        %v1084 = vand.u32 %v240, 4294901760
        %v1085 = vsub.f32 %v240, %v1084
        %v1086 = vand.u32 %v1085, 4294901760
        %1087 = vmatmul.mubr.f32.gmra.mrb[0].mxu0 %v1086
        %v1088 = vpop.f32.mrb[0].mxu0
        %v1089 = vadd.f32 %v887, %v1088
        %v1090 = vpop.f32.mrb[0].mxu0
        %1091 = vmatprep.mubr.f32.mxu0 0.0
        %v1092 = vand.u32 %v241, 4294901760
        %v1093 = vsub.f32 %v241, %v1092
        %v1094 = vand.u32 %v1093, 4294901760
        %1095 = vmatmul.mubr.f32.gmra.mrb[0].mxu0 %v1094
        %v1096 = vpop.f32.mrb[0].mxu0
        %v1097 = vadd.f32 %v894, %v1096
        %v1098 = vpop.f32.mrb[0].mxu0
        %1099 = vmatprep.mubr.f32.mxu0 0.0
        %v1100 = vand.u32 %v242, 4294901760
        %v1101 = vsub.f32 %v242, %v1100
        %v1102 = vand.u32 %v1101, 4294901760
        %1103 = vmatmul.mubr.f32.gmra.mrb[0].mxu0 %v1102
        %v1104 = vpop.f32.mrb[0].mxu0
        %v1105 = vadd.f32 %v901, %v1104
        %v1106 = vpop.f32.mrb[0].mxu0
        %1107 = vmatprep.mubr.f32.mxu0 0.0
        %v1108 = vand.u32 %v243, 4294901760
        %v1109 = vsub.f32 %v243, %v1108
        %v1110 = vand.u32 %v1109, 4294901760
        %1111 = vmatmul.mubr.f32.gmra.mrb[0].mxu0 %v1110
        %v1112 = vpop.f32.mrb[0].mxu0
        %v1113 = vadd.f32 %v908, %v1112
        %v1114 = vpop.f32.mrb[0].mxu0
        %1115 = vmatprep.mubr.f32.mxu0 0.0
        %v1116 = vand.u32 %v244, 4294901760
        %v1117 = vsub.f32 %v244, %v1116
        %v1118 = vand.u32 %v1117, 4294901760
        %1119 = vmatmul.mubr.f32.gmra.mrb[0].mxu0 %v1118
        %v1120 = vpop.f32.mrb[0].mxu0
        %v1121 = vadd.f32 %v915, %v1120
        %v1122 = vpop.f32.mrb[0].mxu0
        %1123 = vmatprep.mubr.f32.mxu0 0.0
        %v1124 = vand.u32 %v245, 4294901760
        %v1125 = vsub.f32 %v245, %v1124
        %v1126 = vand.u32 %v1125, 4294901760
        %1127 = vmatmul.mubr.f32.gmra.mrb[0].mxu0 %v1126
        %v1128 = vpop.f32.mrb[0].mxu0
        %v1129 = vadd.f32 %v922, %v1128
        %v1130 = vpop.f32.mrb[0].mxu0
        %1131 = vmatprep.mubr.f32.mxu0 0.0
        %v1132 = vand.u32 %v246, 4294901760
        %v1133 = vsub.f32 %v246, %v1132
        %v1134 = vand.u32 %v1133, 4294901760
        %1135 = vmatmul.mubr.f32.gmra.mrb[0].mxu0 %v1134
        %v1136 = vpop.f32.mrb[0].mxu0
        %v1137 = vadd.f32 %v929, %v1136
        %v1138 = vpop.f32.mrb[0].mxu0
        %1139 = vmatprep.mubr.f32.mxu0 0.0
        %v1140 = vand.u32 %v247, 4294901760
        %v1141 = vsub.f32 %v247, %v1140
        %v1142 = vand.u32 %v1141, 4294901760
        %1143 = vmatmul.mubr.f32.gmra.mrb[0].mxu0 %v1142
        %v1144 = vpop.f32.mrb[0].mxu0
        %v1145 = vadd.f32 %v936, %v1144
        %v1146 = vpop.f32.mrb[0].mxu0
        %1147 = vdwg.mxu0
        %1148 = vmatprep.subr.mxu0 0.0
        %v1149 = vand.u32 %v232, 4294901760
        %v1150 = vsub.f32 %v232, %v1149
        %v1151 = vand.u32 %v1150, 4294901760
        %1152 = vmatpush1.xpose.msra.mxu0 %v1151
        %1153 = vmatprep.subr.mxu0 0.0
        %v1154 = vand.u32 %v233, 4294901760
        %v1155 = vsub.f32 %v233, %v1154
        %v1156 = vand.u32 %v1155, 4294901760
        %1157 = vmatpush1.xpose.msra.mxu0 %v1156
        %1158 = vmatprep.subr.mxu0 0.0
        %v1159 = vand.u32 %v234, 4294901760
        %v1160 = vsub.f32 %v234, %v1159
        %v1161 = vand.u32 %v1160, 4294901760
        %1162 = vmatpush1.xpose.msra.mxu0 %v1161
        %1163 = vmatprep.subr.mxu0 0.0
        %v1164 = vand.u32 %v235, 4294901760
        %v1165 = vsub.f32 %v235, %v1164
        %v1166 = vand.u32 %v1165, 4294901760
        %1167 = vmatpush1.xpose.msra.mxu0 %v1166
        %1168 = vmatprep.subr.mxu0 0.0
        %v1169 = vand.u32 %v236, 4294901760
        %v1170 = vsub.f32 %v236, %v1169
        %v1171 = vand.u32 %v1170, 4294901760
        %1172 = vmatpush1.xpose.msra.mxu0 %v1171
        %1173 = vmatprep.subr.mxu0 0.0
        %v1174 = vand.u32 %v237, 4294901760
        %v1175 = vsub.f32 %v237, %v1174
        %v1176 = vand.u32 %v1175, 4294901760
        %1177 = vmatpush1.xpose.msra.mxu0 %v1176
        %1178 = vmatprep.subr.mxu0 0.0
        %v1179 = vand.u32 %v238, 4294901760
        %v1180 = vsub.f32 %v238, %v1179
        %v1181 = vand.u32 %v1180, 4294901760
        %1182 = vmatpush1.xpose.msra.mxu0 %v1181
        %1183 = vmatprep.subr.mxu0 0.0
        %v1184 = vand.u32 %v239, 4294901760
        %v1185 = vsub.f32 %v239, %v1184
        %v1186 = vand.u32 %v1185, 4294901760
        %1187 = vmatpush1.xpose.msra.mxu0 %v1186
        %1188 = vmatprep.subr.mxu0 0.0
        %v1189 = vand.u32 %v240, 4294901760
        %v1190 = vsub.f32 %v240, %v1189
        %v1191 = vand.u32 %v1190, 4294901760
        %1192 = vmatpush1.xpose.msra.mxu0 %v1191
        %1193 = vmatprep.subr.mxu0 0.0
        %v1194 = vand.u32 %v241, 4294901760
        %v1195 = vsub.f32 %v241, %v1194
        %v1196 = vand.u32 %v1195, 4294901760
        %1197 = vmatpush1.xpose.msra.mxu0 %v1196
        %1198 = vmatprep.subr.mxu0 0.0
        %v1199 = vand.u32 %v242, 4294901760
        %v1200 = vsub.f32 %v242, %v1199
        %v1201 = vand.u32 %v1200, 4294901760
        %1202 = vmatpush1.xpose.msra.mxu0 %v1201
        %1203 = vmatprep.subr.mxu0 0.0
        %v1204 = vand.u32 %v243, 4294901760
        %v1205 = vsub.f32 %v243, %v1204
        %v1206 = vand.u32 %v1205, 4294901760
        %1207 = vmatpush1.xpose.msra.mxu0 %v1206
        %1208 = vmatprep.subr.mxu0 0.0
        %v1209 = vand.u32 %v244, 4294901760
        %v1210 = vsub.f32 %v244, %v1209
        %v1211 = vand.u32 %v1210, 4294901760
        %1212 = vmatpush1.xpose.msra.mxu0 %v1211
        %1213 = vmatprep.subr.mxu0 0.0
        %v1214 = vand.u32 %v245, 4294901760
        %v1215 = vsub.f32 %v245, %v1214
        %v1216 = vand.u32 %v1215, 4294901760
        %1217 = vmatpush1.xpose.msra.mxu0 %v1216
        %1218 = vmatprep.subr.mxu0 0.0
        %v1219 = vand.u32 %v246, 4294901760
        %v1220 = vsub.f32 %v246, %v1219
        %v1221 = vand.u32 %v1220, 4294901760
        %1222 = vmatpush1.xpose.msra.mxu0 %v1221
        %1223 = vmatprep.subr.mxu0 0.0
        %v1224 = vand.u32 %v247, 4294901760
        %v1225 = vsub.f32 %v247, %v1224
        %v1226 = vand.u32 %v1225, 4294901760
        %1227 = vmatpush1.xpose.msra.mxu0 %v1226
        %1228 = vmatprep.subr.mxu0 0.0
        %1229 = vmatpush1.xpose.msra.mxu0 0.0
        %1230 = vmatprep.subr.mxu0 0.0
        %1231 = vmatpush1.xpose.msra.mxu0 0.0
        %1232 = vmatprep.subr.mxu0 0.0
        %1233 = vmatpush1.xpose.msra.mxu0 0.0
        %1234 = vmatprep.subr.mxu0 0.0
        %1235 = vmatpush1.xpose.msra.mxu0 0.0
        %1236 = vmatprep.subr.mxu0 0.0
        %1237 = vmatpush1.xpose.msra.mxu0 0.0
        %1238 = vmatprep.subr.mxu0 0.0
        %1239 = vmatpush1.xpose.msra.mxu0 0.0
        %1240 = vmatprep.subr.mxu0 0.0
        %1241 = vmatpush1.xpose.msra.mxu0 0.0
        %1242 = vmatprep.subr.mxu0 0.0
        %1243 = vmatpush1.xpose.msra.mxu0 0.0
        %1244 = vmatprep.subr.mxu0 0.0
        %1245 = vmatpush1.xpose.msra.mxu0 0.0
        %1246 = vmatprep.subr.mxu0 0.0
        %1247 = vmatpush1.xpose.msra.mxu0 0.0
        %1248 = vmatprep.subr.mxu0 0.0
        %1249 = vmatpush1.xpose.msra.mxu0 0.0
        %1250 = vmatprep.subr.mxu0 0.0
        %1251 = vmatpush1.xpose.msra.mxu0 0.0
        %1252 = vmatprep.subr.mxu0 0.0
        %1253 = vmatpush1.xpose.msra.mxu0 0.0
        %1254 = vmatprep.subr.mxu0 0.0
        %1255 = vmatpush1.xpose.msra.mxu0 0.0
        %1256 = vmatprep.subr.mxu0 0.0
        %1257 = vmatpush1.xpose.msra.mxu0 0.0
        %1258 = vmatprep.subr.mxu0 0.0
        %1259 = vmatpush1.xpose.msra.mxu0 0.0
        %1260 = vmatprep.mubr.f32.mxu0 0.0
        %v1261 = vand.u32 %v232, 4294901760
        %1262 = vmatmul.mubr.f32.gmra.mrb[0].mxu0 %v1261
        %v1263 = vpop.f32.mrb[0].mxu0
        %v1264 = vadd.f32 %v1025, %v1263
        %v1265 = vpop.f32.mrb[0].mxu0
        %1266 = vmatprep.mubr.f32.mxu0 0.0
        %v1267 = vand.u32 %v233, 4294901760
        %1268 = vmatmul.mubr.f32.gmra.mrb[0].mxu0 %v1267
        %v1269 = vpop.f32.mrb[0].mxu0
        %v1270 = vadd.f32 %v1033, %v1269
        %v1271 = vpop.f32.mrb[0].mxu0
        %1272 = vmatprep.mubr.f32.mxu0 0.0
        %v1273 = vand.u32 %v234, 4294901760
        %1274 = vmatmul.mubr.f32.gmra.mrb[0].mxu0 %v1273
        %v1275 = vpop.f32.mrb[0].mxu0
        %v1276 = vadd.f32 %v1041, %v1275
        %v1277 = vpop.f32.mrb[0].mxu0
        %1278 = vmatprep.mubr.f32.mxu0 0.0
        %v1279 = vand.u32 %v235, 4294901760
        %1280 = vmatmul.mubr.f32.gmra.mrb[0].mxu0 %v1279
        %v1281 = vpop.f32.mrb[0].mxu0
        %v1282 = vadd.f32 %v1049, %v1281
        %v1283 = vpop.f32.mrb[0].mxu0
        %1284 = vmatprep.mubr.f32.mxu0 0.0
        %v1285 = vand.u32 %v236, 4294901760
        %1286 = vmatmul.mubr.f32.gmra.mrb[0].mxu0 %v1285
        %v1287 = vpop.f32.mrb[0].mxu0
        %v1288 = vadd.f32 %v1057, %v1287
        %v1289 = vpop.f32.mrb[0].mxu0
        %1290 = vmatprep.mubr.f32.mxu0 0.0
        %v1291 = vand.u32 %v237, 4294901760
        %1292 = vmatmul.mubr.f32.gmra.mrb[0].mxu0 %v1291
        %v1293 = vpop.f32.mrb[0].mxu0
        %v1294 = vadd.f32 %v1065, %v1293
        %v1295 = vpop.f32.mrb[0].mxu0
        %1296 = vmatprep.mubr.f32.mxu0 0.0
        %v1297 = vand.u32 %v238, 4294901760
        %1298 = vmatmul.mubr.f32.gmra.mrb[0].mxu0 %v1297
        %v1299 = vpop.f32.mrb[0].mxu0
        %v1300 = vadd.f32 %v1073, %v1299
        %v1301 = vpop.f32.mrb[0].mxu0
        %1302 = vmatprep.mubr.f32.mxu0 0.0
        %v1303 = vand.u32 %v239, 4294901760
        %1304 = vmatmul.mubr.f32.gmra.mrb[0].mxu0 %v1303
        %v1305 = vpop.f32.mrb[0].mxu0
        %v1306 = vadd.f32 %v1081, %v1305
        %v1307 = vpop.f32.mrb[0].mxu0
        %1308 = vmatprep.mubr.f32.mxu0 0.0
        %v1309 = vand.u32 %v240, 4294901760
        %1310 = vmatmul.mubr.f32.gmra.mrb[0].mxu0 %v1309
        %v1311 = vpop.f32.mrb[0].mxu0
        %v1312 = vadd.f32 %v1089, %v1311
        %v1313 = vpop.f32.mrb[0].mxu0
        %1314 = vmatprep.mubr.f32.mxu0 0.0
        %v1315 = vand.u32 %v241, 4294901760
        %1316 = vmatmul.mubr.f32.gmra.mrb[0].mxu0 %v1315
        %v1317 = vpop.f32.mrb[0].mxu0
        %v1318 = vadd.f32 %v1097, %v1317
        %v1319 = vpop.f32.mrb[0].mxu0
        %1320 = vmatprep.mubr.f32.mxu0 0.0
        %v1321 = vand.u32 %v242, 4294901760
        %1322 = vmatmul.mubr.f32.gmra.mrb[0].mxu0 %v1321
        %v1323 = vpop.f32.mrb[0].mxu0
        %v1324 = vadd.f32 %v1105, %v1323
        %v1325 = vpop.f32.mrb[0].mxu0
        %1326 = vmatprep.mubr.f32.mxu0 0.0
        %v1327 = vand.u32 %v243, 4294901760
        %1328 = vmatmul.mubr.f32.gmra.mrb[0].mxu0 %v1327
        %v1329 = vpop.f32.mrb[0].mxu0
        %v1330 = vadd.f32 %v1113, %v1329
        %v1331 = vpop.f32.mrb[0].mxu0
        %1332 = vmatprep.mubr.f32.mxu0 0.0
        %v1333 = vand.u32 %v244, 4294901760
        %1334 = vmatmul.mubr.f32.gmra.mrb[0].mxu0 %v1333
        %v1335 = vpop.f32.mrb[0].mxu0
        %v1336 = vadd.f32 %v1121, %v1335
        %v1337 = vpop.f32.mrb[0].mxu0
        %1338 = vmatprep.mubr.f32.mxu0 0.0
        %v1339 = vand.u32 %v245, 4294901760
        %1340 = vmatmul.mubr.f32.gmra.mrb[0].mxu0 %v1339
        %v1341 = vpop.f32.mrb[0].mxu0
        %v1342 = vadd.f32 %v1129, %v1341
        %v1343 = vpop.f32.mrb[0].mxu0
        %1344 = vmatprep.mubr.f32.mxu0 0.0
        %v1345 = vand.u32 %v246, 4294901760
        %1346 = vmatmul.mubr.f32.gmra.mrb[0].mxu0 %v1345
        %v1347 = vpop.f32.mrb[0].mxu0
        %v1348 = vadd.f32 %v1137, %v1347
        %v1349 = vpop.f32.mrb[0].mxu0
        %1350 = vmatprep.mubr.f32.mxu0 0.0
        %v1351 = vand.u32 %v247, 4294901760
        %1352 = vmatmul.mubr.f32.gmra.mrb[0].mxu0 %v1351
        %v1353 = vpop.f32.mrb[0].mxu0
        %v1354 = vadd.f32 %v1145, %v1353
        %v1355 = vpop.f32.mrb[0].mxu0
        %1356 = vdwg.mxu0
        %1357 = vmatprep.subr.mxu0 0.0
        %v1358 = vand.u32 %v232, 4294901760
        %1359 = vmatpush1.xpose.msra.mxu0 %v1358
        %1360 = vmatprep.subr.mxu0 0.0
        %v1361 = vand.u32 %v233, 4294901760
        %1362 = vmatpush1.xpose.msra.mxu0 %v1361
        %1363 = vmatprep.subr.mxu0 0.0
        %v1364 = vand.u32 %v234, 4294901760
        %1365 = vmatpush1.xpose.msra.mxu0 %v1364
        %1366 = vmatprep.subr.mxu0 0.0
        %v1367 = vand.u32 %v235, 4294901760
        %1368 = vmatpush1.xpose.msra.mxu0 %v1367
        %1369 = vmatprep.subr.mxu0 0.0
        %v1370 = vand.u32 %v236, 4294901760
        %1371 = vmatpush1.xpose.msra.mxu0 %v1370
        %1372 = vmatprep.subr.mxu0 0.0
        %v1373 = vand.u32 %v237, 4294901760
        %1374 = vmatpush1.xpose.msra.mxu0 %v1373
        %1375 = vmatprep.subr.mxu0 0.0
        %v1376 = vand.u32 %v238, 4294901760
        %1377 = vmatpush1.xpose.msra.mxu0 %v1376
        %1378 = vmatprep.subr.mxu0 0.0
        %v1379 = vand.u32 %v239, 4294901760
        %1380 = vmatpush1.xpose.msra.mxu0 %v1379
        %1381 = vmatprep.subr.mxu0 0.0
        %v1382 = vand.u32 %v240, 4294901760
        %1383 = vmatpush1.xpose.msra.mxu0 %v1382
        %1384 = vmatprep.subr.mxu0 0.0
        %v1385 = vand.u32 %v241, 4294901760
        %1386 = vmatpush1.xpose.msra.mxu0 %v1385
        %1387 = vmatprep.subr.mxu0 0.0
        %v1388 = vand.u32 %v242, 4294901760
        %1389 = vmatpush1.xpose.msra.mxu0 %v1388
        %1390 = vmatprep.subr.mxu0 0.0
        %v1391 = vand.u32 %v243, 4294901760
        %1392 = vmatpush1.xpose.msra.mxu0 %v1391
        %1393 = vmatprep.subr.mxu0 0.0
        %v1394 = vand.u32 %v244, 4294901760
        %1395 = vmatpush1.xpose.msra.mxu0 %v1394
        %1396 = vmatprep.subr.mxu0 0.0
        %v1397 = vand.u32 %v245, 4294901760
        %1398 = vmatpush1.xpose.msra.mxu0 %v1397
        %1399 = vmatprep.subr.mxu0 0.0
        %v1400 = vand.u32 %v246, 4294901760
        %1401 = vmatpush1.xpose.msra.mxu0 %v1400
        %1402 = vmatprep.subr.mxu0 0.0
        %v1403 = vand.u32 %v247, 4294901760
        %1404 = vmatpush1.xpose.msra.mxu0 %v1403
        %1405 = vmatprep.subr.mxu0 0.0
        %1406 = vmatpush1.xpose.msra.mxu0 0.0
        %1407 = vmatprep.subr.mxu0 0.0
        %1408 = vmatpush1.xpose.msra.mxu0 0.0
        %1409 = vmatprep.subr.mxu0 0.0
        %1410 = vmatpush1.xpose.msra.mxu0 0.0
        %1411 = vmatprep.subr.mxu0 0.0
        %1412 = vmatpush1.xpose.msra.mxu0 0.0
        %1413 = vmatprep.subr.mxu0 0.0
        %1414 = vmatpush1.xpose.msra.mxu0 0.0
        %1415 = vmatprep.subr.mxu0 0.0
        %1416 = vmatpush1.xpose.msra.mxu0 0.0
        %1417 = vmatprep.subr.mxu0 0.0
        %1418 = vmatpush1.xpose.msra.mxu0 0.0
        %1419 = vmatprep.subr.mxu0 0.0
        %1420 = vmatpush1.xpose.msra.mxu0 0.0
        %1421 = vmatprep.subr.mxu0 0.0
        %1422 = vmatpush1.xpose.msra.mxu0 0.0
        %1423 = vmatprep.subr.mxu0 0.0
        %1424 = vmatpush1.xpose.msra.mxu0 0.0
        %1425 = vmatprep.subr.mxu0 0.0
        %1426 = vmatpush1.xpose.msra.mxu0 0.0
        %1427 = vmatprep.subr.mxu0 0.0
        %1428 = vmatpush1.xpose.msra.mxu0 0.0
        %1429 = vmatprep.subr.mxu0 0.0
        %1430 = vmatpush1.xpose.msra.mxu0 0.0
        %1431 = vmatprep.subr.mxu0 0.0
        %1432 = vmatpush1.xpose.msra.mxu0 0.0
        %1433 = vmatprep.subr.mxu0 0.0
        %1434 = vmatpush1.xpose.msra.mxu0 0.0
        %1435 = vmatprep.subr.mxu0 0.0
        %1436 = vmatpush1.xpose.msra.mxu0 0.0
        %1437 = vmatprep.mubr.f32.mxu0 0.0
        %v1438 = vand.u32 %v232, 4294901760
        %1439 = vmatmul.mubr.f32.gmra.mrb[0].mxu0 %v1438
        %v1440 = vpop.f32.mrb[0].mxu0
        %v1441 = vadd.f32 %v1264, %v1440
        %v1442 = vpop.f32.mrb[0].mxu0
        %1443 = vmatprep.mubr.f32.mxu0 0.0
        %v1444 = vand.u32 %v233, 4294901760
        %1445 = vmatmul.mubr.f32.gmra.mrb[0].mxu0 %v1444
        %v1446 = vpop.f32.mrb[0].mxu0
        %v1447 = vadd.f32 %v1270, %v1446
        %v1448 = vpop.f32.mrb[0].mxu0
        %1449 = vmatprep.mubr.f32.mxu0 0.0
        %v1450 = vand.u32 %v234, 4294901760
        %1451 = vmatmul.mubr.f32.gmra.mrb[0].mxu0 %v1450
        %v1452 = vpop.f32.mrb[0].mxu0
        %v1453 = vadd.f32 %v1276, %v1452
        %v1454 = vpop.f32.mrb[0].mxu0
        %1455 = vmatprep.mubr.f32.mxu0 0.0
        %v1456 = vand.u32 %v235, 4294901760
        %1457 = vmatmul.mubr.f32.gmra.mrb[0].mxu0 %v1456
        %v1458 = vpop.f32.mrb[0].mxu0
        %v1459 = vadd.f32 %v1282, %v1458
        %v1460 = vpop.f32.mrb[0].mxu0
        %1461 = vmatprep.mubr.f32.mxu0 0.0
        %v1462 = vand.u32 %v236, 4294901760
        %1463 = vmatmul.mubr.f32.gmra.mrb[0].mxu0 %v1462
        %v1464 = vpop.f32.mrb[0].mxu0
        %v1465 = vadd.f32 %v1288, %v1464
        %v1466 = vpop.f32.mrb[0].mxu0
        %1467 = vmatprep.mubr.f32.mxu0 0.0
        %v1468 = vand.u32 %v237, 4294901760
        %1469 = vmatmul.mubr.f32.gmra.mrb[0].mxu0 %v1468
        %v1470 = vpop.f32.mrb[0].mxu0
        %v1471 = vadd.f32 %v1294, %v1470
        %v1472 = vpop.f32.mrb[0].mxu0
        %1473 = vmatprep.mubr.f32.mxu0 0.0
        %v1474 = vand.u32 %v238, 4294901760
        %1475 = vmatmul.mubr.f32.gmra.mrb[0].mxu0 %v1474
        %v1476 = vpop.f32.mrb[0].mxu0
        %v1477 = vadd.f32 %v1300, %v1476
        %v1478 = vpop.f32.mrb[0].mxu0
        %1479 = vmatprep.mubr.f32.mxu0 0.0
        %v1480 = vand.u32 %v239, 4294901760
        %1481 = vmatmul.mubr.f32.gmra.mrb[0].mxu0 %v1480
        %v1482 = vpop.f32.mrb[0].mxu0
        %v1483 = vadd.f32 %v1306, %v1482
        %v1484 = vpop.f32.mrb[0].mxu0
        %1485 = vmatprep.mubr.f32.mxu0 0.0
        %v1486 = vand.u32 %v240, 4294901760
        %1487 = vmatmul.mubr.f32.gmra.mrb[0].mxu0 %v1486
        %v1488 = vpop.f32.mrb[0].mxu0
        %v1489 = vadd.f32 %v1312, %v1488
        %v1490 = vpop.f32.mrb[0].mxu0
        %1491 = vmatprep.mubr.f32.mxu0 0.0
        %v1492 = vand.u32 %v241, 4294901760
        %1493 = vmatmul.mubr.f32.gmra.mrb[0].mxu0 %v1492
        %v1494 = vpop.f32.mrb[0].mxu0
        %v1495 = vadd.f32 %v1318, %v1494
        %v1496 = vpop.f32.mrb[0].mxu0
        %1497 = vmatprep.mubr.f32.mxu0 0.0
        %v1498 = vand.u32 %v242, 4294901760
        %1499 = vmatmul.mubr.f32.gmra.mrb[0].mxu0 %v1498
        %v1500 = vpop.f32.mrb[0].mxu0
        %v1501 = vadd.f32 %v1324, %v1500
        %v1502 = vpop.f32.mrb[0].mxu0
        %1503 = vmatprep.mubr.f32.mxu0 0.0
        %v1504 = vand.u32 %v243, 4294901760
        %1505 = vmatmul.mubr.f32.gmra.mrb[0].mxu0 %v1504
        %v1506 = vpop.f32.mrb[0].mxu0
        %v1507 = vadd.f32 %v1330, %v1506
        %v1508 = vpop.f32.mrb[0].mxu0
        %1509 = vmatprep.mubr.f32.mxu0 0.0
        %v1510 = vand.u32 %v244, 4294901760
        %1511 = vmatmul.mubr.f32.gmra.mrb[0].mxu0 %v1510
        %v1512 = vpop.f32.mrb[0].mxu0
        %v1513 = vadd.f32 %v1336, %v1512
        %v1514 = vpop.f32.mrb[0].mxu0
        %1515 = vmatprep.mubr.f32.mxu0 0.0
        %v1516 = vand.u32 %v245, 4294901760
        %1517 = vmatmul.mubr.f32.gmra.mrb[0].mxu0 %v1516
        %v1518 = vpop.f32.mrb[0].mxu0
        %v1519 = vadd.f32 %v1342, %v1518
        %v1520 = vpop.f32.mrb[0].mxu0
        %1521 = vmatprep.mubr.f32.mxu0 0.0
        %v1522 = vand.u32 %v246, 4294901760
        %1523 = vmatmul.mubr.f32.gmra.mrb[0].mxu0 %v1522
        %v1524 = vpop.f32.mrb[0].mxu0
        %v1525 = vadd.f32 %v1348, %v1524
        %v1526 = vpop.f32.mrb[0].mxu0
        %1527 = vmatprep.mubr.f32.mxu0 0.0
        %v1528 = vand.u32 %v247, 4294901760
        %1529 = vmatmul.mubr.f32.gmra.mrb[0].mxu0 %v1528
        %v1530 = vpop.f32.mrb[0].mxu0
        %v1531 = vadd.f32 %v1354, %v1530
        %v1532 = vpop.f32.mrb[0].mxu0
        %1533 = vdwg.mxu0
        %v1534 = vlaneseq
        %v1535 = vand.u32 %v1534, 127
        %vm1536 = vcmp.lt.s32.totalorder %v1535, 16
        %v1537 = vsel %vm1536, %v1441, -1e+30
        %v1538 = vsel %vm1536, %v1447, -1e+30
        %v1539 = vsel %vm1536, %v1453, -1e+30
        %v1540 = vsel %vm1536, %v1459, -1e+30
        %v1541 = vsel %vm1536, %v1465, -1e+30
        %v1542 = vsel %vm1536, %v1471, -1e+30
        %v1543 = vsel %vm1536, %v1477, -1e+30
        %v1544 = vsel %vm1536, %v1483, -1e+30
        %v1545 = vsel %vm1536, %v1489, -1e+30
        %v1546 = vsel %vm1536, %v1495, -1e+30
        %v1547 = vsel %vm1536, %v1501, -1e+30
        %v1548 = vsel %vm1536, %v1507, -1e+30
        %v1549 = vsel %vm1536, %v1513, -1e+30
        %v1550 = vsel %vm1536, %v1519, -1e+30
        %v1551 = vsel %vm1536, %v1525, -1e+30
        %v1552 = vsel %vm1536, %v1531, -1e+30
        %1553 = vmax.xlane.f32.xlu0 %v1537
        %v1554 = vpop.xlane.xlu0 %1553
        %1555 = vmax.xlane.f32.xlu0 %v1538
        %v1556 = vpop.xlane.xlu0 %1555
        %1557 = vmax.xlane.f32.xlu0 %v1539
        %v1558 = vpop.xlane.xlu0 %1557
        %1559 = vmax.xlane.f32.xlu0 %v1540
        %v1560 = vpop.xlane.xlu0 %1559
        %1561 = vmax.xlane.f32.xlu0 %v1541
        %v1562 = vpop.xlane.xlu0 %1561
        %1563 = vmax.xlane.f32.xlu0 %v1542
        %v1564 = vpop.xlane.xlu0 %1563
        %1565 = vmax.xlane.f32.xlu0 %v1543
        %v1566 = vpop.xlane.xlu0 %1565
        %1567 = vmax.xlane.f32.xlu0 %v1544
        %v1568 = vpop.xlane.xlu0 %1567
        %1569 = vmax.xlane.f32.xlu0 %v1545
        %v1570 = vpop.xlane.xlu0 %1569
        %1571 = vmax.xlane.f32.xlu0 %v1546
        %v1572 = vpop.xlane.xlu0 %1571
        %1573 = vmax.xlane.f32.xlu0 %v1547
        %v1574 = vpop.xlane.xlu0 %1573
        %1575 = vmax.xlane.f32.xlu0 %v1548
        %v1576 = vpop.xlane.xlu0 %1575
        %1577 = vmax.xlane.f32.xlu0 %v1549
        %v1578 = vpop.xlane.xlu0 %1577
        %1579 = vmax.xlane.f32.xlu0 %v1550
        %v1580 = vpop.xlane.xlu0 %1579
        %1581 = vmax.xlane.f32.xlu0 %v1551
        %v1582 = vpop.xlane.xlu0 %1581
        %1583 = vmax.xlane.f32.xlu0 %v1552
        %v1584 = vpop.xlane.xlu0 %1583
        %vm1585 = vcmp.eq.f32.partialorder %v1537, %v1554
        %vm1586 = vcmp.eq.f32.partialorder %v1538, %v1556
        %vm1587 = vcmp.eq.f32.partialorder %v1539, %v1558
        %vm1588 = vcmp.eq.f32.partialorder %v1540, %v1560
        %vm1589 = vcmp.eq.f32.partialorder %v1541, %v1562
        %vm1590 = vcmp.eq.f32.partialorder %v1542, %v1564
        %vm1591 = vcmp.eq.f32.partialorder %v1543, %v1566
        %vm1592 = vcmp.eq.f32.partialorder %v1544, %v1568
        %vm1593 = vcmp.eq.f32.partialorder %v1545, %v1570
        %vm1594 = vcmp.eq.f32.partialorder %v1546, %v1572
        %vm1595 = vcmp.eq.f32.partialorder %v1547, %v1574
        %vm1596 = vcmp.eq.f32.partialorder %v1548, %v1576
        %vm1597 = vcmp.eq.f32.partialorder %v1549, %v1578
        %vm1598 = vcmp.eq.f32.partialorder %v1550, %v1580
        %vm1599 = vcmp.eq.f32.partialorder %v1551, %v1582
        %vm1600 = vcmp.eq.f32.partialorder %v1552, %v1584
        %v1601 = vsel %vm1585, 1, 0
        %v1602 = vsel %vm1586, 1, 0
        %v1603 = vsel %vm1587, 1, 0
        %v1604 = vsel %vm1588, 1, 0
        %v1605 = vsel %vm1589, 1, 0
        %v1606 = vsel %vm1590, 1, 0
        %v1607 = vsel %vm1591, 1, 0
        %v1608 = vsel %vm1592, 1, 0
        %v1609 = vsel %vm1593, 1, 0
        %v1610 = vsel %vm1594, 1, 0
        %v1611 = vsel %vm1595, 1, 0
        %v1612 = vsel %vm1596, 1, 0
        %v1613 = vsel %vm1597, 1, 0
        %v1614 = vsel %vm1598, 1, 0
        %v1615 = vsel %vm1599, 1, 0
        %v1616 = vsel %vm1600, 1, 0
        %v1617 = vcvt.s32.f32 %v1601
        %v1618 = vcvt.s32.f32 %v1602
        %v1619 = vcvt.s32.f32 %v1603
        %v1620 = vcvt.s32.f32 %v1604
        %v1621 = vcvt.s32.f32 %v1605
        %v1622 = vcvt.s32.f32 %v1606
        %v1623 = vcvt.s32.f32 %v1607
        %v1624 = vcvt.s32.f32 %v1608
        %v1625 = vcvt.s32.f32 %v1609
        %v1626 = vcvt.s32.f32 %v1610
        %v1627 = vcvt.s32.f32 %v1611
        %v1628 = vcvt.s32.f32 %v1612
        %v1629 = vcvt.s32.f32 %v1613
        %v1630 = vcvt.s32.f32 %v1614
        %v1631 = vcvt.s32.f32 %v1615
        %v1632 = vcvt.s32.f32 %v1616
        %v1633 = vsel %vm1585, -1e+30, %v1537
        %v1634 = vsel %vm1586, -1e+30, %v1538
        %v1635 = vsel %vm1587, -1e+30, %v1539
        %v1636 = vsel %vm1588, -1e+30, %v1540
        %v1637 = vsel %vm1589, -1e+30, %v1541
        %v1638 = vsel %vm1590, -1e+30, %v1542
        %v1639 = vsel %vm1591, -1e+30, %v1543
        %v1640 = vsel %vm1592, -1e+30, %v1544
        %v1641 = vsel %vm1593, -1e+30, %v1545
        %v1642 = vsel %vm1594, -1e+30, %v1546
        %v1643 = vsel %vm1595, -1e+30, %v1547
        %v1644 = vsel %vm1596, -1e+30, %v1548
        %v1645 = vsel %vm1597, -1e+30, %v1549
        %v1646 = vsel %vm1598, -1e+30, %v1550
        %v1647 = vsel %vm1599, -1e+30, %v1551
        %v1648 = vsel %vm1600, -1e+30, %v1552
        loop: start=0, step=1, limit=4
        $region43: #{tpu_custom_call.1} parent=23 // loop_pre_header
          _
        $region44: #{tpu_custom_call.1} parent=23 // loop_header
          %s1650 = sphi 0, %s1654
          %p1651 = scmp.ge.s32.totalorder %s1650, 4
          %v1655 = vphi %v1633, %v1847
          %v1656 = vphi %v1634, %v1848
          %v1657 = vphi %v1635, %v1849
          %v1658 = vphi %v1636, %v1850
          %v1659 = vphi %v1637, %v1851
          %v1660 = vphi %v1638, %v1852
          %v1661 = vphi %v1639, %v1853
          %v1662 = vphi %v1640, %v1854
          %v1663 = vphi %v1641, %v1855
          %v1664 = vphi %v1642, %v1856
          %v1665 = vphi %v1643, %v1857
          %v1666 = vphi %v1644, %v1858
          %v1667 = vphi %v1645, %v1859
          %v1668 = vphi %v1646, %v1860
          %v1669 = vphi %v1647, %v1861
          %v1670 = vphi %v1648, %v1862
          %v1671 = vphi %v1617, %v1831
          %v1672 = vphi %v1618, %v1832
          %v1673 = vphi %v1619, %v1833
          %v1674 = vphi %v1620, %v1834
          %v1675 = vphi %v1621, %v1835
          %v1676 = vphi %v1622, %v1836
          %v1677 = vphi %v1623, %v1837
          %v1678 = vphi %v1624, %v1838
          %v1679 = vphi %v1625, %v1839
          %v1680 = vphi %v1626, %v1840
          %v1681 = vphi %v1627, %v1841
          %v1682 = vphi %v1628, %v1842
          %v1683 = vphi %v1629, %v1843
          %v1684 = vphi %v1630, %v1844
          %v1685 = vphi %v1631, %v1845
          %v1686 = vphi %v1632, %v1846
        $region45: #{tpu_custom_call.1} parent=23 // loop_header_branch
          %1653 = sbr.rel (%p1651) target = $region49
        $region46: #{tpu_custom_call.1} parent=23 // loop_body
          %1687 = vmax.xlane.f32.xlu0 %v1655
          %v1688 = vpop.xlane.xlu0 %1687
          %1689 = vmax.xlane.f32.xlu0 %v1656
          %v1690 = vpop.xlane.xlu0 %1689
          %1691 = vmax.xlane.f32.xlu0 %v1657
          %v1692 = vpop.xlane.xlu0 %1691
          %1693 = vmax.xlane.f32.xlu0 %v1658
          %v1694 = vpop.xlane.xlu0 %1693
          %1695 = vmax.xlane.f32.xlu0 %v1659
          %v1696 = vpop.xlane.xlu0 %1695
          %1697 = vmax.xlane.f32.xlu0 %v1660
          %v1698 = vpop.xlane.xlu0 %1697
          %1699 = vmax.xlane.f32.xlu0 %v1661
          %v1700 = vpop.xlane.xlu0 %1699
          %1701 = vmax.xlane.f32.xlu0 %v1662
          %v1702 = vpop.xlane.xlu0 %1701
          %1703 = vmax.xlane.f32.xlu0 %v1663
          %v1704 = vpop.xlane.xlu0 %1703
          %1705 = vmax.xlane.f32.xlu0 %v1664
          %v1706 = vpop.xlane.xlu0 %1705
          %1707 = vmax.xlane.f32.xlu0 %v1665
          %v1708 = vpop.xlane.xlu0 %1707
          %1709 = vmax.xlane.f32.xlu0 %v1666
          %v1710 = vpop.xlane.xlu0 %1709
          %1711 = vmax.xlane.f32.xlu0 %v1667
          %v1712 = vpop.xlane.xlu0 %1711
          %1713 = vmax.xlane.f32.xlu0 %v1668
          %v1714 = vpop.xlane.xlu0 %1713
          %1715 = vmax.xlane.f32.xlu0 %v1669
          %v1716 = vpop.xlane.xlu0 %1715
          %1717 = vmax.xlane.f32.xlu0 %v1670
          %v1718 = vpop.xlane.xlu0 %1717
          %vm1719 = vcmp.eq.f32.partialorder %v1655, %v1688
          %vm1720 = vcmp.eq.f32.partialorder %v1656, %v1690
          %vm1721 = vcmp.eq.f32.partialorder %v1657, %v1692
          %vm1722 = vcmp.eq.f32.partialorder %v1658, %v1694
          %vm1723 = vcmp.eq.f32.partialorder %v1659, %v1696
          %vm1724 = vcmp.eq.f32.partialorder %v1660, %v1698
          %vm1725 = vcmp.eq.f32.partialorder %v1661, %v1700
          %vm1726 = vcmp.eq.f32.partialorder %v1662, %v1702
          %vm1727 = vcmp.eq.f32.partialorder %v1663, %v1704
          %vm1728 = vcmp.eq.f32.partialorder %v1664, %v1706
          %vm1729 = vcmp.eq.f32.partialorder %v1665, %v1708
          %vm1730 = vcmp.eq.f32.partialorder %v1666, %v1710
          %vm1731 = vcmp.eq.f32.partialorder %v1667, %v1712
          %vm1732 = vcmp.eq.f32.partialorder %v1668, %v1714
          %vm1733 = vcmp.eq.f32.partialorder %v1669, %v1716
          %vm1734 = vcmp.eq.f32.partialorder %v1670, %v1718
          %vm1735 = vcmp.gt.f32.partialorder %v1688, -1e+29
          %vm1736 = vcmp.gt.f32.partialorder %v1690, -1e+29
          %vm1737 = vcmp.gt.f32.partialorder %v1692, -1e+29
          %vm1738 = vcmp.gt.f32.partialorder %v1694, -1e+29
          %vm1739 = vcmp.gt.f32.partialorder %v1696, -1e+29
          %vm1740 = vcmp.gt.f32.partialorder %v1698, -1e+29
          %vm1741 = vcmp.gt.f32.partialorder %v1700, -1e+29
          %vm1742 = vcmp.gt.f32.partialorder %v1702, -1e+29
          %vm1743 = vcmp.gt.f32.partialorder %v1704, -1e+29
          %vm1744 = vcmp.gt.f32.partialorder %v1706, -1e+29
          %vm1745 = vcmp.gt.f32.partialorder %v1708, -1e+29
          %vm1746 = vcmp.gt.f32.partialorder %v1710, -1e+29
          %vm1747 = vcmp.gt.f32.partialorder %v1712, -1e+29
          %vm1748 = vcmp.gt.f32.partialorder %v1714, -1e+29
          %vm1749 = vcmp.gt.f32.partialorder %v1716, -1e+29
          %vm1750 = vcmp.gt.f32.partialorder %v1718, -1e+29
          %v1751 = vsel %vm1735, 1, 0
          %v1752 = vsel %vm1736, 1, 0
          %v1753 = vsel %vm1737, 1, 0
          %v1754 = vsel %vm1738, 1, 0
          %v1755 = vsel %vm1739, 1, 0
          %v1756 = vsel %vm1740, 1, 0
          %v1757 = vsel %vm1741, 1, 0
          %v1758 = vsel %vm1742, 1, 0
          %v1759 = vsel %vm1743, 1, 0
          %v1760 = vsel %vm1744, 1, 0
          %v1761 = vsel %vm1745, 1, 0
          %v1762 = vsel %vm1746, 1, 0
          %v1763 = vsel %vm1747, 1, 0
          %v1764 = vsel %vm1748, 1, 0
          %v1765 = vsel %vm1749, 1, 0
          %v1766 = vsel %vm1750, 1, 0
          %vm1767 = vcmp.eq.s32.totalorder %v1751, 1
          %vm1768 = vcmp.eq.s32.totalorder %v1752, 1
          %vm1769 = vcmp.eq.s32.totalorder %v1753, 1
          %vm1770 = vcmp.eq.s32.totalorder %v1754, 1
          %vm1771 = vcmp.eq.s32.totalorder %v1755, 1
          %vm1772 = vcmp.eq.s32.totalorder %v1756, 1
          %vm1773 = vcmp.eq.s32.totalorder %v1757, 1
          %vm1774 = vcmp.eq.s32.totalorder %v1758, 1
          %vm1775 = vcmp.eq.s32.totalorder %v1759, 1
          %vm1776 = vcmp.eq.s32.totalorder %v1760, 1
          %vm1777 = vcmp.eq.s32.totalorder %v1761, 1
          %vm1778 = vcmp.eq.s32.totalorder %v1762, 1
          %vm1779 = vcmp.eq.s32.totalorder %v1763, 1
          %vm1780 = vcmp.eq.s32.totalorder %v1764, 1
          %vm1781 = vcmp.eq.s32.totalorder %v1765, 1
          %vm1782 = vcmp.eq.s32.totalorder %v1766, 1
          %vm1783 = vmand %vm1719, %vm1767
          %vm1784 = vmand %vm1720, %vm1768
          %vm1785 = vmand %vm1721, %vm1769
          %vm1786 = vmand %vm1722, %vm1770
          %vm1787 = vmand %vm1723, %vm1771
          %vm1788 = vmand %vm1724, %vm1772
          %vm1789 = vmand %vm1725, %vm1773
          %vm1790 = vmand %vm1726, %vm1774
          %vm1791 = vmand %vm1727, %vm1775
          %vm1792 = vmand %vm1728, %vm1776
          %vm1793 = vmand %vm1729, %vm1777
          %vm1794 = vmand %vm1730, %vm1778
          %vm1795 = vmand %vm1731, %vm1779
          %vm1796 = vmand %vm1732, %vm1780
          %vm1797 = vmand %vm1733, %vm1781
          %vm1798 = vmand %vm1734, %vm1782
          %v1799 = vmul.f32 %v1688, 0.15
          %v1800 = vmul.f32 %v1690, 0.15
          %v1801 = vmul.f32 %v1692, 0.15
          %v1802 = vmul.f32 %v1694, 0.15
          %v1803 = vmul.f32 %v1696, 0.15
          %v1804 = vmul.f32 %v1698, 0.15
          %v1805 = vmul.f32 %v1700, 0.15
          %v1806 = vmul.f32 %v1702, 0.15
          %v1807 = vmul.f32 %v1704, 0.15
          %v1808 = vmul.f32 %v1706, 0.15
          %v1809 = vmul.f32 %v1708, 0.15
          %v1810 = vmul.f32 %v1710, 0.15
          %v1811 = vmul.f32 %v1712, 0.15
          %v1812 = vmul.f32 %v1714, 0.15
          %v1813 = vmul.f32 %v1716, 0.15
          %v1814 = vmul.f32 %v1718, 0.15
          %v1815 = vsel %vm1783, %v1799, 0.0
          %v1816 = vsel %vm1784, %v1800, 0.0
          %v1817 = vsel %vm1785, %v1801, 0.0
          %v1818 = vsel %vm1786, %v1802, 0.0
          %v1819 = vsel %vm1787, %v1803, 0.0
          %v1820 = vsel %vm1788, %v1804, 0.0
          %v1821 = vsel %vm1789, %v1805, 0.0
          %v1822 = vsel %vm1790, %v1806, 0.0
          %v1823 = vsel %vm1791, %v1807, 0.0
          %v1824 = vsel %vm1792, %v1808, 0.0
          %v1825 = vsel %vm1793, %v1809, 0.0
          %v1826 = vsel %vm1794, %v1810, 0.0
          %v1827 = vsel %vm1795, %v1811, 0.0
          %v1828 = vsel %vm1796, %v1812, 0.0
          %v1829 = vsel %vm1797, %v1813, 0.0
          %v1830 = vsel %vm1798, %v1814, 0.0
          %v1831 = vadd.f32 %v1671, %v1815
          %v1832 = vadd.f32 %v1672, %v1816
          %v1833 = vadd.f32 %v1673, %v1817
          %v1834 = vadd.f32 %v1674, %v1818
          %v1835 = vadd.f32 %v1675, %v1819
          %v1836 = vadd.f32 %v1676, %v1820
          %v1837 = vadd.f32 %v1677, %v1821
          %v1838 = vadd.f32 %v1678, %v1822
          %v1839 = vadd.f32 %v1679, %v1823
          %v1840 = vadd.f32 %v1680, %v1824
          %v1841 = vadd.f32 %v1681, %v1825
          %v1842 = vadd.f32 %v1682, %v1826
          %v1843 = vadd.f32 %v1683, %v1827
          %v1844 = vadd.f32 %v1684, %v1828
          %v1845 = vadd.f32 %v1685, %v1829
          %v1846 = vadd.f32 %v1686, %v1830
          %v1847 = vsel %vm1719, -1e+30, %v1655
          %v1848 = vsel %vm1720, -1e+30, %v1656
          %v1849 = vsel %vm1721, -1e+30, %v1657
          %v1850 = vsel %vm1722, -1e+30, %v1658
          %v1851 = vsel %vm1723, -1e+30, %v1659
          %v1852 = vsel %vm1724, -1e+30, %v1660
          %v1853 = vsel %vm1725, -1e+30, %v1661
          %v1854 = vsel %vm1726, -1e+30, %v1662
          %v1855 = vsel %vm1727, -1e+30, %v1663
          %v1856 = vsel %vm1728, -1e+30, %v1664
          %v1857 = vsel %vm1729, -1e+30, %v1665
          %v1858 = vsel %vm1730, -1e+30, %v1666
          %v1859 = vsel %vm1731, -1e+30, %v1667
          %v1860 = vsel %vm1732, -1e+30, %v1668
          %v1861 = vsel %vm1733, -1e+30, %v1669
          %v1862 = vsel %vm1734, -1e+30, %v1670
        $region47: #{tpu_custom_call.1} parent=23 // loop_footer
          %s1654 = sadd.s32 1, %s1650
        $region48: #{tpu_custom_call.1} parent=23 // loop_footer_branch
          %1649 = sbr.rel target = $region44
        $region49: #{tpu_custom_call.1} parent=23 // loop_exit
          _
        %1863 = vadd.xlane.f32.xlu0 %v1671
        %v1864 = vpop.xlane.xlu0 %1863
        %1865 = vadd.xlane.f32.xlu0 %v1672
        %v1866 = vpop.xlane.xlu0 %1865
        %1867 = vadd.xlane.f32.xlu0 %v1673
        %v1868 = vpop.xlane.xlu0 %1867
        %1869 = vadd.xlane.f32.xlu0 %v1674
        %v1870 = vpop.xlane.xlu0 %1869
        %1871 = vadd.xlane.f32.xlu0 %v1675
        %v1872 = vpop.xlane.xlu0 %1871
        %1873 = vadd.xlane.f32.xlu0 %v1676
        %v1874 = vpop.xlane.xlu0 %1873
        %1875 = vadd.xlane.f32.xlu0 %v1677
        %v1876 = vpop.xlane.xlu0 %1875
        %1877 = vadd.xlane.f32.xlu0 %v1678
        %v1878 = vpop.xlane.xlu0 %1877
        %1879 = vadd.xlane.f32.xlu0 %v1679
        %v1880 = vpop.xlane.xlu0 %1879
        %1881 = vadd.xlane.f32.xlu0 %v1680
        %v1882 = vpop.xlane.xlu0 %1881
        %1883 = vadd.xlane.f32.xlu0 %v1681
        %v1884 = vpop.xlane.xlu0 %1883
        %1885 = vadd.xlane.f32.xlu0 %v1682
        %v1886 = vpop.xlane.xlu0 %1885
        %1887 = vadd.xlane.f32.xlu0 %v1683
        %v1888 = vpop.xlane.xlu0 %1887
        %1889 = vadd.xlane.f32.xlu0 %v1684
        %v1890 = vpop.xlane.xlu0 %1889
        %1891 = vadd.xlane.f32.xlu0 %v1685
        %v1892 = vpop.xlane.xlu0 %1891
        %1893 = vadd.xlane.f32.xlu0 %v1686
        %v1894 = vpop.xlane.xlu0 %1893
        %1895 = vmatprep.subr.mxu0 0.0
        %v1896 = vand.u32 %v232, 4294901760
        %1897 = vmatpush1.msra.mxu0 %v1896
        %1898 = vmatprep.subr.mxu0 0.0
        %v1899 = vand.u32 %v233, 4294901760
        %1900 = vmatpush1.msra.mxu0 %v1899
        %1901 = vmatprep.subr.mxu0 0.0
        %v1902 = vand.u32 %v234, 4294901760
        %1903 = vmatpush1.msra.mxu0 %v1902
        %1904 = vmatprep.subr.mxu0 0.0
        %v1905 = vand.u32 %v235, 4294901760
        %1906 = vmatpush1.msra.mxu0 %v1905
        %1907 = vmatprep.subr.mxu0 0.0
        %v1908 = vand.u32 %v236, 4294901760
        %1909 = vmatpush1.msra.mxu0 %v1908
        %1910 = vmatprep.subr.mxu0 0.0
        %v1911 = vand.u32 %v237, 4294901760
        %1912 = vmatpush1.msra.mxu0 %v1911
        %1913 = vmatprep.subr.mxu0 0.0
        %v1914 = vand.u32 %v238, 4294901760
        %1915 = vmatpush1.msra.mxu0 %v1914
        %1916 = vmatprep.subr.mxu0 0.0
        %v1917 = vand.u32 %v239, 4294901760
        %1918 = vmatpush1.msra.mxu0 %v1917
        %1919 = vmatprep.subr.mxu0 0.0
        %v1920 = vand.u32 %v240, 4294901760
        %1921 = vmatpush1.msra.mxu0 %v1920
        %1922 = vmatprep.subr.mxu0 0.0
        %v1923 = vand.u32 %v241, 4294901760
        %1924 = vmatpush1.msra.mxu0 %v1923
        %1925 = vmatprep.subr.mxu0 0.0
        %v1926 = vand.u32 %v242, 4294901760
        %1927 = vmatpush1.msra.mxu0 %v1926
        %1928 = vmatprep.subr.mxu0 0.0
        %v1929 = vand.u32 %v243, 4294901760
        %1930 = vmatpush1.msra.mxu0 %v1929
        %1931 = vmatprep.subr.mxu0 0.0
        %v1932 = vand.u32 %v244, 4294901760
        %1933 = vmatpush1.msra.mxu0 %v1932
        %1934 = vmatprep.subr.mxu0 0.0
        %v1935 = vand.u32 %v245, 4294901760
        %1936 = vmatpush1.msra.mxu0 %v1935
        %1937 = vmatprep.subr.mxu0 0.0
        %v1938 = vand.u32 %v246, 4294901760
        %1939 = vmatpush1.msra.mxu0 %v1938
        %1940 = vmatprep.subr.mxu0 0.0
        %v1941 = vand.u32 %v247, 4294901760
        %1942 = vmatpush1.msra.mxu0 %v1941
        %1943 = vmatprep.subr.mxu0 0.0
        %1944 = vmatpush1.msra.mxu0 0.0
        %1945 = vmatprep.subr.mxu0 0.0
        %1946 = vmatpush1.msra.mxu0 0.0
        %1947 = vmatprep.subr.mxu0 0.0
        %1948 = vmatpush1.msra.mxu0 0.0
        %1949 = vmatprep.subr.mxu0 0.0
        %1950 = vmatpush1.msra.mxu0 0.0
        %1951 = vmatprep.subr.mxu0 0.0
        %1952 = vmatpush1.msra.mxu0 0.0
        %1953 = vmatprep.subr.mxu0 0.0
        %1954 = vmatpush1.msra.mxu0 0.0
        %1955 = vmatprep.subr.mxu0 0.0
        %1956 = vmatpush1.msra.mxu0 0.0
        %1957 = vmatprep.subr.mxu0 0.0
        %1958 = vmatpush1.msra.mxu0 0.0
        %1959 = vmatprep.subr.mxu0 0.0
        %1960 = vmatpush1.msra.mxu0 0.0
        %1961 = vmatprep.subr.mxu0 0.0
        %1962 = vmatpush1.msra.mxu0 0.0
        %1963 = vmatprep.subr.mxu0 0.0
        %1964 = vmatpush1.msra.mxu0 0.0
        %1965 = vmatprep.subr.mxu0 0.0
        %1966 = vmatpush1.msra.mxu0 0.0
        %1967 = vmatprep.subr.mxu0 0.0
        %1968 = vmatpush1.msra.mxu0 0.0
        %1969 = vmatprep.subr.mxu0 0.0
        %1970 = vmatpush1.msra.mxu0 0.0
        %1971 = vmatprep.subr.mxu0 0.0
        %1972 = vmatpush1.msra.mxu0 0.0
        %1973 = vmatprep.subr.mxu0 0.0
        %1974 = vmatpush1.msra.mxu0 0.0
        %1975 = vmatprep.mubr.f32.mxu0 0.0
        %v1976 = vand.u32 %v1671, 4294901760
        %v1977 = vsub.f32 %v1671, %v1976
        %v1978 = vand.u32 %v1977, 4294901760
        %v1979 = vsub.f32 %v1977, %v1978
        %v1980 = vand.u32 %v1979, 4294901760
        %1981 = vmatmul.mubr.f32.gmra.mrb[0].mxu0 %v1980
        %v1982 = vpop.f32.mrb[0].mxu0
        %v1983 = vadd.f32 0.0, %v1982
        %v1984 = vpop.f32.mrb[0].mxu0
        %1985 = vmatprep.mubr.f32.mxu0 0.0
        %v1986 = vand.u32 %v1672, 4294901760
        %v1987 = vsub.f32 %v1672, %v1986
        %v1988 = vand.u32 %v1987, 4294901760
        %v1989 = vsub.f32 %v1987, %v1988
        %v1990 = vand.u32 %v1989, 4294901760
        %1991 = vmatmul.mubr.f32.gmra.mrb[0].mxu0 %v1990
        %v1992 = vpop.f32.mrb[0].mxu0
        %v1993 = vadd.f32 0.0, %v1992
        %v1994 = vpop.f32.mrb[0].mxu0
        %1995 = vmatprep.mubr.f32.mxu0 0.0
        %v1996 = vand.u32 %v1673, 4294901760
        %v1997 = vsub.f32 %v1673, %v1996
        %v1998 = vand.u32 %v1997, 4294901760
        %v1999 = vsub.f32 %v1997, %v1998
        %v2000 = vand.u32 %v1999, 4294901760
        %2001 = vmatmul.mubr.f32.gmra.mrb[0].mxu0 %v2000
        %v2002 = vpop.f32.mrb[0].mxu0
        %v2003 = vadd.f32 0.0, %v2002
        %v2004 = vpop.f32.mrb[0].mxu0
        %2005 = vmatprep.mubr.f32.mxu0 0.0
        %v2006 = vand.u32 %v1674, 4294901760
        %v2007 = vsub.f32 %v1674, %v2006
        %v2008 = vand.u32 %v2007, 4294901760
        %v2009 = vsub.f32 %v2007, %v2008
        %v2010 = vand.u32 %v2009, 4294901760
        %2011 = vmatmul.mubr.f32.gmra.mrb[0].mxu0 %v2010
        %v2012 = vpop.f32.mrb[0].mxu0
        %v2013 = vadd.f32 0.0, %v2012
        %v2014 = vpop.f32.mrb[0].mxu0
        %2015 = vmatprep.mubr.f32.mxu0 0.0
        %v2016 = vand.u32 %v1675, 4294901760
        %v2017 = vsub.f32 %v1675, %v2016
        %v2018 = vand.u32 %v2017, 4294901760
        %v2019 = vsub.f32 %v2017, %v2018
        %v2020 = vand.u32 %v2019, 4294901760
        %2021 = vmatmul.mubr.f32.gmra.mrb[0].mxu0 %v2020
        %v2022 = vpop.f32.mrb[0].mxu0
        %v2023 = vadd.f32 0.0, %v2022
        %v2024 = vpop.f32.mrb[0].mxu0
        %2025 = vmatprep.mubr.f32.mxu0 0.0
        %v2026 = vand.u32 %v1676, 4294901760
        %v2027 = vsub.f32 %v1676, %v2026
        %v2028 = vand.u32 %v2027, 4294901760
        %v2029 = vsub.f32 %v2027, %v2028
        %v2030 = vand.u32 %v2029, 4294901760
        %2031 = vmatmul.mubr.f32.gmra.mrb[0].mxu0 %v2030
        %v2032 = vpop.f32.mrb[0].mxu0
        %v2033 = vadd.f32 0.0, %v2032
        %v2034 = vpop.f32.mrb[0].mxu0
        %2035 = vmatprep.mubr.f32.mxu0 0.0
        %v2036 = vand.u32 %v1677, 4294901760
        %v2037 = vsub.f32 %v1677, %v2036
        %v2038 = vand.u32 %v2037, 4294901760
        %v2039 = vsub.f32 %v2037, %v2038
        %v2040 = vand.u32 %v2039, 4294901760
        %2041 = vmatmul.mubr.f32.gmra.mrb[0].mxu0 %v2040
        %v2042 = vpop.f32.mrb[0].mxu0
        %v2043 = vadd.f32 0.0, %v2042
        %v2044 = vpop.f32.mrb[0].mxu0
        %2045 = vmatprep.mubr.f32.mxu0 0.0
        %v2046 = vand.u32 %v1678, 4294901760
        %v2047 = vsub.f32 %v1678, %v2046
        %v2048 = vand.u32 %v2047, 4294901760
        %v2049 = vsub.f32 %v2047, %v2048
        %v2050 = vand.u32 %v2049, 4294901760
        %2051 = vmatmul.mubr.f32.gmra.mrb[0].mxu0 %v2050
        %v2052 = vpop.f32.mrb[0].mxu0
        %v2053 = vadd.f32 0.0, %v2052
        %v2054 = vpop.f32.mrb[0].mxu0
        %2055 = vmatprep.mubr.f32.mxu0 0.0
        %v2056 = vand.u32 %v1679, 4294901760
        %v2057 = vsub.f32 %v1679, %v2056
        %v2058 = vand.u32 %v2057, 4294901760
        %v2059 = vsub.f32 %v2057, %v2058
        %v2060 = vand.u32 %v2059, 4294901760
        %2061 = vmatmul.mubr.f32.gmra.mrb[0].mxu0 %v2060
        %v2062 = vpop.f32.mrb[0].mxu0
        %v2063 = vadd.f32 0.0, %v2062
        %v2064 = vpop.f32.mrb[0].mxu0
        %2065 = vmatprep.mubr.f32.mxu0 0.0
        %v2066 = vand.u32 %v1680, 4294901760
        %v2067 = vsub.f32 %v1680, %v2066
        %v2068 = vand.u32 %v2067, 4294901760
        %v2069 = vsub.f32 %v2067, %v2068
        %v2070 = vand.u32 %v2069, 4294901760
        %2071 = vmatmul.mubr.f32.gmra.mrb[0].mxu0 %v2070
        %v2072 = vpop.f32.mrb[0].mxu0
        %v2073 = vadd.f32 0.0, %v2072
        %v2074 = vpop.f32.mrb[0].mxu0
        %2075 = vmatprep.mubr.f32.mxu0 0.0
        %v2076 = vand.u32 %v1681, 4294901760
        %v2077 = vsub.f32 %v1681, %v2076
        %v2078 = vand.u32 %v2077, 4294901760
        %v2079 = vsub.f32 %v2077, %v2078
        %v2080 = vand.u32 %v2079, 4294901760
        %2081 = vmatmul.mubr.f32.gmra.mrb[0].mxu0 %v2080
        %v2082 = vpop.f32.mrb[0].mxu0
        %v2083 = vadd.f32 0.0, %v2082
        %v2084 = vpop.f32.mrb[0].mxu0
        %2085 = vmatprep.mubr.f32.mxu0 0.0
        %v2086 = vand.u32 %v1682, 4294901760
        %v2087 = vsub.f32 %v1682, %v2086
        %v2088 = vand.u32 %v2087, 4294901760
        %v2089 = vsub.f32 %v2087, %v2088
        %v2090 = vand.u32 %v2089, 4294901760
        %2091 = vmatmul.mubr.f32.gmra.mrb[0].mxu0 %v2090
        %v2092 = vpop.f32.mrb[0].mxu0
        %v2093 = vadd.f32 0.0, %v2092
        %v2094 = vpop.f32.mrb[0].mxu0
        %2095 = vmatprep.mubr.f32.mxu0 0.0
        %v2096 = vand.u32 %v1683, 4294901760
        %v2097 = vsub.f32 %v1683, %v2096
        %v2098 = vand.u32 %v2097, 4294901760
        %v2099 = vsub.f32 %v2097, %v2098
        %v2100 = vand.u32 %v2099, 4294901760
        %2101 = vmatmul.mubr.f32.gmra.mrb[0].mxu0 %v2100
        %v2102 = vpop.f32.mrb[0].mxu0
        %v2103 = vadd.f32 0.0, %v2102
        %v2104 = vpop.f32.mrb[0].mxu0
        %2105 = vmatprep.mubr.f32.mxu0 0.0
        %v2106 = vand.u32 %v1684, 4294901760
        %v2107 = vsub.f32 %v1684, %v2106
        %v2108 = vand.u32 %v2107, 4294901760
        %v2109 = vsub.f32 %v2107, %v2108
        %v2110 = vand.u32 %v2109, 4294901760
        %2111 = vmatmul.mubr.f32.gmra.mrb[0].mxu0 %v2110
        %v2112 = vpop.f32.mrb[0].mxu0
        %v2113 = vadd.f32 0.0, %v2112
        %v2114 = vpop.f32.mrb[0].mxu0
        %2115 = vmatprep.mubr.f32.mxu0 0.0
        %v2116 = vand.u32 %v1685, 4294901760
        %v2117 = vsub.f32 %v1685, %v2116
        %v2118 = vand.u32 %v2117, 4294901760
        %v2119 = vsub.f32 %v2117, %v2118
        %v2120 = vand.u32 %v2119, 4294901760
        %2121 = vmatmul.mubr.f32.gmra.mrb[0].mxu0 %v2120
        %v2122 = vpop.f32.mrb[0].mxu0
        %v2123 = vadd.f32 0.0, %v2122
        %v2124 = vpop.f32.mrb[0].mxu0
        %2125 = vmatprep.mubr.f32.mxu0 0.0
        %v2126 = vand.u32 %v1686, 4294901760
        %v2127 = vsub.f32 %v1686, %v2126
        %v2128 = vand.u32 %v2127, 4294901760
        %v2129 = vsub.f32 %v2127, %v2128
        %v2130 = vand.u32 %v2129, 4294901760
        %2131 = vmatmul.mubr.f32.gmra.mrb[0].mxu0 %v2130
        %v2132 = vpop.f32.mrb[0].mxu0
        %v2133 = vadd.f32 0.0, %v2132
        %v2134 = vpop.f32.mrb[0].mxu0
        %2135 = vdwg.mxu0
        %2136 = vmatprep.subr.mxu0 0.0
        %v2137 = vand.u32 %v232, 4294901760
        %v2138 = vsub.f32 %v232, %v2137
        %v2139 = vand.u32 %v2138, 4294901760
        %v2140 = vsub.f32 %v2138, %v2139
        %v2141 = vand.u32 %v2140, 4294901760
        %2142 = vmatpush1.msra.mxu0 %v2141
        %2143 = vmatprep.subr.mxu0 0.0
        %v2144 = vand.u32 %v233, 4294901760
        %v2145 = vsub.f32 %v233, %v2144
        %v2146 = vand.u32 %v2145, 4294901760
        %v2147 = vsub.f32 %v2145, %v2146
        %v2148 = vand.u32 %v2147, 4294901760
        %2149 = vmatpush1.msra.mxu0 %v2148
        %2150 = vmatprep.subr.mxu0 0.0
        %v2151 = vand.u32 %v234, 4294901760
        %v2152 = vsub.f32 %v234, %v2151
        %v2153 = vand.u32 %v2152, 4294901760
        %v2154 = vsub.f32 %v2152, %v2153
        %v2155 = vand.u32 %v2154, 4294901760
        %2156 = vmatpush1.msra.mxu0 %v2155
        %2157 = vmatprep.subr.mxu0 0.0
        %v2158 = vand.u32 %v235, 4294901760
        %v2159 = vsub.f32 %v235, %v2158
        %v2160 = vand.u32 %v2159, 4294901760
        %v2161 = vsub.f32 %v2159, %v2160
        %v2162 = vand.u32 %v2161, 4294901760
        %2163 = vmatpush1.msra.mxu0 %v2162
        %2164 = vmatprep.subr.mxu0 0.0
        %v2165 = vand.u32 %v236, 4294901760
        %v2166 = vsub.f32 %v236, %v2165
        %v2167 = vand.u32 %v2166, 4294901760
        %v2168 = vsub.f32 %v2166, %v2167
        %v2169 = vand.u32 %v2168, 4294901760
        %2170 = vmatpush1.msra.mxu0 %v2169
        %2171 = vmatprep.subr.mxu0 0.0
        %v2172 = vand.u32 %v237, 4294901760
        %v2173 = vsub.f32 %v237, %v2172
        %v2174 = vand.u32 %v2173, 4294901760
        %v2175 = vsub.f32 %v2173, %v2174
        %v2176 = vand.u32 %v2175, 4294901760
        %2177 = vmatpush1.msra.mxu0 %v2176
        %2178 = vmatprep.subr.mxu0 0.0
        %v2179 = vand.u32 %v238, 4294901760
        %v2180 = vsub.f32 %v238, %v2179
        %v2181 = vand.u32 %v2180, 4294901760
        %v2182 = vsub.f32 %v2180, %v2181
        %v2183 = vand.u32 %v2182, 4294901760
        %2184 = vmatpush1.msra.mxu0 %v2183
        %2185 = vmatprep.subr.mxu0 0.0
        %v2186 = vand.u32 %v239, 4294901760
        %v2187 = vsub.f32 %v239, %v2186
        %v2188 = vand.u32 %v2187, 4294901760
        %v2189 = vsub.f32 %v2187, %v2188
        %v2190 = vand.u32 %v2189, 4294901760
        %2191 = vmatpush1.msra.mxu0 %v2190
        %2192 = vmatprep.subr.mxu0 0.0
        %v2193 = vand.u32 %v240, 4294901760
        %v2194 = vsub.f32 %v240, %v2193
        %v2195 = vand.u32 %v2194, 4294901760
        %v2196 = vsub.f32 %v2194, %v2195
        %v2197 = vand.u32 %v2196, 4294901760
        %2198 = vmatpush1.msra.mxu0 %v2197
        %2199 = vmatprep.subr.mxu0 0.0
        %v2200 = vand.u32 %v241, 4294901760
        %v2201 = vsub.f32 %v241, %v2200
        %v2202 = vand.u32 %v2201, 4294901760
        %v2203 = vsub.f32 %v2201, %v2202
        %v2204 = vand.u32 %v2203, 4294901760
        %2205 = vmatpush1.msra.mxu0 %v2204
        %2206 = vmatprep.subr.mxu0 0.0
        %v2207 = vand.u32 %v242, 4294901760
        %v2208 = vsub.f32 %v242, %v2207
        %v2209 = vand.u32 %v2208, 4294901760
        %v2210 = vsub.f32 %v2208, %v2209
        %v2211 = vand.u32 %v2210, 4294901760
        %2212 = vmatpush1.msra.mxu0 %v2211
        %2213 = vmatprep.subr.mxu0 0.0
        %v2214 = vand.u32 %v243, 4294901760
        %v2215 = vsub.f32 %v243, %v2214
        %v2216 = vand.u32 %v2215, 4294901760
        %v2217 = vsub.f32 %v2215, %v2216
        %v2218 = vand.u32 %v2217, 4294901760
        %2219 = vmatpush1.msra.mxu0 %v2218
        %2220 = vmatprep.subr.mxu0 0.0
        %v2221 = vand.u32 %v244, 4294901760
        %v2222 = vsub.f32 %v244, %v2221
        %v2223 = vand.u32 %v2222, 4294901760
        %v2224 = vsub.f32 %v2222, %v2223
        %v2225 = vand.u32 %v2224, 4294901760
        %2226 = vmatpush1.msra.mxu0 %v2225
        %2227 = vmatprep.subr.mxu0 0.0
        %v2228 = vand.u32 %v245, 4294901760
        %v2229 = vsub.f32 %v245, %v2228
        %v2230 = vand.u32 %v2229, 4294901760
        %v2231 = vsub.f32 %v2229, %v2230
        %v2232 = vand.u32 %v2231, 4294901760
        %2233 = vmatpush1.msra.mxu0 %v2232
        %2234 = vmatprep.subr.mxu0 0.0
        %v2235 = vand.u32 %v246, 4294901760
        %v2236 = vsub.f32 %v246, %v2235
        %v2237 = vand.u32 %v2236, 4294901760
        %v2238 = vsub.f32 %v2236, %v2237
        %v2239 = vand.u32 %v2238, 4294901760
        %2240 = vmatpush1.msra.mxu0 %v2239
        %2241 = vmatprep.subr.mxu0 0.0
        %v2242 = vand.u32 %v247, 4294901760
        %v2243 = vsub.f32 %v247, %v2242
        %v2244 = vand.u32 %v2243, 4294901760
        %v2245 = vsub.f32 %v2243, %v2244
        %v2246 = vand.u32 %v2245, 4294901760
        %2247 = vmatpush1.msra.mxu0 %v2246
        %2248 = vmatprep.subr.mxu0 0.0
        %2249 = vmatpush1.msra.mxu0 0.0
        %2250 = vmatprep.subr.mxu0 0.0
        %2251 = vmatpush1.msra.mxu0 0.0
        %2252 = vmatprep.subr.mxu0 0.0
        %2253 = vmatpush1.msra.mxu0 0.0
        %2254 = vmatprep.subr.mxu0 0.0
        %2255 = vmatpush1.msra.mxu0 0.0
        %2256 = vmatprep.subr.mxu0 0.0
        %2257 = vmatpush1.msra.mxu0 0.0
        %2258 = vmatprep.subr.mxu0 0.0
        %2259 = vmatpush1.msra.mxu0 0.0
        %2260 = vmatprep.subr.mxu0 0.0
        %2261 = vmatpush1.msra.mxu0 0.0
        %2262 = vmatprep.subr.mxu0 0.0
        %2263 = vmatpush1.msra.mxu0 0.0
        %2264 = vmatprep.subr.mxu0 0.0
        %2265 = vmatpush1.msra.mxu0 0.0
        %2266 = vmatprep.subr.mxu0 0.0
        %2267 = vmatpush1.msra.mxu0 0.0
        %2268 = vmatprep.subr.mxu0 0.0
        %2269 = vmatpush1.msra.mxu0 0.0
        %2270 = vmatprep.subr.mxu0 0.0
        %2271 = vmatpush1.msra.mxu0 0.0
        %2272 = vmatprep.subr.mxu0 0.0
        %2273 = vmatpush1.msra.mxu0 0.0
        %2274 = vmatprep.subr.mxu0 0.0
        %2275 = vmatpush1.msra.mxu0 0.0
        %2276 = vmatprep.subr.mxu0 0.0
        %2277 = vmatpush1.msra.mxu0 0.0
        %2278 = vmatprep.subr.mxu0 0.0
        %2279 = vmatpush1.msra.mxu0 0.0
        %2280 = vmatprep.mubr.f32.mxu0 0.0
        %v2281 = vand.u32 %v1671, 4294901760
        %2282 = vmatmul.mubr.f32.gmra.mrb[0].mxu0 %v2281
        %v2283 = vpop.f32.mrb[0].mxu0
        %v2284 = vadd.f32 %v1983, %v2283
        %v2285 = vpop.f32.mrb[0].mxu0
        %2286 = vmatprep.mubr.f32.mxu0 0.0
        %v2287 = vand.u32 %v1672, 4294901760
        %2288 = vmatmul.mubr.f32.gmra.mrb[0].mxu0 %v2287
        %v2289 = vpop.f32.mrb[0].mxu0
        %v2290 = vadd.f32 %v1993, %v2289
        %v2291 = vpop.f32.mrb[0].mxu0
        %2292 = vmatprep.mubr.f32.mxu0 0.0
        %v2293 = vand.u32 %v1673, 4294901760
        %2294 = vmatmul.mubr.f32.gmra.mrb[0].mxu0 %v2293
        %v2295 = vpop.f32.mrb[0].mxu0
        %v2296 = vadd.f32 %v2003, %v2295
        %v2297 = vpop.f32.mrb[0].mxu0
        %2298 = vmatprep.mubr.f32.mxu0 0.0
        %v2299 = vand.u32 %v1674, 4294901760
        %2300 = vmatmul.mubr.f32.gmra.mrb[0].mxu0 %v2299
        %v2301 = vpop.f32.mrb[0].mxu0
        %v2302 = vadd.f32 %v2013, %v2301
        %v2303 = vpop.f32.mrb[0].mxu0
        %2304 = vmatprep.mubr.f32.mxu0 0.0
        %v2305 = vand.u32 %v1675, 4294901760
        %2306 = vmatmul.mubr.f32.gmra.mrb[0].mxu0 %v2305
        %v2307 = vpop.f32.mrb[0].mxu0
        %v2308 = vadd.f32 %v2023, %v2307
        %v2309 = vpop.f32.mrb[0].mxu0
        %2310 = vmatprep.mubr.f32.mxu0 0.0
        %v2311 = vand.u32 %v1676, 4294901760
        %2312 = vmatmul.mubr.f32.gmra.mrb[0].mxu0 %v2311
        %v2313 = vpop.f32.mrb[0].mxu0
        %v2314 = vadd.f32 %v2033, %v2313
        %v2315 = vpop.f32.mrb[0].mxu0
        %2316 = vmatprep.mubr.f32.mxu0 0.0
        %v2317 = vand.u32 %v1677, 4294901760
        %2318 = vmatmul.mubr.f32.gmra.mrb[0].mxu0 %v2317
        %v2319 = vpop.f32.mrb[0].mxu0
        %v2320 = vadd.f32 %v2043, %v2319
        %v2321 = vpop.f32.mrb[0].mxu0
        %2322 = vmatprep.mubr.f32.mxu0 0.0
        %v2323 = vand.u32 %v1678, 4294901760
        %2324 = vmatmul.mubr.f32.gmra.mrb[0].mxu0 %v2323
        %v2325 = vpop.f32.mrb[0].mxu0
        %v2326 = vadd.f32 %v2053, %v2325
        %v2327 = vpop.f32.mrb[0].mxu0
        %2328 = vmatprep.mubr.f32.mxu0 0.0
        %v2329 = vand.u32 %v1679, 4294901760
        %2330 = vmatmul.mubr.f32.gmra.mrb[0].mxu0 %v2329
        %v2331 = vpop.f32.mrb[0].mxu0
        %v2332 = vadd.f32 %v2063, %v2331
        %v2333 = vpop.f32.mrb[0].mxu0
        %2334 = vmatprep.mubr.f32.mxu0 0.0
        %v2335 = vand.u32 %v1680, 4294901760
        %2336 = vmatmul.mubr.f32.gmra.mrb[0].mxu0 %v2335
        %v2337 = vpop.f32.mrb[0].mxu0
        %v2338 = vadd.f32 %v2073, %v2337
        %v2339 = vpop.f32.mrb[0].mxu0
        %2340 = vmatprep.mubr.f32.mxu0 0.0
        %v2341 = vand.u32 %v1681, 4294901760
        %2342 = vmatmul.mubr.f32.gmra.mrb[0].mxu0 %v2341
        %v2343 = vpop.f32.mrb[0].mxu0
        %v2344 = vadd.f32 %v2083, %v2343
        %v2345 = vpop.f32.mrb[0].mxu0
        %2346 = vmatprep.mubr.f32.mxu0 0.0
        %v2347 = vand.u32 %v1682, 4294901760
        %2348 = vmatmul.mubr.f32.gmra.mrb[0].mxu0 %v2347
        %v2349 = vpop.f32.mrb[0].mxu0
        %v2350 = vadd.f32 %v2093, %v2349
        %v2351 = vpop.f32.mrb[0].mxu0
        %2352 = vmatprep.mubr.f32.mxu0 0.0
        %v2353 = vand.u32 %v1683, 4294901760
        %2354 = vmatmul.mubr.f32.gmra.mrb[0].mxu0 %v2353
        %v2355 = vpop.f32.mrb[0].mxu0
        %v2356 = vadd.f32 %v2103, %v2355
        %v2357 = vpop.f32.mrb[0].mxu0
        %2358 = vmatprep.mubr.f32.mxu0 0.0
        %v2359 = vand.u32 %v1684, 4294901760
        %2360 = vmatmul.mubr.f32.gmra.mrb[0].mxu0 %v2359
        %v2361 = vpop.f32.mrb[0].mxu0
        %v2362 = vadd.f32 %v2113, %v2361
        %v2363 = vpop.f32.mrb[0].mxu0
        %2364 = vmatprep.mubr.f32.mxu0 0.0
        %v2365 = vand.u32 %v1685, 4294901760
        %2366 = vmatmul.mubr.f32.gmra.mrb[0].mxu0 %v2365
        %v2367 = vpop.f32.mrb[0].mxu0
        %v2368 = vadd.f32 %v2123, %v2367
        %v2369 = vpop.f32.mrb[0].mxu0
        %2370 = vmatprep.mubr.f32.mxu0 0.0
        %v2371 = vand.u32 %v1686, 4294901760
        %2372 = vmatmul.mubr.f32.gmra.mrb[0].mxu0 %v2371
        %v2373 = vpop.f32.mrb[0].mxu0
        %v2374 = vadd.f32 %v2133, %v2373
        %v2375 = vpop.f32.mrb[0].mxu0
        %2376 = vdwg.mxu0
        %2377 = vmatprep.subr.mxu0 0.0
        %v2378 = vand.u32 %v232, 4294901760
        %v2379 = vsub.f32 %v232, %v2378
        %2380 = vmatpush1.msra.mxu0 %v2379
        %2381 = vmatprep.subr.mxu0 0.0
        %v2382 = vand.u32 %v233, 4294901760
        %v2383 = vsub.f32 %v233, %v2382
        %2384 = vmatpush1.msra.mxu0 %v2383
        %2385 = vmatprep.subr.mxu0 0.0
        %v2386 = vand.u32 %v234, 4294901760
        %v2387 = vsub.f32 %v234, %v2386
        %2388 = vmatpush1.msra.mxu0 %v2387
        %2389 = vmatprep.subr.mxu0 0.0
        %v2390 = vand.u32 %v235, 4294901760
        %v2391 = vsub.f32 %v235, %v2390
        %2392 = vmatpush1.msra.mxu0 %v2391
        %2393 = vmatprep.subr.mxu0 0.0
        %v2394 = vand.u32 %v236, 4294901760
        %v2395 = vsub.f32 %v236, %v2394
        %2396 = vmatpush1.msra.mxu0 %v2395
        %2397 = vmatprep.subr.mxu0 0.0
        %v2398 = vand.u32 %v237, 4294901760
        %v2399 = vsub.f32 %v237, %v2398
        %2400 = vmatpush1.msra.mxu0 %v2399
        %2401 = vmatprep.subr.mxu0 0.0
        %v2402 = vand.u32 %v238, 4294901760
        %v2403 = vsub.f32 %v238, %v2402
        %2404 = vmatpush1.msra.mxu0 %v2403
        %2405 = vmatprep.subr.mxu0 0.0
        %v2406 = vand.u32 %v239, 4294901760
        %v2407 = vsub.f32 %v239, %v2406
        %2408 = vmatpush1.msra.mxu0 %v2407
        %2409 = vmatprep.subr.mxu0 0.0
        %v2410 = vand.u32 %v240, 4294901760
        %v2411 = vsub.f32 %v240, %v2410
        %2412 = vmatpush1.msra.mxu0 %v2411
        %2413 = vmatprep.subr.mxu0 0.0
        %v2414 = vand.u32 %v241, 4294901760
        %v2415 = vsub.f32 %v241, %v2414
        %2416 = vmatpush1.msra.mxu0 %v2415
        %2417 = vmatprep.subr.mxu0 0.0
        %v2418 = vand.u32 %v242, 4294901760
        %v2419 = vsub.f32 %v242, %v2418
        %2420 = vmatpush1.msra.mxu0 %v2419
        %2421 = vmatprep.subr.mxu0 0.0
        %v2422 = vand.u32 %v243, 4294901760
        %v2423 = vsub.f32 %v243, %v2422
        %2424 = vmatpush1.msra.mxu0 %v2423
        %2425 = vmatprep.subr.mxu0 0.0
        %v2426 = vand.u32 %v244, 4294901760
        %v2427 = vsub.f32 %v244, %v2426
        %2428 = vmatpush1.msra.mxu0 %v2427
        %2429 = vmatprep.subr.mxu0 0.0
        %v2430 = vand.u32 %v245, 4294901760
        %v2431 = vsub.f32 %v245, %v2430
        %2432 = vmatpush1.msra.mxu0 %v2431
        %2433 = vmatprep.subr.mxu0 0.0
        %v2434 = vand.u32 %v246, 4294901760
        %v2435 = vsub.f32 %v246, %v2434
        %2436 = vmatpush1.msra.mxu0 %v2435
        %2437 = vmatprep.subr.mxu0 0.0
        %v2438 = vand.u32 %v247, 4294901760
        %v2439 = vsub.f32 %v247, %v2438
        %2440 = vmatpush1.msra.mxu0 %v2439
        %2441 = vmatprep.subr.mxu0 0.0
        %2442 = vmatpush1.msra.mxu0 0.0
        %2443 = vmatprep.subr.mxu0 0.0
        %2444 = vmatpush1.msra.mxu0 0.0
        %2445 = vmatprep.subr.mxu0 0.0
        %2446 = vmatpush1.msra.mxu0 0.0
        %2447 = vmatprep.subr.mxu0 0.0
        %2448 = vmatpush1.msra.mxu0 0.0
        %2449 = vmatprep.subr.mxu0 0.0
        %2450 = vmatpush1.msra.mxu0 0.0
        %2451 = vmatprep.subr.mxu0 0.0
        %2452 = vmatpush1.msra.mxu0 0.0
        %2453 = vmatprep.subr.mxu0 0.0
        %2454 = vmatpush1.msra.mxu0 0.0
        %2455 = vmatprep.subr.mxu0 0.0
        %2456 = vmatpush1.msra.mxu0 0.0
        %2457 = vmatprep.subr.mxu0 0.0
        %2458 = vmatpush1.msra.mxu0 0.0
        %2459 = vmatprep.subr.mxu0 0.0
        %2460 = vmatpush1.msra.mxu0 0.0
        %2461 = vmatprep.subr.mxu0 0.0
        %2462 = vmatpush1.msra.mxu0 0.0
        %2463 = vmatprep.subr.mxu0 0.0
        %2464 = vmatpush1.msra.mxu0 0.0
        %2465 = vmatprep.subr.mxu0 0.0
        %2466 = vmatpush1.msra.mxu0 0.0
        %2467 = vmatprep.subr.mxu0 0.0
        %2468 = vmatpush1.msra.mxu0 0.0
        %2469 = vmatprep.subr.mxu0 0.0
        %2470 = vmatpush1.msra.mxu0 0.0
        %2471 = vmatprep.subr.mxu0 0.0
        %2472 = vmatpush1.msra.mxu0 0.0
        %2473 = vmatprep.mubr.f32.mxu0 0.0
        %v2474 = vand.u32 %v1671, 4294901760
        %v2475 = vsub.f32 %v1671, %v2474
        %2476 = vmatmul.mubr.f32.gmra.mrb[0].mxu0 %v2475
        %v2477 = vpop.f32.mrb[0].mxu0
        %v2478 = vadd.f32 %v2284, %v2477
        %v2479 = vpop.f32.mrb[0].mxu0
        %2480 = vmatprep.mubr.f32.mxu0 0.0
        %v2481 = vand.u32 %v1672, 4294901760
        %v2482 = vsub.f32 %v1672, %v2481
        %2483 = vmatmul.mubr.f32.gmra.mrb[0].mxu0 %v2482
        %v2484 = vpop.f32.mrb[0].mxu0
        %v2485 = vadd.f32 %v2290, %v2484
        %v2486 = vpop.f32.mrb[0].mxu0
        %2487 = vmatprep.mubr.f32.mxu0 0.0
        %v2488 = vand.u32 %v1673, 4294901760
        %v2489 = vsub.f32 %v1673, %v2488
        %2490 = vmatmul.mubr.f32.gmra.mrb[0].mxu0 %v2489
        %v2491 = vpop.f32.mrb[0].mxu0
        %v2492 = vadd.f32 %v2296, %v2491
        %v2493 = vpop.f32.mrb[0].mxu0
        %2494 = vmatprep.mubr.f32.mxu0 0.0
        %v2495 = vand.u32 %v1674, 4294901760
        %v2496 = vsub.f32 %v1674, %v2495
        %2497 = vmatmul.mubr.f32.gmra.mrb[0].mxu0 %v2496
        %v2498 = vpop.f32.mrb[0].mxu0
        %v2499 = vadd.f32 %v2302, %v2498
        %v2500 = vpop.f32.mrb[0].mxu0
        %2501 = vmatprep.mubr.f32.mxu0 0.0
        %v2502 = vand.u32 %v1675, 4294901760
        %v2503 = vsub.f32 %v1675, %v2502
        %2504 = vmatmul.mubr.f32.gmra.mrb[0].mxu0 %v2503
        %v2505 = vpop.f32.mrb[0].mxu0
        %v2506 = vadd.f32 %v2308, %v2505
        %v2507 = vpop.f32.mrb[0].mxu0
        %2508 = vmatprep.mubr.f32.mxu0 0.0
        %v2509 = vand.u32 %v1676, 4294901760
        %v2510 = vsub.f32 %v1676, %v2509
        %2511 = vmatmul.mubr.f32.gmra.mrb[0].mxu0 %v2510
        %v2512 = vpop.f32.mrb[0].mxu0
        %v2513 = vadd.f32 %v2314, %v2512
        %v2514 = vpop.f32.mrb[0].mxu0
        %2515 = vmatprep.mubr.f32.mxu0 0.0
        %v2516 = vand.u32 %v1677, 4294901760
        %v2517 = vsub.f32 %v1677, %v2516
        %2518 = vmatmul.mubr.f32.gmra.mrb[0].mxu0 %v2517
        %v2519 = vpop.f32.mrb[0].mxu0
        %v2520 = vadd.f32 %v2320, %v2519
        %v2521 = vpop.f32.mrb[0].mxu0
        %2522 = vmatprep.mubr.f32.mxu0 0.0
        %v2523 = vand.u32 %v1678, 4294901760
        %v2524 = vsub.f32 %v1678, %v2523
        %2525 = vmatmul.mubr.f32.gmra.mrb[0].mxu0 %v2524
        %v2526 = vpop.f32.mrb[0].mxu0
        %v2527 = vadd.f32 %v2326, %v2526
        %v2528 = vpop.f32.mrb[0].mxu0
        %2529 = vmatprep.mubr.f32.mxu0 0.0
        %v2530 = vand.u32 %v1679, 4294901760
        %v2531 = vsub.f32 %v1679, %v2530
        %2532 = vmatmul.mubr.f32.gmra.mrb[0].mxu0 %v2531
        %v2533 = vpop.f32.mrb[0].mxu0
        %v2534 = vadd.f32 %v2332, %v2533
        %v2535 = vpop.f32.mrb[0].mxu0
        %2536 = vmatprep.mubr.f32.mxu0 0.0
        %v2537 = vand.u32 %v1680, 4294901760
        %v2538 = vsub.f32 %v1680, %v2537
        %2539 = vmatmul.mubr.f32.gmra.mrb[0].mxu0 %v2538
        %v2540 = vpop.f32.mrb[0].mxu0
        %v2541 = vadd.f32 %v2338, %v2540
        %v2542 = vpop.f32.mrb[0].mxu0
        %2543 = vmatprep.mubr.f32.mxu0 0.0
        %v2544 = vand.u32 %v1681, 4294901760
        %v2545 = vsub.f32 %v1681, %v2544
        %2546 = vmatmul.mubr.f32.gmra.mrb[0].mxu0 %v2545
        %v2547 = vpop.f32.mrb[0].mxu0
        %v2548 = vadd.f32 %v2344, %v2547
        %v2549 = vpop.f32.mrb[0].mxu0
        %2550 = vmatprep.mubr.f32.mxu0 0.0
        %v2551 = vand.u32 %v1682, 4294901760
        %v2552 = vsub.f32 %v1682, %v2551
        %2553 = vmatmul.mubr.f32.gmra.mrb[0].mxu0 %v2552
        %v2554 = vpop.f32.mrb[0].mxu0
        %v2555 = vadd.f32 %v2350, %v2554
        %v2556 = vpop.f32.mrb[0].mxu0
        %2557 = vmatprep.mubr.f32.mxu0 0.0
        %v2558 = vand.u32 %v1683, 4294901760
        %v2559 = vsub.f32 %v1683, %v2558
        %2560 = vmatmul.mubr.f32.gmra.mrb[0].mxu0 %v2559
        %v2561 = vpop.f32.mrb[0].mxu0
        %v2562 = vadd.f32 %v2356, %v2561
        %v2563 = vpop.f32.mrb[0].mxu0
        %2564 = vmatprep.mubr.f32.mxu0 0.0
        %v2565 = vand.u32 %v1684, 4294901760
        %v2566 = vsub.f32 %v1684, %v2565
        %2567 = vmatmul.mubr.f32.gmra.mrb[0].mxu0 %v2566
        %v2568 = vpop.f32.mrb[0].mxu0
        %v2569 = vadd.f32 %v2362, %v2568
        %v2570 = vpop.f32.mrb[0].mxu0
        %2571 = vmatprep.mubr.f32.mxu0 0.0
        %v2572 = vand.u32 %v1685, 4294901760
        %v2573 = vsub.f32 %v1685, %v2572
        %2574 = vmatmul.mubr.f32.gmra.mrb[0].mxu0 %v2573
        %v2575 = vpop.f32.mrb[0].mxu0
        %v2576 = vadd.f32 %v2368, %v2575
        %v2577 = vpop.f32.mrb[0].mxu0
        %2578 = vmatprep.mubr.f32.mxu0 0.0
        %v2579 = vand.u32 %v1686, 4294901760
        %v2580 = vsub.f32 %v1686, %v2579
        %2581 = vmatmul.mubr.f32.gmra.mrb[0].mxu0 %v2580
        %v2582 = vpop.f32.mrb[0].mxu0
        %v2583 = vadd.f32 %v2374, %v2582
        %v2584 = vpop.f32.mrb[0].mxu0
        %2585 = vdwg.mxu0
        %2586 = vmatprep.subr.mxu0 0.0
        %v2587 = vand.u32 %v232, 4294901760
        %2588 = vmatpush1.msra.mxu0 %v2587
        %2589 = vmatprep.subr.mxu0 0.0
        %v2590 = vand.u32 %v233, 4294901760
        %2591 = vmatpush1.msra.mxu0 %v2590
        %2592 = vmatprep.subr.mxu0 0.0
        %v2593 = vand.u32 %v234, 4294901760
        %2594 = vmatpush1.msra.mxu0 %v2593
        %2595 = vmatprep.subr.mxu0 0.0
        %v2596 = vand.u32 %v235, 4294901760
        %2597 = vmatpush1.msra.mxu0 %v2596
        %2598 = vmatprep.subr.mxu0 0.0
        %v2599 = vand.u32 %v236, 4294901760
        %2600 = vmatpush1.msra.mxu0 %v2599
        %2601 = vmatprep.subr.mxu0 0.0
        %v2602 = vand.u32 %v237, 4294901760
        %2603 = vmatpush1.msra.mxu0 %v2602
        %2604 = vmatprep.subr.mxu0 0.0
        %v2605 = vand.u32 %v238, 4294901760
        %2606 = vmatpush1.msra.mxu0 %v2605
        %2607 = vmatprep.subr.mxu0 0.0
        %v2608 = vand.u32 %v239, 4294901760
        %2609 = vmatpush1.msra.mxu0 %v2608
        %2610 = vmatprep.subr.mxu0 0.0
        %v2611 = vand.u32 %v240, 4294901760
        %2612 = vmatpush1.msra.mxu0 %v2611
        %2613 = vmatprep.subr.mxu0 0.0
        %v2614 = vand.u32 %v241, 4294901760
        %2615 = vmatpush1.msra.mxu0 %v2614
        %2616 = vmatprep.subr.mxu0 0.0
        %v2617 = vand.u32 %v242, 4294901760
        %2618 = vmatpush1.msra.mxu0 %v2617
        %2619 = vmatprep.subr.mxu0 0.0
        %v2620 = vand.u32 %v243, 4294901760
        %2621 = vmatpush1.msra.mxu0 %v2620
        %2622 = vmatprep.subr.mxu0 0.0
        %v2623 = vand.u32 %v244, 4294901760
        %2624 = vmatpush1.msra.mxu0 %v2623
        %2625 = vmatprep.subr.mxu0 0.0
        %v2626 = vand.u32 %v245, 4294901760
        %2627 = vmatpush1.msra.mxu0 %v2626
        %2628 = vmatprep.subr.mxu0 0.0
        %v2629 = vand.u32 %v246, 4294901760
        %2630 = vmatpush1.msra.mxu0 %v2629
        %2631 = vmatprep.subr.mxu0 0.0
        %v2632 = vand.u32 %v247, 4294901760
        %2633 = vmatpush1.msra.mxu0 %v2632
        %2634 = vmatprep.subr.mxu0 0.0
        %2635 = vmatpush1.msra.mxu0 0.0
        %2636 = vmatprep.subr.mxu0 0.0
        %2637 = vmatpush1.msra.mxu0 0.0
        %2638 = vmatprep.subr.mxu0 0.0
        %2639 = vmatpush1.msra.mxu0 0.0
        %2640 = vmatprep.subr.mxu0 0.0
        %2641 = vmatpush1.msra.mxu0 0.0
        %2642 = vmatprep.subr.mxu0 0.0
        %2643 = vmatpush1.msra.mxu0 0.0
        %2644 = vmatprep.subr.mxu0 0.0
        %2645 = vmatpush1.msra.mxu0 0.0
        %2646 = vmatprep.subr.mxu0 0.0
        %2647 = vmatpush1.msra.mxu0 0.0
        %2648 = vmatprep.subr.mxu0 0.0
        %2649 = vmatpush1.msra.mxu0 0.0
        %2650 = vmatprep.subr.mxu0 0.0
        %2651 = vmatpush1.msra.mxu0 0.0
        %2652 = vmatprep.subr.mxu0 0.0
        %2653 = vmatpush1.msra.mxu0 0.0
        %2654 = vmatprep.subr.mxu0 0.0
        %2655 = vmatpush1.msra.mxu0 0.0
        %2656 = vmatprep.subr.mxu0 0.0
        %2657 = vmatpush1.msra.mxu0 0.0
        %2658 = vmatprep.subr.mxu0 0.0
        %2659 = vmatpush1.msra.mxu0 0.0
        %2660 = vmatprep.subr.mxu0 0.0
        %2661 = vmatpush1.msra.mxu0 0.0
        %2662 = vmatprep.subr.mxu0 0.0
        %2663 = vmatpush1.msra.mxu0 0.0
        %2664 = vmatprep.subr.mxu0 0.0
        %2665 = vmatpush1.msra.mxu0 0.0
        %2666 = vmatprep.mubr.f32.mxu0 0.0
        %v2667 = vand.u32 %v1671, 4294901760
        %v2668 = vsub.f32 %v1671, %v2667
        %v2669 = vand.u32 %v2668, 4294901760
        %2670 = vmatmul.mubr.f32.gmra.mrb[0].mxu0 %v2669
        %v2671 = vpop.f32.mrb[0].mxu0
        %v2672 = vadd.f32 %v2478, %v2671
        %v2673 = vpop.f32.mrb[0].mxu0
        %2674 = vmatprep.mubr.f32.mxu0 0.0
        %v2675 = vand.u32 %v1672, 4294901760
        %v2676 = vsub.f32 %v1672, %v2675
        %v2677 = vand.u32 %v2676, 4294901760
        %2678 = vmatmul.mubr.f32.gmra.mrb[0].mxu0 %v2677
        %v2679 = vpop.f32.mrb[0].mxu0
        %v2680 = vadd.f32 %v2485, %v2679
        %v2681 = vpop.f32.mrb[0].mxu0
        %2682 = vmatprep.mubr.f32.mxu0 0.0
        %v2683 = vand.u32 %v1673, 4294901760
        %v2684 = vsub.f32 %v1673, %v2683
        %v2685 = vand.u32 %v2684, 4294901760
        %2686 = vmatmul.mubr.f32.gmra.mrb[0].mxu0 %v2685
        %v2687 = vpop.f32.mrb[0].mxu0
        %v2688 = vadd.f32 %v2492, %v2687
        %v2689 = vpop.f32.mrb[0].mxu0
        %2690 = vmatprep.mubr.f32.mxu0 0.0
        %v2691 = vand.u32 %v1674, 4294901760
        %v2692 = vsub.f32 %v1674, %v2691
        %v2693 = vand.u32 %v2692, 4294901760
        %2694 = vmatmul.mubr.f32.gmra.mrb[0].mxu0 %v2693
        %v2695 = vpop.f32.mrb[0].mxu0
        %v2696 = vadd.f32 %v2499, %v2695
        %v2697 = vpop.f32.mrb[0].mxu0
        %2698 = vmatprep.mubr.f32.mxu0 0.0
        %v2699 = vand.u32 %v1675, 4294901760
        %v2700 = vsub.f32 %v1675, %v2699
        %v2701 = vand.u32 %v2700, 4294901760
        %2702 = vmatmul.mubr.f32.gmra.mrb[0].mxu0 %v2701
        %v2703 = vpop.f32.mrb[0].mxu0
        %v2704 = vadd.f32 %v2506, %v2703
        %v2705 = vpop.f32.mrb[0].mxu0
        %2706 = vmatprep.mubr.f32.mxu0 0.0
        %v2707 = vand.u32 %v1676, 4294901760
        %v2708 = vsub.f32 %v1676, %v2707
        %v2709 = vand.u32 %v2708, 4294901760
        %2710 = vmatmul.mubr.f32.gmra.mrb[0].mxu0 %v2709
        %v2711 = vpop.f32.mrb[0].mxu0
        %v2712 = vadd.f32 %v2513, %v2711
        %v2713 = vpop.f32.mrb[0].mxu0
        %2714 = vmatprep.mubr.f32.mxu0 0.0
        %v2715 = vand.u32 %v1677, 4294901760
        %v2716 = vsub.f32 %v1677, %v2715
        %v2717 = vand.u32 %v2716, 4294901760
        %2718 = vmatmul.mubr.f32.gmra.mrb[0].mxu0 %v2717
        %v2719 = vpop.f32.mrb[0].mxu0
        %v2720 = vadd.f32 %v2520, %v2719
        %v2721 = vpop.f32.mrb[0].mxu0
        %2722 = vmatprep.mubr.f32.mxu0 0.0
        %v2723 = vand.u32 %v1678, 4294901760
        %v2724 = vsub.f32 %v1678, %v2723
        %v2725 = vand.u32 %v2724, 4294901760
        %2726 = vmatmul.mubr.f32.gmra.mrb[0].mxu0 %v2725
        %v2727 = vpop.f32.mrb[0].mxu0
        %v2728 = vadd.f32 %v2527, %v2727
        %v2729 = vpop.f32.mrb[0].mxu0
        %2730 = vmatprep.mubr.f32.mxu0 0.0
        %v2731 = vand.u32 %v1679, 4294901760
        %v2732 = vsub.f32 %v1679, %v2731
        %v2733 = vand.u32 %v2732, 4294901760
        %2734 = vmatmul.mubr.f32.gmra.mrb[0].mxu0 %v2733
        %v2735 = vpop.f32.mrb[0].mxu0
        %v2736 = vadd.f32 %v2534, %v2735
        %v2737 = vpop.f32.mrb[0].mxu0
        %2738 = vmatprep.mubr.f32.mxu0 0.0
        %v2739 = vand.u32 %v1680, 4294901760
        %v2740 = vsub.f32 %v1680, %v2739
        %v2741 = vand.u32 %v2740, 4294901760
        %2742 = vmatmul.mubr.f32.gmra.mrb[0].mxu0 %v2741
        %v2743 = vpop.f32.mrb[0].mxu0
        %v2744 = vadd.f32 %v2541, %v2743
        %v2745 = vpop.f32.mrb[0].mxu0
        %2746 = vmatprep.mubr.f32.mxu0 0.0
        %v2747 = vand.u32 %v1681, 4294901760
        %v2748 = vsub.f32 %v1681, %v2747
        %v2749 = vand.u32 %v2748, 4294901760
        %2750 = vmatmul.mubr.f32.gmra.mrb[0].mxu0 %v2749
        %v2751 = vpop.f32.mrb[0].mxu0
        %v2752 = vadd.f32 %v2548, %v2751
        %v2753 = vpop.f32.mrb[0].mxu0
        %2754 = vmatprep.mubr.f32.mxu0 0.0
        %v2755 = vand.u32 %v1682, 4294901760
        %v2756 = vsub.f32 %v1682, %v2755
        %v2757 = vand.u32 %v2756, 4294901760
        %2758 = vmatmul.mubr.f32.gmra.mrb[0].mxu0 %v2757
        %v2759 = vpop.f32.mrb[0].mxu0
        %v2760 = vadd.f32 %v2555, %v2759
        %v2761 = vpop.f32.mrb[0].mxu0
        %2762 = vmatprep.mubr.f32.mxu0 0.0
        %v2763 = vand.u32 %v1683, 4294901760
        %v2764 = vsub.f32 %v1683, %v2763
        %v2765 = vand.u32 %v2764, 4294901760
        %2766 = vmatmul.mubr.f32.gmra.mrb[0].mxu0 %v2765
        %v2767 = vpop.f32.mrb[0].mxu0
        %v2768 = vadd.f32 %v2562, %v2767
        %v2769 = vpop.f32.mrb[0].mxu0
        %2770 = vmatprep.mubr.f32.mxu0 0.0
        %v2771 = vand.u32 %v1684, 4294901760
        %v2772 = vsub.f32 %v1684, %v2771
        %v2773 = vand.u32 %v2772, 4294901760
        %2774 = vmatmul.mubr.f32.gmra.mrb[0].mxu0 %v2773
        %v2775 = vpop.f32.mrb[0].mxu0
        %v2776 = vadd.f32 %v2569, %v2775
        %v2777 = vpop.f32.mrb[0].mxu0
        %2778 = vmatprep.mubr.f32.mxu0 0.0
        %v2779 = vand.u32 %v1685, 4294901760
        %v2780 = vsub.f32 %v1685, %v2779
        %v2781 = vand.u32 %v2780, 4294901760
        %2782 = vmatmul.mubr.f32.gmra.mrb[0].mxu0 %v2781
        %v2783 = vpop.f32.mrb[0].mxu0
        %v2784 = vadd.f32 %v2576, %v2783
        %v2785 = vpop.f32.mrb[0].mxu0
        %2786 = vmatprep.mubr.f32.mxu0 0.0
        %v2787 = vand.u32 %v1686, 4294901760
        %v2788 = vsub.f32 %v1686, %v2787
        %v2789 = vand.u32 %v2788, 4294901760
        %2790 = vmatmul.mubr.f32.gmra.mrb[0].mxu0 %v2789
        %v2791 = vpop.f32.mrb[0].mxu0
        %v2792 = vadd.f32 %v2583, %v2791
        %v2793 = vpop.f32.mrb[0].mxu0
        %2794 = vdwg.mxu0
        %2795 = vmatprep.subr.mxu0 0.0
        %v2796 = vand.u32 %v232, 4294901760
        %v2797 = vsub.f32 %v232, %v2796
        %v2798 = vand.u32 %v2797, 4294901760
        %2799 = vmatpush1.msra.mxu0 %v2798
        %2800 = vmatprep.subr.mxu0 0.0
        %v2801 = vand.u32 %v233, 4294901760
        %v2802 = vsub.f32 %v233, %v2801
        %v2803 = vand.u32 %v2802, 4294901760
        %2804 = vmatpush1.msra.mxu0 %v2803
        %2805 = vmatprep.subr.mxu0 0.0
        %v2806 = vand.u32 %v234, 4294901760
        %v2807 = vsub.f32 %v234, %v2806
        %v2808 = vand.u32 %v2807, 4294901760
        %2809 = vmatpush1.msra.mxu0 %v2808
        %2810 = vmatprep.subr.mxu0 0.0
        %v2811 = vand.u32 %v235, 4294901760
        %v2812 = vsub.f32 %v235, %v2811
        %v2813 = vand.u32 %v2812, 4294901760
        %2814 = vmatpush1.msra.mxu0 %v2813
        %2815 = vmatprep.subr.mxu0 0.0
        %v2816 = vand.u32 %v236, 4294901760
        %v2817 = vsub.f32 %v236, %v2816
        %v2818 = vand.u32 %v2817, 4294901760
        %2819 = vmatpush1.msra.mxu0 %v2818
        %2820 = vmatprep.subr.mxu0 0.0
        %v2821 = vand.u32 %v237, 4294901760
        %v2822 = vsub.f32 %v237, %v2821
        %v2823 = vand.u32 %v2822, 4294901760
        %2824 = vmatpush1.msra.mxu0 %v2823
        %2825 = vmatprep.subr.mxu0 0.0
        %v2826 = vand.u32 %v238, 4294901760
        %v2827 = vsub.f32 %v238, %v2826
        %v2828 = vand.u32 %v2827, 4294901760
        %2829 = vmatpush1.msra.mxu0 %v2828
        %2830 = vmatprep.subr.mxu0 0.0
        %v2831 = vand.u32 %v239, 4294901760
        %v2832 = vsub.f32 %v239, %v2831
        %v2833 = vand.u32 %v2832, 4294901760
        %2834 = vmatpush1.msra.mxu0 %v2833
        %2835 = vmatprep.subr.mxu0 0.0
        %v2836 = vand.u32 %v240, 4294901760
        %v2837 = vsub.f32 %v240, %v2836
        %v2838 = vand.u32 %v2837, 4294901760
        %2839 = vmatpush1.msra.mxu0 %v2838
        %2840 = vmatprep.subr.mxu0 0.0
        %v2841 = vand.u32 %v241, 4294901760
        %v2842 = vsub.f32 %v241, %v2841
        %v2843 = vand.u32 %v2842, 4294901760
        %2844 = vmatpush1.msra.mxu0 %v2843
        %2845 = vmatprep.subr.mxu0 0.0
        %v2846 = vand.u32 %v242, 4294901760
        %v2847 = vsub.f32 %v242, %v2846
        %v2848 = vand.u32 %v2847, 4294901760
        %2849 = vmatpush1.msra.mxu0 %v2848
        %2850 = vmatprep.subr.mxu0 0.0
        %v2851 = vand.u32 %v243, 4294901760
        %v2852 = vsub.f32 %v243, %v2851
        %v2853 = vand.u32 %v2852, 4294901760
        %2854 = vmatpush1.msra.mxu0 %v2853
        %2855 = vmatprep.subr.mxu0 0.0
        %v2856 = vand.u32 %v244, 4294901760
        %v2857 = vsub.f32 %v244, %v2856
        %v2858 = vand.u32 %v2857, 4294901760
        %2859 = vmatpush1.msra.mxu0 %v2858
        %2860 = vmatprep.subr.mxu0 0.0
        %v2861 = vand.u32 %v245, 4294901760
        %v2862 = vsub.f32 %v245, %v2861
        %v2863 = vand.u32 %v2862, 4294901760
        %2864 = vmatpush1.msra.mxu0 %v2863
        %2865 = vmatprep.subr.mxu0 0.0
        %v2866 = vand.u32 %v246, 4294901760
        %v2867 = vsub.f32 %v246, %v2866
        %v2868 = vand.u32 %v2867, 4294901760
        %2869 = vmatpush1.msra.mxu0 %v2868
        %2870 = vmatprep.subr.mxu0 0.0
        %v2871 = vand.u32 %v247, 4294901760
        %v2872 = vsub.f32 %v247, %v2871
        %v2873 = vand.u32 %v2872, 4294901760
        %2874 = vmatpush1.msra.mxu0 %v2873
        %2875 = vmatprep.subr.mxu0 0.0
        %2876 = vmatpush1.msra.mxu0 0.0
        %2877 = vmatprep.subr.mxu0 0.0
        %2878 = vmatpush1.msra.mxu0 0.0
        %2879 = vmatprep.subr.mxu0 0.0
        %2880 = vmatpush1.msra.mxu0 0.0
        %2881 = vmatprep.subr.mxu0 0.0
        %2882 = vmatpush1.msra.mxu0 0.0
        %2883 = vmatprep.subr.mxu0 0.0
        %2884 = vmatpush1.msra.mxu0 0.0
        %2885 = vmatprep.subr.mxu0 0.0
        %2886 = vmatpush1.msra.mxu0 0.0
        %2887 = vmatprep.subr.mxu0 0.0
        %2888 = vmatpush1.msra.mxu0 0.0
        %2889 = vmatprep.subr.mxu0 0.0
        %2890 = vmatpush1.msra.mxu0 0.0
        %2891 = vmatprep.subr.mxu0 0.0
        %2892 = vmatpush1.msra.mxu0 0.0
        %2893 = vmatprep.subr.mxu0 0.0
        %2894 = vmatpush1.msra.mxu0 0.0
        %2895 = vmatprep.subr.mxu0 0.0
        %2896 = vmatpush1.msra.mxu0 0.0
        %2897 = vmatprep.subr.mxu0 0.0
        %2898 = vmatpush1.msra.mxu0 0.0
        %2899 = vmatprep.subr.mxu0 0.0
        %2900 = vmatpush1.msra.mxu0 0.0
        %2901 = vmatprep.subr.mxu0 0.0
        %2902 = vmatpush1.msra.mxu0 0.0
        %2903 = vmatprep.subr.mxu0 0.0
        %2904 = vmatpush1.msra.mxu0 0.0
        %2905 = vmatprep.subr.mxu0 0.0
        %2906 = vmatpush1.msra.mxu0 0.0
        %2907 = vmatprep.mubr.f32.mxu0 0.0
        %v2908 = vand.u32 %v1671, 4294901760
        %2909 = vmatmul.mubr.f32.gmra.mrb[0].mxu0 %v2908
        %v2910 = vpop.f32.mrb[0].mxu0
        %v2911 = vadd.f32 %v2672, %v2910
        %v2912 = vpop.f32.mrb[0].mxu0
        %2913 = vmatprep.mubr.f32.mxu0 0.0
        %v2914 = vand.u32 %v1672, 4294901760
        %2915 = vmatmul.mubr.f32.gmra.mrb[0].mxu0 %v2914
        %v2916 = vpop.f32.mrb[0].mxu0
        %v2917 = vadd.f32 %v2680, %v2916
        %v2918 = vpop.f32.mrb[0].mxu0
        %2919 = vmatprep.mubr.f32.mxu0 0.0
        %v2920 = vand.u32 %v1673, 4294901760
        %2921 = vmatmul.mubr.f32.gmra.mrb[0].mxu0 %v2920
        %v2922 = vpop.f32.mrb[0].mxu0
        %v2923 = vadd.f32 %v2688, %v2922
        %v2924 = vpop.f32.mrb[0].mxu0
        %2925 = vmatprep.mubr.f32.mxu0 0.0
        %v2926 = vand.u32 %v1674, 4294901760
        %2927 = vmatmul.mubr.f32.gmra.mrb[0].mxu0 %v2926
        %v2928 = vpop.f32.mrb[0].mxu0
        %v2929 = vadd.f32 %v2696, %v2928
        %v2930 = vpop.f32.mrb[0].mxu0
        %2931 = vmatprep.mubr.f32.mxu0 0.0
        %v2932 = vand.u32 %v1675, 4294901760
        %2933 = vmatmul.mubr.f32.gmra.mrb[0].mxu0 %v2932
        %v2934 = vpop.f32.mrb[0].mxu0
        %v2935 = vadd.f32 %v2704, %v2934
        %v2936 = vpop.f32.mrb[0].mxu0
        %2937 = vmatprep.mubr.f32.mxu0 0.0
        %v2938 = vand.u32 %v1676, 4294901760
        %2939 = vmatmul.mubr.f32.gmra.mrb[0].mxu0 %v2938
        %v2940 = vpop.f32.mrb[0].mxu0
        %v2941 = vadd.f32 %v2712, %v2940
        %v2942 = vpop.f32.mrb[0].mxu0
        %2943 = vmatprep.mubr.f32.mxu0 0.0
        %v2944 = vand.u32 %v1677, 4294901760
        %2945 = vmatmul.mubr.f32.gmra.mrb[0].mxu0 %v2944
        %v2946 = vpop.f32.mrb[0].mxu0
        %v2947 = vadd.f32 %v2720, %v2946
        %v2948 = vpop.f32.mrb[0].mxu0
        %2949 = vmatprep.mubr.f32.mxu0 0.0
        %v2950 = vand.u32 %v1678, 4294901760
        %2951 = vmatmul.mubr.f32.gmra.mrb[0].mxu0 %v2950
        %v2952 = vpop.f32.mrb[0].mxu0
        %v2953 = vadd.f32 %v2728, %v2952
        %v2954 = vpop.f32.mrb[0].mxu0
        %2955 = vmatprep.mubr.f32.mxu0 0.0
        %v2956 = vand.u32 %v1679, 4294901760
        %2957 = vmatmul.mubr.f32.gmra.mrb[0].mxu0 %v2956
        %v2958 = vpop.f32.mrb[0].mxu0
        %v2959 = vadd.f32 %v2736, %v2958
        %v2960 = vpop.f32.mrb[0].mxu0
        %2961 = vmatprep.mubr.f32.mxu0 0.0
        %v2962 = vand.u32 %v1680, 4294901760
        %2963 = vmatmul.mubr.f32.gmra.mrb[0].mxu0 %v2962
        %v2964 = vpop.f32.mrb[0].mxu0
        %v2965 = vadd.f32 %v2744, %v2964
        %v2966 = vpop.f32.mrb[0].mxu0
        %2967 = vmatprep.mubr.f32.mxu0 0.0
        %v2968 = vand.u32 %v1681, 4294901760
        %2969 = vmatmul.mubr.f32.gmra.mrb[0].mxu0 %v2968
        %v2970 = vpop.f32.mrb[0].mxu0
        %v2971 = vadd.f32 %v2752, %v2970
        %v2972 = vpop.f32.mrb[0].mxu0
        %2973 = vmatprep.mubr.f32.mxu0 0.0
        %v2974 = vand.u32 %v1682, 4294901760
        %2975 = vmatmul.mubr.f32.gmra.mrb[0].mxu0 %v2974
        %v2976 = vpop.f32.mrb[0].mxu0
        %v2977 = vadd.f32 %v2760, %v2976
        %v2978 = vpop.f32.mrb[0].mxu0
        %2979 = vmatprep.mubr.f32.mxu0 0.0
        %v2980 = vand.u32 %v1683, 4294901760
        %2981 = vmatmul.mubr.f32.gmra.mrb[0].mxu0 %v2980
        %v2982 = vpop.f32.mrb[0].mxu0
        %v2983 = vadd.f32 %v2768, %v2982
        %v2984 = vpop.f32.mrb[0].mxu0
        %2985 = vmatprep.mubr.f32.mxu0 0.0
        %v2986 = vand.u32 %v1684, 4294901760
        %2987 = vmatmul.mubr.f32.gmra.mrb[0].mxu0 %v2986
        %v2988 = vpop.f32.mrb[0].mxu0
        %v2989 = vadd.f32 %v2776, %v2988
        %v2990 = vpop.f32.mrb[0].mxu0
        %2991 = vmatprep.mubr.f32.mxu0 0.0
        %v2992 = vand.u32 %v1685, 4294901760
        %2993 = vmatmul.mubr.f32.gmra.mrb[0].mxu0 %v2992
        %v2994 = vpop.f32.mrb[0].mxu0
        %v2995 = vadd.f32 %v2784, %v2994
        %v2996 = vpop.f32.mrb[0].mxu0
        %2997 = vmatprep.mubr.f32.mxu0 0.0
        %v2998 = vand.u32 %v1686, 4294901760
        %2999 = vmatmul.mubr.f32.gmra.mrb[0].mxu0 %v2998
        %v3000 = vpop.f32.mrb[0].mxu0
        %v3001 = vadd.f32 %v2792, %v3000
        %v3002 = vpop.f32.mrb[0].mxu0
        %3003 = vdwg.mxu0
        %3004 = vmatprep.subr.mxu0 0.0
        %v3005 = vand.u32 %v232, 4294901760
        %3006 = vmatpush1.msra.mxu0 %v3005
        %3007 = vmatprep.subr.mxu0 0.0
        %v3008 = vand.u32 %v233, 4294901760
        %3009 = vmatpush1.msra.mxu0 %v3008
        %3010 = vmatprep.subr.mxu0 0.0
        %v3011 = vand.u32 %v234, 4294901760
        %3012 = vmatpush1.msra.mxu0 %v3011
        %3013 = vmatprep.subr.mxu0 0.0
        %v3014 = vand.u32 %v235, 4294901760
        %3015 = vmatpush1.msra.mxu0 %v3014
        %3016 = vmatprep.subr.mxu0 0.0
        %v3017 = vand.u32 %v236, 4294901760
        %3018 = vmatpush1.msra.mxu0 %v3017
        %3019 = vmatprep.subr.mxu0 0.0
        %v3020 = vand.u32 %v237, 4294901760
        %3021 = vmatpush1.msra.mxu0 %v3020
        %3022 = vmatprep.subr.mxu0 0.0
        %v3023 = vand.u32 %v238, 4294901760
        %3024 = vmatpush1.msra.mxu0 %v3023
        %3025 = vmatprep.subr.mxu0 0.0
        %v3026 = vand.u32 %v239, 4294901760
        %3027 = vmatpush1.msra.mxu0 %v3026
        %3028 = vmatprep.subr.mxu0 0.0
        %v3029 = vand.u32 %v240, 4294901760
        %3030 = vmatpush1.msra.mxu0 %v3029
        %3031 = vmatprep.subr.mxu0 0.0
        %v3032 = vand.u32 %v241, 4294901760
        %3033 = vmatpush1.msra.mxu0 %v3032
        %3034 = vmatprep.subr.mxu0 0.0
        %v3035 = vand.u32 %v242, 4294901760
        %3036 = vmatpush1.msra.mxu0 %v3035
        %3037 = vmatprep.subr.mxu0 0.0
        %v3038 = vand.u32 %v243, 4294901760
        %3039 = vmatpush1.msra.mxu0 %v3038
        %3040 = vmatprep.subr.mxu0 0.0
        %v3041 = vand.u32 %v244, 4294901760
        %3042 = vmatpush1.msra.mxu0 %v3041
        %3043 = vmatprep.subr.mxu0 0.0
        %v3044 = vand.u32 %v245, 4294901760
        %3045 = vmatpush1.msra.mxu0 %v3044
        %3046 = vmatprep.subr.mxu0 0.0
        %v3047 = vand.u32 %v246, 4294901760
        %3048 = vmatpush1.msra.mxu0 %v3047
        %3049 = vmatprep.subr.mxu0 0.0
        %v3050 = vand.u32 %v247, 4294901760
        %3051 = vmatpush1.msra.mxu0 %v3050
        %3052 = vmatprep.subr.mxu0 0.0
        %3053 = vmatpush1.msra.mxu0 0.0
        %3054 = vmatprep.subr.mxu0 0.0
        %3055 = vmatpush1.msra.mxu0 0.0
        %3056 = vmatprep.subr.mxu0 0.0
        %3057 = vmatpush1.msra.mxu0 0.0
        %3058 = vmatprep.subr.mxu0 0.0
        %3059 = vmatpush1.msra.mxu0 0.0
        %3060 = vmatprep.subr.mxu0 0.0
        %3061 = vmatpush1.msra.mxu0 0.0
        %3062 = vmatprep.subr.mxu0 0.0
        %3063 = vmatpush1.msra.mxu0 0.0
        %3064 = vmatprep.subr.mxu0 0.0
        %3065 = vmatpush1.msra.mxu0 0.0
        %3066 = vmatprep.subr.mxu0 0.0
        %3067 = vmatpush1.msra.mxu0 0.0
        %3068 = vmatprep.subr.mxu0 0.0
        %3069 = vmatpush1.msra.mxu0 0.0
        %3070 = vmatprep.subr.mxu0 0.0
        %3071 = vmatpush1.msra.mxu0 0.0
        %3072 = vmatprep.subr.mxu0 0.0
        %3073 = vmatpush1.msra.mxu0 0.0
        %3074 = vmatprep.subr.mxu0 0.0
        %3075 = vmatpush1.msra.mxu0 0.0
        %3076 = vmatprep.subr.mxu0 0.0
        %3077 = vmatpush1.msra.mxu0 0.0
        %3078 = vmatprep.subr.mxu0 0.0
        %3079 = vmatpush1.msra.mxu0 0.0
        %3080 = vmatprep.subr.mxu0 0.0
        %3081 = vmatpush1.msra.mxu0 0.0
        %3082 = vmatprep.subr.mxu0 0.0
        %3083 = vmatpush1.msra.mxu0 0.0
        %3084 = vmatprep.mubr.f32.mxu0 0.0
        %v3085 = vand.u32 %v1671, 4294901760
        %3086 = vmatmul.mubr.f32.gmra.mrb[0].mxu0 %v3085
        %v3087 = vpop.f32.mrb[0].mxu0
        %v3088 = vadd.f32 %v2911, %v3087
        %v3089 = vpop.f32.mrb[0].mxu0
        %3090 = vmatprep.mubr.f32.mxu0 0.0
        %v3091 = vand.u32 %v1672, 4294901760
        %3092 = vmatmul.mubr.f32.gmra.mrb[0].mxu0 %v3091
        %v3093 = vpop.f32.mrb[0].mxu0
        %v3094 = vadd.f32 %v2917, %v3093
        %v3095 = vpop.f32.mrb[0].mxu0
        %3096 = vmatprep.mubr.f32.mxu0 0.0
        %v3097 = vand.u32 %v1673, 4294901760
        %3098 = vmatmul.mubr.f32.gmra.mrb[0].mxu0 %v3097
        %v3099 = vpop.f32.mrb[0].mxu0
        %v3100 = vadd.f32 %v2923, %v3099
        %v3101 = vpop.f32.mrb[0].mxu0
        %3102 = vmatprep.mubr.f32.mxu0 0.0
        %v3103 = vand.u32 %v1674, 4294901760
        %3104 = vmatmul.mubr.f32.gmra.mrb[0].mxu0 %v3103
        %v3105 = vpop.f32.mrb[0].mxu0
        %v3106 = vadd.f32 %v2929, %v3105
        %v3107 = vpop.f32.mrb[0].mxu0
        %3108 = vmatprep.mubr.f32.mxu0 0.0
        %v3109 = vand.u32 %v1675, 4294901760
        %3110 = vmatmul.mubr.f32.gmra.mrb[0].mxu0 %v3109
        %v3111 = vpop.f32.mrb[0].mxu0
        %v3112 = vadd.f32 %v2935, %v3111
        %v3113 = vpop.f32.mrb[0].mxu0
        %3114 = vmatprep.mubr.f32.mxu0 0.0
        %v3115 = vand.u32 %v1676, 4294901760
        %3116 = vmatmul.mubr.f32.gmra.mrb[0].mxu0 %v3115
        %v3117 = vpop.f32.mrb[0].mxu0
        %v3118 = vadd.f32 %v2941, %v3117
        %v3119 = vpop.f32.mrb[0].mxu0
        %3120 = vmatprep.mubr.f32.mxu0 0.0
        %v3121 = vand.u32 %v1677, 4294901760
        %3122 = vmatmul.mubr.f32.gmra.mrb[0].mxu0 %v3121
        %v3123 = vpop.f32.mrb[0].mxu0
        %v3124 = vadd.f32 %v2947, %v3123
        %v3125 = vpop.f32.mrb[0].mxu0
        %3126 = vmatprep.mubr.f32.mxu0 0.0
        %v3127 = vand.u32 %v1678, 4294901760
        %3128 = vmatmul.mubr.f32.gmra.mrb[0].mxu0 %v3127
        %v3129 = vpop.f32.mrb[0].mxu0
        %v3130 = vadd.f32 %v2953, %v3129
        %v3131 = vpop.f32.mrb[0].mxu0
        %3132 = vmatprep.mubr.f32.mxu0 0.0
        %v3133 = vand.u32 %v1679, 4294901760
        %3134 = vmatmul.mubr.f32.gmra.mrb[0].mxu0 %v3133
        %v3135 = vpop.f32.mrb[0].mxu0
        %v3136 = vadd.f32 %v2959, %v3135
        %v3137 = vpop.f32.mrb[0].mxu0
        %3138 = vmatprep.mubr.f32.mxu0 0.0
        %v3139 = vand.u32 %v1680, 4294901760
        %3140 = vmatmul.mubr.f32.gmra.mrb[0].mxu0 %v3139
        %v3141 = vpop.f32.mrb[0].mxu0
        %v3142 = vadd.f32 %v2965, %v3141
        %v3143 = vpop.f32.mrb[0].mxu0
        %3144 = vmatprep.mubr.f32.mxu0 0.0
        %v3145 = vand.u32 %v1681, 4294901760
        %3146 = vmatmul.mubr.f32.gmra.mrb[0].mxu0 %v3145
        %v3147 = vpop.f32.mrb[0].mxu0
        %v3148 = vadd.f32 %v2971, %v3147
        %v3149 = vpop.f32.mrb[0].mxu0
        %3150 = vmatprep.mubr.f32.mxu0 0.0
        %v3151 = vand.u32 %v1682, 4294901760
        %3152 = vmatmul.mubr.f32.gmra.mrb[0].mxu0 %v3151
        %v3153 = vpop.f32.mrb[0].mxu0
        %v3154 = vadd.f32 %v2977, %v3153
        %v3155 = vpop.f32.mrb[0].mxu0
        %3156 = vmatprep.mubr.f32.mxu0 0.0
        %v3157 = vand.u32 %v1683, 4294901760
        %3158 = vmatmul.mubr.f32.gmra.mrb[0].mxu0 %v3157
        %v3159 = vpop.f32.mrb[0].mxu0
        %v3160 = vadd.f32 %v2983, %v3159
        %v3161 = vpop.f32.mrb[0].mxu0
        %3162 = vmatprep.mubr.f32.mxu0 0.0
        %v3163 = vand.u32 %v1684, 4294901760
        %3164 = vmatmul.mubr.f32.gmra.mrb[0].mxu0 %v3163
        %v3165 = vpop.f32.mrb[0].mxu0
        %v3166 = vadd.f32 %v2989, %v3165
        %v3167 = vpop.f32.mrb[0].mxu0
        %3168 = vmatprep.mubr.f32.mxu0 0.0
        %v3169 = vand.u32 %v1685, 4294901760
        %3170 = vmatmul.mubr.f32.gmra.mrb[0].mxu0 %v3169
        %v3171 = vpop.f32.mrb[0].mxu0
        %v3172 = vadd.f32 %v2995, %v3171
        %v3173 = vpop.f32.mrb[0].mxu0
        %3174 = vmatprep.mubr.f32.mxu0 0.0
        %v3175 = vand.u32 %v1686, 4294901760
        %3176 = vmatmul.mubr.f32.gmra.mrb[0].mxu0 %v3175
        %v3177 = vpop.f32.mrb[0].mxu0
        %v3178 = vadd.f32 %v3001, %v3177
        %v3179 = vpop.f32.mrb[0].mxu0
        %3180 = vdwg.mxu0
        %v3181 = vrcp.pop %v1864
        %v3182 = vmul.f32 1.0, %v3181
        %v3183 = vrcp.pop %v1866
        %v3184 = vmul.f32 1.0, %v3183
        %v3185 = vrcp.pop %v1868
        %v3186 = vmul.f32 1.0, %v3185
        %v3187 = vrcp.pop %v1870
        %v3188 = vmul.f32 1.0, %v3187
        %v3189 = vrcp.pop %v1872
        %v3190 = vmul.f32 1.0, %v3189
        %v3191 = vrcp.pop %v1874
        %v3192 = vmul.f32 1.0, %v3191
        %v3193 = vrcp.pop %v1876
        %v3194 = vmul.f32 1.0, %v3193
        %v3195 = vrcp.pop %v1878
        %v3196 = vmul.f32 1.0, %v3195
        %v3197 = vrcp.pop %v1880
        %v3198 = vmul.f32 1.0, %v3197
        %v3199 = vrcp.pop %v1882
        %v3200 = vmul.f32 1.0, %v3199
        %v3201 = vrcp.pop %v1884
        %v3202 = vmul.f32 1.0, %v3201
        %v3203 = vrcp.pop %v1886
        %v3204 = vmul.f32 1.0, %v3203
        %v3205 = vrcp.pop %v1888
        %v3206 = vmul.f32 1.0, %v3205
        %v3207 = vrcp.pop %v1890
        %v3208 = vmul.f32 1.0, %v3207
        %v3209 = vrcp.pop %v1892
        %v3210 = vmul.f32 1.0, %v3209
        %v3211 = vrcp.pop %v1894
        %v3212 = vmul.f32 1.0, %v3211
        %v3213 = vmul.f32 %v3088, %v3182
        %v3214 = vmul.f32 %v3094, %v3184
        %v3215 = vmul.f32 %v3100, %v3186
        %v3216 = vmul.f32 %v3106, %v3188
        %v3217 = vmul.f32 %v3112, %v3190
        %v3218 = vmul.f32 %v3118, %v3192
        %v3219 = vmul.f32 %v3124, %v3194
        %v3220 = vmul.f32 %v3130, %v3196
        %v3221 = vmul.f32 %v3136, %v3198
        %v3222 = vmul.f32 %v3142, %v3200
        %v3223 = vmul.f32 %v3148, %v3202
        %v3224 = vmul.f32 %v3154, %v3204
        %v3225 = vmul.f32 %v3160, %v3206
        %v3226 = vmul.f32 %v3166, %v3208
        %v3227 = vmul.f32 %v3172, %v3210
        %v3228 = vmul.f32 %v3178, %v3212
        %3229 = vst [vmem:[%s142] sm:$0xff] %v3213
        %3230 = vst [vmem:[%s142 + $0x8] sm:$0xff] %v3214
        %v3231 = vld [vmem:[%s151] sm:$0x1]
        %3232 = vmatprep.subr.mxu0 0.0
        %v3233 = vand.u32 %v3213, 4294901760
        %3234 = vmatpush1.xpose.msra.mxu0 %v3233
        %3235 = vmatprep.subr.mxu0 0.0
        %v3236 = vand.u32 %v3214, 4294901760
        %3237 = vmatpush1.xpose.msra.mxu0 %v3236
        %3238 = vmatprep.subr.mxu0 0.0
        %v3239 = vand.u32 %v3215, 4294901760
        %3240 = vmatpush1.xpose.msra.mxu0 %v3239
        %3241 = vmatprep.subr.mxu0 0.0
        %v3242 = vand.u32 %v3216, 4294901760
        %3243 = vmatpush1.xpose.msra.mxu0 %v3242
        %3244 = vmatprep.subr.mxu0 0.0
        %v3245 = vand.u32 %v3217, 4294901760
        %3246 = vmatpush1.xpose.msra.mxu0 %v3245
        %3247 = vmatprep.subr.mxu0 0.0
        %v3248 = vand.u32 %v3218, 4294901760
        %3249 = vmatpush1.xpose.msra.mxu0 %v3248
        %3250 = vmatprep.subr.mxu0 0.0
        %v3251 = vand.u32 %v3219, 4294901760
        %3252 = vmatpush1.xpose.msra.mxu0 %v3251
        %3253 = vmatprep.subr.mxu0 0.0
        %v3254 = vand.u32 %v3220, 4294901760
        %3255 = vmatpush1.xpose.msra.mxu0 %v3254
        %3256 = vmatprep.subr.mxu0 0.0
        %v3257 = vand.u32 %v3221, 4294901760
        %3258 = vmatpush1.xpose.msra.mxu0 %v3257
        %3259 = vmatprep.subr.mxu0 0.0
        %v3260 = vand.u32 %v3222, 4294901760
        %3261 = vmatpush1.xpose.msra.mxu0 %v3260
        %3262 = vmatprep.subr.mxu0 0.0
        %v3263 = vand.u32 %v3223, 4294901760
        %3264 = vmatpush1.xpose.msra.mxu0 %v3263
        %3265 = vmatprep.subr.mxu0 0.0
        %v3266 = vand.u32 %v3224, 4294901760
        %3267 = vmatpush1.xpose.msra.mxu0 %v3266
        %3268 = vmatprep.subr.mxu0 0.0
        %v3269 = vand.u32 %v3225, 4294901760
        %3270 = vmatpush1.xpose.msra.mxu0 %v3269
        %3271 = vmatprep.subr.mxu0 0.0
        %v3272 = vand.u32 %v3226, 4294901760
        %3273 = vmatpush1.xpose.msra.mxu0 %v3272
        %3274 = vmatprep.subr.mxu0 0.0
        %v3275 = vand.u32 %v3227, 4294901760
        %3276 = vmatpush1.xpose.msra.mxu0 %v3275
        %3277 = vmatprep.subr.mxu0 0.0
        %v3278 = vand.u32 %v3228, 4294901760
        %3279 = vmatpush1.xpose.msra.mxu0 %v3278
        %3280 = vmatprep.subr.mxu0 0.0
        %3281 = vmatpush1.xpose.msra.mxu0 0.0
        %3282 = vmatprep.subr.mxu0 0.0
        %3283 = vmatpush1.xpose.msra.mxu0 0.0
        %3284 = vmatprep.subr.mxu0 0.0
        %3285 = vmatpush1.xpose.msra.mxu0 0.0
        %3286 = vmatprep.subr.mxu0 0.0
        %3287 = vmatpush1.xpose.msra.mxu0 0.0
        %3288 = vmatprep.subr.mxu0 0.0
        %3289 = vmatpush1.xpose.msra.mxu0 0.0
        %3290 = vmatprep.subr.mxu0 0.0
        %3291 = vmatpush1.xpose.msra.mxu0 0.0
        %3292 = vmatprep.subr.mxu0 0.0
        %3293 = vmatpush1.xpose.msra.mxu0 0.0
        %3294 = vmatprep.subr.mxu0 0.0
        %3295 = vmatpush1.xpose.msra.mxu0 0.0
        %3296 = vmatprep.subr.mxu0 0.0
        %3297 = vmatpush1.xpose.msra.mxu0 0.0
        %3298 = vmatprep.subr.mxu0 0.0
        %3299 = vmatpush1.xpose.msra.mxu0 0.0
        %3300 = vmatprep.subr.mxu0 0.0
        %3301 = vmatpush1.xpose.msra.mxu0 0.0
        %3302 = vmatprep.subr.mxu0 0.0
        %3303 = vmatpush1.xpose.msra.mxu0 0.0
        %3304 = vmatprep.subr.mxu0 0.0
        %3305 = vmatpush1.xpose.msra.mxu0 0.0
        %3306 = vmatprep.subr.mxu0 0.0
        %3307 = vmatpush1.xpose.msra.mxu0 0.0
        %3308 = vmatprep.subr.mxu0 0.0
        %3309 = vmatpush1.xpose.msra.mxu0 0.0
        %3310 = vmatprep.subr.mxu0 0.0
        %3311 = vmatpush1.xpose.msra.mxu0 0.0
        %3312 = vmatprep.mubr.f32.mxu0 0.0
        %v3313 = vand.u32 %v3231, 4294901760
        %v3314 = vsub.f32 %v3231, %v3313
        %v3315 = vand.u32 %v3314, 4294901760
        %v3316 = vsub.f32 %v3314, %v3315
        %v3317 = vand.u32 %v3316, 4294901760
        %3318 = vmatmul.mubr.f32.gmra.mrb[0].mxu0 %v3317
        %v3319 = vpop.f32.mrb[0].mxu0
        %v3320 = vadd.f32 0.0, %v3319
        %v3321 = vpop.f32.mrb[0].mxu0
        %3322 = vdwg.mxu0
        %3323 = vmatprep.subr.mxu0 0.0
        %v3324 = vand.u32 %v3213, 4294901760
        %v3325 = vsub.f32 %v3213, %v3324
        %v3326 = vand.u32 %v3325, 4294901760
        %v3327 = vsub.f32 %v3325, %v3326
        %v3328 = vand.u32 %v3327, 4294901760
        %3329 = vmatpush1.xpose.msra.mxu0 %v3328
        %3330 = vmatprep.subr.mxu0 0.0
        %v3331 = vand.u32 %v3214, 4294901760
        %v3332 = vsub.f32 %v3214, %v3331
        %v3333 = vand.u32 %v3332, 4294901760
        %v3334 = vsub.f32 %v3332, %v3333
        %v3335 = vand.u32 %v3334, 4294901760
        %3336 = vmatpush1.xpose.msra.mxu0 %v3335
        %3337 = vmatprep.subr.mxu0 0.0
        %v3338 = vand.u32 %v3215, 4294901760
        %v3339 = vsub.f32 %v3215, %v3338
        %v3340 = vand.u32 %v3339, 4294901760
        %v3341 = vsub.f32 %v3339, %v3340
        %v3342 = vand.u32 %v3341, 4294901760
        %3343 = vmatpush1.xpose.msra.mxu0 %v3342
        %3344 = vmatprep.subr.mxu0 0.0
        %v3345 = vand.u32 %v3216, 4294901760
        %v3346 = vsub.f32 %v3216, %v3345
        %v3347 = vand.u32 %v3346, 4294901760
        %v3348 = vsub.f32 %v3346, %v3347
        %v3349 = vand.u32 %v3348, 4294901760
        %3350 = vmatpush1.xpose.msra.mxu0 %v3349
        %3351 = vmatprep.subr.mxu0 0.0
        %v3352 = vand.u32 %v3217, 4294901760
        %v3353 = vsub.f32 %v3217, %v3352
        %v3354 = vand.u32 %v3353, 4294901760
        %v3355 = vsub.f32 %v3353, %v3354
        %v3356 = vand.u32 %v3355, 4294901760
        %3357 = vmatpush1.xpose.msra.mxu0 %v3356
        %3358 = vmatprep.subr.mxu0 0.0
        %v3359 = vand.u32 %v3218, 4294901760
        %v3360 = vsub.f32 %v3218, %v3359
        %v3361 = vand.u32 %v3360, 4294901760
        %v3362 = vsub.f32 %v3360, %v3361
        %v3363 = vand.u32 %v3362, 4294901760
        %3364 = vmatpush1.xpose.msra.mxu0 %v3363
        %3365 = vmatprep.subr.mxu0 0.0
        %v3366 = vand.u32 %v3219, 4294901760
        %v3367 = vsub.f32 %v3219, %v3366
        %v3368 = vand.u32 %v3367, 4294901760
        %v3369 = vsub.f32 %v3367, %v3368
        %v3370 = vand.u32 %v3369, 4294901760
        %3371 = vmatpush1.xpose.msra.mxu0 %v3370
        %3372 = vmatprep.subr.mxu0 0.0
        %v3373 = vand.u32 %v3220, 4294901760
        %v3374 = vsub.f32 %v3220, %v3373
        %v3375 = vand.u32 %v3374, 4294901760
        %v3376 = vsub.f32 %v3374, %v3375
        %v3377 = vand.u32 %v3376, 4294901760
        %3378 = vmatpush1.xpose.msra.mxu0 %v3377
        %3379 = vmatprep.subr.mxu0 0.0
        %v3380 = vand.u32 %v3221, 4294901760
        %v3381 = vsub.f32 %v3221, %v3380
        %v3382 = vand.u32 %v3381, 4294901760
        %v3383 = vsub.f32 %v3381, %v3382
        %v3384 = vand.u32 %v3383, 4294901760
        %3385 = vmatpush1.xpose.msra.mxu0 %v3384
        %3386 = vmatprep.subr.mxu0 0.0
        %v3387 = vand.u32 %v3222, 4294901760
        %v3388 = vsub.f32 %v3222, %v3387
        %v3389 = vand.u32 %v3388, 4294901760
        %v3390 = vsub.f32 %v3388, %v3389
        %v3391 = vand.u32 %v3390, 4294901760
        %3392 = vmatpush1.xpose.msra.mxu0 %v3391
        %3393 = vmatprep.subr.mxu0 0.0
        %v3394 = vand.u32 %v3223, 4294901760
        %v3395 = vsub.f32 %v3223, %v3394
        %v3396 = vand.u32 %v3395, 4294901760
        %v3397 = vsub.f32 %v3395, %v3396
        %v3398 = vand.u32 %v3397, 4294901760
        %3399 = vmatpush1.xpose.msra.mxu0 %v3398
        %3400 = vmatprep.subr.mxu0 0.0
        %v3401 = vand.u32 %v3224, 4294901760
        %v3402 = vsub.f32 %v3224, %v3401
        %v3403 = vand.u32 %v3402, 4294901760
        %v3404 = vsub.f32 %v3402, %v3403
        %v3405 = vand.u32 %v3404, 4294901760
        %3406 = vmatpush1.xpose.msra.mxu0 %v3405
        %3407 = vmatprep.subr.mxu0 0.0
        %v3408 = vand.u32 %v3225, 4294901760
        %v3409 = vsub.f32 %v3225, %v3408
        %v3410 = vand.u32 %v3409, 4294901760
        %v3411 = vsub.f32 %v3409, %v3410
        %v3412 = vand.u32 %v3411, 4294901760
        %3413 = vmatpush1.xpose.msra.mxu0 %v3412
        %3414 = vmatprep.subr.mxu0 0.0
        %v3415 = vand.u32 %v3226, 4294901760
        %v3416 = vsub.f32 %v3226, %v3415
        %v3417 = vand.u32 %v3416, 4294901760
        %v3418 = vsub.f32 %v3416, %v3417
        %v3419 = vand.u32 %v3418, 4294901760
        %3420 = vmatpush1.xpose.msra.mxu0 %v3419
        %3421 = vmatprep.subr.mxu0 0.0
        %v3422 = vand.u32 %v3227, 4294901760
        %v3423 = vsub.f32 %v3227, %v3422
        %v3424 = vand.u32 %v3423, 4294901760
        %v3425 = vsub.f32 %v3423, %v3424
        %v3426 = vand.u32 %v3425, 4294901760
        %3427 = vmatpush1.xpose.msra.mxu0 %v3426
        %3428 = vmatprep.subr.mxu0 0.0
        %v3429 = vand.u32 %v3228, 4294901760
        %v3430 = vsub.f32 %v3228, %v3429
        %v3431 = vand.u32 %v3430, 4294901760
        %v3432 = vsub.f32 %v3430, %v3431
        %v3433 = vand.u32 %v3432, 4294901760
        %3434 = vmatpush1.xpose.msra.mxu0 %v3433
        %3435 = vmatprep.subr.mxu0 0.0
        %3436 = vmatpush1.xpose.msra.mxu0 0.0
        %3437 = vmatprep.subr.mxu0 0.0
        %3438 = vmatpush1.xpose.msra.mxu0 0.0
        %3439 = vmatprep.subr.mxu0 0.0
        %3440 = vmatpush1.xpose.msra.mxu0 0.0
        %3441 = vmatprep.subr.mxu0 0.0
        %3442 = vmatpush1.xpose.msra.mxu0 0.0
        %3443 = vmatprep.subr.mxu0 0.0
        %3444 = vmatpush1.xpose.msra.mxu0 0.0
        %3445 = vmatprep.subr.mxu0 0.0
        %3446 = vmatpush1.xpose.msra.mxu0 0.0
        %3447 = vmatprep.subr.mxu0 0.0
        %3448 = vmatpush1.xpose.msra.mxu0 0.0
        %3449 = vmatprep.subr.mxu0 0.0
        %3450 = vmatpush1.xpose.msra.mxu0 0.0
        %3451 = vmatprep.subr.mxu0 0.0
        %3452 = vmatpush1.xpose.msra.mxu0 0.0
        %3453 = vmatprep.subr.mxu0 0.0
        %3454 = vmatpush1.xpose.msra.mxu0 0.0
        %3455 = vmatprep.subr.mxu0 0.0
        %3456 = vmatpush1.xpose.msra.mxu0 0.0
        %3457 = vmatprep.subr.mxu0 0.0
        %3458 = vmatpush1.xpose.msra.mxu0 0.0
        %3459 = vmatprep.subr.mxu0 0.0
        %3460 = vmatpush1.xpose.msra.mxu0 0.0
        %3461 = vmatprep.subr.mxu0 0.0
        %3462 = vmatpush1.xpose.msra.mxu0 0.0
        %3463 = vmatprep.subr.mxu0 0.0
        %3464 = vmatpush1.xpose.msra.mxu0 0.0
        %3465 = vmatprep.subr.mxu0 0.0
        %3466 = vmatpush1.xpose.msra.mxu0 0.0
        %3467 = vmatprep.mubr.f32.mxu0 0.0
        %v3468 = vand.u32 %v3231, 4294901760
        %3469 = vmatmul.mubr.f32.gmra.mrb[0].mxu0 %v3468
        %v3470 = vpop.f32.mrb[0].mxu0
        %v3471 = vadd.f32 %v3320, %v3470
        %v3472 = vpop.f32.mrb[0].mxu0
        %3473 = vdwg.mxu0
        %3474 = vmatprep.subr.mxu0 0.0
        %v3475 = vand.u32 %v3213, 4294901760
        %v3476 = vsub.f32 %v3213, %v3475
        %3477 = vmatpush1.xpose.msra.mxu0 %v3476
        %3478 = vmatprep.subr.mxu0 0.0
        %v3479 = vand.u32 %v3214, 4294901760
        %v3480 = vsub.f32 %v3214, %v3479
        %3481 = vmatpush1.xpose.msra.mxu0 %v3480
        %3482 = vmatprep.subr.mxu0 0.0
        %v3483 = vand.u32 %v3215, 4294901760
        %v3484 = vsub.f32 %v3215, %v3483
        %3485 = vmatpush1.xpose.msra.mxu0 %v3484
        %3486 = vmatprep.subr.mxu0 0.0
        %v3487 = vand.u32 %v3216, 4294901760
        %v3488 = vsub.f32 %v3216, %v3487
        %3489 = vmatpush1.xpose.msra.mxu0 %v3488
        %3490 = vmatprep.subr.mxu0 0.0
        %v3491 = vand.u32 %v3217, 4294901760
        %v3492 = vsub.f32 %v3217, %v3491
        %3493 = vmatpush1.xpose.msra.mxu0 %v3492
        %3494 = vmatprep.subr.mxu0 0.0
        %v3495 = vand.u32 %v3218, 4294901760
        %v3496 = vsub.f32 %v3218, %v3495
        %3497 = vmatpush1.xpose.msra.mxu0 %v3496
        %3498 = vmatprep.subr.mxu0 0.0
        %v3499 = vand.u32 %v3219, 4294901760
        %v3500 = vsub.f32 %v3219, %v3499
        %3501 = vmatpush1.xpose.msra.mxu0 %v3500
        %3502 = vmatprep.subr.mxu0 0.0
        %v3503 = vand.u32 %v3220, 4294901760
        %v3504 = vsub.f32 %v3220, %v3503
        %3505 = vmatpush1.xpose.msra.mxu0 %v3504
        %3506 = vmatprep.subr.mxu0 0.0
        %v3507 = vand.u32 %v3221, 4294901760
        %v3508 = vsub.f32 %v3221, %v3507
        %3509 = vmatpush1.xpose.msra.mxu0 %v3508
        %3510 = vmatprep.subr.mxu0 0.0
        %v3511 = vand.u32 %v3222, 4294901760
        %v3512 = vsub.f32 %v3222, %v3511
        %3513 = vmatpush1.xpose.msra.mxu0 %v3512
        %3514 = vmatprep.subr.mxu0 0.0
        %v3515 = vand.u32 %v3223, 4294901760
        %v3516 = vsub.f32 %v3223, %v3515
        %3517 = vmatpush1.xpose.msra.mxu0 %v3516
        %3518 = vmatprep.subr.mxu0 0.0
        %v3519 = vand.u32 %v3224, 4294901760
        %v3520 = vsub.f32 %v3224, %v3519
        %3521 = vmatpush1.xpose.msra.mxu0 %v3520
        %3522 = vmatprep.subr.mxu0 0.0
        %v3523 = vand.u32 %v3225, 4294901760
        %v3524 = vsub.f32 %v3225, %v3523
        %3525 = vmatpush1.xpose.msra.mxu0 %v3524
        %3526 = vmatprep.subr.mxu0 0.0
        %v3527 = vand.u32 %v3226, 4294901760
        %v3528 = vsub.f32 %v3226, %v3527
        %3529 = vmatpush1.xpose.msra.mxu0 %v3528
        %3530 = vmatprep.subr.mxu0 0.0
        %v3531 = vand.u32 %v3227, 4294901760
        %v3532 = vsub.f32 %v3227, %v3531
        %3533 = vmatpush1.xpose.msra.mxu0 %v3532
        %3534 = vmatprep.subr.mxu0 0.0
        %v3535 = vand.u32 %v3228, 4294901760
        %v3536 = vsub.f32 %v3228, %v3535
        %3537 = vmatpush1.xpose.msra.mxu0 %v3536
        %3538 = vmatprep.subr.mxu0 0.0
        %3539 = vmatpush1.xpose.msra.mxu0 0.0
        %3540 = vmatprep.subr.mxu0 0.0
        %3541 = vmatpush1.xpose.msra.mxu0 0.0
        %3542 = vmatprep.subr.mxu0 0.0
        %3543 = vmatpush1.xpose.msra.mxu0 0.0
        %3544 = vmatprep.subr.mxu0 0.0
        %3545 = vmatpush1.xpose.msra.mxu0 0.0
        %3546 = vmatprep.subr.mxu0 0.0
        %3547 = vmatpush1.xpose.msra.mxu0 0.0
        %3548 = vmatprep.subr.mxu0 0.0
        %3549 = vmatpush1.xpose.msra.mxu0 0.0
        %3550 = vmatprep.subr.mxu0 0.0
        %3551 = vmatpush1.xpose.msra.mxu0 0.0
        %3552 = vmatprep.subr.mxu0 0.0
        %3553 = vmatpush1.xpose.msra.mxu0 0.0
        %3554 = vmatprep.subr.mxu0 0.0
        %3555 = vmatpush1.xpose.msra.mxu0 0.0
        %3556 = vmatprep.subr.mxu0 0.0
        %3557 = vmatpush1.xpose.msra.mxu0 0.0
        %3558 = vmatprep.subr.mxu0 0.0
        %3559 = vmatpush1.xpose.msra.mxu0 0.0
        %3560 = vmatprep.subr.mxu0 0.0
        %3561 = vmatpush1.xpose.msra.mxu0 0.0
        %3562 = vmatprep.subr.mxu0 0.0
        %3563 = vmatpush1.xpose.msra.mxu0 0.0
        %3564 = vmatprep.subr.mxu0 0.0
        %3565 = vmatpush1.xpose.msra.mxu0 0.0
        %3566 = vmatprep.subr.mxu0 0.0
        %3567 = vmatpush1.xpose.msra.mxu0 0.0
        %3568 = vmatprep.subr.mxu0 0.0
        %3569 = vmatpush1.xpose.msra.mxu0 0.0
        %3570 = vmatprep.mubr.f32.mxu0 0.0
        %v3571 = vand.u32 %v3231, 4294901760
        %v3572 = vsub.f32 %v3231, %v3571
        %3573 = vmatmul.mubr.f32.gmra.mrb[0].mxu0 %v3572
        %v3574 = vpop.f32.mrb[0].mxu0
        %v3575 = vadd.f32 %v3471, %v3574
        %v3576 = vpop.f32.mrb[0].mxu0
        %3577 = vdwg.mxu0
        %3578 = vmatprep.subr.mxu0 0.0
        %v3579 = vand.u32 %v3213, 4294901760
        %3580 = vmatpush1.xpose.msra.mxu0 %v3579
        %3581 = vmatprep.subr.mxu0 0.0
        %v3582 = vand.u32 %v3214, 4294901760
        %3583 = vmatpush1.xpose.msra.mxu0 %v3582
        %3584 = vmatprep.subr.mxu0 0.0
        %v3585 = vand.u32 %v3215, 4294901760
        %3586 = vmatpush1.xpose.msra.mxu0 %v3585
        %3587 = vmatprep.subr.mxu0 0.0
        %v3588 = vand.u32 %v3216, 4294901760
        %3589 = vmatpush1.xpose.msra.mxu0 %v3588
        %3590 = vmatprep.subr.mxu0 0.0
        %v3591 = vand.u32 %v3217, 4294901760
        %3592 = vmatpush1.xpose.msra.mxu0 %v3591
        %3593 = vmatprep.subr.mxu0 0.0
        %v3594 = vand.u32 %v3218, 4294901760
        %3595 = vmatpush1.xpose.msra.mxu0 %v3594
        %3596 = vmatprep.subr.mxu0 0.0
        %v3597 = vand.u32 %v3219, 4294901760
        %3598 = vmatpush1.xpose.msra.mxu0 %v3597
        %3599 = vmatprep.subr.mxu0 0.0
        %v3600 = vand.u32 %v3220, 4294901760
        %3601 = vmatpush1.xpose.msra.mxu0 %v3600
        %3602 = vmatprep.subr.mxu0 0.0
        %v3603 = vand.u32 %v3221, 4294901760
        %3604 = vmatpush1.xpose.msra.mxu0 %v3603
        %3605 = vmatprep.subr.mxu0 0.0
        %v3606 = vand.u32 %v3222, 4294901760
        %3607 = vmatpush1.xpose.msra.mxu0 %v3606
        %3608 = vmatprep.subr.mxu0 0.0
        %v3609 = vand.u32 %v3223, 4294901760
        %3610 = vmatpush1.xpose.msra.mxu0 %v3609
        %3611 = vmatprep.subr.mxu0 0.0
        %v3612 = vand.u32 %v3224, 4294901760
        %3613 = vmatpush1.xpose.msra.mxu0 %v3612
        %3614 = vmatprep.subr.mxu0 0.0
        %v3615 = vand.u32 %v3225, 4294901760
        %3616 = vmatpush1.xpose.msra.mxu0 %v3615
        %3617 = vmatprep.subr.mxu0 0.0
        %v3618 = vand.u32 %v3226, 4294901760
        %3619 = vmatpush1.xpose.msra.mxu0 %v3618
        %3620 = vmatprep.subr.mxu0 0.0
        %v3621 = vand.u32 %v3227, 4294901760
        %3622 = vmatpush1.xpose.msra.mxu0 %v3621
        %3623 = vmatprep.subr.mxu0 0.0
        %v3624 = vand.u32 %v3228, 4294901760
        %3625 = vmatpush1.xpose.msra.mxu0 %v3624
        %3626 = vmatprep.subr.mxu0 0.0
        %3627 = vmatpush1.xpose.msra.mxu0 0.0
        %3628 = vmatprep.subr.mxu0 0.0
        %3629 = vmatpush1.xpose.msra.mxu0 0.0
        %3630 = vmatprep.subr.mxu0 0.0
        %3631 = vmatpush1.xpose.msra.mxu0 0.0
        %3632 = vmatprep.subr.mxu0 0.0
        %3633 = vmatpush1.xpose.msra.mxu0 0.0
        %3634 = vmatprep.subr.mxu0 0.0
        %3635 = vmatpush1.xpose.msra.mxu0 0.0
        %3636 = vmatprep.subr.mxu0 0.0
        %3637 = vmatpush1.xpose.msra.mxu0 0.0
        %3638 = vmatprep.subr.mxu0 0.0
        %3639 = vmatpush1.xpose.msra.mxu0 0.0
        %3640 = vmatprep.subr.mxu0 0.0
        %3641 = vmatpush1.xpose.msra.mxu0 0.0
        %3642 = vmatprep.subr.mxu0 0.0
        %3643 = vmatpush1.xpose.msra.mxu0 0.0
        %3644 = vmatprep.subr.mxu0 0.0
        %3645 = vmatpush1.xpose.msra.mxu0 0.0
        %3646 = vmatprep.subr.mxu0 0.0
        %3647 = vmatpush1.xpose.msra.mxu0 0.0
        %3648 = vmatprep.subr.mxu0 0.0
        %3649 = vmatpush1.xpose.msra.mxu0 0.0
        %3650 = vmatprep.subr.mxu0 0.0
        %3651 = vmatpush1.xpose.msra.mxu0 0.0
        %3652 = vmatprep.subr.mxu0 0.0
        %3653 = vmatpush1.xpose.msra.mxu0 0.0
        %3654 = vmatprep.subr.mxu0 0.0
        %3655 = vmatpush1.xpose.msra.mxu0 0.0
        %3656 = vmatprep.subr.mxu0 0.0
        %3657 = vmatpush1.xpose.msra.mxu0 0.0
        %3658 = vmatprep.mubr.f32.mxu0 0.0
        %v3659 = vand.u32 %v3231, 4294901760
        %v3660 = vsub.f32 %v3231, %v3659
        %v3661 = vand.u32 %v3660, 4294901760
        %3662 = vmatmul.mubr.f32.gmra.mrb[0].mxu0 %v3661
        %v3663 = vpop.f32.mrb[0].mxu0
        %v3664 = vadd.f32 %v3575, %v3663
        %v3665 = vpop.f32.mrb[0].mxu0
        %3666 = vdwg.mxu0
        %3667 = vmatprep.subr.mxu0 0.0
        %v3668 = vand.u32 %v3213, 4294901760
        %v3669 = vsub.f32 %v3213, %v3668
        %v3670 = vand.u32 %v3669, 4294901760
        %3671 = vmatpush1.xpose.msra.mxu0 %v3670
        %3672 = vmatprep.subr.mxu0 0.0
        %v3673 = vand.u32 %v3214, 4294901760
        %v3674 = vsub.f32 %v3214, %v3673
        %v3675 = vand.u32 %v3674, 4294901760
        %3676 = vmatpush1.xpose.msra.mxu0 %v3675
        %3677 = vmatprep.subr.mxu0 0.0
        %v3678 = vand.u32 %v3215, 4294901760
        %v3679 = vsub.f32 %v3215, %v3678
        %v3680 = vand.u32 %v3679, 4294901760
        %3681 = vmatpush1.xpose.msra.mxu0 %v3680
        %3682 = vmatprep.subr.mxu0 0.0
        %v3683 = vand.u32 %v3216, 4294901760
        %v3684 = vsub.f32 %v3216, %v3683
        %v3685 = vand.u32 %v3684, 4294901760
        %3686 = vmatpush1.xpose.msra.mxu0 %v3685
        %3687 = vmatprep.subr.mxu0 0.0
        %v3688 = vand.u32 %v3217, 4294901760
        %v3689 = vsub.f32 %v3217, %v3688
        %v3690 = vand.u32 %v3689, 4294901760
        %3691 = vmatpush1.xpose.msra.mxu0 %v3690
        %3692 = vmatprep.subr.mxu0 0.0
        %v3693 = vand.u32 %v3218, 4294901760
        %v3694 = vsub.f32 %v3218, %v3693
        %v3695 = vand.u32 %v3694, 4294901760
        %3696 = vmatpush1.xpose.msra.mxu0 %v3695
        %3697 = vmatprep.subr.mxu0 0.0
        %v3698 = vand.u32 %v3219, 4294901760
        %v3699 = vsub.f32 %v3219, %v3698
        %v3700 = vand.u32 %v3699, 4294901760
        %3701 = vmatpush1.xpose.msra.mxu0 %v3700
        %3702 = vmatprep.subr.mxu0 0.0
        %v3703 = vand.u32 %v3220, 4294901760
        %v3704 = vsub.f32 %v3220, %v3703
        %v3705 = vand.u32 %v3704, 4294901760
        %3706 = vmatpush1.xpose.msra.mxu0 %v3705
        %3707 = vmatprep.subr.mxu0 0.0
        %v3708 = vand.u32 %v3221, 4294901760
        %v3709 = vsub.f32 %v3221, %v3708
        %v3710 = vand.u32 %v3709, 4294901760
        %3711 = vmatpush1.xpose.msra.mxu0 %v3710
        %3712 = vmatprep.subr.mxu0 0.0
        %v3713 = vand.u32 %v3222, 4294901760
        %v3714 = vsub.f32 %v3222, %v3713
        %v3715 = vand.u32 %v3714, 4294901760
        %3716 = vmatpush1.xpose.msra.mxu0 %v3715
        %3717 = vmatprep.subr.mxu0 0.0
        %v3718 = vand.u32 %v3223, 4294901760
        %v3719 = vsub.f32 %v3223, %v3718
        %v3720 = vand.u32 %v3719, 4294901760
        %3721 = vmatpush1.xpose.msra.mxu0 %v3720
        %3722 = vmatprep.subr.mxu0 0.0
        %v3723 = vand.u32 %v3224, 4294901760
        %v3724 = vsub.f32 %v3224, %v3723
        %v3725 = vand.u32 %v3724, 4294901760
        %3726 = vmatpush1.xpose.msra.mxu0 %v3725
        %3727 = vmatprep.subr.mxu0 0.0
        %v3728 = vand.u32 %v3225, 4294901760
        %v3729 = vsub.f32 %v3225, %v3728
        %v3730 = vand.u32 %v3729, 4294901760
        %3731 = vmatpush1.xpose.msra.mxu0 %v3730
        %3732 = vmatprep.subr.mxu0 0.0
        %v3733 = vand.u32 %v3226, 4294901760
        %v3734 = vsub.f32 %v3226, %v3733
        %v3735 = vand.u32 %v3734, 4294901760
        %3736 = vmatpush1.xpose.msra.mxu0 %v3735
        %3737 = vmatprep.subr.mxu0 0.0
        %v3738 = vand.u32 %v3227, 4294901760
        %v3739 = vsub.f32 %v3227, %v3738
        %v3740 = vand.u32 %v3739, 4294901760
        %3741 = vmatpush1.xpose.msra.mxu0 %v3740
        %3742 = vmatprep.subr.mxu0 0.0
        %v3743 = vand.u32 %v3228, 4294901760
        %v3744 = vsub.f32 %v3228, %v3743
        %v3745 = vand.u32 %v3744, 4294901760
        %3746 = vmatpush1.xpose.msra.mxu0 %v3745
        %3747 = vmatprep.subr.mxu0 0.0
        %3748 = vmatpush1.xpose.msra.mxu0 0.0
        %3749 = vmatprep.subr.mxu0 0.0
        %3750 = vmatpush1.xpose.msra.mxu0 0.0
        %3751 = vmatprep.subr.mxu0 0.0
        %3752 = vmatpush1.xpose.msra.mxu0 0.0
        %3753 = vmatprep.subr.mxu0 0.0
        %3754 = vmatpush1.xpose.msra.mxu0 0.0
        %3755 = vmatprep.subr.mxu0 0.0
        %3756 = vmatpush1.xpose.msra.mxu0 0.0
        %3757 = vmatprep.subr.mxu0 0.0
        %3758 = vmatpush1.xpose.msra.mxu0 0.0
        %3759 = vmatprep.subr.mxu0 0.0
        %3760 = vmatpush1.xpose.msra.mxu0 0.0
        %3761 = vmatprep.subr.mxu0 0.0
        %3762 = vmatpush1.xpose.msra.mxu0 0.0
        %3763 = vmatprep.subr.mxu0 0.0
        %3764 = vmatpush1.xpose.msra.mxu0 0.0
        %3765 = vmatprep.subr.mxu0 0.0
        %3766 = vmatpush1.xpose.msra.mxu0 0.0
        %3767 = vmatprep.subr.mxu0 0.0
        %3768 = vmatpush1.xpose.msra.mxu0 0.0
        %3769 = vmatprep.subr.mxu0 0.0
        %3770 = vmatpush1.xpose.msra.mxu0 0.0
        %3771 = vmatprep.subr.mxu0 0.0
        %3772 = vmatpush1.xpose.msra.mxu0 0.0
        %3773 = vmatprep.subr.mxu0 0.0
        %3774 = vmatpush1.xpose.msra.mxu0 0.0
        %3775 = vmatprep.subr.mxu0 0.0
        %3776 = vmatpush1.xpose.msra.mxu0 0.0
        %3777 = vmatprep.subr.mxu0 0.0
        %3778 = vmatpush1.xpose.msra.mxu0 0.0
        %3779 = vmatprep.mubr.f32.mxu0 0.0
        %v3780 = vand.u32 %v3231, 4294901760
        %3781 = vmatmul.mubr.f32.gmra.mrb[0].mxu0 %v3780
        %v3782 = vpop.f32.mrb[0].mxu0
        %v3783 = vadd.f32 %v3664, %v3782
        %v3784 = vpop.f32.mrb[0].mxu0
        %3785 = vdwg.mxu0
        %3786 = vmatprep.subr.mxu0 0.0
        %v3787 = vand.u32 %v3213, 4294901760
        %3788 = vmatpush1.xpose.msra.mxu0 %v3787
        %3789 = vmatprep.subr.mxu0 0.0
        %v3790 = vand.u32 %v3214, 4294901760
        %3791 = vmatpush1.xpose.msra.mxu0 %v3790
        %3792 = vmatprep.subr.mxu0 0.0
        %v3793 = vand.u32 %v3215, 4294901760
        %3794 = vmatpush1.xpose.msra.mxu0 %v3793
        %3795 = vmatprep.subr.mxu0 0.0
        %v3796 = vand.u32 %v3216, 4294901760
        %3797 = vmatpush1.xpose.msra.mxu0 %v3796
        %3798 = vmatprep.subr.mxu0 0.0
        %v3799 = vand.u32 %v3217, 4294901760
        %3800 = vmatpush1.xpose.msra.mxu0 %v3799
        %3801 = vmatprep.subr.mxu0 0.0
        %v3802 = vand.u32 %v3218, 4294901760
        %3803 = vmatpush1.xpose.msra.mxu0 %v3802
        %3804 = vmatprep.subr.mxu0 0.0
        %v3805 = vand.u32 %v3219, 4294901760
        %3806 = vmatpush1.xpose.msra.mxu0 %v3805
        %3807 = vmatprep.subr.mxu0 0.0
        %v3808 = vand.u32 %v3220, 4294901760
        %3809 = vmatpush1.xpose.msra.mxu0 %v3808
        %3810 = vmatprep.subr.mxu0 0.0
        %v3811 = vand.u32 %v3221, 4294901760
        %3812 = vmatpush1.xpose.msra.mxu0 %v3811
        %3813 = vmatprep.subr.mxu0 0.0
        %v3814 = vand.u32 %v3222, 4294901760
        %3815 = vmatpush1.xpose.msra.mxu0 %v3814
        %3816 = vmatprep.subr.mxu0 0.0
        %v3817 = vand.u32 %v3223, 4294901760
        %3818 = vmatpush1.xpose.msra.mxu0 %v3817
        %3819 = vmatprep.subr.mxu0 0.0
        %v3820 = vand.u32 %v3224, 4294901760
        %3821 = vmatpush1.xpose.msra.mxu0 %v3820
        %3822 = vmatprep.subr.mxu0 0.0
        %v3823 = vand.u32 %v3225, 4294901760
        %3824 = vmatpush1.xpose.msra.mxu0 %v3823
        %3825 = vmatprep.subr.mxu0 0.0
        %v3826 = vand.u32 %v3226, 4294901760
        %3827 = vmatpush1.xpose.msra.mxu0 %v3826
        %3828 = vmatprep.subr.mxu0 0.0
        %v3829 = vand.u32 %v3227, 4294901760
        %3830 = vmatpush1.xpose.msra.mxu0 %v3829
        %3831 = vmatprep.subr.mxu0 0.0
        %v3832 = vand.u32 %v3228, 4294901760
        %3833 = vmatpush1.xpose.msra.mxu0 %v3832
        %3834 = vmatprep.subr.mxu0 0.0
        %3835 = vmatpush1.xpose.msra.mxu0 0.0
        %3836 = vmatprep.subr.mxu0 0.0
        %3837 = vmatpush1.xpose.msra.mxu0 0.0
        %3838 = vmatprep.subr.mxu0 0.0
        %3839 = vmatpush1.xpose.msra.mxu0 0.0
        %3840 = vmatprep.subr.mxu0 0.0
        %3841 = vmatpush1.xpose.msra.mxu0 0.0
        %3842 = vmatprep.subr.mxu0 0.0
        %3843 = vmatpush1.xpose.msra.mxu0 0.0
        %3844 = vmatprep.subr.mxu0 0.0
        %3845 = vmatpush1.xpose.msra.mxu0 0.0
        %3846 = vmatprep.subr.mxu0 0.0
        %3847 = vmatpush1.xpose.msra.mxu0 0.0
        %3848 = vmatprep.subr.mxu0 0.0
        %3849 = vmatpush1.xpose.msra.mxu0 0.0
        %3850 = vmatprep.subr.mxu0 0.0
        %3851 = vmatpush1.xpose.msra.mxu0 0.0
        %3852 = vmatprep.subr.mxu0 0.0
        %3853 = vmatpush1.xpose.msra.mxu0 0.0
        %3854 = vmatprep.subr.mxu0 0.0
        %3855 = vmatpush1.xpose.msra.mxu0 0.0
        %3856 = vmatprep.subr.mxu0 0.0
        %3857 = vmatpush1.xpose.msra.mxu0 0.0
        %3858 = vmatprep.subr.mxu0 0.0
        %3859 = vmatpush1.xpose.msra.mxu0 0.0
        %3860 = vmatprep.subr.mxu0 0.0
        %3861 = vmatpush1.xpose.msra.mxu0 0.0
        %3862 = vmatprep.subr.mxu0 0.0
        %3863 = vmatpush1.xpose.msra.mxu0 0.0
        %3864 = vmatprep.subr.mxu0 0.0
        %3865 = vmatpush1.xpose.msra.mxu0 0.0
        %3866 = vmatprep.mubr.f32.mxu0 0.0
        %v3867 = vand.u32 %v3231, 4294901760
        %3868 = vmatmul.mubr.f32.gmra.mrb[0].mxu0 %v3867
        %v3869 = vpop.f32.mrb[0].mxu0
        %v3870 = vadd.f32 %v3783, %v3869
        %v3871 = vpop.f32.mrb[0].mxu0
        %3872 = vdwg.mxu0
        %3873 = vst [vmem:[%s148] sm:$0x1] %v3870
        %s3874 = sand.u32 %s60, 1
        %s3875 = scalar_lea.sflag [#allocation7], %s3874
        %s3876 = sand.u32 %s60, 1
        %s3877 = smul.addr %s3876, 16
        %s3878 = scalar_lea.vmem [#allocation6], %s3877
        %s3879 = sand.u32 %s86, 1
        %s3880 = scalar_lea.sflag [#allocation9], %s3879
        %s3881 = sand.u32 %s86, 1
        %s3882 = scalar_lea.vmem [#allocation8], %s3881
        // Predicated region
        $region50: #{tpu_custom_call.1} parent=23 // pred_check
          %p3883 = pneg %p70
        $region51: #{tpu_custom_call.1} parent=23 // pred_check_branch
          %3885 = sbr.rel (%p3883) target = $region53
        $region52: #{tpu_custom_call.1} parent=23 // pred_region
          %s3887 = ssub.s32 256, 256
          %3888 = vsyncadd %s3875, %s3887
          %s3889 = smul.addr %s26, 2
          %s3890 = smul.addr %s3889, 128
          %s3891 = scalar_lea.hbm %s3, %s3890
          %s3892 = sshll.u32 %s3878, 4
          %s3893 = int_to_ptr.vmem [resolvable:$true] %s3892
          %3898 = dma.vmem_to_hbm [thread:$0]  %s3893, 256, %s3891, %s3875, 128, 128, 8
        $region53: #{tpu_custom_call.1} parent=23 // pred_fallthru
          _
        // Predicated region
        $region54: #{tpu_custom_call.1} parent=23 // pred_check
          %p3899 = pneg %p96
        $region55: #{tpu_custom_call.1} parent=23 // pred_check_branch
          %3901 = sbr.rel (%p3899) target = $region57
        $region56: #{tpu_custom_call.1} parent=23 // pred_region
          %s3903 = ssub.s32 16, 16
          %3904 = vsyncadd %s3880, %s3903
          %s3905 = smul.addr %s26, 16
          %s3906 = scalar_lea.hbm %s4, %s3905
          %s3908 = sshll.u32 %s3882, 4
          %s3909 = int_to_ptr.vmem [resolvable:$true] %s3908
          %3911 = dma.vmem_to_hbm [thread:$0]  %s3909, 16, %s3906, %s3880
        $region57: #{tpu_custom_call.1} parent=23 // pred_fallthru
          _
      $region24: #{tpu_custom_call.1} parent=5 // pred_fallthru
        _
      %p3912 = scmp.le.s32.totalorder 2, %s21
      // Predicated region
      $region58: #{tpu_custom_call.1} parent=5 // pred_check
        %p3913 = pneg %p3912
      $region59: #{tpu_custom_call.1} parent=5 // pred_check_branch
        %3915 = sbr.rel (%p3913) target = $region61
      $region60: #{tpu_custom_call.1} parent=5 // pred_region
        %s3916 = ssub.s32 %s21, 2
        // Predicated region
        $region62: #{tpu_custom_call.1} parent=60 // pred_check
          %p3917 = pneg %p76
        $region63: #{tpu_custom_call.1} parent=60 // pred_check_branch
          %3919 = sbr.rel (%p3917) target = $region65
        $region64: #{tpu_custom_call.1} parent=60 // pred_region
          %s3920 = sand.u32 %s61, 1
          %s3921 = scalar_lea.sflag [#allocation7], %s3920
          %s3922 = sand.u32 %s61, 1
          %s3923 = smul.addr %s3922, 16
          %s3924 = scalar_lea.vmem [#allocation6], %s3923
          %3925 = dma.done %s3921, 256
        $region65: #{tpu_custom_call.1} parent=60 // pred_fallthru
          _
        // Predicated region
        $region66: #{tpu_custom_call.1} parent=60 // pred_check
          %p3926 = pneg %p102
        $region67: #{tpu_custom_call.1} parent=60 // pred_check_branch
          %3928 = sbr.rel (%p3926) target = $region69
        $region68: #{tpu_custom_call.1} parent=60 // pred_region
          %s3929 = sand.u32 %s87, 1
          %s3930 = scalar_lea.sflag [#allocation9], %s3929
          %s3931 = sand.u32 %s87, 1
          %s3932 = scalar_lea.vmem [#allocation8], %s3931
          %3933 = dma.done %s3930, 16
        $region69: #{tpu_custom_call.1} parent=60 // pred_fallthru
          _
      $region61: #{tpu_custom_call.1} parent=5 // pred_fallthru
        _
    $region6: #{tpu_custom_call.1} parent=1 // loop_footer
      %s25 = sadd.s32 1, %s21
    $region7: #{tpu_custom_call.1} parent=1 // loop_footer_branch
      %20 = sbr.rel target = $region3
    $region8: #{tpu_custom_call.1} parent=1 // loop_exit
      _
    %3934 = vsyncpa [#allocation7], 1
    %s3935 = scalar_lea.sflag [#allocation7], 1
    %3936 = vsyncpa %s3935, 1
    %3937 = vsyncpa [#allocation9], 1
    %s3938 = scalar_lea.sflag [#allocation9], 1
    %3939 = vsyncpa %s3938, 1
  %3940 = vsyncmov [#allocation3]
  %s3941 = vpop.sfrf %3940
  %p3942 = scmp.eq.s32.totalorder %s3941, 0
  %p3943 = pneg %p3942
  %3945 = shalt.err (%p3943)

// kernel: tpu_custom_call.1
$region0: #{tpu_custom_call.1}
  #allocation0 [shape = 'u32[]', space=smem, size = 0x4, offset = 0x4, fixed_abs, tag = 'smem constant byte address 0x4 - core index']
  #allocation1 [shape = 'u32[144,128]{1,0:T(1,128)}', space=vmem, size = 0x12000, scoped, tag = 'internal scratch']
  #allocation2 [shape = 's32[1]{0}', space=sflag, size = 0x4, scoped, tag = 'scoped memory for tpu_custom_call.1']
  #allocation3 [shape = 'u8[512]{0}', space=smem, size = 0x200, scoped, tag = 'prefetched SMEM operand 0']
  %s0 = inlined_call_operand.hbm [shape: s32[32], index: 0, kind: input, shape index: {}]
  %s1 = inlined_call_operand.vmem [shape: f32[2,1,128], index: 1, kind: input, shape index: {}]
  %s2 = inlined_call_operand.hbm [shape: f32[2,128,128], index: 2, kind: input, shape index: {}]
  %s3 = inlined_call_operand.hbm [shape: f32[2,16,128], index: 3, kind: output, shape index: {0}]
  %s4 = inlined_call_operand.hbm [shape: f32[2,1,128], index: 4, kind: output, shape index: {1}]
  %5 = xla_tuple %s3, %s4
  %s6 = sld [smem:[#allocation0]]
  $region60: #{tpu_custom_call.1} parent=0
    _
  %s8 = ssub.s32 1, %s6
  %s9 = scalar_select 0, %s8, %s6
  %11 = dma.hbm_to_smem %s0, 16, [#allocation3], [#allocation2]
  %12 = dma.done [#allocation2], 16
  %13 = sfence
  $region1: #{tpu_custom_call.1} parent=0
    #allocation4 [shape = 'u8[131072]{0}', space=vmem, size = 0x20000, scoped, tag = 'input window, operand 2']
    #allocation5 [shape = 's32[2]{0}', space=sflag, size = 0x8, scoped, tag = 'scoped memory for tpu_custom_call.1']
    #allocation6 [shape = 's32[2]{0}', space=sflag, size = 0x8, scoped, tag = 'scoped memory for tpu_custom_call.1']
    #allocation7 [shape = 'u8[16384]{0}', space=vmem, size = 0x4000, scoped, tag = 'output window, operand 0']
    #allocation8 [shape = 'u8[1024]{0}', space=vmem, size = 0x400, scoped, tag = 'output window, operand 1']
    #allocation9 [shape = 's32[2]{0}', space=sflag, size = 0x8, scoped, tag = 'scoped memory for tpu_custom_call.1']
    %14 = vsyncpa [#allocation5], 0
    %s15 = scalar_lea.sflag [#allocation5], 1
    %16 = vsyncpa %s15, 0
    %17 = vsyncpa [#allocation6], 0
    %s18 = scalar_lea.sflag [#allocation6], 1
    %19 = vsyncpa %s18, 0
    %20 = vsyncpa [#allocation9], 0
    %s21 = scalar_lea.sflag [#allocation9], 1
    %22 = vsyncpa %s21, 0
    loop: start=0, step=1, limit=4
    $region2: #{tpu_custom_call.1} parent=1 // loop_pre_header
      _
    $region3: #{tpu_custom_call.1} parent=1 // loop_header
      %s24 = sphi 0, %s28
      %p25 = scmp.ge.s32.totalorder %s24, 4
      %s34 = sphi 0, %s36
      %s37 = sphi 0, %s34
      %s38 = sphi 0, %s37
      %s54 = sphi 0, %s38
      %s60 = sphi 0, %s62
      %s63 = sphi 0, %s60
      %s64 = sphi 0, %s63
      %s80 = sphi 0, %s64
      %s86 = sphi 0, %s88
      %s89 = sphi 0, %s86
      %s90 = sphi 0, %s89
      %s106 = sphi 0, %s90
      %s112 = sphi 0, %s114
      %s115 = sphi 0, %s112
      %s116 = sphi 0, %s115
      %s132 = sphi 0, %s116
    $region4: #{tpu_custom_call.1} parent=1 // loop_header_branch
      %27 = sbr.rel (%p25) target = $region8
    $region5: #{tpu_custom_call.1} parent=1 // loop_body
      %s29 = ssub.s32 %s24, 1
      %s30 = ssub.s32 %s24, 2
      %s31 = sadd.s32 %s24, 1
      %s32 = ssub.s32 %s24, %s31
      %p33 = scmp.eq.s32.totalorder %s32, 0
      %s35 = sadd.s32 %s34, 1
      %s36 = scalar_select %p33, %s34, %s35
      %p39 = pneg %p33
      %p40 = scmp.eq.s32.totalorder %s24, 1
      %p41 = por %p39, %p40
      %p42 = scmp.ne.s32.totalorder %s34, %s37
      %p43 = scmp.eq.s32.totalorder %s24, 0
      %p44 = por %p42, %p43
      %p45 = scmp.ne.s32.totalorder %s34, %s37
      %p46 = scmp.eq.s32.totalorder %s29, 1
      %p47 = por %p45, %p46
      %p48 = scmp.ne.s32.totalorder %s37, %s38
      %p49 = scmp.eq.s32.totalorder %s29, 0
      %p50 = por %p48, %p49
      %p51 = scmp.ne.s32.totalorder %s37, %s38
      %p52 = scmp.eq.s32.totalorder %s30, 1
      %p53 = por %p51, %p52
      %p55 = scmp.ne.s32.totalorder %s38, %s54
      %p56 = scmp.eq.s32.totalorder %s30, 0
      %p57 = por %p55, %p56
      %s58 = ssub.s32 %s24, %s31
      %p59 = scmp.eq.s32.totalorder %s58, 0
      %s61 = sadd.s32 %s60, 1
      %s62 = scalar_select %p59, %s60, %s61
      %p65 = pneg %p59
      %p66 = scmp.eq.s32.totalorder %s24, 1
      %p67 = por %p65, %p66
      %p68 = scmp.ne.s32.totalorder %s60, %s63
      %p69 = scmp.eq.s32.totalorder %s24, 0
      %p70 = por %p68, %p69
      %p71 = scmp.ne.s32.totalorder %s60, %s63
      %p72 = scmp.eq.s32.totalorder %s29, 1
      %p73 = por %p71, %p72
      %p74 = scmp.ne.s32.totalorder %s63, %s64
      %p75 = scmp.eq.s32.totalorder %s29, 0
      %p76 = por %p74, %p75
      %p77 = scmp.ne.s32.totalorder %s63, %s64
      %p78 = scmp.eq.s32.totalorder %s30, 1
      %p79 = por %p77, %p78
      %p81 = scmp.ne.s32.totalorder %s64, %s80
      %p82 = scmp.eq.s32.totalorder %s30, 0
      %p83 = por %p81, %p82
      %s84 = ssub.s32 %s24, %s31
      %p85 = scmp.eq.s32.totalorder %s84, 0
      %s87 = sadd.s32 %s86, 1
      %s88 = scalar_select %p85, %s86, %s87
      %p91 = pneg %p85
      %p92 = scmp.eq.s32.totalorder %s24, 1
      %p93 = por %p91, %p92
      %p94 = scmp.ne.s32.totalorder %s86, %s89
      %p95 = scmp.eq.s32.totalorder %s24, 0
      %p96 = por %p94, %p95
      %p97 = scmp.ne.s32.totalorder %s86, %s89
      %p98 = scmp.eq.s32.totalorder %s29, 1
      %p99 = por %p97, %p98
      %p100 = scmp.ne.s32.totalorder %s89, %s90
      %p101 = scmp.eq.s32.totalorder %s29, 0
      %p102 = por %p100, %p101
      %p103 = scmp.ne.s32.totalorder %s89, %s90
      %p104 = scmp.eq.s32.totalorder %s30, 1
      %p105 = por %p103, %p104
      %p107 = scmp.ne.s32.totalorder %s90, %s106
      %p108 = scmp.eq.s32.totalorder %s30, 0
      %p109 = por %p107, %p108
      %s110 = ssub.s32 %s24, %s31
      %p111 = scmp.eq.s32.totalorder %s110, 0
      %s113 = sadd.s32 %s112, 1
      %s114 = scalar_select %p111, %s112, %s113
      %p117 = pneg %p111
      %p118 = scmp.eq.s32.totalorder %s24, 1
      %p119 = por %p117, %p118
      %p120 = scmp.ne.s32.totalorder %s112, %s115
      %p121 = scmp.eq.s32.totalorder %s24, 0
      %p122 = por %p120, %p121
      %p123 = scmp.ne.s32.totalorder %s112, %s115
      %p124 = scmp.eq.s32.totalorder %s29, 1
      %p125 = por %p123, %p124
      %p126 = scmp.ne.s32.totalorder %s115, %s116
      %p127 = scmp.eq.s32.totalorder %s29, 0
      %p128 = por %p126, %p127
      %p129 = scmp.ne.s32.totalorder %s115, %s116
      %p130 = scmp.eq.s32.totalorder %s30, 1
      %p131 = por %p129, %p130
      %p133 = scmp.ne.s32.totalorder %s116, %s132
      %p134 = scmp.eq.s32.totalorder %s30, 0
      %p135 = por %p133, %p134
      %p136 = scmp.le.s32.totalorder 1, %s24
      %p137 = scmp.lt.s32.totalorder %s24, 3
      %p138 = pnand %p136, %p137
      %p139 = pneg %p138
      // Predicated region
      $region9: #{tpu_custom_call.1} parent=5 // pred_check
        _
      $region10: #{tpu_custom_call.1} parent=5 // pred_check_branch
        %141 = sbr.rel (%p138) target = $region12
      $region11: #{tpu_custom_call.1} parent=5 // pred_region
        %s142 = ssub.s32 %s24, 1
      $region12: #{tpu_custom_call.1} parent=5 // pred_fallthru
        _
      %p143 = scmp.lt.s32.totalorder %s24, 2
      // Predicated region
      $region13: #{tpu_custom_call.1} parent=5 // pred_check
        %p144 = pneg %p143
      $region14: #{tpu_custom_call.1} parent=5 // pred_check_branch
        %146 = sbr.rel (%p144) target = $region16
      $region15: #{tpu_custom_call.1} parent=5 // pred_region
        // Predicated region
        $region17: #{tpu_custom_call.1} parent=15 // pred_check
          %p147 = pneg %p44
        $region18: #{tpu_custom_call.1} parent=15 // pred_check_branch
          %149 = sbr.rel (%p147) target = $region20
        $region19: #{tpu_custom_call.1} parent=15 // pred_region
          %p150 = scmp.lt.s32.totalorder %s24, 1
          %s151 = scalar_select %p150, %s24, 1
          %s152 = scalar_lea.vmem %s1, %s151
        $region20: #{tpu_custom_call.1} parent=15 // pred_fallthru
          _
        // Predicated region
        $region21: #{tpu_custom_call.1} parent=15 // pred_check
          %p153 = pneg %p70
        $region22: #{tpu_custom_call.1} parent=15 // pred_check_branch
          %155 = sbr.rel (%p153) target = $region24
        $region23: #{tpu_custom_call.1} parent=15 // pred_region
          %s156 = sand.u32 %s60, 1
          %s157 = scalar_lea.sflag [#allocation5], %s156
          %s158 = sand.u32 %s60, 1
          %s159 = smul.addr %s158, 128
          %s160 = scalar_lea.vmem [#allocation4], %s159
          %s162 = ssub.s32 2048, 2048
          %163 = vsyncadd %s157, %s162
          %s164 = smul.addr %s24, 16
          %s165 = smul.addr %s164, 128
          %s166 = scalar_lea.hbm %s2, %s165
          %s167 = sshll.u32 %s160, 4
          %s168 = int_to_ptr.vmem [resolvable:$true] %s167
          %173 = dma.hbm_to_vmem [thread:$0]  %s166, 2048, %s168, %s157, 128, 128, 8
        $region24: #{tpu_custom_call.1} parent=15 // pred_fallthru
          _
      $region16: #{tpu_custom_call.1} parent=5 // pred_fallthru
        _
      %p174 = scmp.le.s32.totalorder 1, %s24
      %p175 = scmp.lt.s32.totalorder %s24, 3
      %p176 = pnand %p174, %p175
      %p177 = pneg %p176
      // Predicated region
      $region25: #{tpu_custom_call.1} parent=5 // pred_check
        _
      $region26: #{tpu_custom_call.1} parent=5 // pred_check_branch
        %179 = sbr.rel (%p176) target = $region28
      $region27: #{tpu_custom_call.1} parent=5 // pred_region
        %s180 = ssub.s32 %s24, 1
        %s181 = sand.u32 %s63, 1
        %s182 = scalar_lea.sflag [#allocation5], %s181
        %s183 = sand.u32 %s63, 1
        %s184 = smul.addr %s183, 128
        %s185 = scalar_lea.vmem [#allocation4], %s184
        // Predicated region
        $region29: #{tpu_custom_call.1} parent=27 // pred_check
          %p186 = pneg %p76
        $region30: #{tpu_custom_call.1} parent=27 // pred_check_branch
          %188 = sbr.rel (%p186) target = $region32
        $region31: #{tpu_custom_call.1} parent=27 // pred_region
          %189 = dma.done %s182, 2048
        $region32: #{tpu_custom_call.1} parent=27 // pred_fallthru
          _
        %p190 = scmp.lt.s32.totalorder %s29, 1
        %s191 = scalar_select %p190, %s29, 1
        %s192 = scalar_lea.vmem %s1, %s191
        %p193 = pneg %p50
        %p194 = pneg %p47
        %s195 = sand.u32 %s63, 1
        %s196 = scalar_lea.sflag [#allocation5], %s195
        %s197 = sand.u32 %s63, 1
        %s198 = smul.addr %s197, 128
        %s199 = scalar_lea.vmem [#allocation4], %s198
        %p200 = pneg %p76
        %p201 = pneg %p73
        %p202 = pneg %p102
        %p203 = pneg %p99
        %s204 = sand.u32 %s89, 1
        %s205 = scalar_lea.sflag [#allocation6], %s204
        %s206 = sand.u32 %s89, 1
        %s207 = smul.addr %s206, 16
        %s208 = scalar_lea.vmem [#allocation7], %s207
        %p209 = pneg %p128
        %p210 = pneg %p125
        %s211 = sand.u32 %s115, 1
        %s212 = scalar_lea.sflag [#allocation9], %s211
        %s213 = sand.u32 %s115, 1
        %s214 = scalar_lea.vmem [#allocation8], %s213
        %p215 = scmp.lt.s32.totalorder %s29, 1
        %s216 = scalar_select %p215, %s29, 1
        %s217 = scalar_lea.vmem %s1, %s216
        %v218 = vld [vmem:[%s185] sm:$0xff]
        %v219 = vld [vmem:[%s185 + $0x8] sm:$0xff]
        %v220 = vld [vmem:[%s185 + $0x10] sm:$0xff]
        %v221 = vld [vmem:[%s185 + $0x18] sm:$0xff]
        %v222 = vld [vmem:[%s185 + $0x20] sm:$0xff]
        %v223 = vld [vmem:[%s185 + $0x28] sm:$0xff]
        %v224 = vld [vmem:[%s185 + $0x30] sm:$0xff]
        %v225 = vld [vmem:[%s185 + $0x38] sm:$0xff]
        %v226 = vld [vmem:[%s185 + $0x40] sm:$0xff]
        %v227 = vld [vmem:[%s185 + $0x48] sm:$0xff]
        %v228 = vld [vmem:[%s185 + $0x50] sm:$0xff]
        %v229 = vld [vmem:[%s185 + $0x58] sm:$0xff]
        %v230 = vld [vmem:[%s185 + $0x60] sm:$0xff]
        %v231 = vld [vmem:[%s185 + $0x68] sm:$0xff]
        %v232 = vld [vmem:[%s185 + $0x70] sm:$0xff]
        %v233 = vld [vmem:[%s185 + $0x78] sm:$0xff]
        %234 = vmatprep.subr.mxu0 0.0
        %v235 = vand.u32 %v218, 4294901760
        %236 = vmatpush1.xpose.msra.mxu0 %v235
        %237 = vmatprep.subr.mxu0 0.0
        %v238 = vand.u32 %v219, 4294901760
        %239 = vmatpush1.xpose.msra.mxu0 %v238
        %240 = vmatprep.subr.mxu0 0.0
        %v241 = vand.u32 %v220, 4294901760
        %242 = vmatpush1.xpose.msra.mxu0 %v241
        %243 = vmatprep.subr.mxu0 0.0
        %v244 = vand.u32 %v221, 4294901760
        %245 = vmatpush1.xpose.msra.mxu0 %v244
        %246 = vmatprep.subr.mxu0 0.0
        %v247 = vand.u32 %v222, 4294901760
        %248 = vmatpush1.xpose.msra.mxu0 %v247
        %249 = vmatprep.subr.mxu0 0.0
        %v250 = vand.u32 %v223, 4294901760
        %251 = vmatpush1.xpose.msra.mxu0 %v250
        %252 = vmatprep.subr.mxu0 0.0
        %v253 = vand.u32 %v224, 4294901760
        %254 = vmatpush1.xpose.msra.mxu0 %v253
        %255 = vmatprep.subr.mxu0 0.0
        %v256 = vand.u32 %v225, 4294901760
        %257 = vmatpush1.xpose.msra.mxu0 %v256
        %258 = vmatprep.subr.mxu0 0.0
        %v259 = vand.u32 %v226, 4294901760
        %260 = vmatpush1.xpose.msra.mxu0 %v259
        %261 = vmatprep.subr.mxu0 0.0
        %v262 = vand.u32 %v227, 4294901760
        %263 = vmatpush1.xpose.msra.mxu0 %v262
        %264 = vmatprep.subr.mxu0 0.0
        %v265 = vand.u32 %v228, 4294901760
        %266 = vmatpush1.xpose.msra.mxu0 %v265
        %267 = vmatprep.subr.mxu0 0.0
        %v268 = vand.u32 %v229, 4294901760
        %269 = vmatpush1.xpose.msra.mxu0 %v268
        %270 = vmatprep.subr.mxu0 0.0
        %v271 = vand.u32 %v230, 4294901760
        %272 = vmatpush1.xpose.msra.mxu0 %v271
        %273 = vmatprep.subr.mxu0 0.0
        %v274 = vand.u32 %v231, 4294901760
        %275 = vmatpush1.xpose.msra.mxu0 %v274
        %276 = vmatprep.subr.mxu0 0.0
        %v277 = vand.u32 %v232, 4294901760
        %278 = vmatpush1.xpose.msra.mxu0 %v277
        %279 = vmatprep.subr.mxu0 0.0
        %v280 = vand.u32 %v233, 4294901760
        %281 = vmatpush1.xpose.msra.mxu0 %v280
        %282 = vmatprep.subr.mxu0 0.0
        %283 = vmatpush1.xpose.msra.mxu0 0.0
        %284 = vmatprep.subr.mxu0 0.0
        %285 = vmatpush1.xpose.msra.mxu0 0.0
        %286 = vmatprep.subr.mxu0 0.0
        %287 = vmatpush1.xpose.msra.mxu0 0.0
        %288 = vmatprep.subr.mxu0 0.0
        %289 = vmatpush1.xpose.msra.mxu0 0.0
        %290 = vmatprep.subr.mxu0 0.0
        %291 = vmatpush1.xpose.msra.mxu0 0.0
        %292 = vmatprep.subr.mxu0 0.0
        %293 = vmatpush1.xpose.msra.mxu0 0.0
        %294 = vmatprep.subr.mxu0 0.0
        %295 = vmatpush1.xpose.msra.mxu0 0.0
        %296 = vmatprep.subr.mxu0 0.0
        %297 = vmatpush1.xpose.msra.mxu0 0.0
        %298 = vmatprep.subr.mxu0 0.0
        %299 = vmatpush1.xpose.msra.mxu0 0.0
        %300 = vmatprep.subr.mxu0 0.0
        %301 = vmatpush1.xpose.msra.mxu0 0.0
        %302 = vmatprep.subr.mxu0 0.0
        %303 = vmatpush1.xpose.msra.mxu0 0.0
        %304 = vmatprep.subr.mxu0 0.0
        %305 = vmatpush1.xpose.msra.mxu0 0.0
        %306 = vmatprep.subr.mxu0 0.0
        %307 = vmatpush1.xpose.msra.mxu0 0.0
        %308 = vmatprep.subr.mxu0 0.0
        %309 = vmatpush1.xpose.msra.mxu0 0.0
        %310 = vmatprep.subr.mxu0 0.0
        %311 = vmatpush1.xpose.msra.mxu0 0.0
        %312 = vmatprep.subr.mxu0 0.0
        %313 = vmatpush1.xpose.msra.mxu0 0.0
        %314 = vmatprep.mubr.f32.mxu0 0.0
        %v315 = vand.u32 %v218, 4294901760
        %v316 = vsub.f32 %v218, %v315
        %v317 = vand.u32 %v316, 4294901760
        %v318 = vsub.f32 %v316, %v317
        %v319 = vand.u32 %v318, 4294901760
        %320 = vmatmul.mubr.f32.gmra.mrb[0].mxu0 %v319
        %v321 = vpop.f32.mrb[0].mxu0
        %v322 = vadd.f32 0.0, %v321
        %v323 = vpop.f32.mrb[0].mxu0
        %324 = vmatprep.mubr.f32.mxu0 0.0
        %v325 = vand.u32 %v219, 4294901760
        %v326 = vsub.f32 %v219, %v325
        %v327 = vand.u32 %v326, 4294901760
        %v328 = vsub.f32 %v326, %v327
        %v329 = vand.u32 %v328, 4294901760
        %330 = vmatmul.mubr.f32.gmra.mrb[0].mxu0 %v329
        %v331 = vpop.f32.mrb[0].mxu0
        %v332 = vadd.f32 0.0, %v331
        %v333 = vpop.f32.mrb[0].mxu0
        %334 = vmatprep.mubr.f32.mxu0 0.0
        %v335 = vand.u32 %v220, 4294901760
        %v336 = vsub.f32 %v220, %v335
        %v337 = vand.u32 %v336, 4294901760
        %v338 = vsub.f32 %v336, %v337
        %v339 = vand.u32 %v338, 4294901760
        %340 = vmatmul.mubr.f32.gmra.mrb[0].mxu0 %v339
        %v341 = vpop.f32.mrb[0].mxu0
        %v342 = vadd.f32 0.0, %v341
        %v343 = vpop.f32.mrb[0].mxu0
        %344 = vmatprep.mubr.f32.mxu0 0.0
        %v345 = vand.u32 %v221, 4294901760
        %v346 = vsub.f32 %v221, %v345
        %v347 = vand.u32 %v346, 4294901760
        %v348 = vsub.f32 %v346, %v347
        %v349 = vand.u32 %v348, 4294901760
        %350 = vmatmul.mubr.f32.gmra.mrb[0].mxu0 %v349
        %v351 = vpop.f32.mrb[0].mxu0
        %v352 = vadd.f32 0.0, %v351
        %v353 = vpop.f32.mrb[0].mxu0
        %354 = vmatprep.mubr.f32.mxu0 0.0
        %v355 = vand.u32 %v222, 4294901760
        %v356 = vsub.f32 %v222, %v355
        %v357 = vand.u32 %v356, 4294901760
        %v358 = vsub.f32 %v356, %v357
        %v359 = vand.u32 %v358, 4294901760
        %360 = vmatmul.mubr.f32.gmra.mrb[0].mxu0 %v359
        %v361 = vpop.f32.mrb[0].mxu0
        %v362 = vadd.f32 0.0, %v361
        %v363 = vpop.f32.mrb[0].mxu0
        %364 = vmatprep.mubr.f32.mxu0 0.0
        %v365 = vand.u32 %v223, 4294901760
        %v366 = vsub.f32 %v223, %v365
        %v367 = vand.u32 %v366, 4294901760
        %v368 = vsub.f32 %v366, %v367
        %v369 = vand.u32 %v368, 4294901760
        %370 = vmatmul.mubr.f32.gmra.mrb[0].mxu0 %v369
        %v371 = vpop.f32.mrb[0].mxu0
        %v372 = vadd.f32 0.0, %v371
        %v373 = vpop.f32.mrb[0].mxu0
        %374 = vmatprep.mubr.f32.mxu0 0.0
        %v375 = vand.u32 %v224, 4294901760
        %v376 = vsub.f32 %v224, %v375
        %v377 = vand.u32 %v376, 4294901760
        %v378 = vsub.f32 %v376, %v377
        %v379 = vand.u32 %v378, 4294901760
        %380 = vmatmul.mubr.f32.gmra.mrb[0].mxu0 %v379
        %v381 = vpop.f32.mrb[0].mxu0
        %v382 = vadd.f32 0.0, %v381
        %v383 = vpop.f32.mrb[0].mxu0
        %384 = vmatprep.mubr.f32.mxu0 0.0
        %v385 = vand.u32 %v225, 4294901760
        %v386 = vsub.f32 %v225, %v385
        %v387 = vand.u32 %v386, 4294901760
        %v388 = vsub.f32 %v386, %v387
        %v389 = vand.u32 %v388, 4294901760
        %390 = vmatmul.mubr.f32.gmra.mrb[0].mxu0 %v389
        %v391 = vpop.f32.mrb[0].mxu0
        %v392 = vadd.f32 0.0, %v391
        %v393 = vpop.f32.mrb[0].mxu0
        %394 = vmatprep.mubr.f32.mxu0 0.0
        %v395 = vand.u32 %v226, 4294901760
        %v396 = vsub.f32 %v226, %v395
        %v397 = vand.u32 %v396, 4294901760
        %v398 = vsub.f32 %v396, %v397
        %v399 = vand.u32 %v398, 4294901760
        %400 = vmatmul.mubr.f32.gmra.mrb[0].mxu0 %v399
        %v401 = vpop.f32.mrb[0].mxu0
        %v402 = vadd.f32 0.0, %v401
        %v403 = vpop.f32.mrb[0].mxu0
        %404 = vmatprep.mubr.f32.mxu0 0.0
        %v405 = vand.u32 %v227, 4294901760
        %v406 = vsub.f32 %v227, %v405
        %v407 = vand.u32 %v406, 4294901760
        %v408 = vsub.f32 %v406, %v407
        %v409 = vand.u32 %v408, 4294901760
        %410 = vmatmul.mubr.f32.gmra.mrb[0].mxu0 %v409
        %v411 = vpop.f32.mrb[0].mxu0
        %v412 = vadd.f32 0.0, %v411
        %v413 = vpop.f32.mrb[0].mxu0
        %414 = vmatprep.mubr.f32.mxu0 0.0
        %v415 = vand.u32 %v228, 4294901760
        %v416 = vsub.f32 %v228, %v415
        %v417 = vand.u32 %v416, 4294901760
        %v418 = vsub.f32 %v416, %v417
        %v419 = vand.u32 %v418, 4294901760
        %420 = vmatmul.mubr.f32.gmra.mrb[0].mxu0 %v419
        %v421 = vpop.f32.mrb[0].mxu0
        %v422 = vadd.f32 0.0, %v421
        %v423 = vpop.f32.mrb[0].mxu0
        %424 = vmatprep.mubr.f32.mxu0 0.0
        %v425 = vand.u32 %v229, 4294901760
        %v426 = vsub.f32 %v229, %v425
        %v427 = vand.u32 %v426, 4294901760
        %v428 = vsub.f32 %v426, %v427
        %v429 = vand.u32 %v428, 4294901760
        %430 = vmatmul.mubr.f32.gmra.mrb[0].mxu0 %v429
        %v431 = vpop.f32.mrb[0].mxu0
        %v432 = vadd.f32 0.0, %v431
        %v433 = vpop.f32.mrb[0].mxu0
        %434 = vmatprep.mubr.f32.mxu0 0.0
        %v435 = vand.u32 %v230, 4294901760
        %v436 = vsub.f32 %v230, %v435
        %v437 = vand.u32 %v436, 4294901760
        %v438 = vsub.f32 %v436, %v437
        %v439 = vand.u32 %v438, 4294901760
        %440 = vmatmul.mubr.f32.gmra.mrb[0].mxu0 %v439
        %v441 = vpop.f32.mrb[0].mxu0
        %v442 = vadd.f32 0.0, %v441
        %v443 = vpop.f32.mrb[0].mxu0
        %444 = vmatprep.mubr.f32.mxu0 0.0
        %v445 = vand.u32 %v231, 4294901760
        %v446 = vsub.f32 %v231, %v445
        %v447 = vand.u32 %v446, 4294901760
        %v448 = vsub.f32 %v446, %v447
        %v449 = vand.u32 %v448, 4294901760
        %450 = vmatmul.mubr.f32.gmra.mrb[0].mxu0 %v449
        %v451 = vpop.f32.mrb[0].mxu0
        %v452 = vadd.f32 0.0, %v451
        %v453 = vpop.f32.mrb[0].mxu0
        %454 = vmatprep.mubr.f32.mxu0 0.0
        %v455 = vand.u32 %v232, 4294901760
        %v456 = vsub.f32 %v232, %v455
        %v457 = vand.u32 %v456, 4294901760
        %v458 = vsub.f32 %v456, %v457
        %v459 = vand.u32 %v458, 4294901760
        %460 = vmatmul.mubr.f32.gmra.mrb[0].mxu0 %v459
        %v461 = vpop.f32.mrb[0].mxu0
        %v462 = vadd.f32 0.0, %v461
        %v463 = vpop.f32.mrb[0].mxu0
        %464 = vmatprep.mubr.f32.mxu0 0.0
        %v465 = vand.u32 %v233, 4294901760
        %v466 = vsub.f32 %v233, %v465
        %v467 = vand.u32 %v466, 4294901760
        %v468 = vsub.f32 %v466, %v467
        %v469 = vand.u32 %v468, 4294901760
        %470 = vmatmul.mubr.f32.gmra.mrb[0].mxu0 %v469
        %v471 = vpop.f32.mrb[0].mxu0
        %v472 = vadd.f32 0.0, %v471
        %v473 = vpop.f32.mrb[0].mxu0
        %474 = vdwg.mxu0
        %475 = vmatprep.subr.mxu0 0.0
        %v476 = vand.u32 %v218, 4294901760
        %v477 = vsub.f32 %v218, %v476
        %v478 = vand.u32 %v477, 4294901760
        %v479 = vsub.f32 %v477, %v478
        %v480 = vand.u32 %v479, 4294901760
        %481 = vmatpush1.xpose.msra.mxu0 %v480
        %482 = vmatprep.subr.mxu0 0.0
        %v483 = vand.u32 %v219, 4294901760
        %v484 = vsub.f32 %v219, %v483
        %v485 = vand.u32 %v484, 4294901760
        %v486 = vsub.f32 %v484, %v485
        %v487 = vand.u32 %v486, 4294901760
        %488 = vmatpush1.xpose.msra.mxu0 %v487
        %489 = vmatprep.subr.mxu0 0.0
        %v490 = vand.u32 %v220, 4294901760
        %v491 = vsub.f32 %v220, %v490
        %v492 = vand.u32 %v491, 4294901760
        %v493 = vsub.f32 %v491, %v492
        %v494 = vand.u32 %v493, 4294901760
        %495 = vmatpush1.xpose.msra.mxu0 %v494
        %496 = vmatprep.subr.mxu0 0.0
        %v497 = vand.u32 %v221, 4294901760
        %v498 = vsub.f32 %v221, %v497
        %v499 = vand.u32 %v498, 4294901760
        %v500 = vsub.f32 %v498, %v499
        %v501 = vand.u32 %v500, 4294901760
        %502 = vmatpush1.xpose.msra.mxu0 %v501
        %503 = vmatprep.subr.mxu0 0.0
        %v504 = vand.u32 %v222, 4294901760
        %v505 = vsub.f32 %v222, %v504
        %v506 = vand.u32 %v505, 4294901760
        %v507 = vsub.f32 %v505, %v506
        %v508 = vand.u32 %v507, 4294901760
        %509 = vmatpush1.xpose.msra.mxu0 %v508
        %510 = vmatprep.subr.mxu0 0.0
        %v511 = vand.u32 %v223, 4294901760
        %v512 = vsub.f32 %v223, %v511
        %v513 = vand.u32 %v512, 4294901760
        %v514 = vsub.f32 %v512, %v513
        %v515 = vand.u32 %v514, 4294901760
        %516 = vmatpush1.xpose.msra.mxu0 %v515
        %517 = vmatprep.subr.mxu0 0.0
        %v518 = vand.u32 %v224, 4294901760
        %v519 = vsub.f32 %v224, %v518
        %v520 = vand.u32 %v519, 4294901760
        %v521 = vsub.f32 %v519, %v520
        %v522 = vand.u32 %v521, 4294901760
        %523 = vmatpush1.xpose.msra.mxu0 %v522
        %524 = vmatprep.subr.mxu0 0.0
        %v525 = vand.u32 %v225, 4294901760
        %v526 = vsub.f32 %v225, %v525
        %v527 = vand.u32 %v526, 4294901760
        %v528 = vsub.f32 %v526, %v527
        %v529 = vand.u32 %v528, 4294901760
        %530 = vmatpush1.xpose.msra.mxu0 %v529
        %531 = vmatprep.subr.mxu0 0.0
        %v532 = vand.u32 %v226, 4294901760
        %v533 = vsub.f32 %v226, %v532
        %v534 = vand.u32 %v533, 4294901760
        %v535 = vsub.f32 %v533, %v534
        %v536 = vand.u32 %v535, 4294901760
        %537 = vmatpush1.xpose.msra.mxu0 %v536
        %538 = vmatprep.subr.mxu0 0.0
        %v539 = vand.u32 %v227, 4294901760
        %v540 = vsub.f32 %v227, %v539
        %v541 = vand.u32 %v540, 4294901760
        %v542 = vsub.f32 %v540, %v541
        %v543 = vand.u32 %v542, 4294901760
        %544 = vmatpush1.xpose.msra.mxu0 %v543
        %545 = vmatprep.subr.mxu0 0.0
        %v546 = vand.u32 %v228, 4294901760
        %v547 = vsub.f32 %v228, %v546
        %v548 = vand.u32 %v547, 4294901760
        %v549 = vsub.f32 %v547, %v548
        %v550 = vand.u32 %v549, 4294901760
        %551 = vmatpush1.xpose.msra.mxu0 %v550
        %552 = vmatprep.subr.mxu0 0.0
        %v553 = vand.u32 %v229, 4294901760
        %v554 = vsub.f32 %v229, %v553
        %v555 = vand.u32 %v554, 4294901760
        %v556 = vsub.f32 %v554, %v555
        %v557 = vand.u32 %v556, 4294901760
        %558 = vmatpush1.xpose.msra.mxu0 %v557
        %559 = vmatprep.subr.mxu0 0.0
        %v560 = vand.u32 %v230, 4294901760
        %v561 = vsub.f32 %v230, %v560
        %v562 = vand.u32 %v561, 4294901760
        %v563 = vsub.f32 %v561, %v562
        %v564 = vand.u32 %v563, 4294901760
        %565 = vmatpush1.xpose.msra.mxu0 %v564
        %566 = vmatprep.subr.mxu0 0.0
        %v567 = vand.u32 %v231, 4294901760
        %v568 = vsub.f32 %v231, %v567
        %v569 = vand.u32 %v568, 4294901760
        %v570 = vsub.f32 %v568, %v569
        %v571 = vand.u32 %v570, 4294901760
        %572 = vmatpush1.xpose.msra.mxu0 %v571
        %573 = vmatprep.subr.mxu0 0.0
        %v574 = vand.u32 %v232, 4294901760
        %v575 = vsub.f32 %v232, %v574
        %v576 = vand.u32 %v575, 4294901760
        %v577 = vsub.f32 %v575, %v576
        %v578 = vand.u32 %v577, 4294901760
        %579 = vmatpush1.xpose.msra.mxu0 %v578
        %580 = vmatprep.subr.mxu0 0.0
        %v581 = vand.u32 %v233, 4294901760
        %v582 = vsub.f32 %v233, %v581
        %v583 = vand.u32 %v582, 4294901760
        %v584 = vsub.f32 %v582, %v583
        %v585 = vand.u32 %v584, 4294901760
        %586 = vmatpush1.xpose.msra.mxu0 %v585
        %587 = vmatprep.subr.mxu0 0.0
        %588 = vmatpush1.xpose.msra.mxu0 0.0
        %589 = vmatprep.subr.mxu0 0.0
        %590 = vmatpush1.xpose.msra.mxu0 0.0
        %591 = vmatprep.subr.mxu0 0.0
        %592 = vmatpush1.xpose.msra.mxu0 0.0
        %593 = vmatprep.subr.mxu0 0.0
        %594 = vmatpush1.xpose.msra.mxu0 0.0
        %595 = vmatprep.subr.mxu0 0.0
        %596 = vmatpush1.xpose.msra.mxu0 0.0
        %597 = vmatprep.subr.mxu0 0.0
        %598 = vmatpush1.xpose.msra.mxu0 0.0
        %599 = vmatprep.subr.mxu0 0.0
        %600 = vmatpush1.xpose.msra.mxu0 0.0
        %601 = vmatprep.subr.mxu0 0.0
        %602 = vmatpush1.xpose.msra.mxu0 0.0
        %603 = vmatprep.subr.mxu0 0.0
        %604 = vmatpush1.xpose.msra.mxu0 0.0
        %605 = vmatprep.subr.mxu0 0.0
        %606 = vmatpush1.xpose.msra.mxu0 0.0
        %607 = vmatprep.subr.mxu0 0.0
        %608 = vmatpush1.xpose.msra.mxu0 0.0
        %609 = vmatprep.subr.mxu0 0.0
        %610 = vmatpush1.xpose.msra.mxu0 0.0
        %611 = vmatprep.subr.mxu0 0.0
        %612 = vmatpush1.xpose.msra.mxu0 0.0
        %613 = vmatprep.subr.mxu0 0.0
        %614 = vmatpush1.xpose.msra.mxu0 0.0
        %615 = vmatprep.subr.mxu0 0.0
        %616 = vmatpush1.xpose.msra.mxu0 0.0
        %617 = vmatprep.subr.mxu0 0.0
        %618 = vmatpush1.xpose.msra.mxu0 0.0
        %619 = vmatprep.mubr.f32.mxu0 0.0
        %v620 = vand.u32 %v218, 4294901760
        %621 = vmatmul.mubr.f32.gmra.mrb[0].mxu0 %v620
        %v622 = vpop.f32.mrb[0].mxu0
        %v623 = vadd.f32 %v322, %v622
        %v624 = vpop.f32.mrb[0].mxu0
        %625 = vmatprep.mubr.f32.mxu0 0.0
        %v626 = vand.u32 %v219, 4294901760
        %627 = vmatmul.mubr.f32.gmra.mrb[0].mxu0 %v626
        %v628 = vpop.f32.mrb[0].mxu0
        %v629 = vadd.f32 %v332, %v628
        %v630 = vpop.f32.mrb[0].mxu0
        %631 = vmatprep.mubr.f32.mxu0 0.0
        %v632 = vand.u32 %v220, 4294901760
        %633 = vmatmul.mubr.f32.gmra.mrb[0].mxu0 %v632
        %v634 = vpop.f32.mrb[0].mxu0
        %v635 = vadd.f32 %v342, %v634
        %v636 = vpop.f32.mrb[0].mxu0
        %637 = vmatprep.mubr.f32.mxu0 0.0
        %v638 = vand.u32 %v221, 4294901760
        %639 = vmatmul.mubr.f32.gmra.mrb[0].mxu0 %v638
        %v640 = vpop.f32.mrb[0].mxu0
        %v641 = vadd.f32 %v352, %v640
        %v642 = vpop.f32.mrb[0].mxu0
        %643 = vmatprep.mubr.f32.mxu0 0.0
        %v644 = vand.u32 %v222, 4294901760
        %645 = vmatmul.mubr.f32.gmra.mrb[0].mxu0 %v644
        %v646 = vpop.f32.mrb[0].mxu0
        %v647 = vadd.f32 %v362, %v646
        %v648 = vpop.f32.mrb[0].mxu0
        %649 = vmatprep.mubr.f32.mxu0 0.0
        %v650 = vand.u32 %v223, 4294901760
        %651 = vmatmul.mubr.f32.gmra.mrb[0].mxu0 %v650
        %v652 = vpop.f32.mrb[0].mxu0
        %v653 = vadd.f32 %v372, %v652
        %v654 = vpop.f32.mrb[0].mxu0
        %655 = vmatprep.mubr.f32.mxu0 0.0
        %v656 = vand.u32 %v224, 4294901760
        %657 = vmatmul.mubr.f32.gmra.mrb[0].mxu0 %v656
        %v658 = vpop.f32.mrb[0].mxu0
        %v659 = vadd.f32 %v382, %v658
        %v660 = vpop.f32.mrb[0].mxu0
        %661 = vmatprep.mubr.f32.mxu0 0.0
        %v662 = vand.u32 %v225, 4294901760
        %663 = vmatmul.mubr.f32.gmra.mrb[0].mxu0 %v662
        %v664 = vpop.f32.mrb[0].mxu0
        %v665 = vadd.f32 %v392, %v664
        %v666 = vpop.f32.mrb[0].mxu0
        %667 = vmatprep.mubr.f32.mxu0 0.0
        %v668 = vand.u32 %v226, 4294901760
        %669 = vmatmul.mubr.f32.gmra.mrb[0].mxu0 %v668
        %v670 = vpop.f32.mrb[0].mxu0
        %v671 = vadd.f32 %v402, %v670
        %v672 = vpop.f32.mrb[0].mxu0
        %673 = vmatprep.mubr.f32.mxu0 0.0
        %v674 = vand.u32 %v227, 4294901760
        %675 = vmatmul.mubr.f32.gmra.mrb[0].mxu0 %v674
        %v676 = vpop.f32.mrb[0].mxu0
        %v677 = vadd.f32 %v412, %v676
        %v678 = vpop.f32.mrb[0].mxu0
        %679 = vmatprep.mubr.f32.mxu0 0.0
        %v680 = vand.u32 %v228, 4294901760
        %681 = vmatmul.mubr.f32.gmra.mrb[0].mxu0 %v680
        %v682 = vpop.f32.mrb[0].mxu0
        %v683 = vadd.f32 %v422, %v682
        %v684 = vpop.f32.mrb[0].mxu0
        %685 = vmatprep.mubr.f32.mxu0 0.0
        %v686 = vand.u32 %v229, 4294901760
        %687 = vmatmul.mubr.f32.gmra.mrb[0].mxu0 %v686
        %v688 = vpop.f32.mrb[0].mxu0
        %v689 = vadd.f32 %v432, %v688
        %v690 = vpop.f32.mrb[0].mxu0
        %691 = vmatprep.mubr.f32.mxu0 0.0
        %v692 = vand.u32 %v230, 4294901760
        %693 = vmatmul.mubr.f32.gmra.mrb[0].mxu0 %v692
        %v694 = vpop.f32.mrb[0].mxu0
        %v695 = vadd.f32 %v442, %v694
        %v696 = vpop.f32.mrb[0].mxu0
        %697 = vmatprep.mubr.f32.mxu0 0.0
        %v698 = vand.u32 %v231, 4294901760
        %699 = vmatmul.mubr.f32.gmra.mrb[0].mxu0 %v698
        %v700 = vpop.f32.mrb[0].mxu0
        %v701 = vadd.f32 %v452, %v700
        %v702 = vpop.f32.mrb[0].mxu0
        %703 = vmatprep.mubr.f32.mxu0 0.0
        %v704 = vand.u32 %v232, 4294901760
        %705 = vmatmul.mubr.f32.gmra.mrb[0].mxu0 %v704
        %v706 = vpop.f32.mrb[0].mxu0
        %v707 = vadd.f32 %v462, %v706
        %v708 = vpop.f32.mrb[0].mxu0
        %709 = vmatprep.mubr.f32.mxu0 0.0
        %v710 = vand.u32 %v233, 4294901760
        %711 = vmatmul.mubr.f32.gmra.mrb[0].mxu0 %v710
        %v712 = vpop.f32.mrb[0].mxu0
        %v713 = vadd.f32 %v472, %v712
        %v714 = vpop.f32.mrb[0].mxu0
        %715 = vdwg.mxu0
        %716 = vmatprep.subr.mxu0 0.0
        %v717 = vand.u32 %v218, 4294901760
        %v718 = vsub.f32 %v218, %v717
        %719 = vmatpush1.xpose.msra.mxu0 %v718
        %720 = vmatprep.subr.mxu0 0.0
        %v721 = vand.u32 %v219, 4294901760
        %v722 = vsub.f32 %v219, %v721
        %723 = vmatpush1.xpose.msra.mxu0 %v722
        %724 = vmatprep.subr.mxu0 0.0
        %v725 = vand.u32 %v220, 4294901760
        %v726 = vsub.f32 %v220, %v725
        %727 = vmatpush1.xpose.msra.mxu0 %v726
        %728 = vmatprep.subr.mxu0 0.0
        %v729 = vand.u32 %v221, 4294901760
        %v730 = vsub.f32 %v221, %v729
        %731 = vmatpush1.xpose.msra.mxu0 %v730
        %732 = vmatprep.subr.mxu0 0.0
        %v733 = vand.u32 %v222, 4294901760
        %v734 = vsub.f32 %v222, %v733
        %735 = vmatpush1.xpose.msra.mxu0 %v734
        %736 = vmatprep.subr.mxu0 0.0
        %v737 = vand.u32 %v223, 4294901760
        %v738 = vsub.f32 %v223, %v737
        %739 = vmatpush1.xpose.msra.mxu0 %v738
        %740 = vmatprep.subr.mxu0 0.0
        %v741 = vand.u32 %v224, 4294901760
        %v742 = vsub.f32 %v224, %v741
        %743 = vmatpush1.xpose.msra.mxu0 %v742
        %744 = vmatprep.subr.mxu0 0.0
        %v745 = vand.u32 %v225, 4294901760
        %v746 = vsub.f32 %v225, %v745
        %747 = vmatpush1.xpose.msra.mxu0 %v746
        %748 = vmatprep.subr.mxu0 0.0
        %v749 = vand.u32 %v226, 4294901760
        %v750 = vsub.f32 %v226, %v749
        %751 = vmatpush1.xpose.msra.mxu0 %v750
        %752 = vmatprep.subr.mxu0 0.0
        %v753 = vand.u32 %v227, 4294901760
        %v754 = vsub.f32 %v227, %v753
        %755 = vmatpush1.xpose.msra.mxu0 %v754
        %756 = vmatprep.subr.mxu0 0.0
        %v757 = vand.u32 %v228, 4294901760
        %v758 = vsub.f32 %v228, %v757
        %759 = vmatpush1.xpose.msra.mxu0 %v758
        %760 = vmatprep.subr.mxu0 0.0
        %v761 = vand.u32 %v229, 4294901760
        %v762 = vsub.f32 %v229, %v761
        %763 = vmatpush1.xpose.msra.mxu0 %v762
        %764 = vmatprep.subr.mxu0 0.0
        %v765 = vand.u32 %v230, 4294901760
        %v766 = vsub.f32 %v230, %v765
        %767 = vmatpush1.xpose.msra.mxu0 %v766
        %768 = vmatprep.subr.mxu0 0.0
        %v769 = vand.u32 %v231, 4294901760
        %v770 = vsub.f32 %v231, %v769
        %771 = vmatpush1.xpose.msra.mxu0 %v770
        %772 = vmatprep.subr.mxu0 0.0
        %v773 = vand.u32 %v232, 4294901760
        %v774 = vsub.f32 %v232, %v773
        %775 = vmatpush1.xpose.msra.mxu0 %v774
        %776 = vmatprep.subr.mxu0 0.0
        %v777 = vand.u32 %v233, 4294901760
        %v778 = vsub.f32 %v233, %v777
        %779 = vmatpush1.xpose.msra.mxu0 %v778
        %780 = vmatprep.subr.mxu0 0.0
        %781 = vmatpush1.xpose.msra.mxu0 0.0
        %782 = vmatprep.subr.mxu0 0.0
        %783 = vmatpush1.xpose.msra.mxu0 0.0
        %784 = vmatprep.subr.mxu0 0.0
        %785 = vmatpush1.xpose.msra.mxu0 0.0
        %786 = vmatprep.subr.mxu0 0.0
        %787 = vmatpush1.xpose.msra.mxu0 0.0
        %788 = vmatprep.subr.mxu0 0.0
        %789 = vmatpush1.xpose.msra.mxu0 0.0
        %790 = vmatprep.subr.mxu0 0.0
        %791 = vmatpush1.xpose.msra.mxu0 0.0
        %792 = vmatprep.subr.mxu0 0.0
        %793 = vmatpush1.xpose.msra.mxu0 0.0
        %794 = vmatprep.subr.mxu0 0.0
        %795 = vmatpush1.xpose.msra.mxu0 0.0
        %796 = vmatprep.subr.mxu0 0.0
        %797 = vmatpush1.xpose.msra.mxu0 0.0
        %798 = vmatprep.subr.mxu0 0.0
        %799 = vmatpush1.xpose.msra.mxu0 0.0
        %800 = vmatprep.subr.mxu0 0.0
        %801 = vmatpush1.xpose.msra.mxu0 0.0
        %802 = vmatprep.subr.mxu0 0.0
        %803 = vmatpush1.xpose.msra.mxu0 0.0
        %804 = vmatprep.subr.mxu0 0.0
        %805 = vmatpush1.xpose.msra.mxu0 0.0
        %806 = vmatprep.subr.mxu0 0.0
        %807 = vmatpush1.xpose.msra.mxu0 0.0
        %808 = vmatprep.subr.mxu0 0.0
        %809 = vmatpush1.xpose.msra.mxu0 0.0
        %810 = vmatprep.subr.mxu0 0.0
        %811 = vmatpush1.xpose.msra.mxu0 0.0
        %812 = vmatprep.mubr.f32.mxu0 0.0
        %v813 = vand.u32 %v218, 4294901760
        %v814 = vsub.f32 %v218, %v813
        %815 = vmatmul.mubr.f32.gmra.mrb[0].mxu0 %v814
        %v816 = vpop.f32.mrb[0].mxu0
        %v817 = vadd.f32 %v623, %v816
        %v818 = vpop.f32.mrb[0].mxu0
        %819 = vmatprep.mubr.f32.mxu0 0.0
        %v820 = vand.u32 %v219, 4294901760
        %v821 = vsub.f32 %v219, %v820
        %822 = vmatmul.mubr.f32.gmra.mrb[0].mxu0 %v821
        %v823 = vpop.f32.mrb[0].mxu0
        %v824 = vadd.f32 %v629, %v823
        %v825 = vpop.f32.mrb[0].mxu0
        %826 = vmatprep.mubr.f32.mxu0 0.0
        %v827 = vand.u32 %v220, 4294901760
        %v828 = vsub.f32 %v220, %v827
        %829 = vmatmul.mubr.f32.gmra.mrb[0].mxu0 %v828
        %v830 = vpop.f32.mrb[0].mxu0
        %v831 = vadd.f32 %v635, %v830
        %v832 = vpop.f32.mrb[0].mxu0
        %833 = vmatprep.mubr.f32.mxu0 0.0
        %v834 = vand.u32 %v221, 4294901760
        %v835 = vsub.f32 %v221, %v834
        %836 = vmatmul.mubr.f32.gmra.mrb[0].mxu0 %v835
        %v837 = vpop.f32.mrb[0].mxu0
        %v838 = vadd.f32 %v641, %v837
        %v839 = vpop.f32.mrb[0].mxu0
        %840 = vmatprep.mubr.f32.mxu0 0.0
        %v841 = vand.u32 %v222, 4294901760
        %v842 = vsub.f32 %v222, %v841
        %843 = vmatmul.mubr.f32.gmra.mrb[0].mxu0 %v842
        %v844 = vpop.f32.mrb[0].mxu0
        %v845 = vadd.f32 %v647, %v844
        %v846 = vpop.f32.mrb[0].mxu0
        %847 = vmatprep.mubr.f32.mxu0 0.0
        %v848 = vand.u32 %v223, 4294901760
        %v849 = vsub.f32 %v223, %v848
        %850 = vmatmul.mubr.f32.gmra.mrb[0].mxu0 %v849
        %v851 = vpop.f32.mrb[0].mxu0
        %v852 = vadd.f32 %v653, %v851
        %v853 = vpop.f32.mrb[0].mxu0
        %854 = vmatprep.mubr.f32.mxu0 0.0
        %v855 = vand.u32 %v224, 4294901760
        %v856 = vsub.f32 %v224, %v855
        %857 = vmatmul.mubr.f32.gmra.mrb[0].mxu0 %v856
        %v858 = vpop.f32.mrb[0].mxu0
        %v859 = vadd.f32 %v659, %v858
        %v860 = vpop.f32.mrb[0].mxu0
        %861 = vmatprep.mubr.f32.mxu0 0.0
        %v862 = vand.u32 %v225, 4294901760
        %v863 = vsub.f32 %v225, %v862
        %864 = vmatmul.mubr.f32.gmra.mrb[0].mxu0 %v863
        %v865 = vpop.f32.mrb[0].mxu0
        %v866 = vadd.f32 %v665, %v865
        %v867 = vpop.f32.mrb[0].mxu0
        %868 = vmatprep.mubr.f32.mxu0 0.0
        %v869 = vand.u32 %v226, 4294901760
        %v870 = vsub.f32 %v226, %v869
        %871 = vmatmul.mubr.f32.gmra.mrb[0].mxu0 %v870
        %v872 = vpop.f32.mrb[0].mxu0
        %v873 = vadd.f32 %v671, %v872
        %v874 = vpop.f32.mrb[0].mxu0
        %875 = vmatprep.mubr.f32.mxu0 0.0
        %v876 = vand.u32 %v227, 4294901760
        %v877 = vsub.f32 %v227, %v876
        %878 = vmatmul.mubr.f32.gmra.mrb[0].mxu0 %v877
        %v879 = vpop.f32.mrb[0].mxu0
        %v880 = vadd.f32 %v677, %v879
        %v881 = vpop.f32.mrb[0].mxu0
        %882 = vmatprep.mubr.f32.mxu0 0.0
        %v883 = vand.u32 %v228, 4294901760
        %v884 = vsub.f32 %v228, %v883
        %885 = vmatmul.mubr.f32.gmra.mrb[0].mxu0 %v884
        %v886 = vpop.f32.mrb[0].mxu0
        %v887 = vadd.f32 %v683, %v886
        %v888 = vpop.f32.mrb[0].mxu0
        %889 = vmatprep.mubr.f32.mxu0 0.0
        %v890 = vand.u32 %v229, 4294901760
        %v891 = vsub.f32 %v229, %v890
        %892 = vmatmul.mubr.f32.gmra.mrb[0].mxu0 %v891
        %v893 = vpop.f32.mrb[0].mxu0
        %v894 = vadd.f32 %v689, %v893
        %v895 = vpop.f32.mrb[0].mxu0
        %896 = vmatprep.mubr.f32.mxu0 0.0
        %v897 = vand.u32 %v230, 4294901760
        %v898 = vsub.f32 %v230, %v897
        %899 = vmatmul.mubr.f32.gmra.mrb[0].mxu0 %v898
        %v900 = vpop.f32.mrb[0].mxu0
        %v901 = vadd.f32 %v695, %v900
        %v902 = vpop.f32.mrb[0].mxu0
        %903 = vmatprep.mubr.f32.mxu0 0.0
        %v904 = vand.u32 %v231, 4294901760
        %v905 = vsub.f32 %v231, %v904
        %906 = vmatmul.mubr.f32.gmra.mrb[0].mxu0 %v905
        %v907 = vpop.f32.mrb[0].mxu0
        %v908 = vadd.f32 %v701, %v907
        %v909 = vpop.f32.mrb[0].mxu0
        %910 = vmatprep.mubr.f32.mxu0 0.0
        %v911 = vand.u32 %v232, 4294901760
        %v912 = vsub.f32 %v232, %v911
        %913 = vmatmul.mubr.f32.gmra.mrb[0].mxu0 %v912
        %v914 = vpop.f32.mrb[0].mxu0
        %v915 = vadd.f32 %v707, %v914
        %v916 = vpop.f32.mrb[0].mxu0
        %917 = vmatprep.mubr.f32.mxu0 0.0
        %v918 = vand.u32 %v233, 4294901760
        %v919 = vsub.f32 %v233, %v918
        %920 = vmatmul.mubr.f32.gmra.mrb[0].mxu0 %v919
        %v921 = vpop.f32.mrb[0].mxu0
        %v922 = vadd.f32 %v713, %v921
        %v923 = vpop.f32.mrb[0].mxu0
        %924 = vdwg.mxu0
        %925 = vmatprep.subr.mxu0 0.0
        %v926 = vand.u32 %v218, 4294901760
        %927 = vmatpush1.xpose.msra.mxu0 %v926
        %928 = vmatprep.subr.mxu0 0.0
        %v929 = vand.u32 %v219, 4294901760
        %930 = vmatpush1.xpose.msra.mxu0 %v929
        %931 = vmatprep.subr.mxu0 0.0
        %v932 = vand.u32 %v220, 4294901760
        %933 = vmatpush1.xpose.msra.mxu0 %v932
        %934 = vmatprep.subr.mxu0 0.0
        %v935 = vand.u32 %v221, 4294901760
        %936 = vmatpush1.xpose.msra.mxu0 %v935
        %937 = vmatprep.subr.mxu0 0.0
        %v938 = vand.u32 %v222, 4294901760
        %939 = vmatpush1.xpose.msra.mxu0 %v938
        %940 = vmatprep.subr.mxu0 0.0
        %v941 = vand.u32 %v223, 4294901760
        %942 = vmatpush1.xpose.msra.mxu0 %v941
        %943 = vmatprep.subr.mxu0 0.0
        %v944 = vand.u32 %v224, 4294901760
        %945 = vmatpush1.xpose.msra.mxu0 %v944
        %946 = vmatprep.subr.mxu0 0.0
        %v947 = vand.u32 %v225, 4294901760
        %948 = vmatpush1.xpose.msra.mxu0 %v947
        %949 = vmatprep.subr.mxu0 0.0
        %v950 = vand.u32 %v226, 4294901760
        %951 = vmatpush1.xpose.msra.mxu0 %v950
        %952 = vmatprep.subr.mxu0 0.0
        %v953 = vand.u32 %v227, 4294901760
        %954 = vmatpush1.xpose.msra.mxu0 %v953
        %955 = vmatprep.subr.mxu0 0.0
        %v956 = vand.u32 %v228, 4294901760
        %957 = vmatpush1.xpose.msra.mxu0 %v956
        %958 = vmatprep.subr.mxu0 0.0
        %v959 = vand.u32 %v229, 4294901760
        %960 = vmatpush1.xpose.msra.mxu0 %v959
        %961 = vmatprep.subr.mxu0 0.0
        %v962 = vand.u32 %v230, 4294901760
        %963 = vmatpush1.xpose.msra.mxu0 %v962
        %964 = vmatprep.subr.mxu0 0.0
        %v965 = vand.u32 %v231, 4294901760
        %966 = vmatpush1.xpose.msra.mxu0 %v965
        %967 = vmatprep.subr.mxu0 0.0
        %v968 = vand.u32 %v232, 4294901760
        %969 = vmatpush1.xpose.msra.mxu0 %v968
        %970 = vmatprep.subr.mxu0 0.0
        %v971 = vand.u32 %v233, 4294901760
        %972 = vmatpush1.xpose.msra.mxu0 %v971
        %973 = vmatprep.subr.mxu0 0.0
        %974 = vmatpush1.xpose.msra.mxu0 0.0
        %975 = vmatprep.subr.mxu0 0.0
        %976 = vmatpush1.xpose.msra.mxu0 0.0
        %977 = vmatprep.subr.mxu0 0.0
        %978 = vmatpush1.xpose.msra.mxu0 0.0
        %979 = vmatprep.subr.mxu0 0.0
        %980 = vmatpush1.xpose.msra.mxu0 0.0
        %981 = vmatprep.subr.mxu0 0.0
        %982 = vmatpush1.xpose.msra.mxu0 0.0
        %983 = vmatprep.subr.mxu0 0.0
        %984 = vmatpush1.xpose.msra.mxu0 0.0
        %985 = vmatprep.subr.mxu0 0.0
        %986 = vmatpush1.xpose.msra.mxu0 0.0
        %987 = vmatprep.subr.mxu0 0.0
        %988 = vmatpush1.xpose.msra.mxu0 0.0
        %989 = vmatprep.subr.mxu0 0.0
        %990 = vmatpush1.xpose.msra.mxu0 0.0
        %991 = vmatprep.subr.mxu0 0.0
        %992 = vmatpush1.xpose.msra.mxu0 0.0
        %993 = vmatprep.subr.mxu0 0.0
        %994 = vmatpush1.xpose.msra.mxu0 0.0
        %995 = vmatprep.subr.mxu0 0.0
        %996 = vmatpush1.xpose.msra.mxu0 0.0
        %997 = vmatprep.subr.mxu0 0.0
        %998 = vmatpush1.xpose.msra.mxu0 0.0
        %999 = vmatprep.subr.mxu0 0.0
        %1000 = vmatpush1.xpose.msra.mxu0 0.0
        %1001 = vmatprep.subr.mxu0 0.0
        %1002 = vmatpush1.xpose.msra.mxu0 0.0
        %1003 = vmatprep.subr.mxu0 0.0
        %1004 = vmatpush1.xpose.msra.mxu0 0.0
        %1005 = vmatprep.mubr.f32.mxu0 0.0
        %v1006 = vand.u32 %v218, 4294901760
        %v1007 = vsub.f32 %v218, %v1006
        %v1008 = vand.u32 %v1007, 4294901760
        %1009 = vmatmul.mubr.f32.gmra.mrb[0].mxu0 %v1008
        %v1010 = vpop.f32.mrb[0].mxu0
        %v1011 = vadd.f32 %v817, %v1010
        %v1012 = vpop.f32.mrb[0].mxu0
        %1013 = vmatprep.mubr.f32.mxu0 0.0
        %v1014 = vand.u32 %v219, 4294901760
        %v1015 = vsub.f32 %v219, %v1014
        %v1016 = vand.u32 %v1015, 4294901760
        %1017 = vmatmul.mubr.f32.gmra.mrb[0].mxu0 %v1016
        %v1018 = vpop.f32.mrb[0].mxu0
        %v1019 = vadd.f32 %v824, %v1018
        %v1020 = vpop.f32.mrb[0].mxu0
        %1021 = vmatprep.mubr.f32.mxu0 0.0
        %v1022 = vand.u32 %v220, 4294901760
        %v1023 = vsub.f32 %v220, %v1022
        %v1024 = vand.u32 %v1023, 4294901760
        %1025 = vmatmul.mubr.f32.gmra.mrb[0].mxu0 %v1024
        %v1026 = vpop.f32.mrb[0].mxu0
        %v1027 = vadd.f32 %v831, %v1026
        %v1028 = vpop.f32.mrb[0].mxu0
        %1029 = vmatprep.mubr.f32.mxu0 0.0
        %v1030 = vand.u32 %v221, 4294901760
        %v1031 = vsub.f32 %v221, %v1030
        %v1032 = vand.u32 %v1031, 4294901760
        %1033 = vmatmul.mubr.f32.gmra.mrb[0].mxu0 %v1032
        %v1034 = vpop.f32.mrb[0].mxu0
        %v1035 = vadd.f32 %v838, %v1034
        %v1036 = vpop.f32.mrb[0].mxu0
        %1037 = vmatprep.mubr.f32.mxu0 0.0
        %v1038 = vand.u32 %v222, 4294901760
        %v1039 = vsub.f32 %v222, %v1038
        %v1040 = vand.u32 %v1039, 4294901760
        %1041 = vmatmul.mubr.f32.gmra.mrb[0].mxu0 %v1040
        %v1042 = vpop.f32.mrb[0].mxu0
        %v1043 = vadd.f32 %v845, %v1042
        %v1044 = vpop.f32.mrb[0].mxu0
        %1045 = vmatprep.mubr.f32.mxu0 0.0
        %v1046 = vand.u32 %v223, 4294901760
        %v1047 = vsub.f32 %v223, %v1046
        %v1048 = vand.u32 %v1047, 4294901760
        %1049 = vmatmul.mubr.f32.gmra.mrb[0].mxu0 %v1048
        %v1050 = vpop.f32.mrb[0].mxu0
        %v1051 = vadd.f32 %v852, %v1050
        %v1052 = vpop.f32.mrb[0].mxu0
        %1053 = vmatprep.mubr.f32.mxu0 0.0
        %v1054 = vand.u32 %v224, 4294901760
        %v1055 = vsub.f32 %v224, %v1054
        %v1056 = vand.u32 %v1055, 4294901760
        %1057 = vmatmul.mubr.f32.gmra.mrb[0].mxu0 %v1056
        %v1058 = vpop.f32.mrb[0].mxu0
        %v1059 = vadd.f32 %v859, %v1058
        %v1060 = vpop.f32.mrb[0].mxu0
        %1061 = vmatprep.mubr.f32.mxu0 0.0
        %v1062 = vand.u32 %v225, 4294901760
        %v1063 = vsub.f32 %v225, %v1062
        %v1064 = vand.u32 %v1063, 4294901760
        %1065 = vmatmul.mubr.f32.gmra.mrb[0].mxu0 %v1064
        %v1066 = vpop.f32.mrb[0].mxu0
        %v1067 = vadd.f32 %v866, %v1066
        %v1068 = vpop.f32.mrb[0].mxu0
        %1069 = vmatprep.mubr.f32.mxu0 0.0
        %v1070 = vand.u32 %v226, 4294901760
        %v1071 = vsub.f32 %v226, %v1070
        %v1072 = vand.u32 %v1071, 4294901760
        %1073 = vmatmul.mubr.f32.gmra.mrb[0].mxu0 %v1072
        %v1074 = vpop.f32.mrb[0].mxu0
        %v1075 = vadd.f32 %v873, %v1074
        %v1076 = vpop.f32.mrb[0].mxu0
        %1077 = vmatprep.mubr.f32.mxu0 0.0
        %v1078 = vand.u32 %v227, 4294901760
        %v1079 = vsub.f32 %v227, %v1078
        %v1080 = vand.u32 %v1079, 4294901760
        %1081 = vmatmul.mubr.f32.gmra.mrb[0].mxu0 %v1080
        %v1082 = vpop.f32.mrb[0].mxu0
        %v1083 = vadd.f32 %v880, %v1082
        %v1084 = vpop.f32.mrb[0].mxu0
        %1085 = vmatprep.mubr.f32.mxu0 0.0
        %v1086 = vand.u32 %v228, 4294901760
        %v1087 = vsub.f32 %v228, %v1086
        %v1088 = vand.u32 %v1087, 4294901760
        %1089 = vmatmul.mubr.f32.gmra.mrb[0].mxu0 %v1088
        %v1090 = vpop.f32.mrb[0].mxu0
        %v1091 = vadd.f32 %v887, %v1090
        %v1092 = vpop.f32.mrb[0].mxu0
        %1093 = vmatprep.mubr.f32.mxu0 0.0
        %v1094 = vand.u32 %v229, 4294901760
        %v1095 = vsub.f32 %v229, %v1094
        %v1096 = vand.u32 %v1095, 4294901760
        %1097 = vmatmul.mubr.f32.gmra.mrb[0].mxu0 %v1096
        %v1098 = vpop.f32.mrb[0].mxu0
        %v1099 = vadd.f32 %v894, %v1098
        %v1100 = vpop.f32.mrb[0].mxu0
        %1101 = vmatprep.mubr.f32.mxu0 0.0
        %v1102 = vand.u32 %v230, 4294901760
        %v1103 = vsub.f32 %v230, %v1102
        %v1104 = vand.u32 %v1103, 4294901760
        %1105 = vmatmul.mubr.f32.gmra.mrb[0].mxu0 %v1104
        %v1106 = vpop.f32.mrb[0].mxu0
        %v1107 = vadd.f32 %v901, %v1106
        %v1108 = vpop.f32.mrb[0].mxu0
        %1109 = vmatprep.mubr.f32.mxu0 0.0
        %v1110 = vand.u32 %v231, 4294901760
        %v1111 = vsub.f32 %v231, %v1110
        %v1112 = vand.u32 %v1111, 4294901760
        %1113 = vmatmul.mubr.f32.gmra.mrb[0].mxu0 %v1112
        %v1114 = vpop.f32.mrb[0].mxu0
        %v1115 = vadd.f32 %v908, %v1114
        %v1116 = vpop.f32.mrb[0].mxu0
        %1117 = vmatprep.mubr.f32.mxu0 0.0
        %v1118 = vand.u32 %v232, 4294901760
        %v1119 = vsub.f32 %v232, %v1118
        %v1120 = vand.u32 %v1119, 4294901760
        %1121 = vmatmul.mubr.f32.gmra.mrb[0].mxu0 %v1120
        %v1122 = vpop.f32.mrb[0].mxu0
        %v1123 = vadd.f32 %v915, %v1122
        %v1124 = vpop.f32.mrb[0].mxu0
        %1125 = vmatprep.mubr.f32.mxu0 0.0
        %v1126 = vand.u32 %v233, 4294901760
        %v1127 = vsub.f32 %v233, %v1126
        %v1128 = vand.u32 %v1127, 4294901760
        %1129 = vmatmul.mubr.f32.gmra.mrb[0].mxu0 %v1128
        %v1130 = vpop.f32.mrb[0].mxu0
        %v1131 = vadd.f32 %v922, %v1130
        %v1132 = vpop.f32.mrb[0].mxu0
        %1133 = vdwg.mxu0
        %1134 = vmatprep.subr.mxu0 0.0
        %v1135 = vand.u32 %v218, 4294901760
        %v1136 = vsub.f32 %v218, %v1135
        %v1137 = vand.u32 %v1136, 4294901760
        %1138 = vmatpush1.xpose.msra.mxu0 %v1137
        %1139 = vmatprep.subr.mxu0 0.0
        %v1140 = vand.u32 %v219, 4294901760
        %v1141 = vsub.f32 %v219, %v1140
        %v1142 = vand.u32 %v1141, 4294901760
        %1143 = vmatpush1.xpose.msra.mxu0 %v1142
        %1144 = vmatprep.subr.mxu0 0.0
        %v1145 = vand.u32 %v220, 4294901760
        %v1146 = vsub.f32 %v220, %v1145
        %v1147 = vand.u32 %v1146, 4294901760
        %1148 = vmatpush1.xpose.msra.mxu0 %v1147
        %1149 = vmatprep.subr.mxu0 0.0
        %v1150 = vand.u32 %v221, 4294901760
        %v1151 = vsub.f32 %v221, %v1150
        %v1152 = vand.u32 %v1151, 4294901760
        %1153 = vmatpush1.xpose.msra.mxu0 %v1152
        %1154 = vmatprep.subr.mxu0 0.0
        %v1155 = vand.u32 %v222, 4294901760
        %v1156 = vsub.f32 %v222, %v1155
        %v1157 = vand.u32 %v1156, 4294901760
        %1158 = vmatpush1.xpose.msra.mxu0 %v1157
        %1159 = vmatprep.subr.mxu0 0.0
        %v1160 = vand.u32 %v223, 4294901760
        %v1161 = vsub.f32 %v223, %v1160
        %v1162 = vand.u32 %v1161, 4294901760
        %1163 = vmatpush1.xpose.msra.mxu0 %v1162
        %1164 = vmatprep.subr.mxu0 0.0
        %v1165 = vand.u32 %v224, 4294901760
        %v1166 = vsub.f32 %v224, %v1165
        %v1167 = vand.u32 %v1166, 4294901760
        %1168 = vmatpush1.xpose.msra.mxu0 %v1167
        %1169 = vmatprep.subr.mxu0 0.0
        %v1170 = vand.u32 %v225, 4294901760
        %v1171 = vsub.f32 %v225, %v1170
        %v1172 = vand.u32 %v1171, 4294901760
        %1173 = vmatpush1.xpose.msra.mxu0 %v1172
        %1174 = vmatprep.subr.mxu0 0.0
        %v1175 = vand.u32 %v226, 4294901760
        %v1176 = vsub.f32 %v226, %v1175
        %v1177 = vand.u32 %v1176, 4294901760
        %1178 = vmatpush1.xpose.msra.mxu0 %v1177
        %1179 = vmatprep.subr.mxu0 0.0
        %v1180 = vand.u32 %v227, 4294901760
        %v1181 = vsub.f32 %v227, %v1180
        %v1182 = vand.u32 %v1181, 4294901760
        %1183 = vmatpush1.xpose.msra.mxu0 %v1182
        %1184 = vmatprep.subr.mxu0 0.0
        %v1185 = vand.u32 %v228, 4294901760
        %v1186 = vsub.f32 %v228, %v1185
        %v1187 = vand.u32 %v1186, 4294901760
        %1188 = vmatpush1.xpose.msra.mxu0 %v1187
        %1189 = vmatprep.subr.mxu0 0.0
        %v1190 = vand.u32 %v229, 4294901760
        %v1191 = vsub.f32 %v229, %v1190
        %v1192 = vand.u32 %v1191, 4294901760
        %1193 = vmatpush1.xpose.msra.mxu0 %v1192
        %1194 = vmatprep.subr.mxu0 0.0
        %v1195 = vand.u32 %v230, 4294901760
        %v1196 = vsub.f32 %v230, %v1195
        %v1197 = vand.u32 %v1196, 4294901760
        %1198 = vmatpush1.xpose.msra.mxu0 %v1197
        %1199 = vmatprep.subr.mxu0 0.0
        %v1200 = vand.u32 %v231, 4294901760
        %v1201 = vsub.f32 %v231, %v1200
        %v1202 = vand.u32 %v1201, 4294901760
        %1203 = vmatpush1.xpose.msra.mxu0 %v1202
        %1204 = vmatprep.subr.mxu0 0.0
        %v1205 = vand.u32 %v232, 4294901760
        %v1206 = vsub.f32 %v232, %v1205
        %v1207 = vand.u32 %v1206, 4294901760
        %1208 = vmatpush1.xpose.msra.mxu0 %v1207
        %1209 = vmatprep.subr.mxu0 0.0
        %v1210 = vand.u32 %v233, 4294901760
        %v1211 = vsub.f32 %v233, %v1210
        %v1212 = vand.u32 %v1211, 4294901760
        %1213 = vmatpush1.xpose.msra.mxu0 %v1212
        %1214 = vmatprep.subr.mxu0 0.0
        %1215 = vmatpush1.xpose.msra.mxu0 0.0
        %1216 = vmatprep.subr.mxu0 0.0
        %1217 = vmatpush1.xpose.msra.mxu0 0.0
        %1218 = vmatprep.subr.mxu0 0.0
        %1219 = vmatpush1.xpose.msra.mxu0 0.0
        %1220 = vmatprep.subr.mxu0 0.0
        %1221 = vmatpush1.xpose.msra.mxu0 0.0
        %1222 = vmatprep.subr.mxu0 0.0
        %1223 = vmatpush1.xpose.msra.mxu0 0.0
        %1224 = vmatprep.subr.mxu0 0.0
        %1225 = vmatpush1.xpose.msra.mxu0 0.0
        %1226 = vmatprep.subr.mxu0 0.0
        %1227 = vmatpush1.xpose.msra.mxu0 0.0
        %1228 = vmatprep.subr.mxu0 0.0
        %1229 = vmatpush1.xpose.msra.mxu0 0.0
        %1230 = vmatprep.subr.mxu0 0.0
        %1231 = vmatpush1.xpose.msra.mxu0 0.0
        %1232 = vmatprep.subr.mxu0 0.0
        %1233 = vmatpush1.xpose.msra.mxu0 0.0
        %1234 = vmatprep.subr.mxu0 0.0
        %1235 = vmatpush1.xpose.msra.mxu0 0.0
        %1236 = vmatprep.subr.mxu0 0.0
        %1237 = vmatpush1.xpose.msra.mxu0 0.0
        %1238 = vmatprep.subr.mxu0 0.0
        %1239 = vmatpush1.xpose.msra.mxu0 0.0
        %1240 = vmatprep.subr.mxu0 0.0
        %1241 = vmatpush1.xpose.msra.mxu0 0.0
        %1242 = vmatprep.subr.mxu0 0.0
        %1243 = vmatpush1.xpose.msra.mxu0 0.0
        %1244 = vmatprep.subr.mxu0 0.0
        %1245 = vmatpush1.xpose.msra.mxu0 0.0
        %1246 = vmatprep.mubr.f32.mxu0 0.0
        %v1247 = vand.u32 %v218, 4294901760
        %1248 = vmatmul.mubr.f32.gmra.mrb[0].mxu0 %v1247
        %v1249 = vpop.f32.mrb[0].mxu0
        %v1250 = vadd.f32 %v1011, %v1249
        %v1251 = vpop.f32.mrb[0].mxu0
        %1252 = vmatprep.mubr.f32.mxu0 0.0
        %v1253 = vand.u32 %v219, 4294901760
        %1254 = vmatmul.mubr.f32.gmra.mrb[0].mxu0 %v1253
        %v1255 = vpop.f32.mrb[0].mxu0
        %v1256 = vadd.f32 %v1019, %v1255
        %v1257 = vpop.f32.mrb[0].mxu0
        %1258 = vmatprep.mubr.f32.mxu0 0.0
        %v1259 = vand.u32 %v220, 4294901760
        %1260 = vmatmul.mubr.f32.gmra.mrb[0].mxu0 %v1259
        %v1261 = vpop.f32.mrb[0].mxu0
        %v1262 = vadd.f32 %v1027, %v1261
        %v1263 = vpop.f32.mrb[0].mxu0
        %1264 = vmatprep.mubr.f32.mxu0 0.0
        %v1265 = vand.u32 %v221, 4294901760
        %1266 = vmatmul.mubr.f32.gmra.mrb[0].mxu0 %v1265
        %v1267 = vpop.f32.mrb[0].mxu0
        %v1268 = vadd.f32 %v1035, %v1267
        %v1269 = vpop.f32.mrb[0].mxu0
        %1270 = vmatprep.mubr.f32.mxu0 0.0
        %v1271 = vand.u32 %v222, 4294901760
        %1272 = vmatmul.mubr.f32.gmra.mrb[0].mxu0 %v1271
        %v1273 = vpop.f32.mrb[0].mxu0
        %v1274 = vadd.f32 %v1043, %v1273
        %v1275 = vpop.f32.mrb[0].mxu0
        %1276 = vmatprep.mubr.f32.mxu0 0.0
        %v1277 = vand.u32 %v223, 4294901760
        %1278 = vmatmul.mubr.f32.gmra.mrb[0].mxu0 %v1277
        %v1279 = vpop.f32.mrb[0].mxu0
        %v1280 = vadd.f32 %v1051, %v1279
        %v1281 = vpop.f32.mrb[0].mxu0
        %1282 = vmatprep.mubr.f32.mxu0 0.0
        %v1283 = vand.u32 %v224, 4294901760
        %1284 = vmatmul.mubr.f32.gmra.mrb[0].mxu0 %v1283
        %v1285 = vpop.f32.mrb[0].mxu0
        %v1286 = vadd.f32 %v1059, %v1285
        %v1287 = vpop.f32.mrb[0].mxu0
        %1288 = vmatprep.mubr.f32.mxu0 0.0
        %v1289 = vand.u32 %v225, 4294901760
        %1290 = vmatmul.mubr.f32.gmra.mrb[0].mxu0 %v1289
        %v1291 = vpop.f32.mrb[0].mxu0
        %v1292 = vadd.f32 %v1067, %v1291
        %v1293 = vpop.f32.mrb[0].mxu0
        %1294 = vmatprep.mubr.f32.mxu0 0.0
        %v1295 = vand.u32 %v226, 4294901760
        %1296 = vmatmul.mubr.f32.gmra.mrb[0].mxu0 %v1295
        %v1297 = vpop.f32.mrb[0].mxu0
        %v1298 = vadd.f32 %v1075, %v1297
        %v1299 = vpop.f32.mrb[0].mxu0
        %1300 = vmatprep.mubr.f32.mxu0 0.0
        %v1301 = vand.u32 %v227, 4294901760
        %1302 = vmatmul.mubr.f32.gmra.mrb[0].mxu0 %v1301
        %v1303 = vpop.f32.mrb[0].mxu0
        %v1304 = vadd.f32 %v1083, %v1303
        %v1305 = vpop.f32.mrb[0].mxu0
        %1306 = vmatprep.mubr.f32.mxu0 0.0
        %v1307 = vand.u32 %v228, 4294901760
        %1308 = vmatmul.mubr.f32.gmra.mrb[0].mxu0 %v1307
        %v1309 = vpop.f32.mrb[0].mxu0
        %v1310 = vadd.f32 %v1091, %v1309
        %v1311 = vpop.f32.mrb[0].mxu0
        %1312 = vmatprep.mubr.f32.mxu0 0.0
        %v1313 = vand.u32 %v229, 4294901760
        %1314 = vmatmul.mubr.f32.gmra.mrb[0].mxu0 %v1313
        %v1315 = vpop.f32.mrb[0].mxu0
        %v1316 = vadd.f32 %v1099, %v1315
        %v1317 = vpop.f32.mrb[0].mxu0
        %1318 = vmatprep.mubr.f32.mxu0 0.0
        %v1319 = vand.u32 %v230, 4294901760
        %1320 = vmatmul.mubr.f32.gmra.mrb[0].mxu0 %v1319
        %v1321 = vpop.f32.mrb[0].mxu0
        %v1322 = vadd.f32 %v1107, %v1321
        %v1323 = vpop.f32.mrb[0].mxu0
        %1324 = vmatprep.mubr.f32.mxu0 0.0
        %v1325 = vand.u32 %v231, 4294901760
        %1326 = vmatmul.mubr.f32.gmra.mrb[0].mxu0 %v1325
        %v1327 = vpop.f32.mrb[0].mxu0
        %v1328 = vadd.f32 %v1115, %v1327
        %v1329 = vpop.f32.mrb[0].mxu0
        %1330 = vmatprep.mubr.f32.mxu0 0.0
        %v1331 = vand.u32 %v232, 4294901760
        %1332 = vmatmul.mubr.f32.gmra.mrb[0].mxu0 %v1331
        %v1333 = vpop.f32.mrb[0].mxu0
        %v1334 = vadd.f32 %v1123, %v1333
        %v1335 = vpop.f32.mrb[0].mxu0
        %1336 = vmatprep.mubr.f32.mxu0 0.0
        %v1337 = vand.u32 %v233, 4294901760
        %1338 = vmatmul.mubr.f32.gmra.mrb[0].mxu0 %v1337
        %v1339 = vpop.f32.mrb[0].mxu0
        %v1340 = vadd.f32 %v1131, %v1339
        %v1341 = vpop.f32.mrb[0].mxu0
        %1342 = vdwg.mxu0
        %1343 = vmatprep.subr.mxu0 0.0
        %v1344 = vand.u32 %v218, 4294901760
        %1345 = vmatpush1.xpose.msra.mxu0 %v1344
        %1346 = vmatprep.subr.mxu0 0.0
        %v1347 = vand.u32 %v219, 4294901760
        %1348 = vmatpush1.xpose.msra.mxu0 %v1347
        %1349 = vmatprep.subr.mxu0 0.0
        %v1350 = vand.u32 %v220, 4294901760
        %1351 = vmatpush1.xpose.msra.mxu0 %v1350
        %1352 = vmatprep.subr.mxu0 0.0
        %v1353 = vand.u32 %v221, 4294901760
        %1354 = vmatpush1.xpose.msra.mxu0 %v1353
        %1355 = vmatprep.subr.mxu0 0.0
        %v1356 = vand.u32 %v222, 4294901760
        %1357 = vmatpush1.xpose.msra.mxu0 %v1356
        %1358 = vmatprep.subr.mxu0 0.0
        %v1359 = vand.u32 %v223, 4294901760
        %1360 = vmatpush1.xpose.msra.mxu0 %v1359
        %1361 = vmatprep.subr.mxu0 0.0
        %v1362 = vand.u32 %v224, 4294901760
        %1363 = vmatpush1.xpose.msra.mxu0 %v1362
        %1364 = vmatprep.subr.mxu0 0.0
        %v1365 = vand.u32 %v225, 4294901760
        %1366 = vmatpush1.xpose.msra.mxu0 %v1365
        %1367 = vmatprep.subr.mxu0 0.0
        %v1368 = vand.u32 %v226, 4294901760
        %1369 = vmatpush1.xpose.msra.mxu0 %v1368
        %1370 = vmatprep.subr.mxu0 0.0
        %v1371 = vand.u32 %v227, 4294901760
        %1372 = vmatpush1.xpose.msra.mxu0 %v1371
        %1373 = vmatprep.subr.mxu0 0.0
        %v1374 = vand.u32 %v228, 4294901760
        %1375 = vmatpush1.xpose.msra.mxu0 %v1374
        %1376 = vmatprep.subr.mxu0 0.0
        %v1377 = vand.u32 %v229, 4294901760
        %1378 = vmatpush1.xpose.msra.mxu0 %v1377
        %1379 = vmatprep.subr.mxu0 0.0
        %v1380 = vand.u32 %v230, 4294901760
        %1381 = vmatpush1.xpose.msra.mxu0 %v1380
        %1382 = vmatprep.subr.mxu0 0.0
        %v1383 = vand.u32 %v231, 4294901760
        %1384 = vmatpush1.xpose.msra.mxu0 %v1383
        %1385 = vmatprep.subr.mxu0 0.0
        %v1386 = vand.u32 %v232, 4294901760
        %1387 = vmatpush1.xpose.msra.mxu0 %v1386
        %1388 = vmatprep.subr.mxu0 0.0
        %v1389 = vand.u32 %v233, 4294901760
        %1390 = vmatpush1.xpose.msra.mxu0 %v1389
        %1391 = vmatprep.subr.mxu0 0.0
        %1392 = vmatpush1.xpose.msra.mxu0 0.0
        %1393 = vmatprep.subr.mxu0 0.0
        %1394 = vmatpush1.xpose.msra.mxu0 0.0
        %1395 = vmatprep.subr.mxu0 0.0
        %1396 = vmatpush1.xpose.msra.mxu0 0.0
        %1397 = vmatprep.subr.mxu0 0.0
        %1398 = vmatpush1.xpose.msra.mxu0 0.0
        %1399 = vmatprep.subr.mxu0 0.0
        %1400 = vmatpush1.xpose.msra.mxu0 0.0
        %1401 = vmatprep.subr.mxu0 0.0
        %1402 = vmatpush1.xpose.msra.mxu0 0.0
        %1403 = vmatprep.subr.mxu0 0.0
        %1404 = vmatpush1.xpose.msra.mxu0 0.0
        %1405 = vmatprep.subr.mxu0 0.0
        %1406 = vmatpush1.xpose.msra.mxu0 0.0
        %1407 = vmatprep.subr.mxu0 0.0
        %1408 = vmatpush1.xpose.msra.mxu0 0.0
        %1409 = vmatprep.subr.mxu0 0.0
        %1410 = vmatpush1.xpose.msra.mxu0 0.0
        %1411 = vmatprep.subr.mxu0 0.0
        %1412 = vmatpush1.xpose.msra.mxu0 0.0
        %1413 = vmatprep.subr.mxu0 0.0
        %1414 = vmatpush1.xpose.msra.mxu0 0.0
        %1415 = vmatprep.subr.mxu0 0.0
        %1416 = vmatpush1.xpose.msra.mxu0 0.0
        %1417 = vmatprep.subr.mxu0 0.0
        %1418 = vmatpush1.xpose.msra.mxu0 0.0
        %1419 = vmatprep.subr.mxu0 0.0
        %1420 = vmatpush1.xpose.msra.mxu0 0.0
        %1421 = vmatprep.subr.mxu0 0.0
        %1422 = vmatpush1.xpose.msra.mxu0 0.0
        %1423 = vmatprep.mubr.f32.mxu0 0.0
        %v1424 = vand.u32 %v218, 4294901760
        %1425 = vmatmul.mubr.f32.gmra.mrb[0].mxu0 %v1424
        %v1426 = vpop.f32.mrb[0].mxu0
        %v1427 = vadd.f32 %v1250, %v1426
        %v1428 = vpop.f32.mrb[0].mxu0
        %1429 = vmatprep.mubr.f32.mxu0 0.0
        %v1430 = vand.u32 %v219, 4294901760
        %1431 = vmatmul.mubr.f32.gmra.mrb[0].mxu0 %v1430
        %v1432 = vpop.f32.mrb[0].mxu0
        %v1433 = vadd.f32 %v1256, %v1432
        %v1434 = vpop.f32.mrb[0].mxu0
        %1435 = vmatprep.mubr.f32.mxu0 0.0
        %v1436 = vand.u32 %v220, 4294901760
        %1437 = vmatmul.mubr.f32.gmra.mrb[0].mxu0 %v1436
        %v1438 = vpop.f32.mrb[0].mxu0
        %v1439 = vadd.f32 %v1262, %v1438
        %v1440 = vpop.f32.mrb[0].mxu0
        %1441 = vmatprep.mubr.f32.mxu0 0.0
        %v1442 = vand.u32 %v221, 4294901760
        %1443 = vmatmul.mubr.f32.gmra.mrb[0].mxu0 %v1442
        %v1444 = vpop.f32.mrb[0].mxu0
        %v1445 = vadd.f32 %v1268, %v1444
        %v1446 = vpop.f32.mrb[0].mxu0
        %1447 = vmatprep.mubr.f32.mxu0 0.0
        %v1448 = vand.u32 %v222, 4294901760
        %1449 = vmatmul.mubr.f32.gmra.mrb[0].mxu0 %v1448
        %v1450 = vpop.f32.mrb[0].mxu0
        %v1451 = vadd.f32 %v1274, %v1450
        %v1452 = vpop.f32.mrb[0].mxu0
        %1453 = vmatprep.mubr.f32.mxu0 0.0
        %v1454 = vand.u32 %v223, 4294901760
        %1455 = vmatmul.mubr.f32.gmra.mrb[0].mxu0 %v1454
        %v1456 = vpop.f32.mrb[0].mxu0
        %v1457 = vadd.f32 %v1280, %v1456
        %v1458 = vpop.f32.mrb[0].mxu0
        %1459 = vmatprep.mubr.f32.mxu0 0.0
        %v1460 = vand.u32 %v224, 4294901760
        %1461 = vmatmul.mubr.f32.gmra.mrb[0].mxu0 %v1460
        %v1462 = vpop.f32.mrb[0].mxu0
        %v1463 = vadd.f32 %v1286, %v1462
        %v1464 = vpop.f32.mrb[0].mxu0
        %1465 = vmatprep.mubr.f32.mxu0 0.0
        %v1466 = vand.u32 %v225, 4294901760
        %1467 = vmatmul.mubr.f32.gmra.mrb[0].mxu0 %v1466
        %v1468 = vpop.f32.mrb[0].mxu0
        %v1469 = vadd.f32 %v1292, %v1468
        %v1470 = vpop.f32.mrb[0].mxu0
        %1471 = vmatprep.mubr.f32.mxu0 0.0
        %v1472 = vand.u32 %v226, 4294901760
        %1473 = vmatmul.mubr.f32.gmra.mrb[0].mxu0 %v1472
        %v1474 = vpop.f32.mrb[0].mxu0
        %v1475 = vadd.f32 %v1298, %v1474
        %v1476 = vpop.f32.mrb[0].mxu0
        %1477 = vmatprep.mubr.f32.mxu0 0.0
        %v1478 = vand.u32 %v227, 4294901760
        %1479 = vmatmul.mubr.f32.gmra.mrb[0].mxu0 %v1478
        %v1480 = vpop.f32.mrb[0].mxu0
        %v1481 = vadd.f32 %v1304, %v1480
        %v1482 = vpop.f32.mrb[0].mxu0
        %1483 = vmatprep.mubr.f32.mxu0 0.0
        %v1484 = vand.u32 %v228, 4294901760
        %1485 = vmatmul.mubr.f32.gmra.mrb[0].mxu0 %v1484
        %v1486 = vpop.f32.mrb[0].mxu0
        %v1487 = vadd.f32 %v1310, %v1486
        %v1488 = vpop.f32.mrb[0].mxu0
        %1489 = vmatprep.mubr.f32.mxu0 0.0
        %v1490 = vand.u32 %v229, 4294901760
        %1491 = vmatmul.mubr.f32.gmra.mrb[0].mxu0 %v1490
        %v1492 = vpop.f32.mrb[0].mxu0
        %v1493 = vadd.f32 %v1316, %v1492
        %v1494 = vpop.f32.mrb[0].mxu0
        %1495 = vmatprep.mubr.f32.mxu0 0.0
        %v1496 = vand.u32 %v230, 4294901760
        %1497 = vmatmul.mubr.f32.gmra.mrb[0].mxu0 %v1496
        %v1498 = vpop.f32.mrb[0].mxu0
        %v1499 = vadd.f32 %v1322, %v1498
        %v1500 = vpop.f32.mrb[0].mxu0
        %1501 = vmatprep.mubr.f32.mxu0 0.0
        %v1502 = vand.u32 %v231, 4294901760
        %1503 = vmatmul.mubr.f32.gmra.mrb[0].mxu0 %v1502
        %v1504 = vpop.f32.mrb[0].mxu0
        %v1505 = vadd.f32 %v1328, %v1504
        %v1506 = vpop.f32.mrb[0].mxu0
        %1507 = vmatprep.mubr.f32.mxu0 0.0
        %v1508 = vand.u32 %v232, 4294901760
        %1509 = vmatmul.mubr.f32.gmra.mrb[0].mxu0 %v1508
        %v1510 = vpop.f32.mrb[0].mxu0
        %v1511 = vadd.f32 %v1334, %v1510
        %v1512 = vpop.f32.mrb[0].mxu0
        %1513 = vmatprep.mubr.f32.mxu0 0.0
        %v1514 = vand.u32 %v233, 4294901760
        %1515 = vmatmul.mubr.f32.gmra.mrb[0].mxu0 %v1514
        %v1516 = vpop.f32.mrb[0].mxu0
        %v1517 = vadd.f32 %v1340, %v1516
        %v1518 = vpop.f32.mrb[0].mxu0
        %1519 = vdwg.mxu0
        %v1520 = vlaneseq
        %v1521 = vand.u32 %v1520, 127
        %vm1522 = vcmp.lt.s32.totalorder %v1521, 16
        %v1523 = vsel %vm1522, %v1427, -1e+30
        %v1524 = vsel %vm1522, %v1433, -1e+30
        %v1525 = vsel %vm1522, %v1439, -1e+30
        %v1526 = vsel %vm1522, %v1445, -1e+30
        %v1527 = vsel %vm1522, %v1451, -1e+30
        %v1528 = vsel %vm1522, %v1457, -1e+30
        %v1529 = vsel %vm1522, %v1463, -1e+30
        %v1530 = vsel %vm1522, %v1469, -1e+30
        %v1531 = vsel %vm1522, %v1475, -1e+30
        %v1532 = vsel %vm1522, %v1481, -1e+30
        %v1533 = vsel %vm1522, %v1487, -1e+30
        %v1534 = vsel %vm1522, %v1493, -1e+30
        %v1535 = vsel %vm1522, %v1499, -1e+30
        %v1536 = vsel %vm1522, %v1505, -1e+30
        %v1537 = vsel %vm1522, %v1511, -1e+30
        %v1538 = vsel %vm1522, %v1517, -1e+30
        %1539 = vmax.xlane.f32.xlu0 %v1523
        %v1540 = vpop.xlane.xlu0 %1539
        %1541 = vmax.xlane.f32.xlu0 %v1524
        %v1542 = vpop.xlane.xlu0 %1541
        %1543 = vmax.xlane.f32.xlu0 %v1525
        %v1544 = vpop.xlane.xlu0 %1543
        %1545 = vmax.xlane.f32.xlu0 %v1526
        %v1546 = vpop.xlane.xlu0 %1545
        %1547 = vmax.xlane.f32.xlu0 %v1527
        %v1548 = vpop.xlane.xlu0 %1547
        %1549 = vmax.xlane.f32.xlu0 %v1528
        %v1550 = vpop.xlane.xlu0 %1549
        %1551 = vmax.xlane.f32.xlu0 %v1529
        %v1552 = vpop.xlane.xlu0 %1551
        %1553 = vmax.xlane.f32.xlu0 %v1530
        %v1554 = vpop.xlane.xlu0 %1553
        %1555 = vmax.xlane.f32.xlu0 %v1531
        %v1556 = vpop.xlane.xlu0 %1555
        %1557 = vmax.xlane.f32.xlu0 %v1532
        %v1558 = vpop.xlane.xlu0 %1557
        %1559 = vmax.xlane.f32.xlu0 %v1533
        %v1560 = vpop.xlane.xlu0 %1559
        %1561 = vmax.xlane.f32.xlu0 %v1534
        %v1562 = vpop.xlane.xlu0 %1561
        %1563 = vmax.xlane.f32.xlu0 %v1535
        %v1564 = vpop.xlane.xlu0 %1563
        %1565 = vmax.xlane.f32.xlu0 %v1536
        %v1566 = vpop.xlane.xlu0 %1565
        %1567 = vmax.xlane.f32.xlu0 %v1537
        %v1568 = vpop.xlane.xlu0 %1567
        %1569 = vmax.xlane.f32.xlu0 %v1538
        %v1570 = vpop.xlane.xlu0 %1569
        %vm1571 = vcmp.eq.f32.partialorder %v1523, %v1540
        %vm1572 = vcmp.eq.f32.partialorder %v1524, %v1542
        %vm1573 = vcmp.eq.f32.partialorder %v1525, %v1544
        %vm1574 = vcmp.eq.f32.partialorder %v1526, %v1546
        %vm1575 = vcmp.eq.f32.partialorder %v1527, %v1548
        %vm1576 = vcmp.eq.f32.partialorder %v1528, %v1550
        %vm1577 = vcmp.eq.f32.partialorder %v1529, %v1552
        %vm1578 = vcmp.eq.f32.partialorder %v1530, %v1554
        %vm1579 = vcmp.eq.f32.partialorder %v1531, %v1556
        %vm1580 = vcmp.eq.f32.partialorder %v1532, %v1558
        %vm1581 = vcmp.eq.f32.partialorder %v1533, %v1560
        %vm1582 = vcmp.eq.f32.partialorder %v1534, %v1562
        %vm1583 = vcmp.eq.f32.partialorder %v1535, %v1564
        %vm1584 = vcmp.eq.f32.partialorder %v1536, %v1566
        %vm1585 = vcmp.eq.f32.partialorder %v1537, %v1568
        %vm1586 = vcmp.eq.f32.partialorder %v1538, %v1570
        %v1587 = vsel %vm1571, 1, 0
        %v1588 = vsel %vm1572, 1, 0
        %v1589 = vsel %vm1573, 1, 0
        %v1590 = vsel %vm1574, 1, 0
        %v1591 = vsel %vm1575, 1, 0
        %v1592 = vsel %vm1576, 1, 0
        %v1593 = vsel %vm1577, 1, 0
        %v1594 = vsel %vm1578, 1, 0
        %v1595 = vsel %vm1579, 1, 0
        %v1596 = vsel %vm1580, 1, 0
        %v1597 = vsel %vm1581, 1, 0
        %v1598 = vsel %vm1582, 1, 0
        %v1599 = vsel %vm1583, 1, 0
        %v1600 = vsel %vm1584, 1, 0
        %v1601 = vsel %vm1585, 1, 0
        %v1602 = vsel %vm1586, 1, 0
        %v1603 = vcvt.s32.f32 %v1587
        %v1604 = vcvt.s32.f32 %v1588
        %v1605 = vcvt.s32.f32 %v1589
        %v1606 = vcvt.s32.f32 %v1590
        %v1607 = vcvt.s32.f32 %v1591
        %v1608 = vcvt.s32.f32 %v1592
        %v1609 = vcvt.s32.f32 %v1593
        %v1610 = vcvt.s32.f32 %v1594
        %v1611 = vcvt.s32.f32 %v1595
        %v1612 = vcvt.s32.f32 %v1596
        %v1613 = vcvt.s32.f32 %v1597
        %v1614 = vcvt.s32.f32 %v1598
        %v1615 = vcvt.s32.f32 %v1599
        %v1616 = vcvt.s32.f32 %v1600
        %v1617 = vcvt.s32.f32 %v1601
        %v1618 = vcvt.s32.f32 %v1602
        %v1619 = vsel %vm1571, -1e+30, %v1523
        %v1620 = vsel %vm1572, -1e+30, %v1524
        %v1621 = vsel %vm1573, -1e+30, %v1525
        %v1622 = vsel %vm1574, -1e+30, %v1526
        %v1623 = vsel %vm1575, -1e+30, %v1527
        %v1624 = vsel %vm1576, -1e+30, %v1528
        %v1625 = vsel %vm1577, -1e+30, %v1529
        %v1626 = vsel %vm1578, -1e+30, %v1530
        %v1627 = vsel %vm1579, -1e+30, %v1531
        %v1628 = vsel %vm1580, -1e+30, %v1532
        %v1629 = vsel %vm1581, -1e+30, %v1533
        %v1630 = vsel %vm1582, -1e+30, %v1534
        %v1631 = vsel %vm1583, -1e+30, %v1535
        %v1632 = vsel %vm1584, -1e+30, %v1536
        %v1633 = vsel %vm1585, -1e+30, %v1537
        %v1634 = vsel %vm1586, -1e+30, %v1538
        loop: start=0, step=1, limit=4
        $region33: #{tpu_custom_call.1} parent=27 // loop_pre_header
          _
        $region34: #{tpu_custom_call.1} parent=27 // loop_header
          %s1636 = sphi 0, %s1640
          %p1637 = scmp.ge.s32.totalorder %s1636, 4
          %v1641 = vphi %v1619, %v1833
          %v1642 = vphi %v1620, %v1834
          %v1643 = vphi %v1621, %v1835
          %v1644 = vphi %v1622, %v1836
          %v1645 = vphi %v1623, %v1837
          %v1646 = vphi %v1624, %v1838
          %v1647 = vphi %v1625, %v1839
          %v1648 = vphi %v1626, %v1840
          %v1649 = vphi %v1627, %v1841
          %v1650 = vphi %v1628, %v1842
          %v1651 = vphi %v1629, %v1843
          %v1652 = vphi %v1630, %v1844
          %v1653 = vphi %v1631, %v1845
          %v1654 = vphi %v1632, %v1846
          %v1655 = vphi %v1633, %v1847
          %v1656 = vphi %v1634, %v1848
          %v1657 = vphi %v1603, %v1817
          %v1658 = vphi %v1604, %v1818
          %v1659 = vphi %v1605, %v1819
          %v1660 = vphi %v1606, %v1820
          %v1661 = vphi %v1607, %v1821
          %v1662 = vphi %v1608, %v1822
          %v1663 = vphi %v1609, %v1823
          %v1664 = vphi %v1610, %v1824
          %v1665 = vphi %v1611, %v1825
          %v1666 = vphi %v1612, %v1826
          %v1667 = vphi %v1613, %v1827
          %v1668 = vphi %v1614, %v1828
          %v1669 = vphi %v1615, %v1829
          %v1670 = vphi %v1616, %v1830
          %v1671 = vphi %v1617, %v1831
          %v1672 = vphi %v1618, %v1832
        $region35: #{tpu_custom_call.1} parent=27 // loop_header_branch
          %1639 = sbr.rel (%p1637) target = $region39
        $region36: #{tpu_custom_call.1} parent=27 // loop_body
          %1673 = vmax.xlane.f32.xlu0 %v1641
          %v1674 = vpop.xlane.xlu0 %1673
          %1675 = vmax.xlane.f32.xlu0 %v1642
          %v1676 = vpop.xlane.xlu0 %1675
          %1677 = vmax.xlane.f32.xlu0 %v1643
          %v1678 = vpop.xlane.xlu0 %1677
          %1679 = vmax.xlane.f32.xlu0 %v1644
          %v1680 = vpop.xlane.xlu0 %1679
          %1681 = vmax.xlane.f32.xlu0 %v1645
          %v1682 = vpop.xlane.xlu0 %1681
          %1683 = vmax.xlane.f32.xlu0 %v1646
          %v1684 = vpop.xlane.xlu0 %1683
          %1685 = vmax.xlane.f32.xlu0 %v1647
          %v1686 = vpop.xlane.xlu0 %1685
          %1687 = vmax.xlane.f32.xlu0 %v1648
          %v1688 = vpop.xlane.xlu0 %1687
          %1689 = vmax.xlane.f32.xlu0 %v1649
          %v1690 = vpop.xlane.xlu0 %1689
          %1691 = vmax.xlane.f32.xlu0 %v1650
          %v1692 = vpop.xlane.xlu0 %1691
          %1693 = vmax.xlane.f32.xlu0 %v1651
          %v1694 = vpop.xlane.xlu0 %1693
          %1695 = vmax.xlane.f32.xlu0 %v1652
          %v1696 = vpop.xlane.xlu0 %1695
          %1697 = vmax.xlane.f32.xlu0 %v1653
          %v1698 = vpop.xlane.xlu0 %1697
          %1699 = vmax.xlane.f32.xlu0 %v1654
          %v1700 = vpop.xlane.xlu0 %1699
          %1701 = vmax.xlane.f32.xlu0 %v1655
          %v1702 = vpop.xlane.xlu0 %1701
          %1703 = vmax.xlane.f32.xlu0 %v1656
          %v1704 = vpop.xlane.xlu0 %1703
          %vm1705 = vcmp.eq.f32.partialorder %v1641, %v1674
          %vm1706 = vcmp.eq.f32.partialorder %v1642, %v1676
          %vm1707 = vcmp.eq.f32.partialorder %v1643, %v1678
          %vm1708 = vcmp.eq.f32.partialorder %v1644, %v1680
          %vm1709 = vcmp.eq.f32.partialorder %v1645, %v1682
          %vm1710 = vcmp.eq.f32.partialorder %v1646, %v1684
          %vm1711 = vcmp.eq.f32.partialorder %v1647, %v1686
          %vm1712 = vcmp.eq.f32.partialorder %v1648, %v1688
          %vm1713 = vcmp.eq.f32.partialorder %v1649, %v1690
          %vm1714 = vcmp.eq.f32.partialorder %v1650, %v1692
          %vm1715 = vcmp.eq.f32.partialorder %v1651, %v1694
          %vm1716 = vcmp.eq.f32.partialorder %v1652, %v1696
          %vm1717 = vcmp.eq.f32.partialorder %v1653, %v1698
          %vm1718 = vcmp.eq.f32.partialorder %v1654, %v1700
          %vm1719 = vcmp.eq.f32.partialorder %v1655, %v1702
          %vm1720 = vcmp.eq.f32.partialorder %v1656, %v1704
          %vm1721 = vcmp.gt.f32.partialorder %v1674, -1e+29
          %vm1722 = vcmp.gt.f32.partialorder %v1676, -1e+29
          %vm1723 = vcmp.gt.f32.partialorder %v1678, -1e+29
          %vm1724 = vcmp.gt.f32.partialorder %v1680, -1e+29
          %vm1725 = vcmp.gt.f32.partialorder %v1682, -1e+29
          %vm1726 = vcmp.gt.f32.partialorder %v1684, -1e+29
          %vm1727 = vcmp.gt.f32.partialorder %v1686, -1e+29
          %vm1728 = vcmp.gt.f32.partialorder %v1688, -1e+29
          %vm1729 = vcmp.gt.f32.partialorder %v1690, -1e+29
          %vm1730 = vcmp.gt.f32.partialorder %v1692, -1e+29
          %vm1731 = vcmp.gt.f32.partialorder %v1694, -1e+29
          %vm1732 = vcmp.gt.f32.partialorder %v1696, -1e+29
          %vm1733 = vcmp.gt.f32.partialorder %v1698, -1e+29
          %vm1734 = vcmp.gt.f32.partialorder %v1700, -1e+29
          %vm1735 = vcmp.gt.f32.partialorder %v1702, -1e+29
          %vm1736 = vcmp.gt.f32.partialorder %v1704, -1e+29
          %v1737 = vsel %vm1721, 1, 0
          %v1738 = vsel %vm1722, 1, 0
          %v1739 = vsel %vm1723, 1, 0
          %v1740 = vsel %vm1724, 1, 0
          %v1741 = vsel %vm1725, 1, 0
          %v1742 = vsel %vm1726, 1, 0
          %v1743 = vsel %vm1727, 1, 0
          %v1744 = vsel %vm1728, 1, 0
          %v1745 = vsel %vm1729, 1, 0
          %v1746 = vsel %vm1730, 1, 0
          %v1747 = vsel %vm1731, 1, 0
          %v1748 = vsel %vm1732, 1, 0
          %v1749 = vsel %vm1733, 1, 0
          %v1750 = vsel %vm1734, 1, 0
          %v1751 = vsel %vm1735, 1, 0
          %v1752 = vsel %vm1736, 1, 0
          %vm1753 = vcmp.eq.s32.totalorder %v1737, 1
          %vm1754 = vcmp.eq.s32.totalorder %v1738, 1
          %vm1755 = vcmp.eq.s32.totalorder %v1739, 1
          %vm1756 = vcmp.eq.s32.totalorder %v1740, 1
          %vm1757 = vcmp.eq.s32.totalorder %v1741, 1
          %vm1758 = vcmp.eq.s32.totalorder %v1742, 1
          %vm1759 = vcmp.eq.s32.totalorder %v1743, 1
          %vm1760 = vcmp.eq.s32.totalorder %v1744, 1
          %vm1761 = vcmp.eq.s32.totalorder %v1745, 1
          %vm1762 = vcmp.eq.s32.totalorder %v1746, 1
          %vm1763 = vcmp.eq.s32.totalorder %v1747, 1
          %vm1764 = vcmp.eq.s32.totalorder %v1748, 1
          %vm1765 = vcmp.eq.s32.totalorder %v1749, 1
          %vm1766 = vcmp.eq.s32.totalorder %v1750, 1
          %vm1767 = vcmp.eq.s32.totalorder %v1751, 1
          %vm1768 = vcmp.eq.s32.totalorder %v1752, 1
          %vm1769 = vmand %vm1705, %vm1753
          %vm1770 = vmand %vm1706, %vm1754
          %vm1771 = vmand %vm1707, %vm1755
          %vm1772 = vmand %vm1708, %vm1756
          %vm1773 = vmand %vm1709, %vm1757
          %vm1774 = vmand %vm1710, %vm1758
          %vm1775 = vmand %vm1711, %vm1759
          %vm1776 = vmand %vm1712, %vm1760
          %vm1777 = vmand %vm1713, %vm1761
          %vm1778 = vmand %vm1714, %vm1762
          %vm1779 = vmand %vm1715, %vm1763
          %vm1780 = vmand %vm1716, %vm1764
          %vm1781 = vmand %vm1717, %vm1765
          %vm1782 = vmand %vm1718, %vm1766
          %vm1783 = vmand %vm1719, %vm1767
          %vm1784 = vmand %vm1720, %vm1768
          %v1785 = vmul.f32 %v1674, 0.15
          %v1786 = vmul.f32 %v1676, 0.15
          %v1787 = vmul.f32 %v1678, 0.15
          %v1788 = vmul.f32 %v1680, 0.15
          %v1789 = vmul.f32 %v1682, 0.15
          %v1790 = vmul.f32 %v1684, 0.15
          %v1791 = vmul.f32 %v1686, 0.15
          %v1792 = vmul.f32 %v1688, 0.15
          %v1793 = vmul.f32 %v1690, 0.15
          %v1794 = vmul.f32 %v1692, 0.15
          %v1795 = vmul.f32 %v1694, 0.15
          %v1796 = vmul.f32 %v1696, 0.15
          %v1797 = vmul.f32 %v1698, 0.15
          %v1798 = vmul.f32 %v1700, 0.15
          %v1799 = vmul.f32 %v1702, 0.15
          %v1800 = vmul.f32 %v1704, 0.15
          %v1801 = vsel %vm1769, %v1785, 0.0
          %v1802 = vsel %vm1770, %v1786, 0.0
          %v1803 = vsel %vm1771, %v1787, 0.0
          %v1804 = vsel %vm1772, %v1788, 0.0
          %v1805 = vsel %vm1773, %v1789, 0.0
          %v1806 = vsel %vm1774, %v1790, 0.0
          %v1807 = vsel %vm1775, %v1791, 0.0
          %v1808 = vsel %vm1776, %v1792, 0.0
          %v1809 = vsel %vm1777, %v1793, 0.0
          %v1810 = vsel %vm1778, %v1794, 0.0
          %v1811 = vsel %vm1779, %v1795, 0.0
          %v1812 = vsel %vm1780, %v1796, 0.0
          %v1813 = vsel %vm1781, %v1797, 0.0
          %v1814 = vsel %vm1782, %v1798, 0.0
          %v1815 = vsel %vm1783, %v1799, 0.0
          %v1816 = vsel %vm1784, %v1800, 0.0
          %v1817 = vadd.f32 %v1657, %v1801
          %v1818 = vadd.f32 %v1658, %v1802
          %v1819 = vadd.f32 %v1659, %v1803
          %v1820 = vadd.f32 %v1660, %v1804
          %v1821 = vadd.f32 %v1661, %v1805
          %v1822 = vadd.f32 %v1662, %v1806
          %v1823 = vadd.f32 %v1663, %v1807
          %v1824 = vadd.f32 %v1664, %v1808
          %v1825 = vadd.f32 %v1665, %v1809
          %v1826 = vadd.f32 %v1666, %v1810
          %v1827 = vadd.f32 %v1667, %v1811
          %v1828 = vadd.f32 %v1668, %v1812
          %v1829 = vadd.f32 %v1669, %v1813
          %v1830 = vadd.f32 %v1670, %v1814
          %v1831 = vadd.f32 %v1671, %v1815
          %v1832 = vadd.f32 %v1672, %v1816
          %v1833 = vsel %vm1705, -1e+30, %v1641
          %v1834 = vsel %vm1706, -1e+30, %v1642
          %v1835 = vsel %vm1707, -1e+30, %v1643
          %v1836 = vsel %vm1708, -1e+30, %v1644
          %v1837 = vsel %vm1709, -1e+30, %v1645
          %v1838 = vsel %vm1710, -1e+30, %v1646
          %v1839 = vsel %vm1711, -1e+30, %v1647
          %v1840 = vsel %vm1712, -1e+30, %v1648
          %v1841 = vsel %vm1713, -1e+30, %v1649
          %v1842 = vsel %vm1714, -1e+30, %v1650
          %v1843 = vsel %vm1715, -1e+30, %v1651
          %v1844 = vsel %vm1716, -1e+30, %v1652
          %v1845 = vsel %vm1717, -1e+30, %v1653
          %v1846 = vsel %vm1718, -1e+30, %v1654
          %v1847 = vsel %vm1719, -1e+30, %v1655
          %v1848 = vsel %vm1720, -1e+30, %v1656
        $region37: #{tpu_custom_call.1} parent=27 // loop_footer
          %s1640 = sadd.s32 1, %s1636
        $region38: #{tpu_custom_call.1} parent=27 // loop_footer_branch
          %1635 = sbr.rel target = $region34
        $region39: #{tpu_custom_call.1} parent=27 // loop_exit
          _
        %1849 = vadd.xlane.f32.xlu0 %v1657
        %v1850 = vpop.xlane.xlu0 %1849
        %1851 = vadd.xlane.f32.xlu0 %v1658
        %v1852 = vpop.xlane.xlu0 %1851
        %1853 = vadd.xlane.f32.xlu0 %v1659
        %v1854 = vpop.xlane.xlu0 %1853
        %1855 = vadd.xlane.f32.xlu0 %v1660
        %v1856 = vpop.xlane.xlu0 %1855
        %1857 = vadd.xlane.f32.xlu0 %v1661
        %v1858 = vpop.xlane.xlu0 %1857
        %1859 = vadd.xlane.f32.xlu0 %v1662
        %v1860 = vpop.xlane.xlu0 %1859
        %1861 = vadd.xlane.f32.xlu0 %v1663
        %v1862 = vpop.xlane.xlu0 %1861
        %1863 = vadd.xlane.f32.xlu0 %v1664
        %v1864 = vpop.xlane.xlu0 %1863
        %1865 = vadd.xlane.f32.xlu0 %v1665
        %v1866 = vpop.xlane.xlu0 %1865
        %1867 = vadd.xlane.f32.xlu0 %v1666
        %v1868 = vpop.xlane.xlu0 %1867
        %1869 = vadd.xlane.f32.xlu0 %v1667
        %v1870 = vpop.xlane.xlu0 %1869
        %1871 = vadd.xlane.f32.xlu0 %v1668
        %v1872 = vpop.xlane.xlu0 %1871
        %1873 = vadd.xlane.f32.xlu0 %v1669
        %v1874 = vpop.xlane.xlu0 %1873
        %1875 = vadd.xlane.f32.xlu0 %v1670
        %v1876 = vpop.xlane.xlu0 %1875
        %1877 = vadd.xlane.f32.xlu0 %v1671
        %v1878 = vpop.xlane.xlu0 %1877
        %1879 = vadd.xlane.f32.xlu0 %v1672
        %v1880 = vpop.xlane.xlu0 %1879
        %1881 = vmatprep.subr.mxu0 0.0
        %v1882 = vand.u32 %v218, 4294901760
        %1883 = vmatpush1.msra.mxu0 %v1882
        %1884 = vmatprep.subr.mxu0 0.0
        %v1885 = vand.u32 %v219, 4294901760
        %1886 = vmatpush1.msra.mxu0 %v1885
        %1887 = vmatprep.subr.mxu0 0.0
        %v1888 = vand.u32 %v220, 4294901760
        %1889 = vmatpush1.msra.mxu0 %v1888
        %1890 = vmatprep.subr.mxu0 0.0
        %v1891 = vand.u32 %v221, 4294901760
        %1892 = vmatpush1.msra.mxu0 %v1891
        %1893 = vmatprep.subr.mxu0 0.0
        %v1894 = vand.u32 %v222, 4294901760
        %1895 = vmatpush1.msra.mxu0 %v1894
        %1896 = vmatprep.subr.mxu0 0.0
        %v1897 = vand.u32 %v223, 4294901760
        %1898 = vmatpush1.msra.mxu0 %v1897
        %1899 = vmatprep.subr.mxu0 0.0
        %v1900 = vand.u32 %v224, 4294901760
        %1901 = vmatpush1.msra.mxu0 %v1900
        %1902 = vmatprep.subr.mxu0 0.0
        %v1903 = vand.u32 %v225, 4294901760
        %1904 = vmatpush1.msra.mxu0 %v1903
        %1905 = vmatprep.subr.mxu0 0.0
        %v1906 = vand.u32 %v226, 4294901760
        %1907 = vmatpush1.msra.mxu0 %v1906
        %1908 = vmatprep.subr.mxu0 0.0
        %v1909 = vand.u32 %v227, 4294901760
        %1910 = vmatpush1.msra.mxu0 %v1909
        %1911 = vmatprep.subr.mxu0 0.0
        %v1912 = vand.u32 %v228, 4294901760
        %1913 = vmatpush1.msra.mxu0 %v1912
        %1914 = vmatprep.subr.mxu0 0.0
        %v1915 = vand.u32 %v229, 4294901760
        %1916 = vmatpush1.msra.mxu0 %v1915
        %1917 = vmatprep.subr.mxu0 0.0
        %v1918 = vand.u32 %v230, 4294901760
        %1919 = vmatpush1.msra.mxu0 %v1918
        %1920 = vmatprep.subr.mxu0 0.0
        %v1921 = vand.u32 %v231, 4294901760
        %1922 = vmatpush1.msra.mxu0 %v1921
        %1923 = vmatprep.subr.mxu0 0.0
        %v1924 = vand.u32 %v232, 4294901760
        %1925 = vmatpush1.msra.mxu0 %v1924
        %1926 = vmatprep.subr.mxu0 0.0
        %v1927 = vand.u32 %v233, 4294901760
        %1928 = vmatpush1.msra.mxu0 %v1927
        %1929 = vmatprep.subr.mxu0 0.0
        %1930 = vmatpush1.msra.mxu0 0.0
        %1931 = vmatprep.subr.mxu0 0.0
        %1932 = vmatpush1.msra.mxu0 0.0
        %1933 = vmatprep.subr.mxu0 0.0
        %1934 = vmatpush1.msra.mxu0 0.0
        %1935 = vmatprep.subr.mxu0 0.0
        %1936 = vmatpush1.msra.mxu0 0.0
        %1937 = vmatprep.subr.mxu0 0.0
        %1938 = vmatpush1.msra.mxu0 0.0
        %1939 = vmatprep.subr.mxu0 0.0
        %1940 = vmatpush1.msra.mxu0 0.0
        %1941 = vmatprep.subr.mxu0 0.0
        %1942 = vmatpush1.msra.mxu0 0.0
        %1943 = vmatprep.subr.mxu0 0.0
        %1944 = vmatpush1.msra.mxu0 0.0
        %1945 = vmatprep.subr.mxu0 0.0
        %1946 = vmatpush1.msra.mxu0 0.0
        %1947 = vmatprep.subr.mxu0 0.0
        %1948 = vmatpush1.msra.mxu0 0.0
        %1949 = vmatprep.subr.mxu0 0.0
        %1950 = vmatpush1.msra.mxu0 0.0
        %1951 = vmatprep.subr.mxu0 0.0
        %1952 = vmatpush1.msra.mxu0 0.0
        %1953 = vmatprep.subr.mxu0 0.0
        %1954 = vmatpush1.msra.mxu0 0.0
        %1955 = vmatprep.subr.mxu0 0.0
        %1956 = vmatpush1.msra.mxu0 0.0
        %1957 = vmatprep.subr.mxu0 0.0
        %1958 = vmatpush1.msra.mxu0 0.0
        %1959 = vmatprep.subr.mxu0 0.0
        %1960 = vmatpush1.msra.mxu0 0.0
        %1961 = vmatprep.mubr.f32.mxu0 0.0
        %v1962 = vand.u32 %v1657, 4294901760
        %v1963 = vsub.f32 %v1657, %v1962
        %v1964 = vand.u32 %v1963, 4294901760
        %v1965 = vsub.f32 %v1963, %v1964
        %v1966 = vand.u32 %v1965, 4294901760
        %1967 = vmatmul.mubr.f32.gmra.mrb[0].mxu0 %v1966
        %v1968 = vpop.f32.mrb[0].mxu0
        %v1969 = vadd.f32 0.0, %v1968
        %v1970 = vpop.f32.mrb[0].mxu0
        %1971 = vmatprep.mubr.f32.mxu0 0.0
        %v1972 = vand.u32 %v1658, 4294901760
        %v1973 = vsub.f32 %v1658, %v1972
        %v1974 = vand.u32 %v1973, 4294901760
        %v1975 = vsub.f32 %v1973, %v1974
        %v1976 = vand.u32 %v1975, 4294901760
        %1977 = vmatmul.mubr.f32.gmra.mrb[0].mxu0 %v1976
        %v1978 = vpop.f32.mrb[0].mxu0
        %v1979 = vadd.f32 0.0, %v1978
        %v1980 = vpop.f32.mrb[0].mxu0
        %1981 = vmatprep.mubr.f32.mxu0 0.0
        %v1982 = vand.u32 %v1659, 4294901760
        %v1983 = vsub.f32 %v1659, %v1982
        %v1984 = vand.u32 %v1983, 4294901760
        %v1985 = vsub.f32 %v1983, %v1984
        %v1986 = vand.u32 %v1985, 4294901760
        %1987 = vmatmul.mubr.f32.gmra.mrb[0].mxu0 %v1986
        %v1988 = vpop.f32.mrb[0].mxu0
        %v1989 = vadd.f32 0.0, %v1988
        %v1990 = vpop.f32.mrb[0].mxu0
        %1991 = vmatprep.mubr.f32.mxu0 0.0
        %v1992 = vand.u32 %v1660, 4294901760
        %v1993 = vsub.f32 %v1660, %v1992
        %v1994 = vand.u32 %v1993, 4294901760
        %v1995 = vsub.f32 %v1993, %v1994
        %v1996 = vand.u32 %v1995, 4294901760
        %1997 = vmatmul.mubr.f32.gmra.mrb[0].mxu0 %v1996
        %v1998 = vpop.f32.mrb[0].mxu0
        %v1999 = vadd.f32 0.0, %v1998
        %v2000 = vpop.f32.mrb[0].mxu0
        %2001 = vmatprep.mubr.f32.mxu0 0.0
        %v2002 = vand.u32 %v1661, 4294901760
        %v2003 = vsub.f32 %v1661, %v2002
        %v2004 = vand.u32 %v2003, 4294901760
        %v2005 = vsub.f32 %v2003, %v2004
        %v2006 = vand.u32 %v2005, 4294901760
        %2007 = vmatmul.mubr.f32.gmra.mrb[0].mxu0 %v2006
        %v2008 = vpop.f32.mrb[0].mxu0
        %v2009 = vadd.f32 0.0, %v2008
        %v2010 = vpop.f32.mrb[0].mxu0
        %2011 = vmatprep.mubr.f32.mxu0 0.0
        %v2012 = vand.u32 %v1662, 4294901760
        %v2013 = vsub.f32 %v1662, %v2012
        %v2014 = vand.u32 %v2013, 4294901760
        %v2015 = vsub.f32 %v2013, %v2014
        %v2016 = vand.u32 %v2015, 4294901760
        %2017 = vmatmul.mubr.f32.gmra.mrb[0].mxu0 %v2016
        %v2018 = vpop.f32.mrb[0].mxu0
        %v2019 = vadd.f32 0.0, %v2018
        %v2020 = vpop.f32.mrb[0].mxu0
        %2021 = vmatprep.mubr.f32.mxu0 0.0
        %v2022 = vand.u32 %v1663, 4294901760
        %v2023 = vsub.f32 %v1663, %v2022
        %v2024 = vand.u32 %v2023, 4294901760
        %v2025 = vsub.f32 %v2023, %v2024
        %v2026 = vand.u32 %v2025, 4294901760
        %2027 = vmatmul.mubr.f32.gmra.mrb[0].mxu0 %v2026
        %v2028 = vpop.f32.mrb[0].mxu0
        %v2029 = vadd.f32 0.0, %v2028
        %v2030 = vpop.f32.mrb[0].mxu0
        %2031 = vmatprep.mubr.f32.mxu0 0.0
        %v2032 = vand.u32 %v1664, 4294901760
        %v2033 = vsub.f32 %v1664, %v2032
        %v2034 = vand.u32 %v2033, 4294901760
        %v2035 = vsub.f32 %v2033, %v2034
        %v2036 = vand.u32 %v2035, 4294901760
        %2037 = vmatmul.mubr.f32.gmra.mrb[0].mxu0 %v2036
        %v2038 = vpop.f32.mrb[0].mxu0
        %v2039 = vadd.f32 0.0, %v2038
        %v2040 = vpop.f32.mrb[0].mxu0
        %2041 = vmatprep.mubr.f32.mxu0 0.0
        %v2042 = vand.u32 %v1665, 4294901760
        %v2043 = vsub.f32 %v1665, %v2042
        %v2044 = vand.u32 %v2043, 4294901760
        %v2045 = vsub.f32 %v2043, %v2044
        %v2046 = vand.u32 %v2045, 4294901760
        %2047 = vmatmul.mubr.f32.gmra.mrb[0].mxu0 %v2046
        %v2048 = vpop.f32.mrb[0].mxu0
        %v2049 = vadd.f32 0.0, %v2048
        %v2050 = vpop.f32.mrb[0].mxu0
        %2051 = vmatprep.mubr.f32.mxu0 0.0
        %v2052 = vand.u32 %v1666, 4294901760
        %v2053 = vsub.f32 %v1666, %v2052
        %v2054 = vand.u32 %v2053, 4294901760
        %v2055 = vsub.f32 %v2053, %v2054
        %v2056 = vand.u32 %v2055, 4294901760
        %2057 = vmatmul.mubr.f32.gmra.mrb[0].mxu0 %v2056
        %v2058 = vpop.f32.mrb[0].mxu0
        %v2059 = vadd.f32 0.0, %v2058
        %v2060 = vpop.f32.mrb[0].mxu0
        %2061 = vmatprep.mubr.f32.mxu0 0.0
        %v2062 = vand.u32 %v1667, 4294901760
        %v2063 = vsub.f32 %v1667, %v2062
        %v2064 = vand.u32 %v2063, 4294901760
        %v2065 = vsub.f32 %v2063, %v2064
        %v2066 = vand.u32 %v2065, 4294901760
        %2067 = vmatmul.mubr.f32.gmra.mrb[0].mxu0 %v2066
        %v2068 = vpop.f32.mrb[0].mxu0
        %v2069 = vadd.f32 0.0, %v2068
        %v2070 = vpop.f32.mrb[0].mxu0
        %2071 = vmatprep.mubr.f32.mxu0 0.0
        %v2072 = vand.u32 %v1668, 4294901760
        %v2073 = vsub.f32 %v1668, %v2072
        %v2074 = vand.u32 %v2073, 4294901760
        %v2075 = vsub.f32 %v2073, %v2074
        %v2076 = vand.u32 %v2075, 4294901760
        %2077 = vmatmul.mubr.f32.gmra.mrb[0].mxu0 %v2076
        %v2078 = vpop.f32.mrb[0].mxu0
        %v2079 = vadd.f32 0.0, %v2078
        %v2080 = vpop.f32.mrb[0].mxu0
        %2081 = vmatprep.mubr.f32.mxu0 0.0
        %v2082 = vand.u32 %v1669, 4294901760
        %v2083 = vsub.f32 %v1669, %v2082
        %v2084 = vand.u32 %v2083, 4294901760
        %v2085 = vsub.f32 %v2083, %v2084
        %v2086 = vand.u32 %v2085, 4294901760
        %2087 = vmatmul.mubr.f32.gmra.mrb[0].mxu0 %v2086
        %v2088 = vpop.f32.mrb[0].mxu0
        %v2089 = vadd.f32 0.0, %v2088
        %v2090 = vpop.f32.mrb[0].mxu0
        %2091 = vmatprep.mubr.f32.mxu0 0.0
        %v2092 = vand.u32 %v1670, 4294901760
        %v2093 = vsub.f32 %v1670, %v2092
        %v2094 = vand.u32 %v2093, 4294901760
        %v2095 = vsub.f32 %v2093, %v2094
        %v2096 = vand.u32 %v2095, 4294901760
        %2097 = vmatmul.mubr.f32.gmra.mrb[0].mxu0 %v2096
        %v2098 = vpop.f32.mrb[0].mxu0
        %v2099 = vadd.f32 0.0, %v2098
        %v2100 = vpop.f32.mrb[0].mxu0
        %2101 = vmatprep.mubr.f32.mxu0 0.0
        %v2102 = vand.u32 %v1671, 4294901760
        %v2103 = vsub.f32 %v1671, %v2102
        %v2104 = vand.u32 %v2103, 4294901760
        %v2105 = vsub.f32 %v2103, %v2104
        %v2106 = vand.u32 %v2105, 4294901760
        %2107 = vmatmul.mubr.f32.gmra.mrb[0].mxu0 %v2106
        %v2108 = vpop.f32.mrb[0].mxu0
        %v2109 = vadd.f32 0.0, %v2108
        %v2110 = vpop.f32.mrb[0].mxu0
        %2111 = vmatprep.mubr.f32.mxu0 0.0
        %v2112 = vand.u32 %v1672, 4294901760
        %v2113 = vsub.f32 %v1672, %v2112
        %v2114 = vand.u32 %v2113, 4294901760
        %v2115 = vsub.f32 %v2113, %v2114
        %v2116 = vand.u32 %v2115, 4294901760
        %2117 = vmatmul.mubr.f32.gmra.mrb[0].mxu0 %v2116
        %v2118 = vpop.f32.mrb[0].mxu0
        %v2119 = vadd.f32 0.0, %v2118
        %v2120 = vpop.f32.mrb[0].mxu0
        %2121 = vdwg.mxu0
        %2122 = vmatprep.subr.mxu0 0.0
        %v2123 = vand.u32 %v218, 4294901760
        %v2124 = vsub.f32 %v218, %v2123
        %v2125 = vand.u32 %v2124, 4294901760
        %v2126 = vsub.f32 %v2124, %v2125
        %v2127 = vand.u32 %v2126, 4294901760
        %2128 = vmatpush1.msra.mxu0 %v2127
        %2129 = vmatprep.subr.mxu0 0.0
        %v2130 = vand.u32 %v219, 4294901760
        %v2131 = vsub.f32 %v219, %v2130
        %v2132 = vand.u32 %v2131, 4294901760
        %v2133 = vsub.f32 %v2131, %v2132
        %v2134 = vand.u32 %v2133, 4294901760
        %2135 = vmatpush1.msra.mxu0 %v2134
        %2136 = vmatprep.subr.mxu0 0.0
        %v2137 = vand.u32 %v220, 4294901760
        %v2138 = vsub.f32 %v220, %v2137
        %v2139 = vand.u32 %v2138, 4294901760
        %v2140 = vsub.f32 %v2138, %v2139
        %v2141 = vand.u32 %v2140, 4294901760
        %2142 = vmatpush1.msra.mxu0 %v2141
        %2143 = vmatprep.subr.mxu0 0.0
        %v2144 = vand.u32 %v221, 4294901760
        %v2145 = vsub.f32 %v221, %v2144
        %v2146 = vand.u32 %v2145, 4294901760
        %v2147 = vsub.f32 %v2145, %v2146
        %v2148 = vand.u32 %v2147, 4294901760
        %2149 = vmatpush1.msra.mxu0 %v2148
        %2150 = vmatprep.subr.mxu0 0.0
        %v2151 = vand.u32 %v222, 4294901760
        %v2152 = vsub.f32 %v222, %v2151
        %v2153 = vand.u32 %v2152, 4294901760
        %v2154 = vsub.f32 %v2152, %v2153
        %v2155 = vand.u32 %v2154, 4294901760
        %2156 = vmatpush1.msra.mxu0 %v2155
        %2157 = vmatprep.subr.mxu0 0.0
        %v2158 = vand.u32 %v223, 4294901760
        %v2159 = vsub.f32 %v223, %v2158
        %v2160 = vand.u32 %v2159, 4294901760
        %v2161 = vsub.f32 %v2159, %v2160
        %v2162 = vand.u32 %v2161, 4294901760
        %2163 = vmatpush1.msra.mxu0 %v2162
        %2164 = vmatprep.subr.mxu0 0.0
        %v2165 = vand.u32 %v224, 4294901760
        %v2166 = vsub.f32 %v224, %v2165
        %v2167 = vand.u32 %v2166, 4294901760
        %v2168 = vsub.f32 %v2166, %v2167
        %v2169 = vand.u32 %v2168, 4294901760
        %2170 = vmatpush1.msra.mxu0 %v2169
        %2171 = vmatprep.subr.mxu0 0.0
        %v2172 = vand.u32 %v225, 4294901760
        %v2173 = vsub.f32 %v225, %v2172
        %v2174 = vand.u32 %v2173, 4294901760
        %v2175 = vsub.f32 %v2173, %v2174
        %v2176 = vand.u32 %v2175, 4294901760
        %2177 = vmatpush1.msra.mxu0 %v2176
        %2178 = vmatprep.subr.mxu0 0.0
        %v2179 = vand.u32 %v226, 4294901760
        %v2180 = vsub.f32 %v226, %v2179
        %v2181 = vand.u32 %v2180, 4294901760
        %v2182 = vsub.f32 %v2180, %v2181
        %v2183 = vand.u32 %v2182, 4294901760
        %2184 = vmatpush1.msra.mxu0 %v2183
        %2185 = vmatprep.subr.mxu0 0.0
        %v2186 = vand.u32 %v227, 4294901760
        %v2187 = vsub.f32 %v227, %v2186
        %v2188 = vand.u32 %v2187, 4294901760
        %v2189 = vsub.f32 %v2187, %v2188
        %v2190 = vand.u32 %v2189, 4294901760
        %2191 = vmatpush1.msra.mxu0 %v2190
        %2192 = vmatprep.subr.mxu0 0.0
        %v2193 = vand.u32 %v228, 4294901760
        %v2194 = vsub.f32 %v228, %v2193
        %v2195 = vand.u32 %v2194, 4294901760
        %v2196 = vsub.f32 %v2194, %v2195
        %v2197 = vand.u32 %v2196, 4294901760
        %2198 = vmatpush1.msra.mxu0 %v2197
        %2199 = vmatprep.subr.mxu0 0.0
        %v2200 = vand.u32 %v229, 4294901760
        %v2201 = vsub.f32 %v229, %v2200
        %v2202 = vand.u32 %v2201, 4294901760
        %v2203 = vsub.f32 %v2201, %v2202
        %v2204 = vand.u32 %v2203, 4294901760
        %2205 = vmatpush1.msra.mxu0 %v2204
        %2206 = vmatprep.subr.mxu0 0.0
        %v2207 = vand.u32 %v230, 4294901760
        %v2208 = vsub.f32 %v230, %v2207
        %v2209 = vand.u32 %v2208, 4294901760
        %v2210 = vsub.f32 %v2208, %v2209
        %v2211 = vand.u32 %v2210, 4294901760
        %2212 = vmatpush1.msra.mxu0 %v2211
        %2213 = vmatprep.subr.mxu0 0.0
        %v2214 = vand.u32 %v231, 4294901760
        %v2215 = vsub.f32 %v231, %v2214
        %v2216 = vand.u32 %v2215, 4294901760
        %v2217 = vsub.f32 %v2215, %v2216
        %v2218 = vand.u32 %v2217, 4294901760
        %2219 = vmatpush1.msra.mxu0 %v2218
        %2220 = vmatprep.subr.mxu0 0.0
        %v2221 = vand.u32 %v232, 4294901760
        %v2222 = vsub.f32 %v232, %v2221
        %v2223 = vand.u32 %v2222, 4294901760
        %v2224 = vsub.f32 %v2222, %v2223
        %v2225 = vand.u32 %v2224, 4294901760
        %2226 = vmatpush1.msra.mxu0 %v2225
        %2227 = vmatprep.subr.mxu0 0.0
        %v2228 = vand.u32 %v233, 4294901760
        %v2229 = vsub.f32 %v233, %v2228
        %v2230 = vand.u32 %v2229, 4294901760
        %v2231 = vsub.f32 %v2229, %v2230
        %v2232 = vand.u32 %v2231, 4294901760
        %2233 = vmatpush1.msra.mxu0 %v2232
        %2234 = vmatprep.subr.mxu0 0.0
        %2235 = vmatpush1.msra.mxu0 0.0
        %2236 = vmatprep.subr.mxu0 0.0
        %2237 = vmatpush1.msra.mxu0 0.0
        %2238 = vmatprep.subr.mxu0 0.0
        %2239 = vmatpush1.msra.mxu0 0.0
        %2240 = vmatprep.subr.mxu0 0.0
        %2241 = vmatpush1.msra.mxu0 0.0
        %2242 = vmatprep.subr.mxu0 0.0
        %2243 = vmatpush1.msra.mxu0 0.0
        %2244 = vmatprep.subr.mxu0 0.0
        %2245 = vmatpush1.msra.mxu0 0.0
        %2246 = vmatprep.subr.mxu0 0.0
        %2247 = vmatpush1.msra.mxu0 0.0
        %2248 = vmatprep.subr.mxu0 0.0
        %2249 = vmatpush1.msra.mxu0 0.0
        %2250 = vmatprep.subr.mxu0 0.0
        %2251 = vmatpush1.msra.mxu0 0.0
        %2252 = vmatprep.subr.mxu0 0.0
        %2253 = vmatpush1.msra.mxu0 0.0
        %2254 = vmatprep.subr.mxu0 0.0
        %2255 = vmatpush1.msra.mxu0 0.0
        %2256 = vmatprep.subr.mxu0 0.0
        %2257 = vmatpush1.msra.mxu0 0.0
        %2258 = vmatprep.subr.mxu0 0.0
        %2259 = vmatpush1.msra.mxu0 0.0
        %2260 = vmatprep.subr.mxu0 0.0
        %2261 = vmatpush1.msra.mxu0 0.0
        %2262 = vmatprep.subr.mxu0 0.0
        %2263 = vmatpush1.msra.mxu0 0.0
        %2264 = vmatprep.subr.mxu0 0.0
        %2265 = vmatpush1.msra.mxu0 0.0
        %2266 = vmatprep.mubr.f32.mxu0 0.0
        %v2267 = vand.u32 %v1657, 4294901760
        %2268 = vmatmul.mubr.f32.gmra.mrb[0].mxu0 %v2267
        %v2269 = vpop.f32.mrb[0].mxu0
        %v2270 = vadd.f32 %v1969, %v2269
        %v2271 = vpop.f32.mrb[0].mxu0
        %2272 = vmatprep.mubr.f32.mxu0 0.0
        %v2273 = vand.u32 %v1658, 4294901760
        %2274 = vmatmul.mubr.f32.gmra.mrb[0].mxu0 %v2273
        %v2275 = vpop.f32.mrb[0].mxu0
        %v2276 = vadd.f32 %v1979, %v2275
        %v2277 = vpop.f32.mrb[0].mxu0
        %2278 = vmatprep.mubr.f32.mxu0 0.0
        %v2279 = vand.u32 %v1659, 4294901760
        %2280 = vmatmul.mubr.f32.gmra.mrb[0].mxu0 %v2279
        %v2281 = vpop.f32.mrb[0].mxu0
        %v2282 = vadd.f32 %v1989, %v2281
        %v2283 = vpop.f32.mrb[0].mxu0
        %2284 = vmatprep.mubr.f32.mxu0 0.0
        %v2285 = vand.u32 %v1660, 4294901760
        %2286 = vmatmul.mubr.f32.gmra.mrb[0].mxu0 %v2285
        %v2287 = vpop.f32.mrb[0].mxu0
        %v2288 = vadd.f32 %v1999, %v2287
        %v2289 = vpop.f32.mrb[0].mxu0
        %2290 = vmatprep.mubr.f32.mxu0 0.0
        %v2291 = vand.u32 %v1661, 4294901760
        %2292 = vmatmul.mubr.f32.gmra.mrb[0].mxu0 %v2291
        %v2293 = vpop.f32.mrb[0].mxu0
        %v2294 = vadd.f32 %v2009, %v2293
        %v2295 = vpop.f32.mrb[0].mxu0
        %2296 = vmatprep.mubr.f32.mxu0 0.0
        %v2297 = vand.u32 %v1662, 4294901760
        %2298 = vmatmul.mubr.f32.gmra.mrb[0].mxu0 %v2297
        %v2299 = vpop.f32.mrb[0].mxu0
        %v2300 = vadd.f32 %v2019, %v2299
        %v2301 = vpop.f32.mrb[0].mxu0
        %2302 = vmatprep.mubr.f32.mxu0 0.0
        %v2303 = vand.u32 %v1663, 4294901760
        %2304 = vmatmul.mubr.f32.gmra.mrb[0].mxu0 %v2303
        %v2305 = vpop.f32.mrb[0].mxu0
        %v2306 = vadd.f32 %v2029, %v2305
        %v2307 = vpop.f32.mrb[0].mxu0
        %2308 = vmatprep.mubr.f32.mxu0 0.0
        %v2309 = vand.u32 %v1664, 4294901760
        %2310 = vmatmul.mubr.f32.gmra.mrb[0].mxu0 %v2309
        %v2311 = vpop.f32.mrb[0].mxu0
        %v2312 = vadd.f32 %v2039, %v2311
        %v2313 = vpop.f32.mrb[0].mxu0
        %2314 = vmatprep.mubr.f32.mxu0 0.0
        %v2315 = vand.u32 %v1665, 4294901760
        %2316 = vmatmul.mubr.f32.gmra.mrb[0].mxu0 %v2315
        %v2317 = vpop.f32.mrb[0].mxu0
        %v2318 = vadd.f32 %v2049, %v2317
        %v2319 = vpop.f32.mrb[0].mxu0
        %2320 = vmatprep.mubr.f32.mxu0 0.0
        %v2321 = vand.u32 %v1666, 4294901760
        %2322 = vmatmul.mubr.f32.gmra.mrb[0].mxu0 %v2321
        %v2323 = vpop.f32.mrb[0].mxu0
        %v2324 = vadd.f32 %v2059, %v2323
        %v2325 = vpop.f32.mrb[0].mxu0
        %2326 = vmatprep.mubr.f32.mxu0 0.0
        %v2327 = vand.u32 %v1667, 4294901760
        %2328 = vmatmul.mubr.f32.gmra.mrb[0].mxu0 %v2327
        %v2329 = vpop.f32.mrb[0].mxu0
        %v2330 = vadd.f32 %v2069, %v2329
        %v2331 = vpop.f32.mrb[0].mxu0
        %2332 = vmatprep.mubr.f32.mxu0 0.0
        %v2333 = vand.u32 %v1668, 4294901760
        %2334 = vmatmul.mubr.f32.gmra.mrb[0].mxu0 %v2333
        %v2335 = vpop.f32.mrb[0].mxu0
        %v2336 = vadd.f32 %v2079, %v2335
        %v2337 = vpop.f32.mrb[0].mxu0
        %2338 = vmatprep.mubr.f32.mxu0 0.0
        %v2339 = vand.u32 %v1669, 4294901760
        %2340 = vmatmul.mubr.f32.gmra.mrb[0].mxu0 %v2339
        %v2341 = vpop.f32.mrb[0].mxu0
        %v2342 = vadd.f32 %v2089, %v2341
        %v2343 = vpop.f32.mrb[0].mxu0
        %2344 = vmatprep.mubr.f32.mxu0 0.0
        %v2345 = vand.u32 %v1670, 4294901760
        %2346 = vmatmul.mubr.f32.gmra.mrb[0].mxu0 %v2345
        %v2347 = vpop.f32.mrb[0].mxu0
        %v2348 = vadd.f32 %v2099, %v2347
        %v2349 = vpop.f32.mrb[0].mxu0
        %2350 = vmatprep.mubr.f32.mxu0 0.0
        %v2351 = vand.u32 %v1671, 4294901760
        %2352 = vmatmul.mubr.f32.gmra.mrb[0].mxu0 %v2351
        %v2353 = vpop.f32.mrb[0].mxu0
        %v2354 = vadd.f32 %v2109, %v2353
        %v2355 = vpop.f32.mrb[0].mxu0
        %2356 = vmatprep.mubr.f32.mxu0 0.0
        %v2357 = vand.u32 %v1672, 4294901760
        %2358 = vmatmul.mubr.f32.gmra.mrb[0].mxu0 %v2357
        %v2359 = vpop.f32.mrb[0].mxu0
        %v2360 = vadd.f32 %v2119, %v2359
        %v2361 = vpop.f32.mrb[0].mxu0
        %2362 = vdwg.mxu0
        %2363 = vmatprep.subr.mxu0 0.0
        %v2364 = vand.u32 %v218, 4294901760
        %v2365 = vsub.f32 %v218, %v2364
        %2366 = vmatpush1.msra.mxu0 %v2365
        %2367 = vmatprep.subr.mxu0 0.0
        %v2368 = vand.u32 %v219, 4294901760
        %v2369 = vsub.f32 %v219, %v2368
        %2370 = vmatpush1.msra.mxu0 %v2369
        %2371 = vmatprep.subr.mxu0 0.0
        %v2372 = vand.u32 %v220, 4294901760
        %v2373 = vsub.f32 %v220, %v2372
        %2374 = vmatpush1.msra.mxu0 %v2373
        %2375 = vmatprep.subr.mxu0 0.0
        %v2376 = vand.u32 %v221, 4294901760
        %v2377 = vsub.f32 %v221, %v2376
        %2378 = vmatpush1.msra.mxu0 %v2377
        %2379 = vmatprep.subr.mxu0 0.0
        %v2380 = vand.u32 %v222, 4294901760
        %v2381 = vsub.f32 %v222, %v2380
        %2382 = vmatpush1.msra.mxu0 %v2381
        %2383 = vmatprep.subr.mxu0 0.0
        %v2384 = vand.u32 %v223, 4294901760
        %v2385 = vsub.f32 %v223, %v2384
        %2386 = vmatpush1.msra.mxu0 %v2385
        %2387 = vmatprep.subr.mxu0 0.0
        %v2388 = vand.u32 %v224, 4294901760
        %v2389 = vsub.f32 %v224, %v2388
        %2390 = vmatpush1.msra.mxu0 %v2389
        %2391 = vmatprep.subr.mxu0 0.0
        %v2392 = vand.u32 %v225, 4294901760
        %v2393 = vsub.f32 %v225, %v2392
        %2394 = vmatpush1.msra.mxu0 %v2393
        %2395 = vmatprep.subr.mxu0 0.0
        %v2396 = vand.u32 %v226, 4294901760
        %v2397 = vsub.f32 %v226, %v2396
        %2398 = vmatpush1.msra.mxu0 %v2397
        %2399 = vmatprep.subr.mxu0 0.0
        %v2400 = vand.u32 %v227, 4294901760
        %v2401 = vsub.f32 %v227, %v2400
        %2402 = vmatpush1.msra.mxu0 %v2401
        %2403 = vmatprep.subr.mxu0 0.0
        %v2404 = vand.u32 %v228, 4294901760
        %v2405 = vsub.f32 %v228, %v2404
        %2406 = vmatpush1.msra.mxu0 %v2405
        %2407 = vmatprep.subr.mxu0 0.0
        %v2408 = vand.u32 %v229, 4294901760
        %v2409 = vsub.f32 %v229, %v2408
        %2410 = vmatpush1.msra.mxu0 %v2409
        %2411 = vmatprep.subr.mxu0 0.0
        %v2412 = vand.u32 %v230, 4294901760
        %v2413 = vsub.f32 %v230, %v2412
        %2414 = vmatpush1.msra.mxu0 %v2413
        %2415 = vmatprep.subr.mxu0 0.0
        %v2416 = vand.u32 %v231, 4294901760
        %v2417 = vsub.f32 %v231, %v2416
        %2418 = vmatpush1.msra.mxu0 %v2417
        %2419 = vmatprep.subr.mxu0 0.0
        %v2420 = vand.u32 %v232, 4294901760
        %v2421 = vsub.f32 %v232, %v2420
        %2422 = vmatpush1.msra.mxu0 %v2421
        %2423 = vmatprep.subr.mxu0 0.0
        %v2424 = vand.u32 %v233, 4294901760
        %v2425 = vsub.f32 %v233, %v2424
        %2426 = vmatpush1.msra.mxu0 %v2425
        %2427 = vmatprep.subr.mxu0 0.0
        %2428 = vmatpush1.msra.mxu0 0.0
        %2429 = vmatprep.subr.mxu0 0.0
        %2430 = vmatpush1.msra.mxu0 0.0
        %2431 = vmatprep.subr.mxu0 0.0
        %2432 = vmatpush1.msra.mxu0 0.0
        %2433 = vmatprep.subr.mxu0 0.0
        %2434 = vmatpush1.msra.mxu0 0.0
        %2435 = vmatprep.subr.mxu0 0.0
        %2436 = vmatpush1.msra.mxu0 0.0
        %2437 = vmatprep.subr.mxu0 0.0
        %2438 = vmatpush1.msra.mxu0 0.0
        %2439 = vmatprep.subr.mxu0 0.0
        %2440 = vmatpush1.msra.mxu0 0.0
        %2441 = vmatprep.subr.mxu0 0.0
        %2442 = vmatpush1.msra.mxu0 0.0
        %2443 = vmatprep.subr.mxu0 0.0
        %2444 = vmatpush1.msra.mxu0 0.0
        %2445 = vmatprep.subr.mxu0 0.0
        %2446 = vmatpush1.msra.mxu0 0.0
        %2447 = vmatprep.subr.mxu0 0.0
        %2448 = vmatpush1.msra.mxu0 0.0
        %2449 = vmatprep.subr.mxu0 0.0
        %2450 = vmatpush1.msra.mxu0 0.0
        %2451 = vmatprep.subr.mxu0 0.0
        %2452 = vmatpush1.msra.mxu0 0.0
        %2453 = vmatprep.subr.mxu0 0.0
        %2454 = vmatpush1.msra.mxu0 0.0
        %2455 = vmatprep.subr.mxu0 0.0
        %2456 = vmatpush1.msra.mxu0 0.0
        %2457 = vmatprep.subr.mxu0 0.0
        %2458 = vmatpush1.msra.mxu0 0.0
        %2459 = vmatprep.mubr.f32.mxu0 0.0
        %v2460 = vand.u32 %v1657, 4294901760
        %v2461 = vsub.f32 %v1657, %v2460
        %2462 = vmatmul.mubr.f32.gmra.mrb[0].mxu0 %v2461
        %v2463 = vpop.f32.mrb[0].mxu0
        %v2464 = vadd.f32 %v2270, %v2463
        %v2465 = vpop.f32.mrb[0].mxu0
        %2466 = vmatprep.mubr.f32.mxu0 0.0
        %v2467 = vand.u32 %v1658, 4294901760
        %v2468 = vsub.f32 %v1658, %v2467
        %2469 = vmatmul.mubr.f32.gmra.mrb[0].mxu0 %v2468
        %v2470 = vpop.f32.mrb[0].mxu0
        %v2471 = vadd.f32 %v2276, %v2470
        %v2472 = vpop.f32.mrb[0].mxu0
        %2473 = vmatprep.mubr.f32.mxu0 0.0
        %v2474 = vand.u32 %v1659, 4294901760
        %v2475 = vsub.f32 %v1659, %v2474
        %2476 = vmatmul.mubr.f32.gmra.mrb[0].mxu0 %v2475
        %v2477 = vpop.f32.mrb[0].mxu0
        %v2478 = vadd.f32 %v2282, %v2477
        %v2479 = vpop.f32.mrb[0].mxu0
        %2480 = vmatprep.mubr.f32.mxu0 0.0
        %v2481 = vand.u32 %v1660, 4294901760
        %v2482 = vsub.f32 %v1660, %v2481
        %2483 = vmatmul.mubr.f32.gmra.mrb[0].mxu0 %v2482
        %v2484 = vpop.f32.mrb[0].mxu0
        %v2485 = vadd.f32 %v2288, %v2484
        %v2486 = vpop.f32.mrb[0].mxu0
        %2487 = vmatprep.mubr.f32.mxu0 0.0
        %v2488 = vand.u32 %v1661, 4294901760
        %v2489 = vsub.f32 %v1661, %v2488
        %2490 = vmatmul.mubr.f32.gmra.mrb[0].mxu0 %v2489
        %v2491 = vpop.f32.mrb[0].mxu0
        %v2492 = vadd.f32 %v2294, %v2491
        %v2493 = vpop.f32.mrb[0].mxu0
        %2494 = vmatprep.mubr.f32.mxu0 0.0
        %v2495 = vand.u32 %v1662, 4294901760
        %v2496 = vsub.f32 %v1662, %v2495
        %2497 = vmatmul.mubr.f32.gmra.mrb[0].mxu0 %v2496
        %v2498 = vpop.f32.mrb[0].mxu0
        %v2499 = vadd.f32 %v2300, %v2498
        %v2500 = vpop.f32.mrb[0].mxu0
        %2501 = vmatprep.mubr.f32.mxu0 0.0
        %v2502 = vand.u32 %v1663, 4294901760
        %v2503 = vsub.f32 %v1663, %v2502
        %2504 = vmatmul.mubr.f32.gmra.mrb[0].mxu0 %v2503
        %v2505 = vpop.f32.mrb[0].mxu0
        %v2506 = vadd.f32 %v2306, %v2505
        %v2507 = vpop.f32.mrb[0].mxu0
        %2508 = vmatprep.mubr.f32.mxu0 0.0
        %v2509 = vand.u32 %v1664, 4294901760
        %v2510 = vsub.f32 %v1664, %v2509
        %2511 = vmatmul.mubr.f32.gmra.mrb[0].mxu0 %v2510
        %v2512 = vpop.f32.mrb[0].mxu0
        %v2513 = vadd.f32 %v2312, %v2512
        %v2514 = vpop.f32.mrb[0].mxu0
        %2515 = vmatprep.mubr.f32.mxu0 0.0
        %v2516 = vand.u32 %v1665, 4294901760
        %v2517 = vsub.f32 %v1665, %v2516
        %2518 = vmatmul.mubr.f32.gmra.mrb[0].mxu0 %v2517
        %v2519 = vpop.f32.mrb[0].mxu0
        %v2520 = vadd.f32 %v2318, %v2519
        %v2521 = vpop.f32.mrb[0].mxu0
        %2522 = vmatprep.mubr.f32.mxu0 0.0
        %v2523 = vand.u32 %v1666, 4294901760
        %v2524 = vsub.f32 %v1666, %v2523
        %2525 = vmatmul.mubr.f32.gmra.mrb[0].mxu0 %v2524
        %v2526 = vpop.f32.mrb[0].mxu0
        %v2527 = vadd.f32 %v2324, %v2526
        %v2528 = vpop.f32.mrb[0].mxu0
        %2529 = vmatprep.mubr.f32.mxu0 0.0
        %v2530 = vand.u32 %v1667, 4294901760
        %v2531 = vsub.f32 %v1667, %v2530
        %2532 = vmatmul.mubr.f32.gmra.mrb[0].mxu0 %v2531
        %v2533 = vpop.f32.mrb[0].mxu0
        %v2534 = vadd.f32 %v2330, %v2533
        %v2535 = vpop.f32.mrb[0].mxu0
        %2536 = vmatprep.mubr.f32.mxu0 0.0
        %v2537 = vand.u32 %v1668, 4294901760
        %v2538 = vsub.f32 %v1668, %v2537
        %2539 = vmatmul.mubr.f32.gmra.mrb[0].mxu0 %v2538
        %v2540 = vpop.f32.mrb[0].mxu0
        %v2541 = vadd.f32 %v2336, %v2540
        %v2542 = vpop.f32.mrb[0].mxu0
        %2543 = vmatprep.mubr.f32.mxu0 0.0
        %v2544 = vand.u32 %v1669, 4294901760
        %v2545 = vsub.f32 %v1669, %v2544
        %2546 = vmatmul.mubr.f32.gmra.mrb[0].mxu0 %v2545
        %v2547 = vpop.f32.mrb[0].mxu0
        %v2548 = vadd.f32 %v2342, %v2547
        %v2549 = vpop.f32.mrb[0].mxu0
        %2550 = vmatprep.mubr.f32.mxu0 0.0
        %v2551 = vand.u32 %v1670, 4294901760
        %v2552 = vsub.f32 %v1670, %v2551
        %2553 = vmatmul.mubr.f32.gmra.mrb[0].mxu0 %v2552
        %v2554 = vpop.f32.mrb[0].mxu0
        %v2555 = vadd.f32 %v2348, %v2554
        %v2556 = vpop.f32.mrb[0].mxu0
        %2557 = vmatprep.mubr.f32.mxu0 0.0
        %v2558 = vand.u32 %v1671, 4294901760
        %v2559 = vsub.f32 %v1671, %v2558
        %2560 = vmatmul.mubr.f32.gmra.mrb[0].mxu0 %v2559
        %v2561 = vpop.f32.mrb[0].mxu0
        %v2562 = vadd.f32 %v2354, %v2561
        %v2563 = vpop.f32.mrb[0].mxu0
        %2564 = vmatprep.mubr.f32.mxu0 0.0
        %v2565 = vand.u32 %v1672, 4294901760
        %v2566 = vsub.f32 %v1672, %v2565
        %2567 = vmatmul.mubr.f32.gmra.mrb[0].mxu0 %v2566
        %v2568 = vpop.f32.mrb[0].mxu0
        %v2569 = vadd.f32 %v2360, %v2568
        %v2570 = vpop.f32.mrb[0].mxu0
        %2571 = vdwg.mxu0
        %2572 = vmatprep.subr.mxu0 0.0
        %v2573 = vand.u32 %v218, 4294901760
        %2574 = vmatpush1.msra.mxu0 %v2573
        %2575 = vmatprep.subr.mxu0 0.0
        %v2576 = vand.u32 %v219, 4294901760
        %2577 = vmatpush1.msra.mxu0 %v2576
        %2578 = vmatprep.subr.mxu0 0.0
        %v2579 = vand.u32 %v220, 4294901760
        %2580 = vmatpush1.msra.mxu0 %v2579
        %2581 = vmatprep.subr.mxu0 0.0
        %v2582 = vand.u32 %v221, 4294901760
        %2583 = vmatpush1.msra.mxu0 %v2582
        %2584 = vmatprep.subr.mxu0 0.0
        %v2585 = vand.u32 %v222, 4294901760
        %2586 = vmatpush1.msra.mxu0 %v2585
        %2587 = vmatprep.subr.mxu0 0.0
        %v2588 = vand.u32 %v223, 4294901760
        %2589 = vmatpush1.msra.mxu0 %v2588
        %2590 = vmatprep.subr.mxu0 0.0
        %v2591 = vand.u32 %v224, 4294901760
        %2592 = vmatpush1.msra.mxu0 %v2591
        %2593 = vmatprep.subr.mxu0 0.0
        %v2594 = vand.u32 %v225, 4294901760
        %2595 = vmatpush1.msra.mxu0 %v2594
        %2596 = vmatprep.subr.mxu0 0.0
        %v2597 = vand.u32 %v226, 4294901760
        %2598 = vmatpush1.msra.mxu0 %v2597
        %2599 = vmatprep.subr.mxu0 0.0
        %v2600 = vand.u32 %v227, 4294901760
        %2601 = vmatpush1.msra.mxu0 %v2600
        %2602 = vmatprep.subr.mxu0 0.0
        %v2603 = vand.u32 %v228, 4294901760
        %2604 = vmatpush1.msra.mxu0 %v2603
        %2605 = vmatprep.subr.mxu0 0.0
        %v2606 = vand.u32 %v229, 4294901760
        %2607 = vmatpush1.msra.mxu0 %v2606
        %2608 = vmatprep.subr.mxu0 0.0
        %v2609 = vand.u32 %v230, 4294901760
        %2610 = vmatpush1.msra.mxu0 %v2609
        %2611 = vmatprep.subr.mxu0 0.0
        %v2612 = vand.u32 %v231, 4294901760
        %2613 = vmatpush1.msra.mxu0 %v2612
        %2614 = vmatprep.subr.mxu0 0.0
        %v2615 = vand.u32 %v232, 4294901760
        %2616 = vmatpush1.msra.mxu0 %v2615
        %2617 = vmatprep.subr.mxu0 0.0
        %v2618 = vand.u32 %v233, 4294901760
        %2619 = vmatpush1.msra.mxu0 %v2618
        %2620 = vmatprep.subr.mxu0 0.0
        %2621 = vmatpush1.msra.mxu0 0.0
        %2622 = vmatprep.subr.mxu0 0.0
        %2623 = vmatpush1.msra.mxu0 0.0
        %2624 = vmatprep.subr.mxu0 0.0
        %2625 = vmatpush1.msra.mxu0 0.0
        %2626 = vmatprep.subr.mxu0 0.0
        %2627 = vmatpush1.msra.mxu0 0.0
        %2628 = vmatprep.subr.mxu0 0.0
        %2629 = vmatpush1.msra.mxu0 0.0
        %2630 = vmatprep.subr.mxu0 0.0
        %2631 = vmatpush1.msra.mxu0 0.0
        %2632 = vmatprep.subr.mxu0 0.0
        %2633 = vmatpush1.msra.mxu0 0.0
        %2634 = vmatprep.subr.mxu0 0.0
        %2635 = vmatpush1.msra.mxu0 0.0
        %2636 = vmatprep.subr.mxu0 0.0
        %2637 = vmatpush1.msra.mxu0 0.0
        %2638 = vmatprep.subr.mxu0 0.0
        %2639 = vmatpush1.msra.mxu0 0.0
        %2640 = vmatprep.subr.mxu0 0.0
        %2641 = vmatpush1.msra.mxu0 0.0
        %2642 = vmatprep.subr.mxu0 0.0
        %2643 = vmatpush1.msra.mxu0 0.0
        %2644 = vmatprep.subr.mxu0 0.0
        %2645 = vmatpush1.msra.mxu0 0.0
        %2646 = vmatprep.subr.mxu0 0.0
        %2647 = vmatpush1.msra.mxu0 0.0
        %2648 = vmatprep.subr.mxu0 0.0
        %2649 = vmatpush1.msra.mxu0 0.0
        %2650 = vmatprep.subr.mxu0 0.0
        %2651 = vmatpush1.msra.mxu0 0.0
        %2652 = vmatprep.mubr.f32.mxu0 0.0
        %v2653 = vand.u32 %v1657, 4294901760
        %v2654 = vsub.f32 %v1657, %v2653
        %v2655 = vand.u32 %v2654, 4294901760
        %2656 = vmatmul.mubr.f32.gmra.mrb[0].mxu0 %v2655
        %v2657 = vpop.f32.mrb[0].mxu0
        %v2658 = vadd.f32 %v2464, %v2657
        %v2659 = vpop.f32.mrb[0].mxu0
        %2660 = vmatprep.mubr.f32.mxu0 0.0
        %v2661 = vand.u32 %v1658, 4294901760
        %v2662 = vsub.f32 %v1658, %v2661
        %v2663 = vand.u32 %v2662, 4294901760
        %2664 = vmatmul.mubr.f32.gmra.mrb[0].mxu0 %v2663
        %v2665 = vpop.f32.mrb[0].mxu0
        %v2666 = vadd.f32 %v2471, %v2665
        %v2667 = vpop.f32.mrb[0].mxu0
        %2668 = vmatprep.mubr.f32.mxu0 0.0
        %v2669 = vand.u32 %v1659, 4294901760
        %v2670 = vsub.f32 %v1659, %v2669
        %v2671 = vand.u32 %v2670, 4294901760
        %2672 = vmatmul.mubr.f32.gmra.mrb[0].mxu0 %v2671
        %v2673 = vpop.f32.mrb[0].mxu0
        %v2674 = vadd.f32 %v2478, %v2673
        %v2675 = vpop.f32.mrb[0].mxu0
        %2676 = vmatprep.mubr.f32.mxu0 0.0
        %v2677 = vand.u32 %v1660, 4294901760
        %v2678 = vsub.f32 %v1660, %v2677
        %v2679 = vand.u32 %v2678, 4294901760
        %2680 = vmatmul.mubr.f32.gmra.mrb[0].mxu0 %v2679
        %v2681 = vpop.f32.mrb[0].mxu0
        %v2682 = vadd.f32 %v2485, %v2681
        %v2683 = vpop.f32.mrb[0].mxu0
        %2684 = vmatprep.mubr.f32.mxu0 0.0
        %v2685 = vand.u32 %v1661, 4294901760
        %v2686 = vsub.f32 %v1661, %v2685
        %v2687 = vand.u32 %v2686, 4294901760
        %2688 = vmatmul.mubr.f32.gmra.mrb[0].mxu0 %v2687
        %v2689 = vpop.f32.mrb[0].mxu0
        %v2690 = vadd.f32 %v2492, %v2689
        %v2691 = vpop.f32.mrb[0].mxu0
        %2692 = vmatprep.mubr.f32.mxu0 0.0
        %v2693 = vand.u32 %v1662, 4294901760
        %v2694 = vsub.f32 %v1662, %v2693
        %v2695 = vand.u32 %v2694, 4294901760
        %2696 = vmatmul.mubr.f32.gmra.mrb[0].mxu0 %v2695
        %v2697 = vpop.f32.mrb[0].mxu0
        %v2698 = vadd.f32 %v2499, %v2697
        %v2699 = vpop.f32.mrb[0].mxu0
        %2700 = vmatprep.mubr.f32.mxu0 0.0
        %v2701 = vand.u32 %v1663, 4294901760
        %v2702 = vsub.f32 %v1663, %v2701
        %v2703 = vand.u32 %v2702, 4294901760
        %2704 = vmatmul.mubr.f32.gmra.mrb[0].mxu0 %v2703
        %v2705 = vpop.f32.mrb[0].mxu0
        %v2706 = vadd.f32 %v2506, %v2705
        %v2707 = vpop.f32.mrb[0].mxu0
        %2708 = vmatprep.mubr.f32.mxu0 0.0
        %v2709 = vand.u32 %v1664, 4294901760
        %v2710 = vsub.f32 %v1664, %v2709
        %v2711 = vand.u32 %v2710, 4294901760
        %2712 = vmatmul.mubr.f32.gmra.mrb[0].mxu0 %v2711
        %v2713 = vpop.f32.mrb[0].mxu0
        %v2714 = vadd.f32 %v2513, %v2713
        %v2715 = vpop.f32.mrb[0].mxu0
        %2716 = vmatprep.mubr.f32.mxu0 0.0
        %v2717 = vand.u32 %v1665, 4294901760
        %v2718 = vsub.f32 %v1665, %v2717
        %v2719 = vand.u32 %v2718, 4294901760
        %2720 = vmatmul.mubr.f32.gmra.mrb[0].mxu0 %v2719
        %v2721 = vpop.f32.mrb[0].mxu0
        %v2722 = vadd.f32 %v2520, %v2721
        %v2723 = vpop.f32.mrb[0].mxu0
        %2724 = vmatprep.mubr.f32.mxu0 0.0
        %v2725 = vand.u32 %v1666, 4294901760
        %v2726 = vsub.f32 %v1666, %v2725
        %v2727 = vand.u32 %v2726, 4294901760
        %2728 = vmatmul.mubr.f32.gmra.mrb[0].mxu0 %v2727
        %v2729 = vpop.f32.mrb[0].mxu0
        %v2730 = vadd.f32 %v2527, %v2729
        %v2731 = vpop.f32.mrb[0].mxu0
        %2732 = vmatprep.mubr.f32.mxu0 0.0
        %v2733 = vand.u32 %v1667, 4294901760
        %v2734 = vsub.f32 %v1667, %v2733
        %v2735 = vand.u32 %v2734, 4294901760
        %2736 = vmatmul.mubr.f32.gmra.mrb[0].mxu0 %v2735
        %v2737 = vpop.f32.mrb[0].mxu0
        %v2738 = vadd.f32 %v2534, %v2737
        %v2739 = vpop.f32.mrb[0].mxu0
        %2740 = vmatprep.mubr.f32.mxu0 0.0
        %v2741 = vand.u32 %v1668, 4294901760
        %v2742 = vsub.f32 %v1668, %v2741
        %v2743 = vand.u32 %v2742, 4294901760
        %2744 = vmatmul.mubr.f32.gmra.mrb[0].mxu0 %v2743
        %v2745 = vpop.f32.mrb[0].mxu0
        %v2746 = vadd.f32 %v2541, %v2745
        %v2747 = vpop.f32.mrb[0].mxu0
        %2748 = vmatprep.mubr.f32.mxu0 0.0
        %v2749 = vand.u32 %v1669, 4294901760
        %v2750 = vsub.f32 %v1669, %v2749
        %v2751 = vand.u32 %v2750, 4294901760
        %2752 = vmatmul.mubr.f32.gmra.mrb[0].mxu0 %v2751
        %v2753 = vpop.f32.mrb[0].mxu0
        %v2754 = vadd.f32 %v2548, %v2753
        %v2755 = vpop.f32.mrb[0].mxu0
        %2756 = vmatprep.mubr.f32.mxu0 0.0
        %v2757 = vand.u32 %v1670, 4294901760
        %v2758 = vsub.f32 %v1670, %v2757
        %v2759 = vand.u32 %v2758, 4294901760
        %2760 = vmatmul.mubr.f32.gmra.mrb[0].mxu0 %v2759
        %v2761 = vpop.f32.mrb[0].mxu0
        %v2762 = vadd.f32 %v2555, %v2761
        %v2763 = vpop.f32.mrb[0].mxu0
        %2764 = vmatprep.mubr.f32.mxu0 0.0
        %v2765 = vand.u32 %v1671, 4294901760
        %v2766 = vsub.f32 %v1671, %v2765
        %v2767 = vand.u32 %v2766, 4294901760
        %2768 = vmatmul.mubr.f32.gmra.mrb[0].mxu0 %v2767
        %v2769 = vpop.f32.mrb[0].mxu0
        %v2770 = vadd.f32 %v2562, %v2769
        %v2771 = vpop.f32.mrb[0].mxu0
        %2772 = vmatprep.mubr.f32.mxu0 0.0
        %v2773 = vand.u32 %v1672, 4294901760
        %v2774 = vsub.f32 %v1672, %v2773
        %v2775 = vand.u32 %v2774, 4294901760
        %2776 = vmatmul.mubr.f32.gmra.mrb[0].mxu0 %v2775
        %v2777 = vpop.f32.mrb[0].mxu0
        %v2778 = vadd.f32 %v2569, %v2777
        %v2779 = vpop.f32.mrb[0].mxu0
        %2780 = vdwg.mxu0
        %2781 = vmatprep.subr.mxu0 0.0
        %v2782 = vand.u32 %v218, 4294901760
        %v2783 = vsub.f32 %v218, %v2782
        %v2784 = vand.u32 %v2783, 4294901760
        %2785 = vmatpush1.msra.mxu0 %v2784
        %2786 = vmatprep.subr.mxu0 0.0
        %v2787 = vand.u32 %v219, 4294901760
        %v2788 = vsub.f32 %v219, %v2787
        %v2789 = vand.u32 %v2788, 4294901760
        %2790 = vmatpush1.msra.mxu0 %v2789
        %2791 = vmatprep.subr.mxu0 0.0
        %v2792 = vand.u32 %v220, 4294901760
        %v2793 = vsub.f32 %v220, %v2792
        %v2794 = vand.u32 %v2793, 4294901760
        %2795 = vmatpush1.msra.mxu0 %v2794
        %2796 = vmatprep.subr.mxu0 0.0
        %v2797 = vand.u32 %v221, 4294901760
        %v2798 = vsub.f32 %v221, %v2797
        %v2799 = vand.u32 %v2798, 4294901760
        %2800 = vmatpush1.msra.mxu0 %v2799
        %2801 = vmatprep.subr.mxu0 0.0
        %v2802 = vand.u32 %v222, 4294901760
        %v2803 = vsub.f32 %v222, %v2802
        %v2804 = vand.u32 %v2803, 4294901760
        %2805 = vmatpush1.msra.mxu0 %v2804
        %2806 = vmatprep.subr.mxu0 0.0
        %v2807 = vand.u32 %v223, 4294901760
        %v2808 = vsub.f32 %v223, %v2807
        %v2809 = vand.u32 %v2808, 4294901760
        %2810 = vmatpush1.msra.mxu0 %v2809
        %2811 = vmatprep.subr.mxu0 0.0
        %v2812 = vand.u32 %v224, 4294901760
        %v2813 = vsub.f32 %v224, %v2812
        %v2814 = vand.u32 %v2813, 4294901760
        %2815 = vmatpush1.msra.mxu0 %v2814
        %2816 = vmatprep.subr.mxu0 0.0
        %v2817 = vand.u32 %v225, 4294901760
        %v2818 = vsub.f32 %v225, %v2817
        %v2819 = vand.u32 %v2818, 4294901760
        %2820 = vmatpush1.msra.mxu0 %v2819
        %2821 = vmatprep.subr.mxu0 0.0
        %v2822 = vand.u32 %v226, 4294901760
        %v2823 = vsub.f32 %v226, %v2822
        %v2824 = vand.u32 %v2823, 4294901760
        %2825 = vmatpush1.msra.mxu0 %v2824
        %2826 = vmatprep.subr.mxu0 0.0
        %v2827 = vand.u32 %v227, 4294901760
        %v2828 = vsub.f32 %v227, %v2827
        %v2829 = vand.u32 %v2828, 4294901760
        %2830 = vmatpush1.msra.mxu0 %v2829
        %2831 = vmatprep.subr.mxu0 0.0
        %v2832 = vand.u32 %v228, 4294901760
        %v2833 = vsub.f32 %v228, %v2832
        %v2834 = vand.u32 %v2833, 4294901760
        %2835 = vmatpush1.msra.mxu0 %v2834
        %2836 = vmatprep.subr.mxu0 0.0
        %v2837 = vand.u32 %v229, 4294901760
        %v2838 = vsub.f32 %v229, %v2837
        %v2839 = vand.u32 %v2838, 4294901760
        %2840 = vmatpush1.msra.mxu0 %v2839
        %2841 = vmatprep.subr.mxu0 0.0
        %v2842 = vand.u32 %v230, 4294901760
        %v2843 = vsub.f32 %v230, %v2842
        %v2844 = vand.u32 %v2843, 4294901760
        %2845 = vmatpush1.msra.mxu0 %v2844
        %2846 = vmatprep.subr.mxu0 0.0
        %v2847 = vand.u32 %v231, 4294901760
        %v2848 = vsub.f32 %v231, %v2847
        %v2849 = vand.u32 %v2848, 4294901760
        %2850 = vmatpush1.msra.mxu0 %v2849
        %2851 = vmatprep.subr.mxu0 0.0
        %v2852 = vand.u32 %v232, 4294901760
        %v2853 = vsub.f32 %v232, %v2852
        %v2854 = vand.u32 %v2853, 4294901760
        %2855 = vmatpush1.msra.mxu0 %v2854
        %2856 = vmatprep.subr.mxu0 0.0
        %v2857 = vand.u32 %v233, 4294901760
        %v2858 = vsub.f32 %v233, %v2857
        %v2859 = vand.u32 %v2858, 4294901760
        %2860 = vmatpush1.msra.mxu0 %v2859
        %2861 = vmatprep.subr.mxu0 0.0
        %2862 = vmatpush1.msra.mxu0 0.0
        %2863 = vmatprep.subr.mxu0 0.0
        %2864 = vmatpush1.msra.mxu0 0.0
        %2865 = vmatprep.subr.mxu0 0.0
        %2866 = vmatpush1.msra.mxu0 0.0
        %2867 = vmatprep.subr.mxu0 0.0
        %2868 = vmatpush1.msra.mxu0 0.0
        %2869 = vmatprep.subr.mxu0 0.0
        %2870 = vmatpush1.msra.mxu0 0.0
        %2871 = vmatprep.subr.mxu0 0.0
        %2872 = vmatpush1.msra.mxu0 0.0
        %2873 = vmatprep.subr.mxu0 0.0
        %2874 = vmatpush1.msra.mxu0 0.0
        %2875 = vmatprep.subr.mxu0 0.0
        %2876 = vmatpush1.msra.mxu0 0.0
        %2877 = vmatprep.subr.mxu0 0.0
        %2878 = vmatpush1.msra.mxu0 0.0
        %2879 = vmatprep.subr.mxu0 0.0
        %2880 = vmatpush1.msra.mxu0 0.0
        %2881 = vmatprep.subr.mxu0 0.0
        %2882 = vmatpush1.msra.mxu0 0.0
        %2883 = vmatprep.subr.mxu0 0.0
        %2884 = vmatpush1.msra.mxu0 0.0
        %2885 = vmatprep.subr.mxu0 0.0
        %2886 = vmatpush1.msra.mxu0 0.0
        %2887 = vmatprep.subr.mxu0 0.0
        %2888 = vmatpush1.msra.mxu0 0.0
        %2889 = vmatprep.subr.mxu0 0.0
        %2890 = vmatpush1.msra.mxu0 0.0
        %2891 = vmatprep.subr.mxu0 0.0
        %2892 = vmatpush1.msra.mxu0 0.0
        %2893 = vmatprep.mubr.f32.mxu0 0.0
        %v2894 = vand.u32 %v1657, 4294901760
        %2895 = vmatmul.mubr.f32.gmra.mrb[0].mxu0 %v2894
        %v2896 = vpop.f32.mrb[0].mxu0
        %v2897 = vadd.f32 %v2658, %v2896
        %v2898 = vpop.f32.mrb[0].mxu0
        %2899 = vmatprep.mubr.f32.mxu0 0.0
        %v2900 = vand.u32 %v1658, 4294901760
        %2901 = vmatmul.mubr.f32.gmra.mrb[0].mxu0 %v2900
        %v2902 = vpop.f32.mrb[0].mxu0
        %v2903 = vadd.f32 %v2666, %v2902
        %v2904 = vpop.f32.mrb[0].mxu0
        %2905 = vmatprep.mubr.f32.mxu0 0.0
        %v2906 = vand.u32 %v1659, 4294901760
        %2907 = vmatmul.mubr.f32.gmra.mrb[0].mxu0 %v2906
        %v2908 = vpop.f32.mrb[0].mxu0
        %v2909 = vadd.f32 %v2674, %v2908
        %v2910 = vpop.f32.mrb[0].mxu0
        %2911 = vmatprep.mubr.f32.mxu0 0.0
        %v2912 = vand.u32 %v1660, 4294901760
        %2913 = vmatmul.mubr.f32.gmra.mrb[0].mxu0 %v2912
        %v2914 = vpop.f32.mrb[0].mxu0
        %v2915 = vadd.f32 %v2682, %v2914
        %v2916 = vpop.f32.mrb[0].mxu0
        %2917 = vmatprep.mubr.f32.mxu0 0.0
        %v2918 = vand.u32 %v1661, 4294901760
        %2919 = vmatmul.mubr.f32.gmra.mrb[0].mxu0 %v2918
        %v2920 = vpop.f32.mrb[0].mxu0
        %v2921 = vadd.f32 %v2690, %v2920
        %v2922 = vpop.f32.mrb[0].mxu0
        %2923 = vmatprep.mubr.f32.mxu0 0.0
        %v2924 = vand.u32 %v1662, 4294901760
        %2925 = vmatmul.mubr.f32.gmra.mrb[0].mxu0 %v2924
        %v2926 = vpop.f32.mrb[0].mxu0
        %v2927 = vadd.f32 %v2698, %v2926
        %v2928 = vpop.f32.mrb[0].mxu0
        %2929 = vmatprep.mubr.f32.mxu0 0.0
        %v2930 = vand.u32 %v1663, 4294901760
        %2931 = vmatmul.mubr.f32.gmra.mrb[0].mxu0 %v2930
        %v2932 = vpop.f32.mrb[0].mxu0
        %v2933 = vadd.f32 %v2706, %v2932
        %v2934 = vpop.f32.mrb[0].mxu0
        %2935 = vmatprep.mubr.f32.mxu0 0.0
        %v2936 = vand.u32 %v1664, 4294901760
        %2937 = vmatmul.mubr.f32.gmra.mrb[0].mxu0 %v2936
        %v2938 = vpop.f32.mrb[0].mxu0
        %v2939 = vadd.f32 %v2714, %v2938
        %v2940 = vpop.f32.mrb[0].mxu0
        %2941 = vmatprep.mubr.f32.mxu0 0.0
        %v2942 = vand.u32 %v1665, 4294901760
        %2943 = vmatmul.mubr.f32.gmra.mrb[0].mxu0 %v2942
        %v2944 = vpop.f32.mrb[0].mxu0
        %v2945 = vadd.f32 %v2722, %v2944
        %v2946 = vpop.f32.mrb[0].mxu0
        %2947 = vmatprep.mubr.f32.mxu0 0.0
        %v2948 = vand.u32 %v1666, 4294901760
        %2949 = vmatmul.mubr.f32.gmra.mrb[0].mxu0 %v2948
        %v2950 = vpop.f32.mrb[0].mxu0
        %v2951 = vadd.f32 %v2730, %v2950
        %v2952 = vpop.f32.mrb[0].mxu0
        %2953 = vmatprep.mubr.f32.mxu0 0.0
        %v2954 = vand.u32 %v1667, 4294901760
        %2955 = vmatmul.mubr.f32.gmra.mrb[0].mxu0 %v2954
        %v2956 = vpop.f32.mrb[0].mxu0
        %v2957 = vadd.f32 %v2738, %v2956
        %v2958 = vpop.f32.mrb[0].mxu0
        %2959 = vmatprep.mubr.f32.mxu0 0.0
        %v2960 = vand.u32 %v1668, 4294901760
        %2961 = vmatmul.mubr.f32.gmra.mrb[0].mxu0 %v2960
        %v2962 = vpop.f32.mrb[0].mxu0
        %v2963 = vadd.f32 %v2746, %v2962
        %v2964 = vpop.f32.mrb[0].mxu0
        %2965 = vmatprep.mubr.f32.mxu0 0.0
        %v2966 = vand.u32 %v1669, 4294901760
        %2967 = vmatmul.mubr.f32.gmra.mrb[0].mxu0 %v2966
        %v2968 = vpop.f32.mrb[0].mxu0
        %v2969 = vadd.f32 %v2754, %v2968
        %v2970 = vpop.f32.mrb[0].mxu0
        %2971 = vmatprep.mubr.f32.mxu0 0.0
        %v2972 = vand.u32 %v1670, 4294901760
        %2973 = vmatmul.mubr.f32.gmra.mrb[0].mxu0 %v2972
        %v2974 = vpop.f32.mrb[0].mxu0
        %v2975 = vadd.f32 %v2762, %v2974
        %v2976 = vpop.f32.mrb[0].mxu0
        %2977 = vmatprep.mubr.f32.mxu0 0.0
        %v2978 = vand.u32 %v1671, 4294901760
        %2979 = vmatmul.mubr.f32.gmra.mrb[0].mxu0 %v2978
        %v2980 = vpop.f32.mrb[0].mxu0
        %v2981 = vadd.f32 %v2770, %v2980
        %v2982 = vpop.f32.mrb[0].mxu0
        %2983 = vmatprep.mubr.f32.mxu0 0.0
        %v2984 = vand.u32 %v1672, 4294901760
        %2985 = vmatmul.mubr.f32.gmra.mrb[0].mxu0 %v2984
        %v2986 = vpop.f32.mrb[0].mxu0
        %v2987 = vadd.f32 %v2778, %v2986
        %v2988 = vpop.f32.mrb[0].mxu0
        %2989 = vdwg.mxu0
        %2990 = vmatprep.subr.mxu0 0.0
        %v2991 = vand.u32 %v218, 4294901760
        %2992 = vmatpush1.msra.mxu0 %v2991
        %2993 = vmatprep.subr.mxu0 0.0
        %v2994 = vand.u32 %v219, 4294901760
        %2995 = vmatpush1.msra.mxu0 %v2994
        %2996 = vmatprep.subr.mxu0 0.0
        %v2997 = vand.u32 %v220, 4294901760
        %2998 = vmatpush1.msra.mxu0 %v2997
        %2999 = vmatprep.subr.mxu0 0.0
        %v3000 = vand.u32 %v221, 4294901760
        %3001 = vmatpush1.msra.mxu0 %v3000
        %3002 = vmatprep.subr.mxu0 0.0
        %v3003 = vand.u32 %v222, 4294901760
        %3004 = vmatpush1.msra.mxu0 %v3003
        %3005 = vmatprep.subr.mxu0 0.0
        %v3006 = vand.u32 %v223, 4294901760
        %3007 = vmatpush1.msra.mxu0 %v3006
        %3008 = vmatprep.subr.mxu0 0.0
        %v3009 = vand.u32 %v224, 4294901760
        %3010 = vmatpush1.msra.mxu0 %v3009
        %3011 = vmatprep.subr.mxu0 0.0
        %v3012 = vand.u32 %v225, 4294901760
        %3013 = vmatpush1.msra.mxu0 %v3012
        %3014 = vmatprep.subr.mxu0 0.0
        %v3015 = vand.u32 %v226, 4294901760
        %3016 = vmatpush1.msra.mxu0 %v3015
        %3017 = vmatprep.subr.mxu0 0.0
        %v3018 = vand.u32 %v227, 4294901760
        %3019 = vmatpush1.msra.mxu0 %v3018
        %3020 = vmatprep.subr.mxu0 0.0
        %v3021 = vand.u32 %v228, 4294901760
        %3022 = vmatpush1.msra.mxu0 %v3021
        %3023 = vmatprep.subr.mxu0 0.0
        %v3024 = vand.u32 %v229, 4294901760
        %3025 = vmatpush1.msra.mxu0 %v3024
        %3026 = vmatprep.subr.mxu0 0.0
        %v3027 = vand.u32 %v230, 4294901760
        %3028 = vmatpush1.msra.mxu0 %v3027
        %3029 = vmatprep.subr.mxu0 0.0
        %v3030 = vand.u32 %v231, 4294901760
        %3031 = vmatpush1.msra.mxu0 %v3030
        %3032 = vmatprep.subr.mxu0 0.0
        %v3033 = vand.u32 %v232, 4294901760
        %3034 = vmatpush1.msra.mxu0 %v3033
        %3035 = vmatprep.subr.mxu0 0.0
        %v3036 = vand.u32 %v233, 4294901760
        %3037 = vmatpush1.msra.mxu0 %v3036
        %3038 = vmatprep.subr.mxu0 0.0
        %3039 = vmatpush1.msra.mxu0 0.0
        %3040 = vmatprep.subr.mxu0 0.0
        %3041 = vmatpush1.msra.mxu0 0.0
        %3042 = vmatprep.subr.mxu0 0.0
        %3043 = vmatpush1.msra.mxu0 0.0
        %3044 = vmatprep.subr.mxu0 0.0
        %3045 = vmatpush1.msra.mxu0 0.0
        %3046 = vmatprep.subr.mxu0 0.0
        %3047 = vmatpush1.msra.mxu0 0.0
        %3048 = vmatprep.subr.mxu0 0.0
        %3049 = vmatpush1.msra.mxu0 0.0
        %3050 = vmatprep.subr.mxu0 0.0
        %3051 = vmatpush1.msra.mxu0 0.0
        %3052 = vmatprep.subr.mxu0 0.0
        %3053 = vmatpush1.msra.mxu0 0.0
        %3054 = vmatprep.subr.mxu0 0.0
        %3055 = vmatpush1.msra.mxu0 0.0
        %3056 = vmatprep.subr.mxu0 0.0
        %3057 = vmatpush1.msra.mxu0 0.0
        %3058 = vmatprep.subr.mxu0 0.0
        %3059 = vmatpush1.msra.mxu0 0.0
        %3060 = vmatprep.subr.mxu0 0.0
        %3061 = vmatpush1.msra.mxu0 0.0
        %3062 = vmatprep.subr.mxu0 0.0
        %3063 = vmatpush1.msra.mxu0 0.0
        %3064 = vmatprep.subr.mxu0 0.0
        %3065 = vmatpush1.msra.mxu0 0.0
        %3066 = vmatprep.subr.mxu0 0.0
        %3067 = vmatpush1.msra.mxu0 0.0
        %3068 = vmatprep.subr.mxu0 0.0
        %3069 = vmatpush1.msra.mxu0 0.0
        %3070 = vmatprep.mubr.f32.mxu0 0.0
        %v3071 = vand.u32 %v1657, 4294901760
        %3072 = vmatmul.mubr.f32.gmra.mrb[0].mxu0 %v3071
        %v3073 = vpop.f32.mrb[0].mxu0
        %v3074 = vadd.f32 %v2897, %v3073
        %v3075 = vpop.f32.mrb[0].mxu0
        %3076 = vmatprep.mubr.f32.mxu0 0.0
        %v3077 = vand.u32 %v1658, 4294901760
        %3078 = vmatmul.mubr.f32.gmra.mrb[0].mxu0 %v3077
        %v3079 = vpop.f32.mrb[0].mxu0
        %v3080 = vadd.f32 %v2903, %v3079
        %v3081 = vpop.f32.mrb[0].mxu0
        %3082 = vmatprep.mubr.f32.mxu0 0.0
        %v3083 = vand.u32 %v1659, 4294901760
        %3084 = vmatmul.mubr.f32.gmra.mrb[0].mxu0 %v3083
        %v3085 = vpop.f32.mrb[0].mxu0
        %v3086 = vadd.f32 %v2909, %v3085
        %v3087 = vpop.f32.mrb[0].mxu0
        %3088 = vmatprep.mubr.f32.mxu0 0.0
        %v3089 = vand.u32 %v1660, 4294901760
        %3090 = vmatmul.mubr.f32.gmra.mrb[0].mxu0 %v3089
        %v3091 = vpop.f32.mrb[0].mxu0
        %v3092 = vadd.f32 %v2915, %v3091
        %v3093 = vpop.f32.mrb[0].mxu0
        %3094 = vmatprep.mubr.f32.mxu0 0.0
        %v3095 = vand.u32 %v1661, 4294901760
        %3096 = vmatmul.mubr.f32.gmra.mrb[0].mxu0 %v3095
        %v3097 = vpop.f32.mrb[0].mxu0
        %v3098 = vadd.f32 %v2921, %v3097
        %v3099 = vpop.f32.mrb[0].mxu0
        %3100 = vmatprep.mubr.f32.mxu0 0.0
        %v3101 = vand.u32 %v1662, 4294901760
        %3102 = vmatmul.mubr.f32.gmra.mrb[0].mxu0 %v3101
        %v3103 = vpop.f32.mrb[0].mxu0
        %v3104 = vadd.f32 %v2927, %v3103
        %v3105 = vpop.f32.mrb[0].mxu0
        %3106 = vmatprep.mubr.f32.mxu0 0.0
        %v3107 = vand.u32 %v1663, 4294901760
        %3108 = vmatmul.mubr.f32.gmra.mrb[0].mxu0 %v3107
        %v3109 = vpop.f32.mrb[0].mxu0
        %v3110 = vadd.f32 %v2933, %v3109
        %v3111 = vpop.f32.mrb[0].mxu0
        %3112 = vmatprep.mubr.f32.mxu0 0.0
        %v3113 = vand.u32 %v1664, 4294901760
        %3114 = vmatmul.mubr.f32.gmra.mrb[0].mxu0 %v3113
        %v3115 = vpop.f32.mrb[0].mxu0
        %v3116 = vadd.f32 %v2939, %v3115
        %v3117 = vpop.f32.mrb[0].mxu0
        %3118 = vmatprep.mubr.f32.mxu0 0.0
        %v3119 = vand.u32 %v1665, 4294901760
        %3120 = vmatmul.mubr.f32.gmra.mrb[0].mxu0 %v3119
        %v3121 = vpop.f32.mrb[0].mxu0
        %v3122 = vadd.f32 %v2945, %v3121
        %v3123 = vpop.f32.mrb[0].mxu0
        %3124 = vmatprep.mubr.f32.mxu0 0.0
        %v3125 = vand.u32 %v1666, 4294901760
        %3126 = vmatmul.mubr.f32.gmra.mrb[0].mxu0 %v3125
        %v3127 = vpop.f32.mrb[0].mxu0
        %v3128 = vadd.f32 %v2951, %v3127
        %v3129 = vpop.f32.mrb[0].mxu0
        %3130 = vmatprep.mubr.f32.mxu0 0.0
        %v3131 = vand.u32 %v1667, 4294901760
        %3132 = vmatmul.mubr.f32.gmra.mrb[0].mxu0 %v3131
        %v3133 = vpop.f32.mrb[0].mxu0
        %v3134 = vadd.f32 %v2957, %v3133
        %v3135 = vpop.f32.mrb[0].mxu0
        %3136 = vmatprep.mubr.f32.mxu0 0.0
        %v3137 = vand.u32 %v1668, 4294901760
        %3138 = vmatmul.mubr.f32.gmra.mrb[0].mxu0 %v3137
        %v3139 = vpop.f32.mrb[0].mxu0
        %v3140 = vadd.f32 %v2963, %v3139
        %v3141 = vpop.f32.mrb[0].mxu0
        %3142 = vmatprep.mubr.f32.mxu0 0.0
        %v3143 = vand.u32 %v1669, 4294901760
        %3144 = vmatmul.mubr.f32.gmra.mrb[0].mxu0 %v3143
        %v3145 = vpop.f32.mrb[0].mxu0
        %v3146 = vadd.f32 %v2969, %v3145
        %v3147 = vpop.f32.mrb[0].mxu0
        %3148 = vmatprep.mubr.f32.mxu0 0.0
        %v3149 = vand.u32 %v1670, 4294901760
        %3150 = vmatmul.mubr.f32.gmra.mrb[0].mxu0 %v3149
        %v3151 = vpop.f32.mrb[0].mxu0
        %v3152 = vadd.f32 %v2975, %v3151
        %v3153 = vpop.f32.mrb[0].mxu0
        %3154 = vmatprep.mubr.f32.mxu0 0.0
        %v3155 = vand.u32 %v1671, 4294901760
        %3156 = vmatmul.mubr.f32.gmra.mrb[0].mxu0 %v3155
        %v3157 = vpop.f32.mrb[0].mxu0
        %v3158 = vadd.f32 %v2981, %v3157
        %v3159 = vpop.f32.mrb[0].mxu0
        %3160 = vmatprep.mubr.f32.mxu0 0.0
        %v3161 = vand.u32 %v1672, 4294901760
        %3162 = vmatmul.mubr.f32.gmra.mrb[0].mxu0 %v3161
        %v3163 = vpop.f32.mrb[0].mxu0
        %v3164 = vadd.f32 %v2987, %v3163
        %v3165 = vpop.f32.mrb[0].mxu0
        %3166 = vdwg.mxu0
        %v3167 = vrcp.pop %v1850
        %v3168 = vmul.f32 1.0, %v3167
        %v3169 = vrcp.pop %v1852
        %v3170 = vmul.f32 1.0, %v3169
        %v3171 = vrcp.pop %v1854
        %v3172 = vmul.f32 1.0, %v3171
        %v3173 = vrcp.pop %v1856
        %v3174 = vmul.f32 1.0, %v3173
        %v3175 = vrcp.pop %v1858
        %v3176 = vmul.f32 1.0, %v3175
        %v3177 = vrcp.pop %v1860
        %v3178 = vmul.f32 1.0, %v3177
        %v3179 = vrcp.pop %v1862
        %v3180 = vmul.f32 1.0, %v3179
        %v3181 = vrcp.pop %v1864
        %v3182 = vmul.f32 1.0, %v3181
        %v3183 = vrcp.pop %v1866
        %v3184 = vmul.f32 1.0, %v3183
        %v3185 = vrcp.pop %v1868
        %v3186 = vmul.f32 1.0, %v3185
        %v3187 = vrcp.pop %v1870
        %v3188 = vmul.f32 1.0, %v3187
        %v3189 = vrcp.pop %v1872
        %v3190 = vmul.f32 1.0, %v3189
        %v3191 = vrcp.pop %v1874
        %v3192 = vmul.f32 1.0, %v3191
        %v3193 = vrcp.pop %v1876
        %v3194 = vmul.f32 1.0, %v3193
        %v3195 = vrcp.pop %v1878
        %v3196 = vmul.f32 1.0, %v3195
        %v3197 = vrcp.pop %v1880
        %v3198 = vmul.f32 1.0, %v3197
        %v3199 = vmul.f32 %v3074, %v3168
        %v3200 = vmul.f32 %v3080, %v3170
        %v3201 = vmul.f32 %v3086, %v3172
        %v3202 = vmul.f32 %v3092, %v3174
        %v3203 = vmul.f32 %v3098, %v3176
        %v3204 = vmul.f32 %v3104, %v3178
        %v3205 = vmul.f32 %v3110, %v3180
        %v3206 = vmul.f32 %v3116, %v3182
        %v3207 = vmul.f32 %v3122, %v3184
        %v3208 = vmul.f32 %v3128, %v3186
        %v3209 = vmul.f32 %v3134, %v3188
        %v3210 = vmul.f32 %v3140, %v3190
        %v3211 = vmul.f32 %v3146, %v3192
        %v3212 = vmul.f32 %v3152, %v3194
        %v3213 = vmul.f32 %v3158, %v3196
        %v3214 = vmul.f32 %v3164, %v3198
        %3215 = vst [vmem:[%s208] sm:$0xff] %v3199
        %3216 = vst [vmem:[%s208 + $0x8] sm:$0xff] %v3200
        %v3217 = vld [vmem:[%s217] sm:$0x1]
        %3218 = vmatprep.subr.mxu0 0.0
        %v3219 = vand.u32 %v3199, 4294901760
        %3220 = vmatpush1.xpose.msra.mxu0 %v3219
        %3221 = vmatprep.subr.mxu0 0.0
        %v3222 = vand.u32 %v3200, 4294901760
        %3223 = vmatpush1.xpose.msra.mxu0 %v3222
        %3224 = vmatprep.subr.mxu0 0.0
        %v3225 = vand.u32 %v3201, 4294901760
        %3226 = vmatpush1.xpose.msra.mxu0 %v3225
        %3227 = vmatprep.subr.mxu0 0.0
        %v3228 = vand.u32 %v3202, 4294901760
        %3229 = vmatpush1.xpose.msra.mxu0 %v3228
        %3230 = vmatprep.subr.mxu0 0.0
        %v3231 = vand.u32 %v3203, 4294901760
        %3232 = vmatpush1.xpose.msra.mxu0 %v3231
        %3233 = vmatprep.subr.mxu0 0.0
        %v3234 = vand.u32 %v3204, 4294901760
        %3235 = vmatpush1.xpose.msra.mxu0 %v3234
        %3236 = vmatprep.subr.mxu0 0.0
        %v3237 = vand.u32 %v3205, 4294901760
        %3238 = vmatpush1.xpose.msra.mxu0 %v3237
        %3239 = vmatprep.subr.mxu0 0.0
        %v3240 = vand.u32 %v3206, 4294901760
        %3241 = vmatpush1.xpose.msra.mxu0 %v3240
        %3242 = vmatprep.subr.mxu0 0.0
        %v3243 = vand.u32 %v3207, 4294901760
        %3244 = vmatpush1.xpose.msra.mxu0 %v3243
        %3245 = vmatprep.subr.mxu0 0.0
        %v3246 = vand.u32 %v3208, 4294901760
        %3247 = vmatpush1.xpose.msra.mxu0 %v3246
        %3248 = vmatprep.subr.mxu0 0.0
        %v3249 = vand.u32 %v3209, 4294901760
        %3250 = vmatpush1.xpose.msra.mxu0 %v3249
        %3251 = vmatprep.subr.mxu0 0.0
        %v3252 = vand.u32 %v3210, 4294901760
        %3253 = vmatpush1.xpose.msra.mxu0 %v3252
        %3254 = vmatprep.subr.mxu0 0.0
        %v3255 = vand.u32 %v3211, 4294901760
        %3256 = vmatpush1.xpose.msra.mxu0 %v3255
        %3257 = vmatprep.subr.mxu0 0.0
        %v3258 = vand.u32 %v3212, 4294901760
        %3259 = vmatpush1.xpose.msra.mxu0 %v3258
        %3260 = vmatprep.subr.mxu0 0.0
        %v3261 = vand.u32 %v3213, 4294901760
        %3262 = vmatpush1.xpose.msra.mxu0 %v3261
        %3263 = vmatprep.subr.mxu0 0.0
        %v3264 = vand.u32 %v3214, 4294901760
        %3265 = vmatpush1.xpose.msra.mxu0 %v3264
        %3266 = vmatprep.subr.mxu0 0.0
        %3267 = vmatpush1.xpose.msra.mxu0 0.0
        %3268 = vmatprep.subr.mxu0 0.0
        %3269 = vmatpush1.xpose.msra.mxu0 0.0
        %3270 = vmatprep.subr.mxu0 0.0
        %3271 = vmatpush1.xpose.msra.mxu0 0.0
        %3272 = vmatprep.subr.mxu0 0.0
        %3273 = vmatpush1.xpose.msra.mxu0 0.0
        %3274 = vmatprep.subr.mxu0 0.0
        %3275 = vmatpush1.xpose.msra.mxu0 0.0
        %3276 = vmatprep.subr.mxu0 0.0
        %3277 = vmatpush1.xpose.msra.mxu0 0.0
        %3278 = vmatprep.subr.mxu0 0.0
        %3279 = vmatpush1.xpose.msra.mxu0 0.0
        %3280 = vmatprep.subr.mxu0 0.0
        %3281 = vmatpush1.xpose.msra.mxu0 0.0
        %3282 = vmatprep.subr.mxu0 0.0
        %3283 = vmatpush1.xpose.msra.mxu0 0.0
        %3284 = vmatprep.subr.mxu0 0.0
        %3285 = vmatpush1.xpose.msra.mxu0 0.0
        %3286 = vmatprep.subr.mxu0 0.0
        %3287 = vmatpush1.xpose.msra.mxu0 0.0
        %3288 = vmatprep.subr.mxu0 0.0
        %3289 = vmatpush1.xpose.msra.mxu0 0.0
        %3290 = vmatprep.subr.mxu0 0.0
        %3291 = vmatpush1.xpose.msra.mxu0 0.0
        %3292 = vmatprep.subr.mxu0 0.0
        %3293 = vmatpush1.xpose.msra.mxu0 0.0
        %3294 = vmatprep.subr.mxu0 0.0
        %3295 = vmatpush1.xpose.msra.mxu0 0.0
        %3296 = vmatprep.subr.mxu0 0.0
        %3297 = vmatpush1.xpose.msra.mxu0 0.0
        %3298 = vmatprep.mubr.f32.mxu0 0.0
        %v3299 = vand.u32 %v3217, 4294901760
        %v3300 = vsub.f32 %v3217, %v3299
        %v3301 = vand.u32 %v3300, 4294901760
        %v3302 = vsub.f32 %v3300, %v3301
        %v3303 = vand.u32 %v3302, 4294901760
        %3304 = vmatmul.mubr.f32.gmra.mrb[0].mxu0 %v3303
        %v3305 = vpop.f32.mrb[0].mxu0
        %v3306 = vadd.f32 0.0, %v3305
        %v3307 = vpop.f32.mrb[0].mxu0
        %3308 = vdwg.mxu0
        %3309 = vmatprep.subr.mxu0 0.0
        %v3310 = vand.u32 %v3199, 4294901760
        %v3311 = vsub.f32 %v3199, %v3310
        %v3312 = vand.u32 %v3311, 4294901760
        %v3313 = vsub.f32 %v3311, %v3312
        %v3314 = vand.u32 %v3313, 4294901760
        %3315 = vmatpush1.xpose.msra.mxu0 %v3314
        %3316 = vmatprep.subr.mxu0 0.0
        %v3317 = vand.u32 %v3200, 4294901760
        %v3318 = vsub.f32 %v3200, %v3317
        %v3319 = vand.u32 %v3318, 4294901760
        %v3320 = vsub.f32 %v3318, %v3319
        %v3321 = vand.u32 %v3320, 4294901760
        %3322 = vmatpush1.xpose.msra.mxu0 %v3321
        %3323 = vmatprep.subr.mxu0 0.0
        %v3324 = vand.u32 %v3201, 4294901760
        %v3325 = vsub.f32 %v3201, %v3324
        %v3326 = vand.u32 %v3325, 4294901760
        %v3327 = vsub.f32 %v3325, %v3326
        %v3328 = vand.u32 %v3327, 4294901760
        %3329 = vmatpush1.xpose.msra.mxu0 %v3328
        %3330 = vmatprep.subr.mxu0 0.0
        %v3331 = vand.u32 %v3202, 4294901760
        %v3332 = vsub.f32 %v3202, %v3331
        %v3333 = vand.u32 %v3332, 4294901760
        %v3334 = vsub.f32 %v3332, %v3333
        %v3335 = vand.u32 %v3334, 4294901760
        %3336 = vmatpush1.xpose.msra.mxu0 %v3335
        %3337 = vmatprep.subr.mxu0 0.0
        %v3338 = vand.u32 %v3203, 4294901760
        %v3339 = vsub.f32 %v3203, %v3338
        %v3340 = vand.u32 %v3339, 4294901760
        %v3341 = vsub.f32 %v3339, %v3340
        %v3342 = vand.u32 %v3341, 4294901760
        %3343 = vmatpush1.xpose.msra.mxu0 %v3342
        %3344 = vmatprep.subr.mxu0 0.0
        %v3345 = vand.u32 %v3204, 4294901760
        %v3346 = vsub.f32 %v3204, %v3345
        %v3347 = vand.u32 %v3346, 4294901760
        %v3348 = vsub.f32 %v3346, %v3347
        %v3349 = vand.u32 %v3348, 4294901760
        %3350 = vmatpush1.xpose.msra.mxu0 %v3349
        %3351 = vmatprep.subr.mxu0 0.0
        %v3352 = vand.u32 %v3205, 4294901760
        %v3353 = vsub.f32 %v3205, %v3352
        %v3354 = vand.u32 %v3353, 4294901760
        %v3355 = vsub.f32 %v3353, %v3354
        %v3356 = vand.u32 %v3355, 4294901760
        %3357 = vmatpush1.xpose.msra.mxu0 %v3356
        %3358 = vmatprep.subr.mxu0 0.0
        %v3359 = vand.u32 %v3206, 4294901760
        %v3360 = vsub.f32 %v3206, %v3359
        %v3361 = vand.u32 %v3360, 4294901760
        %v3362 = vsub.f32 %v3360, %v3361
        %v3363 = vand.u32 %v3362, 4294901760
        %3364 = vmatpush1.xpose.msra.mxu0 %v3363
        %3365 = vmatprep.subr.mxu0 0.0
        %v3366 = vand.u32 %v3207, 4294901760
        %v3367 = vsub.f32 %v3207, %v3366
        %v3368 = vand.u32 %v3367, 4294901760
        %v3369 = vsub.f32 %v3367, %v3368
        %v3370 = vand.u32 %v3369, 4294901760
        %3371 = vmatpush1.xpose.msra.mxu0 %v3370
        %3372 = vmatprep.subr.mxu0 0.0
        %v3373 = vand.u32 %v3208, 4294901760
        %v3374 = vsub.f32 %v3208, %v3373
        %v3375 = vand.u32 %v3374, 4294901760
        %v3376 = vsub.f32 %v3374, %v3375
        %v3377 = vand.u32 %v3376, 4294901760
        %3378 = vmatpush1.xpose.msra.mxu0 %v3377
        %3379 = vmatprep.subr.mxu0 0.0
        %v3380 = vand.u32 %v3209, 4294901760
        %v3381 = vsub.f32 %v3209, %v3380
        %v3382 = vand.u32 %v3381, 4294901760
        %v3383 = vsub.f32 %v3381, %v3382
        %v3384 = vand.u32 %v3383, 4294901760
        %3385 = vmatpush1.xpose.msra.mxu0 %v3384
        %3386 = vmatprep.subr.mxu0 0.0
        %v3387 = vand.u32 %v3210, 4294901760
        %v3388 = vsub.f32 %v3210, %v3387
        %v3389 = vand.u32 %v3388, 4294901760
        %v3390 = vsub.f32 %v3388, %v3389
        %v3391 = vand.u32 %v3390, 4294901760
        %3392 = vmatpush1.xpose.msra.mxu0 %v3391
        %3393 = vmatprep.subr.mxu0 0.0
        %v3394 = vand.u32 %v3211, 4294901760
        %v3395 = vsub.f32 %v3211, %v3394
        %v3396 = vand.u32 %v3395, 4294901760
        %v3397 = vsub.f32 %v3395, %v3396
        %v3398 = vand.u32 %v3397, 4294901760
        %3399 = vmatpush1.xpose.msra.mxu0 %v3398
        %3400 = vmatprep.subr.mxu0 0.0
        %v3401 = vand.u32 %v3212, 4294901760
        %v3402 = vsub.f32 %v3212, %v3401
        %v3403 = vand.u32 %v3402, 4294901760
        %v3404 = vsub.f32 %v3402, %v3403
        %v3405 = vand.u32 %v3404, 4294901760
        %3406 = vmatpush1.xpose.msra.mxu0 %v3405
        %3407 = vmatprep.subr.mxu0 0.0
        %v3408 = vand.u32 %v3213, 4294901760
        %v3409 = vsub.f32 %v3213, %v3408
        %v3410 = vand.u32 %v3409, 4294901760
        %v3411 = vsub.f32 %v3409, %v3410
        %v3412 = vand.u32 %v3411, 4294901760
        %3413 = vmatpush1.xpose.msra.mxu0 %v3412
        %3414 = vmatprep.subr.mxu0 0.0
        %v3415 = vand.u32 %v3214, 4294901760
        %v3416 = vsub.f32 %v3214, %v3415
        %v3417 = vand.u32 %v3416, 4294901760
        %v3418 = vsub.f32 %v3416, %v3417
        %v3419 = vand.u32 %v3418, 4294901760
        %3420 = vmatpush1.xpose.msra.mxu0 %v3419
        %3421 = vmatprep.subr.mxu0 0.0
        %3422 = vmatpush1.xpose.msra.mxu0 0.0
        %3423 = vmatprep.subr.mxu0 0.0
        %3424 = vmatpush1.xpose.msra.mxu0 0.0
        %3425 = vmatprep.subr.mxu0 0.0
        %3426 = vmatpush1.xpose.msra.mxu0 0.0
        %3427 = vmatprep.subr.mxu0 0.0
        %3428 = vmatpush1.xpose.msra.mxu0 0.0
        %3429 = vmatprep.subr.mxu0 0.0
        %3430 = vmatpush1.xpose.msra.mxu0 0.0
        %3431 = vmatprep.subr.mxu0 0.0
        %3432 = vmatpush1.xpose.msra.mxu0 0.0
        %3433 = vmatprep.subr.mxu0 0.0
        %3434 = vmatpush1.xpose.msra.mxu0 0.0
        %3435 = vmatprep.subr.mxu0 0.0
        %3436 = vmatpush1.xpose.msra.mxu0 0.0
        %3437 = vmatprep.subr.mxu0 0.0
        %3438 = vmatpush1.xpose.msra.mxu0 0.0
        %3439 = vmatprep.subr.mxu0 0.0
        %3440 = vmatpush1.xpose.msra.mxu0 0.0
        %3441 = vmatprep.subr.mxu0 0.0
        %3442 = vmatpush1.xpose.msra.mxu0 0.0
        %3443 = vmatprep.subr.mxu0 0.0
        %3444 = vmatpush1.xpose.msra.mxu0 0.0
        %3445 = vmatprep.subr.mxu0 0.0
        %3446 = vmatpush1.xpose.msra.mxu0 0.0
        %3447 = vmatprep.subr.mxu0 0.0
        %3448 = vmatpush1.xpose.msra.mxu0 0.0
        %3449 = vmatprep.subr.mxu0 0.0
        %3450 = vmatpush1.xpose.msra.mxu0 0.0
        %3451 = vmatprep.subr.mxu0 0.0
        %3452 = vmatpush1.xpose.msra.mxu0 0.0
        %3453 = vmatprep.mubr.f32.mxu0 0.0
        %v3454 = vand.u32 %v3217, 4294901760
        %3455 = vmatmul.mubr.f32.gmra.mrb[0].mxu0 %v3454
        %v3456 = vpop.f32.mrb[0].mxu0
        %v3457 = vadd.f32 %v3306, %v3456
        %v3458 = vpop.f32.mrb[0].mxu0
        %3459 = vdwg.mxu0
        %3460 = vmatprep.subr.mxu0 0.0
        %v3461 = vand.u32 %v3199, 4294901760
        %v3462 = vsub.f32 %v3199, %v3461
        %3463 = vmatpush1.xpose.msra.mxu0 %v3462
        %3464 = vmatprep.subr.mxu0 0.0
        %v3465 = vand.u32 %v3200, 4294901760
        %v3466 = vsub.f32 %v3200, %v3465
        %3467 = vmatpush1.xpose.msra.mxu0 %v3466
        %3468 = vmatprep.subr.mxu0 0.0
        %v3469 = vand.u32 %v3201, 4294901760
        %v3470 = vsub.f32 %v3201, %v3469
        %3471 = vmatpush1.xpose.msra.mxu0 %v3470
        %3472 = vmatprep.subr.mxu0 0.0
        %v3473 = vand.u32 %v3202, 4294901760
        %v3474 = vsub.f32 %v3202, %v3473
        %3475 = vmatpush1.xpose.msra.mxu0 %v3474
        %3476 = vmatprep.subr.mxu0 0.0
        %v3477 = vand.u32 %v3203, 4294901760
        %v3478 = vsub.f32 %v3203, %v3477
        %3479 = vmatpush1.xpose.msra.mxu0 %v3478
        %3480 = vmatprep.subr.mxu0 0.0
        %v3481 = vand.u32 %v3204, 4294901760
        %v3482 = vsub.f32 %v3204, %v3481
        %3483 = vmatpush1.xpose.msra.mxu0 %v3482
        %3484 = vmatprep.subr.mxu0 0.0
        %v3485 = vand.u32 %v3205, 4294901760
        %v3486 = vsub.f32 %v3205, %v3485
        %3487 = vmatpush1.xpose.msra.mxu0 %v3486
        %3488 = vmatprep.subr.mxu0 0.0
        %v3489 = vand.u32 %v3206, 4294901760
        %v3490 = vsub.f32 %v3206, %v3489
        %3491 = vmatpush1.xpose.msra.mxu0 %v3490
        %3492 = vmatprep.subr.mxu0 0.0
        %v3493 = vand.u32 %v3207, 4294901760
        %v3494 = vsub.f32 %v3207, %v3493
        %3495 = vmatpush1.xpose.msra.mxu0 %v3494
        %3496 = vmatprep.subr.mxu0 0.0
        %v3497 = vand.u32 %v3208, 4294901760
        %v3498 = vsub.f32 %v3208, %v3497
        %3499 = vmatpush1.xpose.msra.mxu0 %v3498
        %3500 = vmatprep.subr.mxu0 0.0
        %v3501 = vand.u32 %v3209, 4294901760
        %v3502 = vsub.f32 %v3209, %v3501
        %3503 = vmatpush1.xpose.msra.mxu0 %v3502
        %3504 = vmatprep.subr.mxu0 0.0
        %v3505 = vand.u32 %v3210, 4294901760
        %v3506 = vsub.f32 %v3210, %v3505
        %3507 = vmatpush1.xpose.msra.mxu0 %v3506
        %3508 = vmatprep.subr.mxu0 0.0
        %v3509 = vand.u32 %v3211, 4294901760
        %v3510 = vsub.f32 %v3211, %v3509
        %3511 = vmatpush1.xpose.msra.mxu0 %v3510
        %3512 = vmatprep.subr.mxu0 0.0
        %v3513 = vand.u32 %v3212, 4294901760
        %v3514 = vsub.f32 %v3212, %v3513
        %3515 = vmatpush1.xpose.msra.mxu0 %v3514
        %3516 = vmatprep.subr.mxu0 0.0
        %v3517 = vand.u32 %v3213, 4294901760
        %v3518 = vsub.f32 %v3213, %v3517
        %3519 = vmatpush1.xpose.msra.mxu0 %v3518
        %3520 = vmatprep.subr.mxu0 0.0
        %v3521 = vand.u32 %v3214, 4294901760
        %v3522 = vsub.f32 %v3214, %v3521
        %3523 = vmatpush1.xpose.msra.mxu0 %v3522
        %3524 = vmatprep.subr.mxu0 0.0
        %3525 = vmatpush1.xpose.msra.mxu0 0.0
        %3526 = vmatprep.subr.mxu0 0.0
        %3527 = vmatpush1.xpose.msra.mxu0 0.0
        %3528 = vmatprep.subr.mxu0 0.0
        %3529 = vmatpush1.xpose.msra.mxu0 0.0
        %3530 = vmatprep.subr.mxu0 0.0
        %3531 = vmatpush1.xpose.msra.mxu0 0.0
        %3532 = vmatprep.subr.mxu0 0.0
        %3533 = vmatpush1.xpose.msra.mxu0 0.0
        %3534 = vmatprep.subr.mxu0 0.0
        %3535 = vmatpush1.xpose.msra.mxu0 0.0
        %3536 = vmatprep.subr.mxu0 0.0
        %3537 = vmatpush1.xpose.msra.mxu0 0.0
        %3538 = vmatprep.subr.mxu0 0.0
        %3539 = vmatpush1.xpose.msra.mxu0 0.0
        %3540 = vmatprep.subr.mxu0 0.0
        %3541 = vmatpush1.xpose.msra.mxu0 0.0
        %3542 = vmatprep.subr.mxu0 0.0
        %3543 = vmatpush1.xpose.msra.mxu0 0.0
        %3544 = vmatprep.subr.mxu0 0.0
        %3545 = vmatpush1.xpose.msra.mxu0 0.0
        %3546 = vmatprep.subr.mxu0 0.0
        %3547 = vmatpush1.xpose.msra.mxu0 0.0
        %3548 = vmatprep.subr.mxu0 0.0
        %3549 = vmatpush1.xpose.msra.mxu0 0.0
        %3550 = vmatprep.subr.mxu0 0.0
        %3551 = vmatpush1.xpose.msra.mxu0 0.0
        %3552 = vmatprep.subr.mxu0 0.0
        %3553 = vmatpush1.xpose.msra.mxu0 0.0
        %3554 = vmatprep.subr.mxu0 0.0
        %3555 = vmatpush1.xpose.msra.mxu0 0.0
        %3556 = vmatprep.mubr.f32.mxu0 0.0
        %v3557 = vand.u32 %v3217, 4294901760
        %v3558 = vsub.f32 %v3217, %v3557
        %3559 = vmatmul.mubr.f32.gmra.mrb[0].mxu0 %v3558
        %v3560 = vpop.f32.mrb[0].mxu0
        %v3561 = vadd.f32 %v3457, %v3560
        %v3562 = vpop.f32.mrb[0].mxu0
        %3563 = vdwg.mxu0
        %3564 = vmatprep.subr.mxu0 0.0
        %v3565 = vand.u32 %v3199, 4294901760
        %3566 = vmatpush1.xpose.msra.mxu0 %v3565
        %3567 = vmatprep.subr.mxu0 0.0
        %v3568 = vand.u32 %v3200, 4294901760
        %3569 = vmatpush1.xpose.msra.mxu0 %v3568
        %3570 = vmatprep.subr.mxu0 0.0
        %v3571 = vand.u32 %v3201, 4294901760
        %3572 = vmatpush1.xpose.msra.mxu0 %v3571
        %3573 = vmatprep.subr.mxu0 0.0
        %v3574 = vand.u32 %v3202, 4294901760
        %3575 = vmatpush1.xpose.msra.mxu0 %v3574
        %3576 = vmatprep.subr.mxu0 0.0
        %v3577 = vand.u32 %v3203, 4294901760
        %3578 = vmatpush1.xpose.msra.mxu0 %v3577
        %3579 = vmatprep.subr.mxu0 0.0
        %v3580 = vand.u32 %v3204, 4294901760
        %3581 = vmatpush1.xpose.msra.mxu0 %v3580
        %3582 = vmatprep.subr.mxu0 0.0
        %v3583 = vand.u32 %v3205, 4294901760
        %3584 = vmatpush1.xpose.msra.mxu0 %v3583
        %3585 = vmatprep.subr.mxu0 0.0
        %v3586 = vand.u32 %v3206, 4294901760
        %3587 = vmatpush1.xpose.msra.mxu0 %v3586
        %3588 = vmatprep.subr.mxu0 0.0
        %v3589 = vand.u32 %v3207, 4294901760
        %3590 = vmatpush1.xpose.msra.mxu0 %v3589
        %3591 = vmatprep.subr.mxu0 0.0
        %v3592 = vand.u32 %v3208, 4294901760
        %3593 = vmatpush1.xpose.msra.mxu0 %v3592
        %3594 = vmatprep.subr.mxu0 0.0
        %v3595 = vand.u32 %v3209, 4294901760
        %3596 = vmatpush1.xpose.msra.mxu0 %v3595
        %3597 = vmatprep.subr.mxu0 0.0
        %v3598 = vand.u32 %v3210, 4294901760
        %3599 = vmatpush1.xpose.msra.mxu0 %v3598
        %3600 = vmatprep.subr.mxu0 0.0
        %v3601 = vand.u32 %v3211, 4294901760
        %3602 = vmatpush1.xpose.msra.mxu0 %v3601
        %3603 = vmatprep.subr.mxu0 0.0
        %v3604 = vand.u32 %v3212, 4294901760
        %3605 = vmatpush1.xpose.msra.mxu0 %v3604
        %3606 = vmatprep.subr.mxu0 0.0
        %v3607 = vand.u32 %v3213, 4294901760
        %3608 = vmatpush1.xpose.msra.mxu0 %v3607
        %3609 = vmatprep.subr.mxu0 0.0
        %v3610 = vand.u32 %v3214, 4294901760
        %3611 = vmatpush1.xpose.msra.mxu0 %v3610
        %3612 = vmatprep.subr.mxu0 0.0
        %3613 = vmatpush1.xpose.msra.mxu0 0.0
        %3614 = vmatprep.subr.mxu0 0.0
        %3615 = vmatpush1.xpose.msra.mxu0 0.0
        %3616 = vmatprep.subr.mxu0 0.0
        %3617 = vmatpush1.xpose.msra.mxu0 0.0
        %3618 = vmatprep.subr.mxu0 0.0
        %3619 = vmatpush1.xpose.msra.mxu0 0.0
        %3620 = vmatprep.subr.mxu0 0.0
        %3621 = vmatpush1.xpose.msra.mxu0 0.0
        %3622 = vmatprep.subr.mxu0 0.0
        %3623 = vmatpush1.xpose.msra.mxu0 0.0
        %3624 = vmatprep.subr.mxu0 0.0
        %3625 = vmatpush1.xpose.msra.mxu0 0.0
        %3626 = vmatprep.subr.mxu0 0.0
        %3627 = vmatpush1.xpose.msra.mxu0 0.0
        %3628 = vmatprep.subr.mxu0 0.0
        %3629 = vmatpush1.xpose.msra.mxu0 0.0
        %3630 = vmatprep.subr.mxu0 0.0
        %3631 = vmatpush1.xpose.msra.mxu0 0.0
        %3632 = vmatprep.subr.mxu0 0.0
        %3633 = vmatpush1.xpose.msra.mxu0 0.0
        %3634 = vmatprep.subr.mxu0 0.0
        %3635 = vmatpush1.xpose.msra.mxu0 0.0
        %3636 = vmatprep.subr.mxu0 0.0
        %3637 = vmatpush1.xpose.msra.mxu0 0.0
        %3638 = vmatprep.subr.mxu0 0.0
        %3639 = vmatpush1.xpose.msra.mxu0 0.0
        %3640 = vmatprep.subr.mxu0 0.0
        %3641 = vmatpush1.xpose.msra.mxu0 0.0
        %3642 = vmatprep.subr.mxu0 0.0
        %3643 = vmatpush1.xpose.msra.mxu0 0.0
        %3644 = vmatprep.mubr.f32.mxu0 0.0
        %v3645 = vand.u32 %v3217, 4294901760
        %v3646 = vsub.f32 %v3217, %v3645
        %v3647 = vand.u32 %v3646, 4294901760
        %3648 = vmatmul.mubr.f32.gmra.mrb[0].mxu0 %v3647
        %v3649 = vpop.f32.mrb[0].mxu0
        %v3650 = vadd.f32 %v3561, %v3649
        %v3651 = vpop.f32.mrb[0].mxu0
        %3652 = vdwg.mxu0
        %3653 = vmatprep.subr.mxu0 0.0
        %v3654 = vand.u32 %v3199, 4294901760
        %v3655 = vsub.f32 %v3199, %v3654
        %v3656 = vand.u32 %v3655, 4294901760
        %3657 = vmatpush1.xpose.msra.mxu0 %v3656
        %3658 = vmatprep.subr.mxu0 0.0
        %v3659 = vand.u32 %v3200, 4294901760
        %v3660 = vsub.f32 %v3200, %v3659
        %v3661 = vand.u32 %v3660, 4294901760
        %3662 = vmatpush1.xpose.msra.mxu0 %v3661
        %3663 = vmatprep.subr.mxu0 0.0
        %v3664 = vand.u32 %v3201, 4294901760
        %v3665 = vsub.f32 %v3201, %v3664
        %v3666 = vand.u32 %v3665, 4294901760
        %3667 = vmatpush1.xpose.msra.mxu0 %v3666
        %3668 = vmatprep.subr.mxu0 0.0
        %v3669 = vand.u32 %v3202, 4294901760
        %v3670 = vsub.f32 %v3202, %v3669
        %v3671 = vand.u32 %v3670, 4294901760
        %3672 = vmatpush1.xpose.msra.mxu0 %v3671
        %3673 = vmatprep.subr.mxu0 0.0
        %v3674 = vand.u32 %v3203, 4294901760
        %v3675 = vsub.f32 %v3203, %v3674
        %v3676 = vand.u32 %v3675, 4294901760
        %3677 = vmatpush1.xpose.msra.mxu0 %v3676
        %3678 = vmatprep.subr.mxu0 0.0
        %v3679 = vand.u32 %v3204, 4294901760
        %v3680 = vsub.f32 %v3204, %v3679
        %v3681 = vand.u32 %v3680, 4294901760
        %3682 = vmatpush1.xpose.msra.mxu0 %v3681
        %3683 = vmatprep.subr.mxu0 0.0
        %v3684 = vand.u32 %v3205, 4294901760
        %v3685 = vsub.f32 %v3205, %v3684
        %v3686 = vand.u32 %v3685, 4294901760
        %3687 = vmatpush1.xpose.msra.mxu0 %v3686
        %3688 = vmatprep.subr.mxu0 0.0
        %v3689 = vand.u32 %v3206, 4294901760
        %v3690 = vsub.f32 %v3206, %v3689
        %v3691 = vand.u32 %v3690, 4294901760
        %3692 = vmatpush1.xpose.msra.mxu0 %v3691
        %3693 = vmatprep.subr.mxu0 0.0
        %v3694 = vand.u32 %v3207, 4294901760
        %v3695 = vsub.f32 %v3207, %v3694
        %v3696 = vand.u32 %v3695, 4294901760
        %3697 = vmatpush1.xpose.msra.mxu0 %v3696
        %3698 = vmatprep.subr.mxu0 0.0
        %v3699 = vand.u32 %v3208, 4294901760
        %v3700 = vsub.f32 %v3208, %v3699
        %v3701 = vand.u32 %v3700, 4294901760
        %3702 = vmatpush1.xpose.msra.mxu0 %v3701
        %3703 = vmatprep.subr.mxu0 0.0
        %v3704 = vand.u32 %v3209, 4294901760
        %v3705 = vsub.f32 %v3209, %v3704
        %v3706 = vand.u32 %v3705, 4294901760
        %3707 = vmatpush1.xpose.msra.mxu0 %v3706
        %3708 = vmatprep.subr.mxu0 0.0
        %v3709 = vand.u32 %v3210, 4294901760
        %v3710 = vsub.f32 %v3210, %v3709
        %v3711 = vand.u32 %v3710, 4294901760
        %3712 = vmatpush1.xpose.msra.mxu0 %v3711
        %3713 = vmatprep.subr.mxu0 0.0
        %v3714 = vand.u32 %v3211, 4294901760
        %v3715 = vsub.f32 %v3211, %v3714
        %v3716 = vand.u32 %v3715, 4294901760
        %3717 = vmatpush1.xpose.msra.mxu0 %v3716
        %3718 = vmatprep.subr.mxu0 0.0
        %v3719 = vand.u32 %v3212, 4294901760
        %v3720 = vsub.f32 %v3212, %v3719
        %v3721 = vand.u32 %v3720, 4294901760
        %3722 = vmatpush1.xpose.msra.mxu0 %v3721
        %3723 = vmatprep.subr.mxu0 0.0
        %v3724 = vand.u32 %v3213, 4294901760
        %v3725 = vsub.f32 %v3213, %v3724
        %v3726 = vand.u32 %v3725, 4294901760
        %3727 = vmatpush1.xpose.msra.mxu0 %v3726
        %3728 = vmatprep.subr.mxu0 0.0
        %v3729 = vand.u32 %v3214, 4294901760
        %v3730 = vsub.f32 %v3214, %v3729
        %v3731 = vand.u32 %v3730, 4294901760
        %3732 = vmatpush1.xpose.msra.mxu0 %v3731
        %3733 = vmatprep.subr.mxu0 0.0
        %3734 = vmatpush1.xpose.msra.mxu0 0.0
        %3735 = vmatprep.subr.mxu0 0.0
        %3736 = vmatpush1.xpose.msra.mxu0 0.0
        %3737 = vmatprep.subr.mxu0 0.0
        %3738 = vmatpush1.xpose.msra.mxu0 0.0
        %3739 = vmatprep.subr.mxu0 0.0
        %3740 = vmatpush1.xpose.msra.mxu0 0.0
        %3741 = vmatprep.subr.mxu0 0.0
        %3742 = vmatpush1.xpose.msra.mxu0 0.0
        %3743 = vmatprep.subr.mxu0 0.0
        %3744 = vmatpush1.xpose.msra.mxu0 0.0
        %3745 = vmatprep.subr.mxu0 0.0
        %3746 = vmatpush1.xpose.msra.mxu0 0.0
        %3747 = vmatprep.subr.mxu0 0.0
        %3748 = vmatpush1.xpose.msra.mxu0 0.0
        %3749 = vmatprep.subr.mxu0 0.0
        %3750 = vmatpush1.xpose.msra.mxu0 0.0
        %3751 = vmatprep.subr.mxu0 0.0
        %3752 = vmatpush1.xpose.msra.mxu0 0.0
        %3753 = vmatprep.subr.mxu0 0.0
        %3754 = vmatpush1.xpose.msra.mxu0 0.0
        %3755 = vmatprep.subr.mxu0 0.0
        %3756 = vmatpush1.xpose.msra.mxu0 0.0
        %3757 = vmatprep.subr.mxu0 0.0
        %3758 = vmatpush1.xpose.msra.mxu0 0.0
        %3759 = vmatprep.subr.mxu0 0.0
        %3760 = vmatpush1.xpose.msra.mxu0 0.0
        %3761 = vmatprep.subr.mxu0 0.0
        %3762 = vmatpush1.xpose.msra.mxu0 0.0
        %3763 = vmatprep.subr.mxu0 0.0
        %3764 = vmatpush1.xpose.msra.mxu0 0.0
        %3765 = vmatprep.mubr.f32.mxu0 0.0
        %v3766 = vand.u32 %v3217, 4294901760
        %3767 = vmatmul.mubr.f32.gmra.mrb[0].mxu0 %v3766
        %v3768 = vpop.f32.mrb[0].mxu0
        %v3769 = vadd.f32 %v3650, %v3768
        %v3770 = vpop.f32.mrb[0].mxu0
        %3771 = vdwg.mxu0
        %3772 = vmatprep.subr.mxu0 0.0
        %v3773 = vand.u32 %v3199, 4294901760
        %3774 = vmatpush1.xpose.msra.mxu0 %v3773
        %3775 = vmatprep.subr.mxu0 0.0
        %v3776 = vand.u32 %v3200, 4294901760
        %3777 = vmatpush1.xpose.msra.mxu0 %v3776
        %3778 = vmatprep.subr.mxu0 0.0
        %v3779 = vand.u32 %v3201, 4294901760
        %3780 = vmatpush1.xpose.msra.mxu0 %v3779
        %3781 = vmatprep.subr.mxu0 0.0
        %v3782 = vand.u32 %v3202, 4294901760
        %3783 = vmatpush1.xpose.msra.mxu0 %v3782
        %3784 = vmatprep.subr.mxu0 0.0
        %v3785 = vand.u32 %v3203, 4294901760
        %3786 = vmatpush1.xpose.msra.mxu0 %v3785
        %3787 = vmatprep.subr.mxu0 0.0
        %v3788 = vand.u32 %v3204, 4294901760
        %3789 = vmatpush1.xpose.msra.mxu0 %v3788
        %3790 = vmatprep.subr.mxu0 0.0
        %v3791 = vand.u32 %v3205, 4294901760
        %3792 = vmatpush1.xpose.msra.mxu0 %v3791
        %3793 = vmatprep.subr.mxu0 0.0
        %v3794 = vand.u32 %v3206, 4294901760
        %3795 = vmatpush1.xpose.msra.mxu0 %v3794
        %3796 = vmatprep.subr.mxu0 0.0
        %v3797 = vand.u32 %v3207, 4294901760
        %3798 = vmatpush1.xpose.msra.mxu0 %v3797
        %3799 = vmatprep.subr.mxu0 0.0
        %v3800 = vand.u32 %v3208, 4294901760
        %3801 = vmatpush1.xpose.msra.mxu0 %v3800
        %3802 = vmatprep.subr.mxu0 0.0
        %v3803 = vand.u32 %v3209, 4294901760
        %3804 = vmatpush1.xpose.msra.mxu0 %v3803
        %3805 = vmatprep.subr.mxu0 0.0
        %v3806 = vand.u32 %v3210, 4294901760
        %3807 = vmatpush1.xpose.msra.mxu0 %v3806
        %3808 = vmatprep.subr.mxu0 0.0
        %v3809 = vand.u32 %v3211, 4294901760
        %3810 = vmatpush1.xpose.msra.mxu0 %v3809
        %3811 = vmatprep.subr.mxu0 0.0
        %v3812 = vand.u32 %v3212, 4294901760
        %3813 = vmatpush1.xpose.msra.mxu0 %v3812
        %3814 = vmatprep.subr.mxu0 0.0
        %v3815 = vand.u32 %v3213, 4294901760
        %3816 = vmatpush1.xpose.msra.mxu0 %v3815
        %3817 = vmatprep.subr.mxu0 0.0
        %v3818 = vand.u32 %v3214, 4294901760
        %3819 = vmatpush1.xpose.msra.mxu0 %v3818
        %3820 = vmatprep.subr.mxu0 0.0
        %3821 = vmatpush1.xpose.msra.mxu0 0.0
        %3822 = vmatprep.subr.mxu0 0.0
        %3823 = vmatpush1.xpose.msra.mxu0 0.0
        %3824 = vmatprep.subr.mxu0 0.0
        %3825 = vmatpush1.xpose.msra.mxu0 0.0
        %3826 = vmatprep.subr.mxu0 0.0
        %3827 = vmatpush1.xpose.msra.mxu0 0.0
        %3828 = vmatprep.subr.mxu0 0.0
        %3829 = vmatpush1.xpose.msra.mxu0 0.0
        %3830 = vmatprep.subr.mxu0 0.0
        %3831 = vmatpush1.xpose.msra.mxu0 0.0
        %3832 = vmatprep.subr.mxu0 0.0
        %3833 = vmatpush1.xpose.msra.mxu0 0.0
        %3834 = vmatprep.subr.mxu0 0.0
        %3835 = vmatpush1.xpose.msra.mxu0 0.0
        %3836 = vmatprep.subr.mxu0 0.0
        %3837 = vmatpush1.xpose.msra.mxu0 0.0
        %3838 = vmatprep.subr.mxu0 0.0
        %3839 = vmatpush1.xpose.msra.mxu0 0.0
        %3840 = vmatprep.subr.mxu0 0.0
        %3841 = vmatpush1.xpose.msra.mxu0 0.0
        %3842 = vmatprep.subr.mxu0 0.0
        %3843 = vmatpush1.xpose.msra.mxu0 0.0
        %3844 = vmatprep.subr.mxu0 0.0
        %3845 = vmatpush1.xpose.msra.mxu0 0.0
        %3846 = vmatprep.subr.mxu0 0.0
        %3847 = vmatpush1.xpose.msra.mxu0 0.0
        %3848 = vmatprep.subr.mxu0 0.0
        %3849 = vmatpush1.xpose.msra.mxu0 0.0
        %3850 = vmatprep.subr.mxu0 0.0
        %3851 = vmatpush1.xpose.msra.mxu0 0.0
        %3852 = vmatprep.mubr.f32.mxu0 0.0
        %v3853 = vand.u32 %v3217, 4294901760
        %3854 = vmatmul.mubr.f32.gmra.mrb[0].mxu0 %v3853
        %v3855 = vpop.f32.mrb[0].mxu0
        %v3856 = vadd.f32 %v3769, %v3855
        %v3857 = vpop.f32.mrb[0].mxu0
        %3858 = vdwg.mxu0
        %3859 = vst [vmem:[%s214] sm:$0x1] %v3856
        %s3860 = sand.u32 %s89, 1
        %s3861 = scalar_lea.sflag [#allocation6], %s3860
        %s3862 = sand.u32 %s89, 1
        %s3863 = smul.addr %s3862, 16
        %s3864 = scalar_lea.vmem [#allocation7], %s3863
        %s3865 = sand.u32 %s115, 1
        %s3866 = scalar_lea.sflag [#allocation9], %s3865
        %s3867 = sand.u32 %s115, 1
        %s3868 = scalar_lea.vmem [#allocation8], %s3867
        // Predicated region
        $region40: #{tpu_custom_call.1} parent=27 // pred_check
          %p3869 = pneg %p99
        $region41: #{tpu_custom_call.1} parent=27 // pred_check_branch
          %3871 = sbr.rel (%p3869) target = $region43
        $region42: #{tpu_custom_call.1} parent=27 // pred_region
          %s3873 = ssub.s32 256, 256
          %3874 = vsyncadd %s3861, %s3873
          %s3875 = smul.addr %s29, 2
          %s3876 = smul.addr %s3875, 128
          %s3877 = scalar_lea.hbm %s3, %s3876
          %s3878 = sshll.u32 %s3864, 4
          %s3879 = int_to_ptr.vmem [resolvable:$true] %s3878
          %3884 = dma.vmem_to_hbm [thread:$0]  %s3879, 256, %s3877, %s3861, 128, 128, 8
        $region43: #{tpu_custom_call.1} parent=27 // pred_fallthru
          _
        // Predicated region
        $region44: #{tpu_custom_call.1} parent=27 // pred_check
          %p3885 = pneg %p125
        $region45: #{tpu_custom_call.1} parent=27 // pred_check_branch
          %3887 = sbr.rel (%p3885) target = $region47
        $region46: #{tpu_custom_call.1} parent=27 // pred_region
          %s3889 = ssub.s32 16, 16
          %3890 = vsyncadd %s3866, %s3889
          %s3891 = smul.addr %s29, 16
          %s3892 = scalar_lea.hbm %s4, %s3891
          %s3894 = sshll.u32 %s3868, 4
          %s3895 = int_to_ptr.vmem [resolvable:$true] %s3894
          %3897 = dma.vmem_to_hbm [thread:$0]  %s3895, 16, %s3892, %s3866
        $region47: #{tpu_custom_call.1} parent=27 // pred_fallthru
          _
      $region28: #{tpu_custom_call.1} parent=5 // pred_fallthru
        _
      %p3898 = scmp.le.s32.totalorder 2, %s24
      // Predicated region
      $region48: #{tpu_custom_call.1} parent=5 // pred_check
        %p3899 = pneg %p3898
      $region49: #{tpu_custom_call.1} parent=5 // pred_check_branch
        %3901 = sbr.rel (%p3899) target = $region51
      $region50: #{tpu_custom_call.1} parent=5 // pred_region
        %s3902 = ssub.s32 %s24, 2
        // Predicated region
        $region52: #{tpu_custom_call.1} parent=50 // pred_check
          %p3903 = pneg %p105
        $region53: #{tpu_custom_call.1} parent=50 // pred_check_branch
          %3905 = sbr.rel (%p3903) target = $region55
        $region54: #{tpu_custom_call.1} parent=50 // pred_region
          %s3906 = sand.u32 %s90, 1
          %s3907 = scalar_lea.sflag [#allocation6], %s3906
          %s3908 = sand.u32 %s90, 1
          %s3909 = smul.addr %s3908, 16
          %s3910 = scalar_lea.vmem [#allocation7], %s3909
          %3911 = dma.done %s3907, 256
        $region55: #{tpu_custom_call.1} parent=50 // pred_fallthru
          _
        // Predicated region
        $region56: #{tpu_custom_call.1} parent=50 // pred_check
          %p3912 = pneg %p131
        $region57: #{tpu_custom_call.1} parent=50 // pred_check_branch
          %3914 = sbr.rel (%p3912) target = $region59
        $region58: #{tpu_custom_call.1} parent=50 // pred_region
          %s3915 = sand.u32 %s116, 1
          %s3916 = scalar_lea.sflag [#allocation9], %s3915
          %s3917 = sand.u32 %s116, 1
          %s3918 = scalar_lea.vmem [#allocation8], %s3917
          %3919 = dma.done %s3916, 16
        $region59: #{tpu_custom_call.1} parent=50 // pred_fallthru
          _
      $region51: #{tpu_custom_call.1} parent=5 // pred_fallthru
        _
    $region6: #{tpu_custom_call.1} parent=1 // loop_footer
      %s28 = sadd.s32 1, %s24
    $region7: #{tpu_custom_call.1} parent=1 // loop_footer_branch
      %23 = sbr.rel target = $region3
    $region8: #{tpu_custom_call.1} parent=1 // loop_exit
      _
    %3920 = vsyncpa [#allocation5], 1
    %s3921 = scalar_lea.sflag [#allocation5], 1
    %3922 = vsyncpa %s3921, 1
    %3923 = vsyncpa [#allocation6], 1
    %s3924 = scalar_lea.sflag [#allocation6], 1
    %3925 = vsyncpa %s3924, 1
    %3926 = vsyncpa [#allocation9], 1
    %s3927 = scalar_lea.sflag [#allocation9], 1
    %3928 = vsyncpa %s3927, 1

</llo_original>
